<compile_context>
chip_gen: v7x
topology: tpu7x:2x2x1
jax: 0.10.0
libtpu: 0.0.40
codegen_flags: <defaults>
</compile_context>

<pallas_src>
import jax
import jax.numpy as jnp
from jax import lax
from jax.experimental import pallas as pl
from jax.experimental.pallas import tpu as pltpu


def _round_up(x, m):
    return (x + m - 1) // m * m


# ---------------------------------------------------------------------------
# Tiled GEMM + bias:  out = x @ w + b
# ---------------------------------------------------------------------------
def matmul_bias_kernel(x_ref, w_ref, b_ref, o_ref, acc_ref):
    @pl.when(pl.program_id(2) == 0)
    def _():
        acc_ref[...] = jnp.zeros_like(acc_ref)

    acc_ref[...] += jnp.dot(x_ref[...], w_ref[...],
                            preferred_element_type=jnp.float32)

    @pl.when(pl.program_id(2) == pl.num_programs(2) - 1)
    def _():
        o_ref[...] = (acc_ref[...] + b_ref[...]).astype(o_ref.dtype)


def _pick_tn(Np):
    # Largest lane-dense tile that still leaves >= 2 tiles along N (megacore balance).
    for c in (512, 256, 128):
        if Np % c == 0 and Np // c >= 2:
            return c
    return 128


def run_matmul_bias(x, w, b, out_dtype=jnp.float32):
    """x: (M, K) bf16, w: (K, N) bf16, b: (1, N) f32 -> (M, N) out_dtype."""
    M, K = x.shape
    N = w.shape[1]

    # Tile selection keeps the footprint (2x double-buffered inputs + f32 acc + out tile)
    # well under the scoped-VMEM default on all generations (16 MiB v5e / 32 MiB v6e/v7x).
    if M <= 256:
        tm = _round_up(M, 8)
        Mp = tm
    else:
        tm = 256
        Mp = _round_up(M, 256)
    Np = _round_up(N, 128)
    tn = _pick_tn(Np)
    if K <= 512:
        tk, Kp = K, K
    else:
        tk = 512
        Kp = _round_up(K, 512)

    if (Mp, Kp) != (M, K):
        x = jnp.pad(x, ((0, Mp - M), (0, Kp - K)))
    if Kp != K or Np != N:
        w = jnp.pad(w, ((0, Kp - K), (0, Np - N)))
    if Np != N:
        b = jnp.pad(b, ((0, 0), (0, Np - N)))

    flops = 2 * Mp * Np * Kp
    bytes_accessed = int(Mp * Kp * x.dtype.itemsize + Kp * Np * w.dtype.itemsize
                         + Np * 4 + Mp * Np * jnp.dtype(out_dtype).itemsize)

    out = pl.pallas_call(
        matmul_bias_kernel,
        out_shape=jax.ShapeDtypeStruct((Mp, Np), out_dtype),
        grid=(Mp // tm, Np // tn, Kp // tk),
        in_specs=[
            pl.BlockSpec((tm, tk), lambda i, j, k: (i, k)),
            pl.BlockSpec((tk, tn), lambda i, j, k: (k, j)),
            pl.BlockSpec((1, tn), lambda i, j, k: (0, j)),
        ],
        out_specs=pl.BlockSpec((tm, tn), lambda i, j, k: (i, j)),
        scratch_shapes=[pltpu.VMEM((tm, tn), jnp.float32)],
        compiler_params=pltpu.CompilerParams(
            dimension_semantics=("parallel", "parallel", "arbitrary")),
        cost_estimate=pl.CostEstimate(flops=flops, transcendentals=0,
                                      bytes_accessed=bytes_accessed),
    )(x, w, b)
    if (Mp, Np) != (M, N):
        out = out[:M, :N]
    return out


# ---------------------------------------------------------------------------
# GRU recurrences: one pallas_call each, in-kernel time loop, gi streamed from
# HBM with manual double-buffered DMA.  Only the (B,Hp)x(Hp,3Hp) hidden matmul
# + gate math sits on the per-step serial path.
# ---------------------------------------------------------------------------
def _gru_step(gi, h, whh, bhn, Hp):
    # gi already contains b_ih (all gates) + b_hh for r/z; b_hn stays inside the r multiply
    # so that n = tanh(i_n + b_in + r * (h_n + b_hn)) matches nn.GRU exactly.
    gh = jnp.dot(h.astype(whh.dtype), whh, preferred_element_type=jnp.float32)
    r = jax.nn.sigmoid(gi[:, :Hp] + gh[:, :Hp])
    z = jax.nn.sigmoid(gi[:, Hp:2 * Hp] + gh[:, Hp:2 * Hp])
    n = jnp.tanh(gi[:, 2 * Hp:] + r * (gh[:, 2 * Hp:] + bhn))
    return (1.0 - z) * n + z * h


def encoder_recurrence_kernel(gi_hbm, whh_ref, bhn_ref, hout_ref, gi_buf, in_sem):
    T, Bp, _ = gi_hbm.shape
    Hp = hout_ref.shape[1]
    whh = whh_ref[...]          # (Hp, 3Hp) bf16, loaded once
    bhn = bhn_ref[...]          # (1, Hp) f32

    # Prime the first gi timestep.
    pltpu.make_async_copy(gi_hbm.at[0], gi_buf.at[0], in_sem.at[0]).start()

    def step(t, h):
        slot = lax.rem(t, 2)
        pltpu.make_async_copy(gi_hbm.at[t], gi_buf.at[slot], in_sem.at[slot]).wait()

        @pl.when(t + 1 < T)
        def _():
            pltpu.make_async_copy(gi_hbm.at[t + 1], gi_buf.at[1 - slot],
                                  in_sem.at[1 - slot]).start()

        gi = gi_buf[slot].astype(jnp.float32)
        return _gru_step(gi, h, whh, bhn, Hp)

    unroll = True if T <= 32 else 8
    h_final = lax.fori_loop(0, T, step, jnp.zeros((Bp, Hp), jnp.float32),
                            unroll=unroll)
    hout_ref[...] = h_final


def decoder_recurrence_kernel(gi_hbm, h0_ref, whh_ref, bhn_ref, hseq_hbm,
                              gi_buf, h_buf, in_sem, out_sem):
    T, Bp, _ = gi_hbm.shape
    Hp = h0_ref.shape[1]
    whh = whh_ref[...]
    bhn = bhn_ref[...]

    pltpu.make_async_copy(gi_hbm.at[0], gi_buf.at[0], in_sem.at[0]).start()

    def step(t, h):
        slot = lax.rem(t, 2)
        pltpu.make_async_copy(gi_hbm.at[t], gi_buf.at[slot], in_sem.at[slot]).wait()

        @pl.when(t + 1 < T)
        def _():
            pltpu.make_async_copy(gi_hbm.at[t + 1], gi_buf.at[1 - slot],
                                  in_sem.at[1 - slot]).start()

        gi = gi_buf[slot].astype(jnp.float32)
        h_new = _gru_step(gi, h, whh, bhn, Hp)

        # h_buf[slot] was handed to an outbound DMA two steps ago; wait before reuse.
        @pl.when(t >= 2)
        def _():
            pltpu.make_async_copy(h_buf.at[slot], hseq_hbm.at[t],
                                  out_sem.at[slot]).wait()

        h_buf[slot] = h_new.astype(h_buf.dtype)
        pltpu.make_async_copy(h_buf.at[slot], hseq_hbm.at[t], out_sem.at[slot]).start()
        return h_new

    unroll = True if T <= 32 else 8
    lax.fori_loop(0, T, step, h0_ref[...].astype(jnp.float32), unroll=unroll)

    # Drain the (at most two) still-in-flight output DMAs.
    if T >= 2:
        s = (T - 2) % 2
        pltpu.make_async_copy(h_buf.at[s], hseq_hbm.at[0], out_sem.at[s]).wait()
    s = (T - 1) % 2
    pltpu.make_async_copy(h_buf.at[s], hseq_hbm.at[0], out_sem.at[s]).wait()


def run_encoder(gi, whh, bhn):
    T, Bp, H3 = gi.shape
    Hp = whh.shape[0]
    flops = T * (2 * Bp * Hp * H3 + 12 * Bp * Hp)
    transc = T * 3 * Bp * Hp
    bytes_acc = int(gi.size * gi.dtype.itemsize + whh.size * 2 + Bp * Hp * 4)
    return pl.pallas_call(
        encoder_recurrence_kernel,
        out_shape=jax.ShapeDtypeStruct((Bp, Hp), jnp.float32),
        in_specs=[
            pl.BlockSpec(memory_space=pl.ANY),                     # gi stays in HBM
            pl.BlockSpec(memory_space=pltpu.MemorySpace.VMEM),     # W_hh
            pl.BlockSpec(memory_space=pltpu.MemorySpace.VMEM),     # b_hn
        ],
        out_specs=pl.BlockSpec(memory_space=pltpu.MemorySpace.VMEM),
        scratch_shapes=[
            pltpu.VMEM((2, Bp, H3), gi.dtype),                     # gi double-buffer
            pltpu.SemaphoreType.DMA((2,)),
        ],
        cost_estimate=pl.CostEstimate(flops=flops, transcendentals=transc,
                                      bytes_accessed=bytes_acc),
    )(gi, whh, bhn)


def run_decoder(gi, h0, whh, bhn):
    T, Bp, H3 = gi.shape
    Hp = h0.shape[1]
    flops = T * (2 * Bp * Hp * H3 + 12 * Bp * Hp)
    transc = T * 3 * Bp * Hp
    bytes_acc = int(gi.size * gi.dtype.itemsize + whh.size * 2
                    + T * Bp * Hp * 2 + Bp * Hp * 4)
    return pl.pallas_call(
        decoder_recurrence_kernel,
        out_shape=jax.ShapeDtypeStruct((T, Bp, Hp), jnp.bfloat16),
        in_specs=[
            pl.BlockSpec(memory_space=pl.ANY),                     # gi stays in HBM
            pl.BlockSpec(memory_space=pltpu.MemorySpace.VMEM),     # h0
            pl.BlockSpec(memory_space=pltpu.MemorySpace.VMEM),     # W_hh
            pl.BlockSpec(memory_space=pltpu.MemorySpace.VMEM),     # b_hn
        ],
        out_specs=pl.BlockSpec(memory_space=pl.ANY),               # hseq written via DMA
        scratch_shapes=[
            pltpu.VMEM((2, Bp, H3), gi.dtype),                     # gi double-buffer
            pltpu.VMEM((2, Bp, Hp), jnp.bfloat16),                 # hseq staging buffer
            pltpu.SemaphoreType.DMA((2,)),
            pltpu.SemaphoreType.DMA((2,)),
        ],
        cost_estimate=pl.CostEstimate(flops=flops, transcendentals=transc,
                                      bytes_accessed=bytes_acc),
    )(gi, h0, whh, bhn)


# ---------------------------------------------------------------------------
# Forward pass
# ---------------------------------------------------------------------------
def _pad_gate_cols(w, H, Hp):
    """(..., 3H) -> (..., 3Hp): pad each of the r/z/n gate blocks from H to Hp lanes."""
    if Hp == H:
        return w
    pad = [(0, 0)] * (w.ndim - 1) + [(0, Hp - H)]
    return jnp.concatenate([jnp.pad(w[..., i * H:(i + 1) * H], pad) for i in range(3)],
                           axis=-1)


def seq2seq_forward(source, target, params):
    """source, target: int32 (T, B) token ids. Returns decoder logits (T_tgt, B, V) f32."""
    H = params["enc_whh"].shape[0]
    V = params["dec_wout"].shape[1]
    Hp = _round_up(H, 128)
    Vp = _round_up(V, 128)

    # ---- lane-dense (multiple-of-128) parameter padding; padded cols stay inert ----
    enc_wih = _pad_gate_cols(params["enc_wih"], H, Hp).astype(jnp.bfloat16)     # (E, 3Hp)
    dec_wih = _pad_gate_cols(params["dec_wih"], H, Hp).astype(jnp.bfloat16)
    enc_whh = jnp.pad(_pad_gate_cols(params["enc_whh"], H, Hp),
                      ((0, Hp - H), (0, 0))).astype(jnp.bfloat16)               # (Hp, 3Hp)
    dec_whh = jnp.pad(_pad_gate_cols(params["dec_whh"], H, Hp),
                      ((0, Hp - H), (0, 0))).astype(jnp.bfloat16)

    def fold_bias(bih, bhh):
        # Fold the r/z hidden-side biases into the parallel GEMM bias; keep only b_hn on
        # the serial path (used inside r * (gh_n + b_hn)) -> exact nn.GRU semantics.
        gemm_b = bih + jnp.concatenate(
            [bhh[:, :2 * H], jnp.zeros((1, H), bhh.dtype)], axis=1)
        return (_pad_gate_cols(gemm_b, H, Hp).astype(jnp.float32),
                jnp.pad(bhh[:, 2 * H:], ((0, 0), (0, Hp - H))).astype(jnp.float32))

    enc_bias, enc_bhn = fold_bias(params["enc_bih"], params["enc_bhh"])
    dec_bias, dec_bhn = fold_bias(params["dec_bih"], params["dec_bhh"])

    wout = jnp.pad(params["dec_wout"], ((0, Hp - H), (0, Vp - V))).astype(jnp.bfloat16)
    bout = jnp.pad(params["dec_bout"], ((0, 0), (0, Vp - V))).astype(jnp.float32)

    # ---- embedding lookups stay plain-JAX glue (gather) ----
    src_emb = jnp.take(params["enc_emb"], source, axis=0).astype(jnp.bfloat16)  # (Ts,B,E)
    tgt_emb = jnp.take(params["dec_emb"], target, axis=0).astype(jnp.bfloat16)  # (Tt,B,E)
    T_src, B, E = src_emb.shape
    T_tgt = tgt_emb.shape[0]

    Bp = _round_up(B, 8)
    if Bp != B:
        pad = ((0, 0), (0, Bp - B), (0, 0))
        src_emb = jnp.pad(src_emb, pad)
        tgt_emb = jnp.pad(tgt_emb, pad)

    # ---- parallel x-side projections for every timestep (bf16 out halves HBM traffic) ----
    enc_gi = run_matmul_bias(src_emb.reshape(T_src * Bp, E), enc_wih, enc_bias,
                             out_dtype=jnp.bfloat16).reshape(T_src, Bp, 3 * Hp)
    dec_gi = run_matmul_bias(tgt_emb.reshape(T_tgt * Bp, E), dec_wih, dec_bias,
                             out_dtype=jnp.bfloat16).reshape(T_tgt, Bp, 3 * Hp)

    # ---- serial recurrences (gi / hseq streamed HBM<->VMEM one step at a time) ----
    h_enc = run_encoder(enc_gi, enc_whh, enc_bhn)                    # (Bp, Hp) f32
    hseq = run_decoder(dec_gi, h_enc, dec_whh, dec_bhn)              # (Tt, Bp, Hp) bf16

    # ---- parallel vocab projection over all decoder timesteps ----
    logits = run_matmul_bias(hseq.reshape(T_tgt * Bp, Hp), wout, bout,
                             out_dtype=jnp.float32).reshape(T_tgt, Bp, Vp)
    return logits[:, :B, :V]


# ---------------------------------------------------------------------------
# Pure-JAX f32 reference (PyTorch nn.GRU semantics) for a numerical sanity check
# ---------------------------------------------------------------------------
def _gru_cell_ref(x, h, wih, whh, bih, bhh):
    H = h.shape[-1]
    gi = x @ wih + bih
    gh = h @ whh + bhh
    r = jax.nn.sigmoid(gi[:, :H] + gh[:, :H])
    z = jax.nn.sigmoid(gi[:, H:2 * H] + gh[:, H:2 * H])
    n = jnp.tanh(gi[:, 2 * H:] + r * gh[:, 2 * H:])
    return (1.0 - z) * n + z * h


def seq2seq_reference(source, target, params):
    src_emb = jnp.take(params["enc_emb"], source, axis=0)
    tgt_emb = jnp.take(params["dec_emb"], target, axis=0)
    T_src, B, _ = src_emb.shape
    T_tgt = tgt_emb.shape[0]
    H = params["enc_whh"].shape[0]
    h = jnp.zeros((B, H), jnp.float32)
    for t in range(T_src):
        h = _gru_cell_ref(src_emb[t], h, params["enc_wih"], params["enc_whh"],
                          params["enc_bih"], params["enc_bhh"])
    outs = []
    for t in range(T_tgt):
        h = _gru_cell_ref(tgt_emb[t], h, params["dec_wih"], params["dec_whh"],
                          params["dec_bih"], params["dec_bhh"])
        outs.append(h @ params["dec_wout"] + params["dec_bout"])
    return jnp.stack(outs, axis=0)


# ---------------------------------------------------------------------------
# Deterministic parameter init (synthetic; shapes implied by the module)
# ---------------------------------------------------------------------------
def init_params(key, vocab_src, vocab_tgt, E, H):
    keys = jax.random.split(key, 12)
    s = 0.1
    return {
        "enc_emb":  s * jax.random.normal(keys[0], (vocab_src, E), jnp.float32),
        "enc_wih":  s * jax.random.normal(keys[1], (E, 3 * H), jnp.float32),
        "enc_whh":  s * jax.random.normal(keys[2], (H, 3 * H), jnp.float32),
        "enc_bih":  s * jax.random.normal(keys[3], (1, 3 * H), jnp.float32),
        "enc_bhh":  s * jax.random.normal(keys[4], (1, 3 * H), jnp.float32),
        "dec_emb":  s * jax.random.normal(keys[5], (vocab_tgt, E), jnp.float32),
        "dec_wih":  s * jax.random.normal(keys[6], (E, 3 * H), jnp.float32),
        "dec_whh":  s * jax.random.normal(keys[7], (H, 3 * H), jnp.float32),
        "dec_bih":  s * jax.random.normal(keys[8], (1, 3 * H), jnp.float32),
        "dec_bhh":  s * jax.random.normal(keys[9], (1, 3 * H), jnp.float32),
        "dec_wout": s * jax.random.normal(keys[10], (H, vocab_tgt), jnp.float32),
        "dec_bout": s * jax.random.normal(keys[11], (1, vocab_tgt), jnp.float32),
    }


if __name__ == "__main__":
    # Small shapes: batch=2, src/tgt seq=8, embed=32, hidden=32, vocab=128.
    T_SRC, T_TGT, B, E, H = 8, 8, 2, 32, 32
    V_SRC, V_TGT = 128, 128

    key = jax.random.PRNGKey(0)
    k_par, k_src, k_tgt = jax.random.split(key, 3)
    params = init_params(k_par, V_SRC, V_TGT, E, H)

    source = jax.random.randint(k_src, (T_SRC, B), 0, V_SRC, dtype=jnp.int32)
    target = jax.random.randint(k_tgt, (T_TGT, B), 0, V_TGT, dtype=jnp.int32)

    fwd = jax.jit(seq2seq_forward)
    outputs = fwd(source, target, params)
    jax.block_until_ready(outputs)

    assert outputs.shape == (T_TGT, B, V_TGT)
    assert outputs.dtype == jnp.float32

    # Numerical sanity check vs pure-JAX f32 reference (bf16 MXU path -> loose tolerance).
    ref = seq2seq_reference(source, target, params)
    err = float(jnp.max(jnp.abs(outputs - ref)))
    assert err < 5e-2, f"max abs diff vs reference too large: {err}"

    print("KERNEL_OK")
</pallas_src>

<mosaic_0001>
module attributes {stable_mosaic.version = 11 : i64} {
  func.func @matmul_bias_kernel(%arg0: i32, %arg1: i32, %arg2: i32, %arg3: memref<64x32xbf16, #tpu.memory_space<vmem>>, %arg4: memref<32x128xbf16, #tpu.memory_space<vmem>>, %arg5: memref<1x128xf32, #tpu.memory_space<vmem>>, %arg6: memref<64x128xbf16, #tpu.memory_space<vmem>>, %arg7: memref<64x128xf32, #tpu.memory_space<vmem>>) attributes {dimension_semantics = [#tpu.dimension_semantics<parallel>, #tpu.dimension_semantics<parallel>, #tpu.dimension_semantics<arbitrary>], iteration_bounds = array<i64: 1, 3, 1>, scalar_prefetch = 0 : i64, scratch_operands = 1 : i64, tpu.core_type = #tpu.core_type<tc>, window_params = [{transform_indices = @transform_0, window_bounds = array<i64: 64, 32>}, {transform_indices = @transform_1, window_bounds = array<i64: 32, 128>}, {transform_indices = @transform_2, window_bounds = array<i64: 1, 128>}, {transform_indices = @transform_3, window_bounds = array<i64: 64, 128>}]} {
    %c0_i32 = arith.constant 0 : i32
    %0 = arith.cmpi eq, %arg2, %c0_i32 : i32
    %1 = arith.extui %0 : i1 to i32
    %c0_i32_0 = arith.constant 0 : i32
    %2 = arith.cmpi ne, %1, %c0_i32_0 : i32
    scf.if %2 {
      %cst_10 = arith.constant 0.000000e+00 : f32
      %12 = vector.broadcast %cst_10 : f32 to vector<64x128xf32>
      %c0_11 = arith.constant 0 : index
      %c0_12 = arith.constant 0 : index
      %13 = vector.load %arg7[%c0_11, %c0_12] : memref<64x128xf32, #tpu.memory_space<vmem>>, vector<64x128xf32>
      tpu.vector_store %arg7[%c0_11, %c0_12], %12 {strides = array<i32>} : memref<64x128xf32, #tpu.memory_space<vmem>>, vector<64x128xf32>,
    } else {
    }
    %c0 = arith.constant 0 : index
    %c0_1 = arith.constant 0 : index
    %3 = vector.load %arg7[%c0, %c0_1] : memref<64x128xf32, #tpu.memory_space<vmem>>, vector<64x128xf32>
    %c0_2 = arith.constant 0 : index
    %c0_3 = arith.constant 0 : index
    %4 = vector.load %arg3[%c0_2, %c0_3] : memref<64x32xbf16, #tpu.memory_space<vmem>>, vector<64x32xbf16>
    %c0_4 = arith.constant 0 : index
    %c0_5 = arith.constant 0 : index
    %5 = vector.load %arg4[%c0_4, %c0_5] : memref<32x128xbf16, #tpu.memory_space<vmem>>, vector<32x128xbf16>
    %cst = arith.constant dense<0.000000e+00> : vector<64x128xf32>
    %6 = tpu.matmul %4, %5, %cst {dimension_numbers = #tpu.dot_dimension_numbers<[1], [0], [0], [1], [0, 0, 1, 1], [], []>} : vector<64x32xbf16>, vector<32x128xbf16>, vector<64x128xf32> -> vector<64x128xf32>
    %7 = arith.addf %3, %6 : vector<64x128xf32>
    %c0_6 = arith.constant 0 : index
    %c0_7 = arith.constant 0 : index
    %8 = vector.load %arg7[%c0_6, %c0_7] : memref<64x128xf32, #tpu.memory_space<vmem>>, vector<64x128xf32>
    tpu.vector_store %arg7[%c0_6, %c0_7], %7 {strides = array<i32>} : memref<64x128xf32, #tpu.memory_space<vmem>>, vector<64x128xf32>,
    %c0_i32_8 = arith.constant 0 : i32
    %9 = arith.cmpi eq, %arg2, %c0_i32_8 : i32
    %10 = arith.extui %9 : i1 to i32
    %c0_i32_9 = arith.constant 0 : i32
    %11 = arith.cmpi ne, %10, %c0_i32_9 : i32
    scf.if %11 {
      %c0_10 = arith.constant 0 : index
      %c0_11 = arith.constant 0 : index
      %12 = vector.load %arg7[%c0_10, %c0_11] : memref<64x128xf32, #tpu.memory_space<vmem>>, vector<64x128xf32>
      %c0_12 = arith.constant 0 : index
      %c0_13 = arith.constant 0 : index
      %13 = vector.load %arg5[%c0_12, %c0_13] : memref<1x128xf32, #tpu.memory_space<vmem>>, vector<1x128xf32>
      %14 = vector.broadcast %13 : vector<1x128xf32> to vector<64x128xf32>
      %15 = arith.addf %12, %14 : vector<64x128xf32>
      %16 = arith.truncf %15 : vector<64x128xf32> to vector<64x128xbf16>
      %c0_14 = arith.constant 0 : index
      %c0_15 = arith.constant 0 : index
      %17 = vector.load %arg6[%c0_14, %c0_15] : memref<64x128xbf16, #tpu.memory_space<vmem>>, vector<64x128xbf16>
      tpu.vector_store %arg6[%c0_14, %c0_15], %16 {strides = array<i32>} : memref<64x128xbf16, #tpu.memory_space<vmem>>, vector<64x128xbf16>,
    } else {
    }
    return
  }
  func.func @transform_0(%arg0: i32, %arg1: i32, %arg2: i32) -> (i32, i32) {
    %c0_i32 = arith.constant 0 : i32
    return %arg0, %arg2 : i32, i32
  }
  func.func @transform_1(%arg0: i32, %arg1: i32, %arg2: i32) -> (i32, i32) {
    %c0_i32 = arith.constant 0 : i32
    return %arg2, %arg1 : i32, i32
  }
  func.func @transform_2(%arg0: i32, %arg1: i32, %arg2: i32) -> (i32, i32) {
    %c0_i32 = arith.constant 0 : i32
    %c0_i32_0 = arith.constant 0 : i32
    return %c0_i32, %arg1 : i32, i32
  }
  func.func @transform_3(%arg0: i32, %arg1: i32, %arg2: i32) -> (i32, i32) {
    %c0_i32 = arith.constant 0 : i32
    return %arg0, %arg1 : i32, i32
  }
}

module attributes {stable_mosaic.version = 11 : i64} {
  func.func @matmul_bias_kernel(%arg0: i32, %arg1: i32, %arg2: i32, %arg3: memref<64x128xbf16, #tpu.memory_space<vmem>>, %arg4: memref<128x128xbf16, #tpu.memory_space<vmem>>, %arg5: memref<1x128xf32, #tpu.memory_space<vmem>>, %arg6: memref<64x128xf32, #tpu.memory_space<vmem>>, %arg7: memref<64x128xf32, #tpu.memory_space<vmem>>) attributes {dimension_semantics = [#tpu.dimension_semantics<parallel>, #tpu.dimension_semantics<parallel>, #tpu.dimension_semantics<arbitrary>], iteration_bounds = array<i64: 1, 1, 1>, scalar_prefetch = 0 : i64, scratch_operands = 1 : i64, tpu.core_type = #tpu.core_type<tc>, window_params = [{transform_indices = @transform_0, window_bounds = array<i64: 64, 128>}, {transform_indices = @transform_1, window_bounds = array<i64: 128, 128>}, {transform_indices = @transform_2, window_bounds = array<i64: 1, 128>}, {transform_indices = @transform_3, window_bounds = array<i64: 64, 128>}]} {
    %c0_i32 = arith.constant 0 : i32
    %0 = arith.cmpi eq, %arg2, %c0_i32 : i32
    %1 = arith.extui %0 : i1 to i32
    %c0_i32_0 = arith.constant 0 : i32
    %2 = arith.cmpi ne, %1, %c0_i32_0 : i32
    scf.if %2 {
      %cst_10 = arith.constant 0.000000e+00 : f32
      %12 = vector.broadcast %cst_10 : f32 to vector<64x128xf32>
      %c0_11 = arith.constant 0 : index
      %c0_12 = arith.constant 0 : index
      %13 = vector.load %arg7[%c0_11, %c0_12] : memref<64x128xf32, #tpu.memory_space<vmem>>, vector<64x128xf32>
      tpu.vector_store %arg7[%c0_11, %c0_12], %12 {strides = array<i32>} : memref<64x128xf32, #tpu.memory_space<vmem>>, vector<64x128xf32>,
    } else {
    }
    %c0 = arith.constant 0 : index
    %c0_1 = arith.constant 0 : index
    %3 = vector.load %arg7[%c0, %c0_1] : memref<64x128xf32, #tpu.memory_space<vmem>>, vector<64x128xf32>
    %c0_2 = arith.constant 0 : index
    %c0_3 = arith.constant 0 : index
    %4 = vector.load %arg3[%c0_2, %c0_3] : memref<64x128xbf16, #tpu.memory_space<vmem>>, vector<64x128xbf16>
    %c0_4 = arith.constant 0 : index
    %c0_5 = arith.constant 0 : index
    %5 = vector.load %arg4[%c0_4, %c0_5] : memref<128x128xbf16, #tpu.memory_space<vmem>>, vector<128x128xbf16>
    %cst = arith.constant dense<0.000000e+00> : vector<64x128xf32>
    %6 = tpu.matmul %4, %5, %cst {dimension_numbers = #tpu.dot_dimension_numbers<[1], [0], [0], [1], [0, 0, 1, 1], [], []>} : vector<64x128xbf16>, vector<128x128xbf16>, vector<64x128xf32> -> vector<64x128xf32>
    %7 = arith.addf %3, %6 : vector<64x128xf32>
    %c0_6 = arith.constant 0 : index
    %c0_7 = arith.constant 0 : index
    %8 = vector.load %arg7[%c0_6, %c0_7] : memref<64x128xf32, #tpu.memory_space<vmem>>, vector<64x128xf32>
    tpu.vector_store %arg7[%c0_6, %c0_7], %7 {strides = array<i32>} : memref<64x128xf32, #tpu.memory_space<vmem>>, vector<64x128xf32>,
    %c0_i32_8 = arith.constant 0 : i32
    %9 = arith.cmpi eq, %arg2, %c0_i32_8 : i32
    %10 = arith.extui %9 : i1 to i32
    %c0_i32_9 = arith.constant 0 : i32
    %11 = arith.cmpi ne, %10, %c0_i32_9 : i32
    scf.if %11 {
      %c0_10 = arith.constant 0 : index
      %c0_11 = arith.constant 0 : index
      %12 = vector.load %arg7[%c0_10, %c0_11] : memref<64x128xf32, #tpu.memory_space<vmem>>, vector<64x128xf32>
      %c0_12 = arith.constant 0 : index
      %c0_13 = arith.constant 0 : index
      %13 = vector.load %arg5[%c0_12, %c0_13] : memref<1x128xf32, #tpu.memory_space<vmem>>, vector<1x128xf32>
      %14 = vector.broadcast %13 : vector<1x128xf32> to vector<64x128xf32>
      %15 = arith.addf %12, %14 : vector<64x128xf32>
      %c0_14 = arith.constant 0 : index
      %c0_15 = arith.constant 0 : index
      %16 = vector.load %arg6[%c0_14, %c0_15] : memref<64x128xf32, #tpu.memory_space<vmem>>, vector<64x128xf32>
      tpu.vector_store %arg6[%c0_14, %c0_15], %15 {strides = array<i32>} : memref<64x128xf32, #tpu.memory_space<vmem>>, vector<64x128xf32>,
    } else {
    }
    return
  }
  func.func @transform_0(%arg0: i32, %arg1: i32, %arg2: i32) -> (i32, i32) {
    %c0_i32 = arith.constant 0 : i32
    return %arg0, %arg2 : i32, i32
  }
  func.func @transform_1(%arg0: i32, %arg1: i32, %arg2: i32) -> (i32, i32) {
    %c0_i32 = arith.constant 0 : i32
    return %arg2, %arg1 : i32, i32
  }
  func.func @transform_2(%arg0: i32, %arg1: i32, %arg2: i32) -> (i32, i32) {
    %c0_i32 = arith.constant 0 : i32
    %c0_i32_0 = arith.constant 0 : i32
    return %c0_i32, %arg1 : i32, i32
  }
  func.func @transform_3(%arg0: i32, %arg1: i32, %arg2: i32) -> (i32, i32) {
    %c0_i32 = arith.constant 0 : i32
    return %arg0, %arg1 : i32, i32
  }
}

module attributes {stable_mosaic.version = 11 : i64} {
  func.func @encoder_recurrence_kernel(%arg0: memref<8x8x384xbf16, #tpu.memory_space<any>>, %arg1: memref<128x384xbf16, #tpu.memory_space<vmem>>, %arg2: memref<1x128xf32, #tpu.memory_space<vmem>>, %arg3: memref<8x128xf32, #tpu.memory_space<vmem>>, %arg4: memref<2x8x384xbf16, #tpu.memory_space<vmem>>, %arg5: memref<2x!tpu.dma_semaphore, #tpu.memory_space<semaphore_mem>>) attributes {dimension_semantics = [], scalar_prefetch = 0 : i64, scratch_operands = 2 : i64, tpu.core_type = #tpu.core_type<tc>} {
    %c0 = arith.constant 0 : index
    %c0_0 = arith.constant 0 : index
    %0 = vector.load %arg1[%c0, %c0_0] : memref<128x384xbf16, #tpu.memory_space<vmem>>, vector<128x384xbf16>
    %c0_1 = arith.constant 0 : index
    %c0_2 = arith.constant 0 : index
    %1 = vector.load %arg2[%c0_1, %c0_2] : memref<1x128xf32, #tpu.memory_space<vmem>>, vector<1x128xf32>
    %c0_i32 = arith.constant 0 : i32
    %c0_i32_3 = arith.constant 0 : i32
    %c0_i32_4 = arith.constant 0 : i32
    %c0_i32_5 = arith.constant 0 : i32
    %c0_i32_6 = arith.constant 0 : i32
    %2 = tpu.memref_slice %arg0[%c0_i32, %c0_i32_5, %c0_i32_6] : memref<8x8x384xbf16, #tpu.memory_space<any>> -> memref<1x8x384xbf16, #tpu.memory_space<any>>
    %3 = tpu.memref_squeeze %2 : memref<1x8x384xbf16, #tpu.memory_space<any>> -> memref<8x384xbf16, #tpu.memory_space<any>>
    %c0_i32_7 = arith.constant 0 : i32
    %c0_i32_8 = arith.constant 0 : i32
    %4 = tpu.memref_slice %arg4[%c0_i32_3, %c0_i32_7, %c0_i32_8] : memref<2x8x384xbf16, #tpu.memory_space<vmem>> -> memref<1x8x384xbf16, #tpu.memory_space<vmem>>
    %5 = tpu.memref_squeeze %4 : memref<1x8x384xbf16, #tpu.memory_space<vmem>> -> memref<8x384xbf16, #tpu.memory_space<vmem>>
    %6 = tpu.memref_slice %arg5[%c0_i32_4] : memref<2x!tpu.dma_semaphore, #tpu.memory_space<semaphore_mem>> -> memref<1x!tpu.dma_semaphore, #tpu.memory_space<semaphore_mem>>
    %7 = tpu.memref_squeeze %6 : memref<1x!tpu.dma_semaphore, #tpu.memory_space<semaphore_mem>> -> memref<!tpu.dma_semaphore, #tpu.memory_space<semaphore_mem>>
    tpu.enqueue_dma source(%3 : memref<8x384xbf16, #tpu.memory_space<any>>) target(%5 : memref<8x384xbf16, #tpu.memory_space<vmem>>) target_semaphore(%7 : memref<!tpu.dma_semaphore, #tpu.memory_space<semaphore_mem>>)
    %cst = arith.constant 0.000000e+00 : f32
    %8 = vector.broadcast %cst : f32 to vector<8x128xf32>
    %c0_i32_9 = arith.constant 0 : i32
    %c2_i32 = arith.constant 2 : i32
    %9 = arith.remsi %c0_i32_9, %c2_i32 : i32
    %c0_i32_10 = arith.constant 0 : i32
    %c0_i32_11 = arith.constant 0 : i32
    %10 = tpu.memref_slice %arg0[%c0_i32_9, %c0_i32_10, %c0_i32_11] : memref<8x8x384xbf16, #tpu.memory_space<any>> -> memref<1x8x384xbf16, #tpu.memory_space<any>>
    %11 = tpu.memref_squeeze %10 : memref<1x8x384xbf16, #tpu.memory_space<any>> -> memref<8x384xbf16, #tpu.memory_space<any>>
    %c0_i32_12 = arith.constant 0 : i32
    %c0_i32_13 = arith.constant 0 : i32
    %12 = tpu.memref_slice %arg4[%9, %c0_i32_12, %c0_i32_13] : memref<2x8x384xbf16, #tpu.memory_space<vmem>> -> memref<1x8x384xbf16, #tpu.memory_space<vmem>>
    %13 = tpu.memref_squeeze %12 : memref<1x8x384xbf16, #tpu.memory_space<vmem>> -> memref<8x384xbf16, #tpu.memory_space<vmem>>
    %14 = tpu.memref_slice %arg5[%9] : memref<2x!tpu.dma_semaphore, #tpu.memory_space<semaphore_mem>> -> memref<1x!tpu.dma_semaphore, #tpu.memory_space<semaphore_mem>>
    %15 = tpu.memref_squeeze %14 : memref<1x!tpu.dma_semaphore, #tpu.memory_space<semaphore_mem>> -> memref<!tpu.dma_semaphore, #tpu.memory_space<semaphore_mem>>
    tpu.wait_dma2 semaphore(%15 : memref<!tpu.dma_semaphore, #tpu.memory_space<semaphore_mem>>) src(%11 : memref<8x384xbf16, #tpu.memory_space<any>>) dst(%13 : memref<8x384xbf16, #tpu.memory_space<vmem>>)
    %c1_i32 = arith.constant 1 : i32
    %16 = arith.addi %c0_i32_9, %c1_i32 : i32
    %c8_i32 = arith.constant 8 : i32
    %17 = arith.cmpi slt, %16, %c8_i32 : i32
    %18 = arith.extui %17 : i1 to i32
    %c0_i32_14 = arith.constant 0 : i32
    %19 = arith.cmpi ne, %18, %c0_i32_14 : i32
    scf.if %19 {
      %c1_i32_124 = arith.constant 1 : i32
      %370 = arith.addi %c0_i32_9, %c1_i32_124 : i32
      %c1_i32_125 = arith.constant 1 : i32
      %371 = arith.subi %c1_i32_125, %9 : i32
      %c1_i32_126 = arith.constant 1 : i32
      %372 = arith.subi %c1_i32_126, %9 : i32
      %c0_i32_127 = arith.constant 0 : i32
      %c0_i32_128 = arith.constant 0 : i32
      %373 = tpu.memref_slice %arg0[%370, %c0_i32_127, %c0_i32_128] : memref<8x8x384xbf16, #tpu.memory_space<any>> -> memref<1x8x384xbf16, #tpu.memory_space<any>>
      %374 = tpu.memref_squeeze %373 : memref<1x8x384xbf16, #tpu.memory_space<any>> -> memref<8x384xbf16, #tpu.memory_space<any>>
      %c0_i32_129 = arith.constant 0 : i32
      %c0_i32_130 = arith.constant 0 : i32
      %375 = tpu.memref_slice %arg4[%371, %c0_i32_129, %c0_i32_130] : memref<2x8x384xbf16, #tpu.memory_space<vmem>> -> memref<1x8x384xbf16, #tpu.memory_space<vmem>>
      %376 = tpu.memref_squeeze %375 : memref<1x8x384xbf16, #tpu.memory_space<vmem>> -> memref<8x384xbf16, #tpu.memory_space<vmem>>
      %377 = tpu.memref_slice %arg5[%372] : memref<2x!tpu.dma_semaphore, #tpu.memory_space<semaphore_mem>> -> memref<1x!tpu.dma_semaphore, #tpu.memory_space<semaphore_mem>>
      %378 = tpu.memref_squeeze %377 : memref<1x!tpu.dma_semaphore, #tpu.memory_space<semaphore_mem>> -> memref<!tpu.dma_semaphore, #tpu.memory_space<semaphore_mem>>
      tpu.enqueue_dma source(%374 : memref<8x384xbf16, #tpu.memory_space<any>>) target(%376 : memref<8x384xbf16, #tpu.memory_space<vmem>>) target_semaphore(%378 : memref<!tpu.dma_semaphore, #tpu.memory_space<semaphore_mem>>)
    } else {
    }
    %20 = arith.index_cast %9 : i32 to index
    %c0_15 = arith.constant 0 : index
    %c0_16 = arith.constant 0 : index
    %21 = vector.load %arg4[%20, %c0_15, %c0_16] : memref<2x8x384xbf16, #tpu.memory_space<vmem>>, vector<1x8x384xbf16>
    %22 = vector.shape_cast %21 : vector<1x8x384xbf16> to vector<8x384xbf16>
    %23 = arith.extf %22 : vector<8x384xbf16> to vector<8x384xf32>
    %24 = arith.truncf %8 : vector<8x128xf32> to vector<8x128xbf16>
    %cst_17 = arith.constant dense<0.000000e+00> : vector<8x384xf32>
    %25 = tpu.matmul %24, %0, %cst_17 {dimension_numbers = #tpu.dot_dimension_numbers<[1], [0], [0], [1], [0, 0, 1, 1], [], []>} : vector<8x128xbf16>, vector<128x384xbf16>, vector<8x384xf32> -> vector<8x384xf32>
    %26 = vector.extract_strided_slice %23 {offsets = [0, 0], sizes = [8, 128], strides = [1, 1]} : vector<8x384xf32> to vector<8x128xf32>
    %27 = vector.extract_strided_slice %25 {offsets = [0, 0], sizes = [8, 128], strides = [1, 1]} : vector<8x384xf32> to vector<8x128xf32>
    %28 = arith.addf %26, %27 : vector<8x128xf32>
    %29 = arith.negf %28 : vector<8x128xf32>
    %30 = math.exp %29 : vector<8x128xf32>
    %cst_18 = arith.constant 1.000000e+00 : f32
    %31 = vector.broadcast %cst_18 : f32 to vector<8x128xf32>
    %32 = arith.addf %31, %30 : vector<8x128xf32>
    %33 = arith.divf %31, %32 : vector<8x128xf32>
    %34 = vector.extract_strided_slice %23 {offsets = [0, 128], sizes = [8, 128], strides = [1, 1]} : vector<8x384xf32> to vector<8x128xf32>
    %35 = vector.extract_strided_slice %25 {offsets = [0, 128], sizes = [8, 128], strides = [1, 1]} : vector<8x384xf32> to vector<8x128xf32>
    %36 = arith.addf %34, %35 : vector<8x128xf32>
    %37 = arith.negf %36 : vector<8x128xf32>
    %38 = math.exp %37 : vector<8x128xf32>
    %cst_19 = arith.constant 1.000000e+00 : f32
    %39 = vector.broadcast %cst_19 : f32 to vector<8x128xf32>
    %40 = arith.addf %39, %38 : vector<8x128xf32>
    %41 = arith.divf %39, %40 : vector<8x128xf32>
    %42 = vector.extract_strided_slice %23 {offsets = [0, 256], sizes = [8, 128], strides = [1, 1]} : vector<8x384xf32> to vector<8x128xf32>
    %43 = vector.extract_strided_slice %25 {offsets = [0, 256], sizes = [8, 128], strides = [1, 1]} : vector<8x384xf32> to vector<8x128xf32>
    %44 = vector.broadcast %1 : vector<1x128xf32> to vector<8x128xf32>
    %45 = arith.addf %43, %44 : vector<8x128xf32>
    %46 = arith.mulf %33, %45 : vector<8x128xf32>
    %47 = arith.addf %42, %46 : vector<8x128xf32>
    %48 = math.tanh %47 : vector<8x128xf32>
    %cst_20 = arith.constant 1.000000e+00 : f32
    %49 = vector.broadcast %cst_20 : f32 to vector<8x128xf32>
    %50 = arith.subf %49, %41 : vector<8x128xf32>
    %51 = arith.mulf %50, %48 : vector<8x128xf32>
    %52 = arith.mulf %41, %8 : vector<8x128xf32>
    %53 = arith.addf %51, %52 : vector<8x128xf32>
    %c1_i32_21 = arith.constant 1 : i32
    %c2_i32_22 = arith.constant 2 : i32
    %54 = arith.remsi %c1_i32_21, %c2_i32_22 : i32
    %c0_i32_23 = arith.constant 0 : i32
    %c0_i32_24 = arith.constant 0 : i32
    %55 = tpu.memref_slice %arg0[%c1_i32_21, %c0_i32_23, %c0_i32_24] : memref<8x8x384xbf16, #tpu.memory_space<any>> -> memref<1x8x384xbf16, #tpu.memory_space<any>>
    %56 = tpu.memref_squeeze %55 : memref<1x8x384xbf16, #tpu.memory_space<any>> -> memref<8x384xbf16, #tpu.memory_space<any>>
    %c0_i32_25 = arith.constant 0 : i32
    %c0_i32_26 = arith.constant 0 : i32
    %57 = tpu.memref_slice %arg4[%54, %c0_i32_25, %c0_i32_26] : memref<2x8x384xbf16, #tpu.memory_space<vmem>> -> memref<1x8x384xbf16, #tpu.memory_space<vmem>>
    %58 = tpu.memref_squeeze %57 : memref<1x8x384xbf16, #tpu.memory_space<vmem>> -> memref<8x384xbf16, #tpu.memory_space<vmem>>
    %59 = tpu.memref_slice %arg5[%54] : memref<2x!tpu.dma_semaphore, #tpu.memory_space<semaphore_mem>> -> memref<1x!tpu.dma_semaphore, #tpu.memory_space<semaphore_mem>>
    %60 = tpu.memref_squeeze %59 : memref<1x!tpu.dma_semaphore, #tpu.memory_space<semaphore_mem>> -> memref<!tpu.dma_semaphore, #tpu.memory_space<semaphore_mem>>
    tpu.wait_dma2 semaphore(%60 : memref<!tpu.dma_semaphore, #tpu.memory_space<semaphore_mem>>) src(%56 : memref<8x384xbf16, #tpu.memory_space<any>>) dst(%58 : memref<8x384xbf16, #tpu.memory_space<vmem>>)
    %c1_i32_27 = arith.constant 1 : i32
    %61 = arith.addi %c1_i32_21, %c1_i32_27 : i32
    %c8_i32_28 = arith.constant 8 : i32
    %62 = arith.cmpi slt, %61, %c8_i32_28 : i32
    %63 = arith.extui %62 : i1 to i32
    %c0_i32_29 = arith.constant 0 : i32
    %64 = arith.cmpi ne, %63, %c0_i32_29 : i32
    scf.if %64 {
      %c1_i32_124 = arith.constant 1 : i32
      %370 = arith.addi %c1_i32_21, %c1_i32_124 : i32
      %c1_i32_125 = arith.constant 1 : i32
      %371 = arith.subi %c1_i32_125, %54 : i32
      %c1_i32_126 = arith.constant 1 : i32
      %372 = arith.subi %c1_i32_126, %54 : i32
      %c0_i32_127 = arith.constant 0 : i32
      %c0_i32_128 = arith.constant 0 : i32
      %373 = tpu.memref_slice %arg0[%370, %c0_i32_127, %c0_i32_128] : memref<8x8x384xbf16, #tpu.memory_space<any>> -> memref<1x8x384xbf16, #tpu.memory_space<any>>
      %374 = tpu.memref_squeeze %373 : memref<1x8x384xbf16, #tpu.memory_space<any>> -> memref<8x384xbf16, #tpu.memory_space<any>>
      %c0_i32_129 = arith.constant 0 : i32
      %c0_i32_130 = arith.constant 0 : i32
      %375 = tpu.memref_slice %arg4[%371, %c0_i32_129, %c0_i32_130] : memref<2x8x384xbf16, #tpu.memory_space<vmem>> -> memref<1x8x384xbf16, #tpu.memory_space<vmem>>
      %376 = tpu.memref_squeeze %375 : memref<1x8x384xbf16, #tpu.memory_space<vmem>> -> memref<8x384xbf16, #tpu.memory_space<vmem>>
      %377 = tpu.memref_slice %arg5[%372] : memref<2x!tpu.dma_semaphore, #tpu.memory_space<semaphore_mem>> -> memref<1x!tpu.dma_semaphore, #tpu.memory_space<semaphore_mem>>
      %378 = tpu.memref_squeeze %377 : memref<1x!tpu.dma_semaphore, #tpu.memory_space<semaphore_mem>> -> memref<!tpu.dma_semaphore, #tpu.memory_space<semaphore_mem>>
      tpu.enqueue_dma source(%374 : memref<8x384xbf16, #tpu.memory_space<any>>) target(%376 : memref<8x384xbf16, #tpu.memory_space<vmem>>) target_semaphore(%378 : memref<!tpu.dma_semaphore, #tpu.memory_space<semaphore_mem>>)
    } else {
    }
    %65 = arith.index_cast %54 : i32 to index
    %c0_30 = arith.constant 0 : index
    %c0_31 = arith.constant 0 : index
    %66 = vector.load %arg4[%65, %c0_30, %c0_31] : memref<2x8x384xbf16, #tpu.memory_space<vmem>>, vector<1x8x384xbf16>
    %67 = vector.shape_cast %66 : vector<1x8x384xbf16> to vector<8x384xbf16>
    %68 = arith.extf %67 : vector<8x384xbf16> to vector<8x384xf32>
    %69 = arith.truncf %53 : vector<8x128xf32> to vector<8x128xbf16>
    %cst_32 = arith.constant dense<0.000000e+00> : vector<8x384xf32>
    %70 = tpu.matmul %69, %0, %cst_32 {dimension_numbers = #tpu.dot_dimension_numbers<[1], [0], [0], [1], [0, 0, 1, 1], [], []>} : vector<8x128xbf16>, vector<128x384xbf16>, vector<8x384xf32> -> vector<8x384xf32>
    %71 = vector.extract_strided_slice %68 {offsets = [0, 0], sizes = [8, 128], strides = [1, 1]} : vector<8x384xf32> to vector<8x128xf32>
    %72 = vector.extract_strided_slice %70 {offsets = [0, 0], sizes = [8, 128], strides = [1, 1]} : vector<8x384xf32> to vector<8x128xf32>
    %73 = arith.addf %71, %72 : vector<8x128xf32>
    %74 = arith.negf %73 : vector<8x128xf32>
    %75 = math.exp %74 : vector<8x128xf32>
    %cst_33 = arith.constant 1.000000e+00 : f32
    %76 = vector.broadcast %cst_33 : f32 to vector<8x128xf32>
    %77 = arith.addf %76, %75 : vector<8x128xf32>
    %78 = arith.divf %76, %77 : vector<8x128xf32>
    %79 = vector.extract_strided_slice %68 {offsets = [0, 128], sizes = [8, 128], strides = [1, 1]} : vector<8x384xf32> to vector<8x128xf32>
    %80 = vector.extract_strided_slice %70 {offsets = [0, 128], sizes = [8, 128], strides = [1, 1]} : vector<8x384xf32> to vector<8x128xf32>
    %81 = arith.addf %79, %80 : vector<8x128xf32>
    %82 = arith.negf %81 : vector<8x128xf32>
    %83 = math.exp %82 : vector<8x128xf32>
    %cst_34 = arith.constant 1.000000e+00 : f32
    %84 = vector.broadcast %cst_34 : f32 to vector<8x128xf32>
    %85 = arith.addf %84, %83 : vector<8x128xf32>
    %86 = arith.divf %84, %85 : vector<8x128xf32>
    %87 = vector.extract_strided_slice %68 {offsets = [0, 256], sizes = [8, 128], strides = [1, 1]} : vector<8x384xf32> to vector<8x128xf32>
    %88 = vector.extract_strided_slice %70 {offsets = [0, 256], sizes = [8, 128], strides = [1, 1]} : vector<8x384xf32> to vector<8x128xf32>
    %89 = vector.broadcast %1 : vector<1x128xf32> to vector<8x128xf32>
    %90 = arith.addf %88, %89 : vector<8x128xf32>
    %91 = arith.mulf %78, %90 : vector<8x128xf32>
    %92 = arith.addf %87, %91 : vector<8x128xf32>
    %93 = math.tanh %92 : vector<8x128xf32>
    %cst_35 = arith.constant 1.000000e+00 : f32
    %94 = vector.broadcast %cst_35 : f32 to vector<8x128xf32>
    %95 = arith.subf %94, %86 : vector<8x128xf32>
    %96 = arith.mulf %95, %93 : vector<8x128xf32>
    %97 = arith.mulf %86, %53 : vector<8x128xf32>
    %98 = arith.addf %96, %97 : vector<8x128xf32>
    %c2_i32_36 = arith.constant 2 : i32
    %c2_i32_37 = arith.constant 2 : i32
    %99 = arith.remsi %c2_i32_36, %c2_i32_37 : i32
    %c0_i32_38 = arith.constant 0 : i32
    %c0_i32_39 = arith.constant 0 : i32
    %100 = tpu.memref_slice %arg0[%c2_i32_36, %c0_i32_38, %c0_i32_39] : memref<8x8x384xbf16, #tpu.memory_space<any>> -> memref<1x8x384xbf16, #tpu.memory_space<any>>
    %101 = tpu.memref_squeeze %100 : memref<1x8x384xbf16, #tpu.memory_space<any>> -> memref<8x384xbf16, #tpu.memory_space<any>>
    %c0_i32_40 = arith.constant 0 : i32
    %c0_i32_41 = arith.constant 0 : i32
    %102 = tpu.memref_slice %arg4[%99, %c0_i32_40, %c0_i32_41] : memref<2x8x384xbf16, #tpu.memory_space<vmem>> -> memref<1x8x384xbf16, #tpu.memory_space<vmem>>
    %103 = tpu.memref_squeeze %102 : memref<1x8x384xbf16, #tpu.memory_space<vmem>> -> memref<8x384xbf16, #tpu.memory_space<vmem>>
    %104 = tpu.memref_slice %arg5[%99] : memref<2x!tpu.dma_semaphore, #tpu.memory_space<semaphore_mem>> -> memref<1x!tpu.dma_semaphore, #tpu.memory_space<semaphore_mem>>
    %105 = tpu.memref_squeeze %104 : memref<1x!tpu.dma_semaphore, #tpu.memory_space<semaphore_mem>> -> memref<!tpu.dma_semaphore, #tpu.memory_space<semaphore_mem>>
    tpu.wait_dma2 semaphore(%105 : memref<!tpu.dma_semaphore, #tpu.memory_space<semaphore_mem>>) src(%101 : memref<8x384xbf16, #tpu.memory_space<any>>) dst(%103 : memref<8x384xbf16, #tpu.memory_space<vmem>>)
    %c1_i32_42 = arith.constant 1 : i32
    %106 = arith.addi %c2_i32_36, %c1_i32_42 : i32
    %c8_i32_43 = arith.constant 8 : i32
    %107 = arith.cmpi slt, %106, %c8_i32_43 : i32
    %108 = arith.extui %107 : i1 to i32
    %c0_i32_44 = arith.constant 0 : i32
    %109 = arith.cmpi ne, %108, %c0_i32_44 : i32
    scf.if %109 {
      %c1_i32_124 = arith.constant 1 : i32
      %370 = arith.addi %c2_i32_36, %c1_i32_124 : i32
      %c1_i32_125 = arith.constant 1 : i32
      %371 = arith.subi %c1_i32_125, %99 : i32
      %c1_i32_126 = arith.constant 1 : i32
      %372 = arith.subi %c1_i32_126, %99 : i32
      %c0_i32_127 = arith.constant 0 : i32
      %c0_i32_128 = arith.constant 0 : i32
      %373 = tpu.memref_slice %arg0[%370, %c0_i32_127, %c0_i32_128] : memref<8x8x384xbf16, #tpu.memory_space<any>> -> memref<1x8x384xbf16, #tpu.memory_space<any>>
      %374 = tpu.memref_squeeze %373 : memref<1x8x384xbf16, #tpu.memory_space<any>> -> memref<8x384xbf16, #tpu.memory_space<any>>
      %c0_i32_129 = arith.constant 0 : i32
      %c0_i32_130 = arith.constant 0 : i32
      %375 = tpu.memref_slice %arg4[%371, %c0_i32_129, %c0_i32_130] : memref<2x8x384xbf16, #tpu.memory_space<vmem>> -> memref<1x8x384xbf16, #tpu.memory_space<vmem>>
      %376 = tpu.memref_squeeze %375 : memref<1x8x384xbf16, #tpu.memory_space<vmem>> -> memref<8x384xbf16, #tpu.memory_space<vmem>>
      %377 = tpu.memref_slice %arg5[%372] : memref<2x!tpu.dma_semaphore, #tpu.memory_space<semaphore_mem>> -> memref<1x!tpu.dma_semaphore, #tpu.memory_space<semaphore_mem>>
      %378 = tpu.memref_squeeze %377 : memref<1x!tpu.dma_semaphore, #tpu.memory_space<semaphore_mem>> -> memref<!tpu.dma_semaphore, #tpu.memory_space<semaphore_mem>>
      tpu.enqueue_dma source(%374 : memref<8x384xbf16, #tpu.memory_space<any>>) target(%376 : memref<8x384xbf16, #tpu.memory_space<vmem>>) target_semaphore(%378 : memref<!tpu.dma_semaphore, #tpu.memory_space<semaphore_mem>>)
    } else {
    }
    %110 = arith.index_cast %99 : i32 to index
    %c0_45 = arith.constant 0 : index
    %c0_46 = arith.constant 0 : index
    %111 = vector.load %arg4[%110, %c0_45, %c0_46] : memref<2x8x384xbf16, #tpu.memory_space<vmem>>, vector<1x8x384xbf16>
    %112 = vector.shape_cast %111 : vector<1x8x384xbf16> to vector<8x384xbf16>
    %113 = arith.extf %112 : vector<8x384xbf16> to vector<8x384xf32>
    %114 = arith.truncf %98 : vector<8x128xf32> to vector<8x128xbf16>
    %cst_47 = arith.constant dense<0.000000e+00> : vector<8x384xf32>
    %115 = tpu.matmul %114, %0, %cst_47 {dimension_numbers = #tpu.dot_dimension_numbers<[1], [0], [0], [1], [0, 0, 1, 1], [], []>} : vector<8x128xbf16>, vector<128x384xbf16>, vector<8x384xf32> -> vector<8x384xf32>
    %116 = vector.extract_strided_slice %113 {offsets = [0, 0], sizes = [8, 128], strides = [1, 1]} : vector<8x384xf32> to vector<8x128xf32>
    %117 = vector.extract_strided_slice %115 {offsets = [0, 0], sizes = [8, 128], strides = [1, 1]} : vector<8x384xf32> to vector<8x128xf32>
    %118 = arith.addf %116, %117 : vector<8x128xf32>
    %119 = arith.negf %118 : vector<8x128xf32>
    %120 = math.exp %119 : vector<8x128xf32>
    %cst_48 = arith.constant 1.000000e+00 : f32
    %121 = vector.broadcast %cst_48 : f32 to vector<8x128xf32>
    %122 = arith.addf %121, %120 : vector<8x128xf32>
    %123 = arith.divf %121, %122 : vector<8x128xf32>
    %124 = vector.extract_strided_slice %113 {offsets = [0, 128], sizes = [8, 128], strides = [1, 1]} : vector<8x384xf32> to vector<8x128xf32>
    %125 = vector.extract_strided_slice %115 {offsets = [0, 128], sizes = [8, 128], strides = [1, 1]} : vector<8x384xf32> to vector<8x128xf32>
    %126 = arith.addf %124, %125 : vector<8x128xf32>
    %127 = arith.negf %126 : vector<8x128xf32>
    %128 = math.exp %127 : vector<8x128xf32>
    %cst_49 = arith.constant 1.000000e+00 : f32
    %129 = vector.broadcast %cst_49 : f32 to vector<8x128xf32>
    %130 = arith.addf %129, %128 : vector<8x128xf32>
    %131 = arith.divf %129, %130 : vector<8x128xf32>
    %132 = vector.extract_strided_slice %113 {offsets = [0, 256], sizes = [8, 128], strides = [1, 1]} : vector<8x384xf32> to vector<8x128xf32>
    %133 = vector.extract_strided_slice %115 {offsets = [0, 256], sizes = [8, 128], strides = [1, 1]} : vector<8x384xf32> to vector<8x128xf32>
    %134 = vector.broadcast %1 : vector<1x128xf32> to vector<8x128xf32>
    %135 = arith.addf %133, %134 : vector<8x128xf32>
    %136 = arith.mulf %123, %135 : vector<8x128xf32>
    %137 = arith.addf %132, %136 : vector<8x128xf32>
    %138 = math.tanh %137 : vector<8x128xf32>
    %cst_50 = arith.constant 1.000000e+00 : f32
    %139 = vector.broadcast %cst_50 : f32 to vector<8x128xf32>
    %140 = arith.subf %139, %131 : vector<8x128xf32>
    %141 = arith.mulf %140, %138 : vector<8x128xf32>
    %142 = arith.mulf %131, %98 : vector<8x128xf32>
    %143 = arith.addf %141, %142 : vector<8x128xf32>
    %c3_i32 = arith.constant 3 : i32
    %c2_i32_51 = arith.constant 2 : i32
    %144 = arith.remsi %c3_i32, %c2_i32_51 : i32
    %c0_i32_52 = arith.constant 0 : i32
    %c0_i32_53 = arith.constant 0 : i32
    %145 = tpu.memref_slice %arg0[%c3_i32, %c0_i32_52, %c0_i32_53] : memref<8x8x384xbf16, #tpu.memory_space<any>> -> memref<1x8x384xbf16, #tpu.memory_space<any>>
    %146 = tpu.memref_squeeze %145 : memref<1x8x384xbf16, #tpu.memory_space<any>> -> memref<8x384xbf16, #tpu.memory_space<any>>
    %c0_i32_54 = arith.constant 0 : i32
    %c0_i32_55 = arith.constant 0 : i32
    %147 = tpu.memref_slice %arg4[%144, %c0_i32_54, %c0_i32_55] : memref<2x8x384xbf16, #tpu.memory_space<vmem>> -> memref<1x8x384xbf16, #tpu.memory_space<vmem>>
    %148 = tpu.memref_squeeze %147 : memref<1x8x384xbf16, #tpu.memory_space<vmem>> -> memref<8x384xbf16, #tpu.memory_space<vmem>>
    %149 = tpu.memref_slice %arg5[%144] : memref<2x!tpu.dma_semaphore, #tpu.memory_space<semaphore_mem>> -> memref<1x!tpu.dma_semaphore, #tpu.memory_space<semaphore_mem>>
    %150 = tpu.memref_squeeze %149 : memref<1x!tpu.dma_semaphore, #tpu.memory_space<semaphore_mem>> -> memref<!tpu.dma_semaphore, #tpu.memory_space<semaphore_mem>>
    tpu.wait_dma2 semaphore(%150 : memref<!tpu.dma_semaphore, #tpu.memory_space<semaphore_mem>>) src(%146 : memref<8x384xbf16, #tpu.memory_space<any>>) dst(%148 : memref<8x384xbf16, #tpu.memory_space<vmem>>)
    %c1_i32_56 = arith.constant 1 : i32
    %151 = arith.addi %c3_i32, %c1_i32_56 : i32
    %c8_i32_57 = arith.constant 8 : i32
    %152 = arith.cmpi slt, %151, %c8_i32_57 : i32
    %153 = arith.extui %152 : i1 to i32
    %c0_i32_58 = arith.constant 0 : i32
    %154 = arith.cmpi ne, %153, %c0_i32_58 : i32
    scf.if %154 {
      %c1_i32_124 = arith.constant 1 : i32
      %370 = arith.addi %c3_i32, %c1_i32_124 : i32
      %c1_i32_125 = arith.constant 1 : i32
      %371 = arith.subi %c1_i32_125, %144 : i32
      %c1_i32_126 = arith.constant 1 : i32
      %372 = arith.subi %c1_i32_126, %144 : i32
      %c0_i32_127 = arith.constant 0 : i32
      %c0_i32_128 = arith.constant 0 : i32
      %373 = tpu.memref_slice %arg0[%370, %c0_i32_127, %c0_i32_128] : memref<8x8x384xbf16, #tpu.memory_space<any>> -> memref<1x8x384xbf16, #tpu.memory_space<any>>
      %374 = tpu.memref_squeeze %373 : memref<1x8x384xbf16, #tpu.memory_space<any>> -> memref<8x384xbf16, #tpu.memory_space<any>>
      %c0_i32_129 = arith.constant 0 : i32
      %c0_i32_130 = arith.constant 0 : i32
      %375 = tpu.memref_slice %arg4[%371, %c0_i32_129, %c0_i32_130] : memref<2x8x384xbf16, #tpu.memory_space<vmem>> -> memref<1x8x384xbf16, #tpu.memory_space<vmem>>
      %376 = tpu.memref_squeeze %375 : memref<1x8x384xbf16, #tpu.memory_space<vmem>> -> memref<8x384xbf16, #tpu.memory_space<vmem>>
      %377 = tpu.memref_slice %arg5[%372] : memref<2x!tpu.dma_semaphore, #tpu.memory_space<semaphore_mem>> -> memref<1x!tpu.dma_semaphore, #tpu.memory_space<semaphore_mem>>
      %378 = tpu.memref_squeeze %377 : memref<1x!tpu.dma_semaphore, #tpu.memory_space<semaphore_mem>> -> memref<!tpu.dma_semaphore, #tpu.memory_space<semaphore_mem>>
      tpu.enqueue_dma source(%374 : memref<8x384xbf16, #tpu.memory_space<any>>) target(%376 : memref<8x384xbf16, #tpu.memory_space<vmem>>) target_semaphore(%378 : memref<!tpu.dma_semaphore, #tpu.memory_space<semaphore_mem>>)
    } else {
    }
    %155 = arith.index_cast %144 : i32 to index
    %c0_59 = arith.constant 0 : index
    %c0_60 = arith.constant 0 : index
    %156 = vector.load %arg4[%155, %c0_59, %c0_60] : memref<2x8x384xbf16, #tpu.memory_space<vmem>>, vector<1x8x384xbf16>
    %157 = vector.shape_cast %156 : vector<1x8x384xbf16> to vector<8x384xbf16>
    %158 = arith.extf %157 : vector<8x384xbf16> to vector<8x384xf32>
    %159 = arith.truncf %143 : vector<8x128xf32> to vector<8x128xbf16>
    %cst_61 = arith.constant dense<0.000000e+00> : vector<8x384xf32>
    %160 = tpu.matmul %159, %0, %cst_61 {dimension_numbers = #tpu.dot_dimension_numbers<[1], [0], [0], [1], [0, 0, 1, 1], [], []>} : vector<8x128xbf16>, vector<128x384xbf16>, vector<8x384xf32> -> vector<8x384xf32>
    %161 = vector.extract_strided_slice %158 {offsets = [0, 0], sizes = [8, 128], strides = [1, 1]} : vector<8x384xf32> to vector<8x128xf32>
    %162 = vector.extract_strided_slice %160 {offsets = [0, 0], sizes = [8, 128], strides = [1, 1]} : vector<8x384xf32> to vector<8x128xf32>
    %163 = arith.addf %161, %162 : vector<8x128xf32>
    %164 = arith.negf %163 : vector<8x128xf32>
    %165 = math.exp %164 : vector<8x128xf32>
    %cst_62 = arith.constant 1.000000e+00 : f32
    %166 = vector.broadcast %cst_62 : f32 to vector<8x128xf32>
    %167 = arith.addf %166, %165 : vector<8x128xf32>
    %168 = arith.divf %166, %167 : vector<8x128xf32>
    %169 = vector.extract_strided_slice %158 {offsets = [0, 128], sizes = [8, 128], strides = [1, 1]} : vector<8x384xf32> to vector<8x128xf32>
    %170 = vector.extract_strided_slice %160 {offsets = [0, 128], sizes = [8, 128], strides = [1, 1]} : vector<8x384xf32> to vector<8x128xf32>
    %171 = arith.addf %169, %170 : vector<8x128xf32>
    %172 = arith.negf %171 : vector<8x128xf32>
    %173 = math.exp %172 : vector<8x128xf32>
    %cst_63 = arith.constant 1.000000e+00 : f32
    %174 = vector.broadcast %cst_63 : f32 to vector<8x128xf32>
    %175 = arith.addf %174, %173 : vector<8x128xf32>
    %176 = arith.divf %174, %175 : vector<8x128xf32>
    %177 = vector.extract_strided_slice %158 {offsets = [0, 256], sizes = [8, 128], strides = [1, 1]} : vector<8x384xf32> to vector<8x128xf32>
    %178 = vector.extract_strided_slice %160 {offsets = [0, 256], sizes = [8, 128], strides = [1, 1]} : vector<8x384xf32> to vector<8x128xf32>
    %179 = vector.broadcast %1 : vector<1x128xf32> to vector<8x128xf32>
    %180 = arith.addf %178, %179 : vector<8x128xf32>
    %181 = arith.mulf %168, %180 : vector<8x128xf32>
    %182 = arith.addf %177, %181 : vector<8x128xf32>
    %183 = math.tanh %182 : vector<8x128xf32>
    %cst_64 = arith.constant 1.000000e+00 : f32
    %184 = vector.broadcast %cst_64 : f32 to vector<8x128xf32>
    %185 = arith.subf %184, %176 : vector<8x128xf32>
    %186 = arith.mulf %185, %183 : vector<8x128xf32>
    %187 = arith.mulf %176, %143 : vector<8x128xf32>
    %188 = arith.addf %186, %187 : vector<8x128xf32>
    %c4_i32 = arith.constant 4 : i32
    %c2_i32_65 = arith.constant 2 : i32
    %189 = arith.remsi %c4_i32, %c2_i32_65 : i32
    %c0_i32_66 = arith.constant 0 : i32
    %c0_i32_67 = arith.constant 0 : i32
    %190 = tpu.memref_slice %arg0[%c4_i32, %c0_i32_66, %c0_i32_67] : memref<8x8x384xbf16, #tpu.memory_space<any>> -> memref<1x8x384xbf16, #tpu.memory_space<any>>
    %191 = tpu.memref_squeeze %190 : memref<1x8x384xbf16, #tpu.memory_space<any>> -> memref<8x384xbf16, #tpu.memory_space<any>>
    %c0_i32_68 = arith.constant 0 : i32
    %c0_i32_69 = arith.constant 0 : i32
    %192 = tpu.memref_slice %arg4[%189, %c0_i32_68, %c0_i32_69] : memref<2x8x384xbf16, #tpu.memory_space<vmem>> -> memref<1x8x384xbf16, #tpu.memory_space<vmem>>
    %193 = tpu.memref_squeeze %192 : memref<1x8x384xbf16, #tpu.memory_space<vmem>> -> memref<8x384xbf16, #tpu.memory_space<vmem>>
    %194 = tpu.memref_slice %arg5[%189] : memref<2x!tpu.dma_semaphore, #tpu.memory_space<semaphore_mem>> -> memref<1x!tpu.dma_semaphore, #tpu.memory_space<semaphore_mem>>
    %195 = tpu.memref_squeeze %194 : memref<1x!tpu.dma_semaphore, #tpu.memory_space<semaphore_mem>> -> memref<!tpu.dma_semaphore, #tpu.memory_space<semaphore_mem>>
    tpu.wait_dma2 semaphore(%195 : memref<!tpu.dma_semaphore, #tpu.memory_space<semaphore_mem>>) src(%191 : memref<8x384xbf16, #tpu.memory_space<any>>) dst(%193 : memref<8x384xbf16, #tpu.memory_space<vmem>>)
    %c1_i32_70 = arith.constant 1 : i32
    %196 = arith.addi %c4_i32, %c1_i32_70 : i32
    %c8_i32_71 = arith.constant 8 : i32
    %197 = arith.cmpi slt, %196, %c8_i32_71 : i32
    %198 = arith.extui %197 : i1 to i32
    %c0_i32_72 = arith.constant 0 : i32
    %199 = arith.cmpi ne, %198, %c0_i32_72 : i32
    scf.if %199 {
      %c1_i32_124 = arith.constant 1 : i32
      %370 = arith.addi %c4_i32, %c1_i32_124 : i32
      %c1_i32_125 = arith.constant 1 : i32
      %371 = arith.subi %c1_i32_125, %189 : i32
      %c1_i32_126 = arith.constant 1 : i32
      %372 = arith.subi %c1_i32_126, %189 : i32
      %c0_i32_127 = arith.constant 0 : i32
      %c0_i32_128 = arith.constant 0 : i32
      %373 = tpu.memref_slice %arg0[%370, %c0_i32_127, %c0_i32_128] : memref<8x8x384xbf16, #tpu.memory_space<any>> -> memref<1x8x384xbf16, #tpu.memory_space<any>>
      %374 = tpu.memref_squeeze %373 : memref<1x8x384xbf16, #tpu.memory_space<any>> -> memref<8x384xbf16, #tpu.memory_space<any>>
      %c0_i32_129 = arith.constant 0 : i32
      %c0_i32_130 = arith.constant 0 : i32
      %375 = tpu.memref_slice %arg4[%371, %c0_i32_129, %c0_i32_130] : memref<2x8x384xbf16, #tpu.memory_space<vmem>> -> memref<1x8x384xbf16, #tpu.memory_space<vmem>>
      %376 = tpu.memref_squeeze %375 : memref<1x8x384xbf16, #tpu.memory_space<vmem>> -> memref<8x384xbf16, #tpu.memory_space<vmem>>
      %377 = tpu.memref_slice %arg5[%372] : memref<2x!tpu.dma_semaphore, #tpu.memory_space<semaphore_mem>> -> memref<1x!tpu.dma_semaphore, #tpu.memory_space<semaphore_mem>>
      %378 = tpu.memref_squeeze %377 : memref<1x!tpu.dma_semaphore, #tpu.memory_space<semaphore_mem>> -> memref<!tpu.dma_semaphore, #tpu.memory_space<semaphore_mem>>
      tpu.enqueue_dma source(%374 : memref<8x384xbf16, #tpu.memory_space<any>>) target(%376 : memref<8x384xbf16, #tpu.memory_space<vmem>>) target_semaphore(%378 : memref<!tpu.dma_semaphore, #tpu.memory_space<semaphore_mem>>)
    } else {
    }
    %200 = arith.index_cast %189 : i32 to index
    %c0_73 = arith.constant 0 : index
    %c0_74 = arith.constant 0 : index
    %201 = vector.load %arg4[%200, %c0_73, %c0_74] : memref<2x8x384xbf16, #tpu.memory_space<vmem>>, vector<1x8x384xbf16>
    %202 = vector.shape_cast %201 : vector<1x8x384xbf16> to vector<8x384xbf16>
    %203 = arith.extf %202 : vector<8x384xbf16> to vector<8x384xf32>
    %204 = arith.truncf %188 : vector<8x128xf32> to vector<8x128xbf16>
    %cst_75 = arith.constant dense<0.000000e+00> : vector<8x384xf32>
    %205 = tpu.matmul %204, %0, %cst_75 {dimension_numbers = #tpu.dot_dimension_numbers<[1], [0], [0], [1], [0, 0, 1, 1], [], []>} : vector<8x128xbf16>, vector<128x384xbf16>, vector<8x384xf32> -> vector<8x384xf32>
    %206 = vector.extract_strided_slice %203 {offsets = [0, 0], sizes = [8, 128], strides = [1, 1]} : vector<8x384xf32> to vector<8x128xf32>
    %207 = vector.extract_strided_slice %205 {offsets = [0, 0], sizes = [8, 128], strides = [1, 1]} : vector<8x384xf32> to vector<8x128xf32>
    %208 = arith.addf %206, %207 : vector<8x128xf32>
    %209 = arith.negf %208 : vector<8x128xf32>
    %210 = math.exp %209 : vector<8x128xf32>
    %cst_76 = arith.constant 1.000000e+00 : f32
    %211 = vector.broadcast %cst_76 : f32 to vector<8x128xf32>
    %212 = arith.addf %211, %210 : vector<8x128xf32>
    %213 = arith.divf %211, %212 : vector<8x128xf32>
    %214 = vector.extract_strided_slice %203 {offsets = [0, 128], sizes = [8, 128], strides = [1, 1]} : vector<8x384xf32> to vector<8x128xf32>
    %215 = vector.extract_strided_slice %205 {offsets = [0, 128], sizes = [8, 128], strides = [1, 1]} : vector<8x384xf32> to vector<8x128xf32>
    %216 = arith.addf %214, %215 : vector<8x128xf32>
    %217 = arith.negf %216 : vector<8x128xf32>
    %218 = math.exp %217 : vector<8x128xf32>
    %cst_77 = arith.constant 1.000000e+00 : f32
    %219 = vector.broadcast %cst_77 : f32 to vector<8x128xf32>
    %220 = arith.addf %219, %218 : vector<8x128xf32>
    %221 = arith.divf %219, %220 : vector<8x128xf32>
    %222 = vector.extract_strided_slice %203 {offsets = [0, 256], sizes = [8, 128], strides = [1, 1]} : vector<8x384xf32> to vector<8x128xf32>
    %223 = vector.extract_strided_slice %205 {offsets = [0, 256], sizes = [8, 128], strides = [1, 1]} : vector<8x384xf32> to vector<8x128xf32>
    %224 = vector.broadcast %1 : vector<1x128xf32> to vector<8x128xf32>
    %225 = arith.addf %223, %224 : vector<8x128xf32>
    %226 = arith.mulf %213, %225 : vector<8x128xf32>
    %227 = arith.addf %222, %226 : vector<8x128xf32>
    %228 = math.tanh %227 : vector<8x128xf32>
    %cst_78 = arith.constant 1.000000e+00 : f32
    %229 = vector.broadcast %cst_78 : f32 to vector<8x128xf32>
    %230 = arith.subf %229, %221 : vector<8x128xf32>
    %231 = arith.mulf %230, %228 : vector<8x128xf32>
    %232 = arith.mulf %221, %188 : vector<8x128xf32>
    %233 = arith.addf %231, %232 : vector<8x128xf32>
    %c5_i32 = arith.constant 5 : i32
    %c2_i32_79 = arith.constant 2 : i32
    %234 = arith.remsi %c5_i32, %c2_i32_79 : i32
    %c0_i32_80 = arith.constant 0 : i32
    %c0_i32_81 = arith.constant 0 : i32
    %235 = tpu.memref_slice %arg0[%c5_i32, %c0_i32_80, %c0_i32_81] : memref<8x8x384xbf16, #tpu.memory_space<any>> -> memref<1x8x384xbf16, #tpu.memory_space<any>>
    %236 = tpu.memref_squeeze %235 : memref<1x8x384xbf16, #tpu.memory_space<any>> -> memref<8x384xbf16, #tpu.memory_space<any>>
    %c0_i32_82 = arith.constant 0 : i32
    %c0_i32_83 = arith.constant 0 : i32
    %237 = tpu.memref_slice %arg4[%234, %c0_i32_82, %c0_i32_83] : memref<2x8x384xbf16, #tpu.memory_space<vmem>> -> memref<1x8x384xbf16, #tpu.memory_space<vmem>>
    %238 = tpu.memref_squeeze %237 : memref<1x8x384xbf16, #tpu.memory_space<vmem>> -> memref<8x384xbf16, #tpu.memory_space<vmem>>
    %239 = tpu.memref_slice %arg5[%234] : memref<2x!tpu.dma_semaphore, #tpu.memory_space<semaphore_mem>> -> memref<1x!tpu.dma_semaphore, #tpu.memory_space<semaphore_mem>>
    %240 = tpu.memref_squeeze %239 : memref<1x!tpu.dma_semaphore, #tpu.memory_space<semaphore_mem>> -> memref<!tpu.dma_semaphore, #tpu.memory_space<semaphore_mem>>
    tpu.wait_dma2 semaphore(%240 : memref<!tpu.dma_semaphore, #tpu.memory_space<semaphore_mem>>) src(%236 : memref<8x384xbf16, #tpu.memory_space<any>>) dst(%238 : memref<8x384xbf16, #tpu.memory_space<vmem>>)
    %c1_i32_84 = arith.constant 1 : i32
    %241 = arith.addi %c5_i32, %c1_i32_84 : i32
    %c8_i32_85 = arith.constant 8 : i32
    %242 = arith.cmpi slt, %241, %c8_i32_85 : i32
    %243 = arith.extui %242 : i1 to i32
    %c0_i32_86 = arith.constant 0 : i32
    %244 = arith.cmpi ne, %243, %c0_i32_86 : i32
    scf.if %244 {
      %c1_i32_124 = arith.constant 1 : i32
      %370 = arith.addi %c5_i32, %c1_i32_124 : i32
      %c1_i32_125 = arith.constant 1 : i32
      %371 = arith.subi %c1_i32_125, %234 : i32
      %c1_i32_126 = arith.constant 1 : i32
      %372 = arith.subi %c1_i32_126, %234 : i32
      %c0_i32_127 = arith.constant 0 : i32
      %c0_i32_128 = arith.constant 0 : i32
      %373 = tpu.memref_slice %arg0[%370, %c0_i32_127, %c0_i32_128] : memref<8x8x384xbf16, #tpu.memory_space<any>> -> memref<1x8x384xbf16, #tpu.memory_space<any>>
      %374 = tpu.memref_squeeze %373 : memref<1x8x384xbf16, #tpu.memory_space<any>> -> memref<8x384xbf16, #tpu.memory_space<any>>
      %c0_i32_129 = arith.constant 0 : i32
      %c0_i32_130 = arith.constant 0 : i32
      %375 = tpu.memref_slice %arg4[%371, %c0_i32_129, %c0_i32_130] : memref<2x8x384xbf16, #tpu.memory_space<vmem>> -> memref<1x8x384xbf16, #tpu.memory_space<vmem>>
      %376 = tpu.memref_squeeze %375 : memref<1x8x384xbf16, #tpu.memory_space<vmem>> -> memref<8x384xbf16, #tpu.memory_space<vmem>>
      %377 = tpu.memref_slice %arg5[%372] : memref<2x!tpu.dma_semaphore, #tpu.memory_space<semaphore_mem>> -> memref<1x!tpu.dma_semaphore, #tpu.memory_space<semaphore_mem>>
      %378 = tpu.memref_squeeze %377 : memref<1x!tpu.dma_semaphore, #tpu.memory_space<semaphore_mem>> -> memref<!tpu.dma_semaphore, #tpu.memory_space<semaphore_mem>>
      tpu.enqueue_dma source(%374 : memref<8x384xbf16, #tpu.memory_space<any>>) target(%376 : memref<8x384xbf16, #tpu.memory_space<vmem>>) target_semaphore(%378 : memref<!tpu.dma_semaphore, #tpu.memory_space<semaphore_mem>>)
    } else {
    }
    %245 = arith.index_cast %234 : i32 to index
    %c0_87 = arith.constant 0 : index
    %c0_88 = arith.constant 0 : index
    %246 = vector.load %arg4[%245, %c0_87, %c0_88] : memref<2x8x384xbf16, #tpu.memory_space<vmem>>, vector<1x8x384xbf16>
    %247 = vector.shape_cast %246 : vector<1x8x384xbf16> to vector<8x384xbf16>
    %248 = arith.extf %247 : vector<8x384xbf16> to vector<8x384xf32>
    %249 = arith.truncf %233 : vector<8x128xf32> to vector<8x128xbf16>
    %cst_89 = arith.constant dense<0.000000e+00> : vector<8x384xf32>
    %250 = tpu.matmul %249, %0, %cst_89 {dimension_numbers = #tpu.dot_dimension_numbers<[1], [0], [0], [1], [0, 0, 1, 1], [], []>} : vector<8x128xbf16>, vector<128x384xbf16>, vector<8x384xf32> -> vector<8x384xf32>
    %251 = vector.extract_strided_slice %248 {offsets = [0, 0], sizes = [8, 128], strides = [1, 1]} : vector<8x384xf32> to vector<8x128xf32>
    %252 = vector.extract_strided_slice %250 {offsets = [0, 0], sizes = [8, 128], strides = [1, 1]} : vector<8x384xf32> to vector<8x128xf32>
    %253 = arith.addf %251, %252 : vector<8x128xf32>
    %254 = arith.negf %253 : vector<8x128xf32>
    %255 = math.exp %254 : vector<8x128xf32>
    %cst_90 = arith.constant 1.000000e+00 : f32
    %256 = vector.broadcast %cst_90 : f32 to vector<8x128xf32>
    %257 = arith.addf %256, %255 : vector<8x128xf32>
    %258 = arith.divf %256, %257 : vector<8x128xf32>
    %259 = vector.extract_strided_slice %248 {offsets = [0, 128], sizes = [8, 128], strides = [1, 1]} : vector<8x384xf32> to vector<8x128xf32>
    %260 = vector.extract_strided_slice %250 {offsets = [0, 128], sizes = [8, 128], strides = [1, 1]} : vector<8x384xf32> to vector<8x128xf32>
    %261 = arith.addf %259, %260 : vector<8x128xf32>
    %262 = arith.negf %261 : vector<8x128xf32>
    %263 = math.exp %262 : vector<8x128xf32>
    %cst_91 = arith.constant 1.000000e+00 : f32
    %264 = vector.broadcast %cst_91 : f32 to vector<8x128xf32>
    %265 = arith.addf %264, %263 : vector<8x128xf32>
    %266 = arith.divf %264, %265 : vector<8x128xf32>
    %267 = vector.extract_strided_slice %248 {offsets = [0, 256], sizes = [8, 128], strides = [1, 1]} : vector<8x384xf32> to vector<8x128xf32>
    %268 = vector.extract_strided_slice %250 {offsets = [0, 256], sizes = [8, 128], strides = [1, 1]} : vector<8x384xf32> to vector<8x128xf32>
    %269 = vector.broadcast %1 : vector<1x128xf32> to vector<8x128xf32>
    %270 = arith.addf %268, %269 : vector<8x128xf32>
    %271 = arith.mulf %258, %270 : vector<8x128xf32>
    %272 = arith.addf %267, %271 : vector<8x128xf32>
    %273 = math.tanh %272 : vector<8x128xf32>
    %cst_92 = arith.constant 1.000000e+00 : f32
    %274 = vector.broadcast %cst_92 : f32 to vector<8x128xf32>
    %275 = arith.subf %274, %266 : vector<8x128xf32>
    %276 = arith.mulf %275, %273 : vector<8x128xf32>
    %277 = arith.mulf %266, %233 : vector<8x128xf32>
    %278 = arith.addf %276, %277 : vector<8x128xf32>
    %c6_i32 = arith.constant 6 : i32
    %c2_i32_93 = arith.constant 2 : i32
    %279 = arith.remsi %c6_i32, %c2_i32_93 : i32
    %c0_i32_94 = arith.constant 0 : i32
    %c0_i32_95 = arith.constant 0 : i32
    %280 = tpu.memref_slice %arg0[%c6_i32, %c0_i32_94, %c0_i32_95] : memref<8x8x384xbf16, #tpu.memory_space<any>> -> memref<1x8x384xbf16, #tpu.memory_space<any>>
    %281 = tpu.memref_squeeze %280 : memref<1x8x384xbf16, #tpu.memory_space<any>> -> memref<8x384xbf16, #tpu.memory_space<any>>
    %c0_i32_96 = arith.constant 0 : i32
    %c0_i32_97 = arith.constant 0 : i32
    %282 = tpu.memref_slice %arg4[%279, %c0_i32_96, %c0_i32_97] : memref<2x8x384xbf16, #tpu.memory_space<vmem>> -> memref<1x8x384xbf16, #tpu.memory_space<vmem>>
    %283 = tpu.memref_squeeze %282 : memref<1x8x384xbf16, #tpu.memory_space<vmem>> -> memref<8x384xbf16, #tpu.memory_space<vmem>>
    %284 = tpu.memref_slice %arg5[%279] : memref<2x!tpu.dma_semaphore, #tpu.memory_space<semaphore_mem>> -> memref<1x!tpu.dma_semaphore, #tpu.memory_space<semaphore_mem>>
    %285 = tpu.memref_squeeze %284 : memref<1x!tpu.dma_semaphore, #tpu.memory_space<semaphore_mem>> -> memref<!tpu.dma_semaphore, #tpu.memory_space<semaphore_mem>>
    tpu.wait_dma2 semaphore(%285 : memref<!tpu.dma_semaphore, #tpu.memory_space<semaphore_mem>>) src(%281 : memref<8x384xbf16, #tpu.memory_space<any>>) dst(%283 : memref<8x384xbf16, #tpu.memory_space<vmem>>)
    %c1_i32_98 = arith.constant 1 : i32
    %286 = arith.addi %c6_i32, %c1_i32_98 : i32
    %c8_i32_99 = arith.constant 8 : i32
    %287 = arith.cmpi slt, %286, %c8_i32_99 : i32
    %288 = arith.extui %287 : i1 to i32
    %c0_i32_100 = arith.constant 0 : i32
    %289 = arith.cmpi ne, %288, %c0_i32_100 : i32
    scf.if %289 {
      %c1_i32_124 = arith.constant 1 : i32
      %370 = arith.addi %c6_i32, %c1_i32_124 : i32
      %c1_i32_125 = arith.constant 1 : i32
      %371 = arith.subi %c1_i32_125, %279 : i32
      %c1_i32_126 = arith.constant 1 : i32
      %372 = arith.subi %c1_i32_126, %279 : i32
      %c0_i32_127 = arith.constant 0 : i32
      %c0_i32_128 = arith.constant 0 : i32
      %373 = tpu.memref_slice %arg0[%370, %c0_i32_127, %c0_i32_128] : memref<8x8x384xbf16, #tpu.memory_space<any>> -> memref<1x8x384xbf16, #tpu.memory_space<any>>
      %374 = tpu.memref_squeeze %373 : memref<1x8x384xbf16, #tpu.memory_space<any>> -> memref<8x384xbf16, #tpu.memory_space<any>>
      %c0_i32_129 = arith.constant 0 : i32
      %c0_i32_130 = arith.constant 0 : i32
      %375 = tpu.memref_slice %arg4[%371, %c0_i32_129, %c0_i32_130] : memref<2x8x384xbf16, #tpu.memory_space<vmem>> -> memref<1x8x384xbf16, #tpu.memory_space<vmem>>
      %376 = tpu.memref_squeeze %375 : memref<1x8x384xbf16, #tpu.memory_space<vmem>> -> memref<8x384xbf16, #tpu.memory_space<vmem>>
      %377 = tpu.memref_slice %arg5[%372] : memref<2x!tpu.dma_semaphore, #tpu.memory_space<semaphore_mem>> -> memref<1x!tpu.dma_semaphore, #tpu.memory_space<semaphore_mem>>
      %378 = tpu.memref_squeeze %377 : memref<1x!tpu.dma_semaphore, #tpu.memory_space<semaphore_mem>> -> memref<!tpu.dma_semaphore, #tpu.memory_space<semaphore_mem>>
      tpu.enqueue_dma source(%374 : memref<8x384xbf16, #tpu.memory_space<any>>) target(%376 : memref<8x384xbf16, #tpu.memory_space<vmem>>) target_semaphore(%378 : memref<!tpu.dma_semaphore, #tpu.memory_space<semaphore_mem>>)
    } else {
    }
    %290 = arith.index_cast %279 : i32 to index
    %c0_101 = arith.constant 0 : index
    %c0_102 = arith.constant 0 : index
    %291 = vector.load %arg4[%290, %c0_101, %c0_102] : memref<2x8x384xbf16, #tpu.memory_space<vmem>>, vector<1x8x384xbf16>
    %292 = vector.shape_cast %291 : vector<1x8x384xbf16> to vector<8x384xbf16>
    %293 = arith.extf %292 : vector<8x384xbf16> to vector<8x384xf32>
    %294 = arith.truncf %278 : vector<8x128xf32> to vector<8x128xbf16>
    %cst_103 = arith.constant dense<0.000000e+00> : vector<8x384xf32>
    %295 = tpu.matmul %294, %0, %cst_103 {dimension_numbers = #tpu.dot_dimension_numbers<[1], [0], [0], [1], [0, 0, 1, 1], [], []>} : vector<8x128xbf16>, vector<128x384xbf16>, vector<8x384xf32> -> vector<8x384xf32>
    %296 = vector.extract_strided_slice %293 {offsets = [0, 0], sizes = [8, 128], strides = [1, 1]} : vector<8x384xf32> to vector<8x128xf32>
    %297 = vector.extract_strided_slice %295 {offsets = [0, 0], sizes = [8, 128], strides = [1, 1]} : vector<8x384xf32> to vector<8x128xf32>
    %298 = arith.addf %296, %297 : vector<8x128xf32>
    %299 = arith.negf %298 : vector<8x128xf32>
    %300 = math.exp %299 : vector<8x128xf32>
    %cst_104 = arith.constant 1.000000e+00 : f32
    %301 = vector.broadcast %cst_104 : f32 to vector<8x128xf32>
    %302 = arith.addf %301, %300 : vector<8x128xf32>
    %303 = arith.divf %301, %302 : vector<8x128xf32>
    %304 = vector.extract_strided_slice %293 {offsets = [0, 128], sizes = [8, 128], strides = [1, 1]} : vector<8x384xf32> to vector<8x128xf32>
    %305 = vector.extract_strided_slice %295 {offsets = [0, 128], sizes = [8, 128], strides = [1, 1]} : vector<8x384xf32> to vector<8x128xf32>
    %306 = arith.addf %304, %305 : vector<8x128xf32>
    %307 = arith.negf %306 : vector<8x128xf32>
    %308 = math.exp %307 : vector<8x128xf32>
    %cst_105 = arith.constant 1.000000e+00 : f32
    %309 = vector.broadcast %cst_105 : f32 to vector<8x128xf32>
    %310 = arith.addf %309, %308 : vector<8x128xf32>
    %311 = arith.divf %309, %310 : vector<8x128xf32>
    %312 = vector.extract_strided_slice %293 {offsets = [0, 256], sizes = [8, 128], strides = [1, 1]} : vector<8x384xf32> to vector<8x128xf32>
    %313 = vector.extract_strided_slice %295 {offsets = [0, 256], sizes = [8, 128], strides = [1, 1]} : vector<8x384xf32> to vector<8x128xf32>
    %314 = vector.broadcast %1 : vector<1x128xf32> to vector<8x128xf32>
    %315 = arith.addf %313, %314 : vector<8x128xf32>
    %316 = arith.mulf %303, %315 : vector<8x128xf32>
    %317 = arith.addf %312, %316 : vector<8x128xf32>
    %318 = math.tanh %317 : vector<8x128xf32>
    %cst_106 = arith.constant 1.000000e+00 : f32
    %319 = vector.broadcast %cst_106 : f32 to vector<8x128xf32>
    %320 = arith.subf %319, %311 : vector<8x128xf32>
    %321 = arith.mulf %320, %318 : vector<8x128xf32>
    %322 = arith.mulf %311, %278 : vector<8x128xf32>
    %323 = arith.addf %321, %322 : vector<8x128xf32>
    %c7_i32 = arith.constant 7 : i32
    %c2_i32_107 = arith.constant 2 : i32
    %324 = arith.remsi %c7_i32, %c2_i32_107 : i32
    %c0_i32_108 = arith.constant 0 : i32
    %c0_i32_109 = arith.constant 0 : i32
    %325 = tpu.memref_slice %arg0[%c7_i32, %c0_i32_108, %c0_i32_109] : memref<8x8x384xbf16, #tpu.memory_space<any>> -> memref<1x8x384xbf16, #tpu.memory_space<any>>
    %326 = tpu.memref_squeeze %325 : memref<1x8x384xbf16, #tpu.memory_space<any>> -> memref<8x384xbf16, #tpu.memory_space<any>>
    %c0_i32_110 = arith.constant 0 : i32
    %c0_i32_111 = arith.constant 0 : i32
    %327 = tpu.memref_slice %arg4[%324, %c0_i32_110, %c0_i32_111] : memref<2x8x384xbf16, #tpu.memory_space<vmem>> -> memref<1x8x384xbf16, #tpu.memory_space<vmem>>
    %328 = tpu.memref_squeeze %327 : memref<1x8x384xbf16, #tpu.memory_space<vmem>> -> memref<8x384xbf16, #tpu.memory_space<vmem>>
    %329 = tpu.memref_slice %arg5[%324] : memref<2x!tpu.dma_semaphore, #tpu.memory_space<semaphore_mem>> -> memref<1x!tpu.dma_semaphore, #tpu.memory_space<semaphore_mem>>
    %330 = tpu.memref_squeeze %329 : memref<1x!tpu.dma_semaphore, #tpu.memory_space<semaphore_mem>> -> memref<!tpu.dma_semaphore, #tpu.memory_space<semaphore_mem>>
    tpu.wait_dma2 semaphore(%330 : memref<!tpu.dma_semaphore, #tpu.memory_space<semaphore_mem>>) src(%326 : memref<8x384xbf16, #tpu.memory_space<any>>) dst(%328 : memref<8x384xbf16, #tpu.memory_space<vmem>>)
    %c1_i32_112 = arith.constant 1 : i32
    %331 = arith.addi %c7_i32, %c1_i32_112 : i32
    %c8_i32_113 = arith.constant 8 : i32
    %332 = arith.cmpi slt, %331, %c8_i32_113 : i32
    %333 = arith.extui %332 : i1 to i32
    %c0_i32_114 = arith.constant 0 : i32
    %334 = arith.cmpi ne, %333, %c0_i32_114 : i32
    scf.if %334 {
      %c1_i32_124 = arith.constant 1 : i32
      %370 = arith.addi %c7_i32, %c1_i32_124 : i32
      %c1_i32_125 = arith.constant 1 : i32
      %371 = arith.subi %c1_i32_125, %324 : i32
      %c1_i32_126 = arith.constant 1 : i32
      %372 = arith.subi %c1_i32_126, %324 : i32
      %c0_i32_127 = arith.constant 0 : i32
      %c0_i32_128 = arith.constant 0 : i32
      %373 = tpu.memref_slice %arg0[%370, %c0_i32_127, %c0_i32_128] : memref<8x8x384xbf16, #tpu.memory_space<any>> -> memref<1x8x384xbf16, #tpu.memory_space<any>>
      %374 = tpu.memref_squeeze %373 : memref<1x8x384xbf16, #tpu.memory_space<any>> -> memref<8x384xbf16, #tpu.memory_space<any>>
      %c0_i32_129 = arith.constant 0 : i32
      %c0_i32_130 = arith.constant 0 : i32
      %375 = tpu.memref_slice %arg4[%371, %c0_i32_129, %c0_i32_130] : memref<2x8x384xbf16, #tpu.memory_space<vmem>> -> memref<1x8x384xbf16, #tpu.memory_space<vmem>>
      %376 = tpu.memref_squeeze %375 : memref<1x8x384xbf16, #tpu.memory_space<vmem>> -> memref<8x384xbf16, #tpu.memory_space<vmem>>
      %377 = tpu.memref_slice %arg5[%372] : memref<2x!tpu.dma_semaphore, #tpu.memory_space<semaphore_mem>> -> memref<1x!tpu.dma_semaphore, #tpu.memory_space<semaphore_mem>>
      %378 = tpu.memref_squeeze %377 : memref<1x!tpu.dma_semaphore, #tpu.memory_space<semaphore_mem>> -> memref<!tpu.dma_semaphore, #tpu.memory_space<semaphore_mem>>
      tpu.enqueue_dma source(%374 : memref<8x384xbf16, #tpu.memory_space<any>>) target(%376 : memref<8x384xbf16, #tpu.memory_space<vmem>>) target_semaphore(%378 : memref<!tpu.dma_semaphore, #tpu.memory_space<semaphore_mem>>)
    } else {
    }
    %335 = arith.index_cast %324 : i32 to index
    %c0_115 = arith.constant 0 : index
    %c0_116 = arith.constant 0 : index
    %336 = vector.load %arg4[%335, %c0_115, %c0_116] : memref<2x8x384xbf16, #tpu.memory_space<vmem>>, vector<1x8x384xbf16>
    %337 = vector.shape_cast %336 : vector<1x8x384xbf16> to vector<8x384xbf16>
    %338 = arith.extf %337 : vector<8x384xbf16> to vector<8x384xf32>
    %339 = arith.truncf %323 : vector<8x128xf32> to vector<8x128xbf16>
    %cst_117 = arith.constant dense<0.000000e+00> : vector<8x384xf32>
    %340 = tpu.matmul %339, %0, %cst_117 {dimension_numbers = #tpu.dot_dimension_numbers<[1], [0], [0], [1], [0, 0, 1, 1], [], []>} : vector<8x128xbf16>, vector<128x384xbf16>, vector<8x384xf32> -> vector<8x384xf32>
    %341 = vector.extract_strided_slice %338 {offsets = [0, 0], sizes = [8, 128], strides = [1, 1]} : vector<8x384xf32> to vector<8x128xf32>
    %342 = vector.extract_strided_slice %340 {offsets = [0, 0], sizes = [8, 128], strides = [1, 1]} : vector<8x384xf32> to vector<8x128xf32>
    %343 = arith.addf %341, %342 : vector<8x128xf32>
    %344 = arith.negf %343 : vector<8x128xf32>
    %345 = math.exp %344 : vector<8x128xf32>
    %cst_118 = arith.constant 1.000000e+00 : f32
    %346 = vector.broadcast %cst_118 : f32 to vector<8x128xf32>
    %347 = arith.addf %346, %345 : vector<8x128xf32>
    %348 = arith.divf %346, %347 : vector<8x128xf32>
    %349 = vector.extract_strided_slice %338 {offsets = [0, 128], sizes = [8, 128], strides = [1, 1]} : vector<8x384xf32> to vector<8x128xf32>
    %350 = vector.extract_strided_slice %340 {offsets = [0, 128], sizes = [8, 128], strides = [1, 1]} : vector<8x384xf32> to vector<8x128xf32>
    %351 = arith.addf %349, %350 : vector<8x128xf32>
    %352 = arith.negf %351 : vector<8x128xf32>
    %353 = math.exp %352 : vector<8x128xf32>
    %cst_119 = arith.constant 1.000000e+00 : f32
    %354 = vector.broadcast %cst_119 : f32 to vector<8x128xf32>
    %355 = arith.addf %354, %353 : vector<8x128xf32>
    %356 = arith.divf %354, %355 : vector<8x128xf32>
    %357 = vector.extract_strided_slice %338 {offsets = [0, 256], sizes = [8, 128], strides = [1, 1]} : vector<8x384xf32> to vector<8x128xf32>
    %358 = vector.extract_strided_slice %340 {offsets = [0, 256], sizes = [8, 128], strides = [1, 1]} : vector<8x384xf32> to vector<8x128xf32>
    %359 = vector.broadcast %1 : vector<1x128xf32> to vector<8x128xf32>
    %360 = arith.addf %358, %359 : vector<8x128xf32>
    %361 = arith.mulf %348, %360 : vector<8x128xf32>
    %362 = arith.addf %357, %361 : vector<8x128xf32>
    %363 = math.tanh %362 : vector<8x128xf32>
    %cst_120 = arith.constant 1.000000e+00 : f32
    %364 = vector.broadcast %cst_120 : f32 to vector<8x128xf32>
    %365 = arith.subf %364, %356 : vector<8x128xf32>
    %366 = arith.mulf %365, %363 : vector<8x128xf32>
    %367 = arith.mulf %356, %323 : vector<8x128xf32>
    %368 = arith.addf %366, %367 : vector<8x128xf32>
    %c8_i32_121 = arith.constant 8 : i32
    %c0_122 = arith.constant 0 : index
    %c0_123 = arith.constant 0 : index
    %369 = vector.load %arg3[%c0_122, %c0_123] : memref<8x128xf32, #tpu.memory_space<vmem>>, vector<8x128xf32>
    tpu.vector_store %arg3[%c0_122, %c0_123], %368 {strides = array<i32>} : memref<8x128xf32, #tpu.memory_space<vmem>>, vector<8x128xf32>,
    return
  }
}

module attributes {stable_mosaic.version = 11 : i64} {
  func.func @decoder_recurrence_kernel(%arg0: memref<8x8x384xbf16, #tpu.memory_space<any>>, %arg1: memref<8x128xf32, #tpu.memory_space<vmem>>, %arg2: memref<128x384xbf16, #tpu.memory_space<vmem>>, %arg3: memref<1x128xf32, #tpu.memory_space<vmem>>, %arg4: memref<8x8x128xbf16, #tpu.memory_space<any>>, %arg5: memref<2x8x384xbf16, #tpu.memory_space<vmem>>, %arg6: memref<2x8x128xbf16, #tpu.memory_space<vmem>>, %arg7: memref<2x!tpu.dma_semaphore, #tpu.memory_space<semaphore_mem>>, %arg8: memref<2x!tpu.dma_semaphore, #tpu.memory_space<semaphore_mem>>) attributes {dimension_semantics = [], scalar_prefetch = 0 : i64, scratch_operands = 4 : i64, tpu.core_type = #tpu.core_type<tc>} {
    %c0 = arith.constant 0 : index
    %c0_0 = arith.constant 0 : index
    %0 = vector.load %arg2[%c0, %c0_0] : memref<128x384xbf16, #tpu.memory_space<vmem>>, vector<128x384xbf16>
    %c0_1 = arith.constant 0 : index
    %c0_2 = arith.constant 0 : index
    %1 = vector.load %arg3[%c0_1, %c0_2] : memref<1x128xf32, #tpu.memory_space<vmem>>, vector<1x128xf32>
    %c0_i32 = arith.constant 0 : i32
    %c0_i32_3 = arith.constant 0 : i32
    %c0_i32_4 = arith.constant 0 : i32
    %c0_i32_5 = arith.constant 0 : i32
    %c0_i32_6 = arith.constant 0 : i32
    %2 = tpu.memref_slice %arg0[%c0_i32, %c0_i32_5, %c0_i32_6] : memref<8x8x384xbf16, #tpu.memory_space<any>> -> memref<1x8x384xbf16, #tpu.memory_space<any>>
    %3 = tpu.memref_squeeze %2 : memref<1x8x384xbf16, #tpu.memory_space<any>> -> memref<8x384xbf16, #tpu.memory_space<any>>
    %c0_i32_7 = arith.constant 0 : i32
    %c0_i32_8 = arith.constant 0 : i32
    %4 = tpu.memref_slice %arg5[%c0_i32_3, %c0_i32_7, %c0_i32_8] : memref<2x8x384xbf16, #tpu.memory_space<vmem>> -> memref<1x8x384xbf16, #tpu.memory_space<vmem>>
    %5 = tpu.memref_squeeze %4 : memref<1x8x384xbf16, #tpu.memory_space<vmem>> -> memref<8x384xbf16, #tpu.memory_space<vmem>>
    %6 = tpu.memref_slice %arg7[%c0_i32_4] : memref<2x!tpu.dma_semaphore, #tpu.memory_space<semaphore_mem>> -> memref<1x!tpu.dma_semaphore, #tpu.memory_space<semaphore_mem>>
    %7 = tpu.memref_squeeze %6 : memref<1x!tpu.dma_semaphore, #tpu.memory_space<semaphore_mem>> -> memref<!tpu.dma_semaphore, #tpu.memory_space<semaphore_mem>>
    tpu.enqueue_dma source(%3 : memref<8x384xbf16, #tpu.memory_space<any>>) target(%5 : memref<8x384xbf16, #tpu.memory_space<vmem>>) target_semaphore(%7 : memref<!tpu.dma_semaphore, #tpu.memory_space<semaphore_mem>>)
    %c0_9 = arith.constant 0 : index
    %c0_10 = arith.constant 0 : index
    %8 = vector.load %arg1[%c0_9, %c0_10] : memref<8x128xf32, #tpu.memory_space<vmem>>, vector<8x128xf32>
    %c0_i32_11 = arith.constant 0 : i32
    %c2_i32 = arith.constant 2 : i32
    %9 = arith.remsi %c0_i32_11, %c2_i32 : i32
    %c0_i32_12 = arith.constant 0 : i32
    %c0_i32_13 = arith.constant 0 : i32
    %10 = tpu.memref_slice %arg0[%c0_i32_11, %c0_i32_12, %c0_i32_13] : memref<8x8x384xbf16, #tpu.memory_space<any>> -> memref<1x8x384xbf16, #tpu.memory_space<any>>
    %11 = tpu.memref_squeeze %10 : memref<1x8x384xbf16, #tpu.memory_space<any>> -> memref<8x384xbf16, #tpu.memory_space<any>>
    %c0_i32_14 = arith.constant 0 : i32
    %c0_i32_15 = arith.constant 0 : i32
    %12 = tpu.memref_slice %arg5[%9, %c0_i32_14, %c0_i32_15] : memref<2x8x384xbf16, #tpu.memory_space<vmem>> -> memref<1x8x384xbf16, #tpu.memory_space<vmem>>
    %13 = tpu.memref_squeeze %12 : memref<1x8x384xbf16, #tpu.memory_space<vmem>> -> memref<8x384xbf16, #tpu.memory_space<vmem>>
    %14 = tpu.memref_slice %arg7[%9] : memref<2x!tpu.dma_semaphore, #tpu.memory_space<semaphore_mem>> -> memref<1x!tpu.dma_semaphore, #tpu.memory_space<semaphore_mem>>
    %15 = tpu.memref_squeeze %14 : memref<1x!tpu.dma_semaphore, #tpu.memory_space<semaphore_mem>> -> memref<!tpu.dma_semaphore, #tpu.memory_space<semaphore_mem>>
    tpu.wait_dma2 semaphore(%15 : memref<!tpu.dma_semaphore, #tpu.memory_space<semaphore_mem>>) src(%11 : memref<8x384xbf16, #tpu.memory_space<any>>) dst(%13 : memref<8x384xbf16, #tpu.memory_space<vmem>>)
    %c1_i32 = arith.constant 1 : i32
    %16 = arith.addi %c0_i32_11, %c1_i32 : i32
    %c8_i32 = arith.constant 8 : i32
    %17 = arith.cmpi slt, %16, %c8_i32 : i32
    %18 = arith.extui %17 : i1 to i32
    %c0_i32_16 = arith.constant 0 : i32
    %19 = arith.cmpi ne, %18, %c0_i32_16 : i32
    scf.if %19 {
      %c1_i32_201 = arith.constant 1 : i32
      %493 = arith.addi %c0_i32_11, %c1_i32_201 : i32
      %c1_i32_202 = arith.constant 1 : i32
      %494 = arith.subi %c1_i32_202, %9 : i32
      %c1_i32_203 = arith.constant 1 : i32
      %495 = arith.subi %c1_i32_203, %9 : i32
      %c0_i32_204 = arith.constant 0 : i32
      %c0_i32_205 = arith.constant 0 : i32
      %496 = tpu.memref_slice %arg0[%493, %c0_i32_204, %c0_i32_205] : memref<8x8x384xbf16, #tpu.memory_space<any>> -> memref<1x8x384xbf16, #tpu.memory_space<any>>
      %497 = tpu.memref_squeeze %496 : memref<1x8x384xbf16, #tpu.memory_space<any>> -> memref<8x384xbf16, #tpu.memory_space<any>>
      %c0_i32_206 = arith.constant 0 : i32
      %c0_i32_207 = arith.constant 0 : i32
      %498 = tpu.memref_slice %arg5[%494, %c0_i32_206, %c0_i32_207] : memref<2x8x384xbf16, #tpu.memory_space<vmem>> -> memref<1x8x384xbf16, #tpu.memory_space<vmem>>
      %499 = tpu.memref_squeeze %498 : memref<1x8x384xbf16, #tpu.memory_space<vmem>> -> memref<8x384xbf16, #tpu.memory_space<vmem>>
      %500 = tpu.memref_slice %arg7[%495] : memref<2x!tpu.dma_semaphore, #tpu.memory_space<semaphore_mem>> -> memref<1x!tpu.dma_semaphore, #tpu.memory_space<semaphore_mem>>
      %501 = tpu.memref_squeeze %500 : memref<1x!tpu.dma_semaphore, #tpu.memory_space<semaphore_mem>> -> memref<!tpu.dma_semaphore, #tpu.memory_space<semaphore_mem>>
      tpu.enqueue_dma source(%497 : memref<8x384xbf16, #tpu.memory_space<any>>) target(%499 : memref<8x384xbf16, #tpu.memory_space<vmem>>) target_semaphore(%501 : memref<!tpu.dma_semaphore, #tpu.memory_space<semaphore_mem>>)
    } else {
    }
    %20 = arith.index_cast %9 : i32 to index
    %c0_17 = arith.constant 0 : index
    %c0_18 = arith.constant 0 : index
    %21 = vector.load %arg5[%20, %c0_17, %c0_18] : memref<2x8x384xbf16, #tpu.memory_space<vmem>>, vector<1x8x384xbf16>
    %22 = vector.shape_cast %21 : vector<1x8x384xbf16> to vector<8x384xbf16>
    %23 = arith.extf %22 : vector<8x384xbf16> to vector<8x384xf32>
    %24 = arith.truncf %8 : vector<8x128xf32> to vector<8x128xbf16>
    %cst = arith.constant dense<0.000000e+00> : vector<8x384xf32>
    %25 = tpu.matmul %24, %0, %cst {dimension_numbers = #tpu.dot_dimension_numbers<[1], [0], [0], [1], [0, 0, 1, 1], [], []>} : vector<8x128xbf16>, vector<128x384xbf16>, vector<8x384xf32> -> vector<8x384xf32>
    %26 = vector.extract_strided_slice %23 {offsets = [0, 0], sizes = [8, 128], strides = [1, 1]} : vector<8x384xf32> to vector<8x128xf32>
    %27 = vector.extract_strided_slice %25 {offsets = [0, 0], sizes = [8, 128], strides = [1, 1]} : vector<8x384xf32> to vector<8x128xf32>
    %28 = arith.addf %26, %27 : vector<8x128xf32>
    %29 = arith.negf %28 : vector<8x128xf32>
    %30 = math.exp %29 : vector<8x128xf32>
    %cst_19 = arith.constant 1.000000e+00 : f32
    %31 = vector.broadcast %cst_19 : f32 to vector<8x128xf32>
    %32 = arith.addf %31, %30 : vector<8x128xf32>
    %33 = arith.divf %31, %32 : vector<8x128xf32>
    %34 = vector.extract_strided_slice %23 {offsets = [0, 128], sizes = [8, 128], strides = [1, 1]} : vector<8x384xf32> to vector<8x128xf32>
    %35 = vector.extract_strided_slice %25 {offsets = [0, 128], sizes = [8, 128], strides = [1, 1]} : vector<8x384xf32> to vector<8x128xf32>
    %36 = arith.addf %34, %35 : vector<8x128xf32>
    %37 = arith.negf %36 : vector<8x128xf32>
    %38 = math.exp %37 : vector<8x128xf32>
    %cst_20 = arith.constant 1.000000e+00 : f32
    %39 = vector.broadcast %cst_20 : f32 to vector<8x128xf32>
    %40 = arith.addf %39, %38 : vector<8x128xf32>
    %41 = arith.divf %39, %40 : vector<8x128xf32>
    %42 = vector.extract_strided_slice %23 {offsets = [0, 256], sizes = [8, 128], strides = [1, 1]} : vector<8x384xf32> to vector<8x128xf32>
    %43 = vector.extract_strided_slice %25 {offsets = [0, 256], sizes = [8, 128], strides = [1, 1]} : vector<8x384xf32> to vector<8x128xf32>
    %44 = vector.broadcast %1 : vector<1x128xf32> to vector<8x128xf32>
    %45 = arith.addf %43, %44 : vector<8x128xf32>
    %46 = arith.mulf %33, %45 : vector<8x128xf32>
    %47 = arith.addf %42, %46 : vector<8x128xf32>
    %48 = math.tanh %47 : vector<8x128xf32>
    %cst_21 = arith.constant 1.000000e+00 : f32
    %49 = vector.broadcast %cst_21 : f32 to vector<8x128xf32>
    %50 = arith.subf %49, %41 : vector<8x128xf32>
    %51 = arith.mulf %50, %48 : vector<8x128xf32>
    %52 = arith.mulf %41, %8 : vector<8x128xf32>
    %53 = arith.addf %51, %52 : vector<8x128xf32>
    %c2_i32_22 = arith.constant 2 : i32
    %54 = arith.cmpi sge, %c0_i32_11, %c2_i32_22 : i32
    %55 = arith.extui %54 : i1 to i32
    %c0_i32_23 = arith.constant 0 : i32
    %56 = arith.cmpi ne, %55, %c0_i32_23 : i32
    scf.if %56 {
      %c0_i32_201 = arith.constant 0 : i32
      %c0_i32_202 = arith.constant 0 : i32
      %493 = tpu.memref_slice %arg6[%9, %c0_i32_201, %c0_i32_202] : memref<2x8x128xbf16, #tpu.memory_space<vmem>> -> memref<1x8x128xbf16, #tpu.memory_space<vmem>>
      %494 = tpu.memref_squeeze %493 : memref<1x8x128xbf16, #tpu.memory_space<vmem>> -> memref<8x128xbf16, #tpu.memory_space<vmem>>
      %c0_i32_203 = arith.constant 0 : i32
      %c0_i32_204 = arith.constant 0 : i32
      %495 = tpu.memref_slice %arg4[%c0_i32_11, %c0_i32_203, %c0_i32_204] : memref<8x8x128xbf16, #tpu.memory_space<any>> -> memref<1x8x128xbf16, #tpu.memory_space<any>>
      %496 = tpu.memref_squeeze %495 : memref<1x8x128xbf16, #tpu.memory_space<any>> -> memref<8x128xbf16, #tpu.memory_space<any>>
      %497 = tpu.memref_slice %arg8[%9] : memref<2x!tpu.dma_semaphore, #tpu.memory_space<semaphore_mem>> -> memref<1x!tpu.dma_semaphore, #tpu.memory_space<semaphore_mem>>
      %498 = tpu.memref_squeeze %497 : memref<1x!tpu.dma_semaphore, #tpu.memory_space<semaphore_mem>> -> memref<!tpu.dma_semaphore, #tpu.memory_space<semaphore_mem>>
      tpu.wait_dma2 semaphore(%498 : memref<!tpu.dma_semaphore, #tpu.memory_space<semaphore_mem>>) src(%494 : memref<8x128xbf16, #tpu.memory_space<vmem>>) dst(%496 : memref<8x128xbf16, #tpu.memory_space<any>>)
    } else {
    }
    %57 = arith.truncf %53 : vector<8x128xf32> to vector<8x128xbf16>
    %58 = arith.index_cast %9 : i32 to index
    %c0_24 = arith.constant 0 : index
    %c0_25 = arith.constant 0 : index
    %59 = vector.load %arg6[%58, %c0_24, %c0_25] : memref<2x8x128xbf16, #tpu.memory_space<vmem>>, vector<1x8x128xbf16>
    %60 = vector.shape_cast %59 : vector<1x8x128xbf16> to vector<8x128xbf16>
    %61 = vector.shape_cast %57 : vector<8x128xbf16> to vector<1x8x128xbf16>
    tpu.vector_store %arg6[%58, %c0_24, %c0_25], %61 {strides = array<i32>} : memref<2x8x128xbf16, #tpu.memory_space<vmem>>, vector<1x8x128xbf16>,
    %c0_i32_26 = arith.constant 0 : i32
    %c0_i32_27 = arith.constant 0 : i32
    %62 = tpu.memref_slice %arg6[%9, %c0_i32_26, %c0_i32_27] : memref<2x8x128xbf16, #tpu.memory_space<vmem>> -> memref<1x8x128xbf16, #tpu.memory_space<vmem>>
    %63 = tpu.memref_squeeze %62 : memref<1x8x128xbf16, #tpu.memory_space<vmem>> -> memref<8x128xbf16, #tpu.memory_space<vmem>>
    %c0_i32_28 = arith.constant 0 : i32
    %c0_i32_29 = arith.constant 0 : i32
    %64 = tpu.memref_slice %arg4[%c0_i32_11, %c0_i32_28, %c0_i32_29] : memref<8x8x128xbf16, #tpu.memory_space<any>> -> memref<1x8x128xbf16, #tpu.memory_space<any>>
    %65 = tpu.memref_squeeze %64 : memref<1x8x128xbf16, #tpu.memory_space<any>> -> memref<8x128xbf16, #tpu.memory_space<any>>
    %66 = tpu.memref_slice %arg8[%9] : memref<2x!tpu.dma_semaphore, #tpu.memory_space<semaphore_mem>> -> memref<1x!tpu.dma_semaphore, #tpu.memory_space<semaphore_mem>>
    %67 = tpu.memref_squeeze %66 : memref<1x!tpu.dma_semaphore, #tpu.memory_space<semaphore_mem>> -> memref<!tpu.dma_semaphore, #tpu.memory_space<semaphore_mem>>
    tpu.enqueue_dma source(%63 : memref<8x128xbf16, #tpu.memory_space<vmem>>) target(%65 : memref<8x128xbf16, #tpu.memory_space<any>>) target_semaphore(%67 : memref<!tpu.dma_semaphore, #tpu.memory_space<semaphore_mem>>)
    %c1_i32_30 = arith.constant 1 : i32
    %c2_i32_31 = arith.constant 2 : i32
    %68 = arith.remsi %c1_i32_30, %c2_i32_31 : i32
    %c0_i32_32 = arith.constant 0 : i32
    %c0_i32_33 = arith.constant 0 : i32
    %69 = tpu.memref_slice %arg0[%c1_i32_30, %c0_i32_32, %c0_i32_33] : memref<8x8x384xbf16, #tpu.memory_space<any>> -> memref<1x8x384xbf16, #tpu.memory_space<any>>
    %70 = tpu.memref_squeeze %69 : memref<1x8x384xbf16, #tpu.memory_space<any>> -> memref<8x384xbf16, #tpu.memory_space<any>>
    %c0_i32_34 = arith.constant 0 : i32
    %c0_i32_35 = arith.constant 0 : i32
    %71 = tpu.memref_slice %arg5[%68, %c0_i32_34, %c0_i32_35] : memref<2x8x384xbf16, #tpu.memory_space<vmem>> -> memref<1x8x384xbf16, #tpu.memory_space<vmem>>
    %72 = tpu.memref_squeeze %71 : memref<1x8x384xbf16, #tpu.memory_space<vmem>> -> memref<8x384xbf16, #tpu.memory_space<vmem>>
    %73 = tpu.memref_slice %arg7[%68] : memref<2x!tpu.dma_semaphore, #tpu.memory_space<semaphore_mem>> -> memref<1x!tpu.dma_semaphore, #tpu.memory_space<semaphore_mem>>
    %74 = tpu.memref_squeeze %73 : memref<1x!tpu.dma_semaphore, #tpu.memory_space<semaphore_mem>> -> memref<!tpu.dma_semaphore, #tpu.memory_space<semaphore_mem>>
    tpu.wait_dma2 semaphore(%74 : memref<!tpu.dma_semaphore, #tpu.memory_space<semaphore_mem>>) src(%70 : memref<8x384xbf16, #tpu.memory_space<any>>) dst(%72 : memref<8x384xbf16, #tpu.memory_space<vmem>>)
    %c1_i32_36 = arith.constant 1 : i32
    %75 = arith.addi %c1_i32_30, %c1_i32_36 : i32
    %c8_i32_37 = arith.constant 8 : i32
    %76 = arith.cmpi slt, %75, %c8_i32_37 : i32
    %77 = arith.extui %76 : i1 to i32
    %c0_i32_38 = arith.constant 0 : i32
    %78 = arith.cmpi ne, %77, %c0_i32_38 : i32
    scf.if %78 {
      %c1_i32_201 = arith.constant 1 : i32
      %493 = arith.addi %c1_i32_30, %c1_i32_201 : i32
      %c1_i32_202 = arith.constant 1 : i32
      %494 = arith.subi %c1_i32_202, %68 : i32
      %c1_i32_203 = arith.constant 1 : i32
      %495 = arith.subi %c1_i32_203, %68 : i32
      %c0_i32_204 = arith.constant 0 : i32
      %c0_i32_205 = arith.constant 0 : i32
      %496 = tpu.memref_slice %arg0[%493, %c0_i32_204, %c0_i32_205] : memref<8x8x384xbf16, #tpu.memory_space<any>> -> memref<1x8x384xbf16, #tpu.memory_space<any>>
      %497 = tpu.memref_squeeze %496 : memref<1x8x384xbf16, #tpu.memory_space<any>> -> memref<8x384xbf16, #tpu.memory_space<any>>
      %c0_i32_206 = arith.constant 0 : i32
      %c0_i32_207 = arith.constant 0 : i32
      %498 = tpu.memref_slice %arg5[%494, %c0_i32_206, %c0_i32_207] : memref<2x8x384xbf16, #tpu.memory_space<vmem>> -> memref<1x8x384xbf16, #tpu.memory_space<vmem>>
      %499 = tpu.memref_squeeze %498 : memref<1x8x384xbf16, #tpu.memory_space<vmem>> -> memref<8x384xbf16, #tpu.memory_space<vmem>>
      %500 = tpu.memref_slice %arg7[%495] : memref<2x!tpu.dma_semaphore, #tpu.memory_space<semaphore_mem>> -> memref<1x!tpu.dma_semaphore, #tpu.memory_space<semaphore_mem>>
      %501 = tpu.memref_squeeze %500 : memref<1x!tpu.dma_semaphore, #tpu.memory_space<semaphore_mem>> -> memref<!tpu.dma_semaphore, #tpu.memory_space<semaphore_mem>>
      tpu.enqueue_dma source(%497 : memref<8x384xbf16, #tpu.memory_space<any>>) target(%499 : memref<8x384xbf16, #tpu.memory_space<vmem>>) target_semaphore(%501 : memref<!tpu.dma_semaphore, #tpu.memory_space<semaphore_mem>>)
    } else {
    }
    %79 = arith.index_cast %68 : i32 to index
    %c0_39 = arith.constant 0 : index
    %c0_40 = arith.constant 0 : index
    %80 = vector.load %arg5[%79, %c0_39, %c0_40] : memref<2x8x384xbf16, #tpu.memory_space<vmem>>, vector<1x8x384xbf16>
    %81 = vector.shape_cast %80 : vector<1x8x384xbf16> to vector<8x384xbf16>
    %82 = arith.extf %81 : vector<8x384xbf16> to vector<8x384xf32>
    %83 = arith.truncf %53 : vector<8x128xf32> to vector<8x128xbf16>
    %cst_41 = arith.constant dense<0.000000e+00> : vector<8x384xf32>
    %84 = tpu.matmul %83, %0, %cst_41 {dimension_numbers = #tpu.dot_dimension_numbers<[1], [0], [0], [1], [0, 0, 1, 1], [], []>} : vector<8x128xbf16>, vector<128x384xbf16>, vector<8x384xf32> -> vector<8x384xf32>
    %85 = vector.extract_strided_slice %82 {offsets = [0, 0], sizes = [8, 128], strides = [1, 1]} : vector<8x384xf32> to vector<8x128xf32>
    %86 = vector.extract_strided_slice %84 {offsets = [0, 0], sizes = [8, 128], strides = [1, 1]} : vector<8x384xf32> to vector<8x128xf32>
    %87 = arith.addf %85, %86 : vector<8x128xf32>
    %88 = arith.negf %87 : vector<8x128xf32>
    %89 = math.exp %88 : vector<8x128xf32>
    %cst_42 = arith.constant 1.000000e+00 : f32
    %90 = vector.broadcast %cst_42 : f32 to vector<8x128xf32>
    %91 = arith.addf %90, %89 : vector<8x128xf32>
    %92 = arith.divf %90, %91 : vector<8x128xf32>
    %93 = vector.extract_strided_slice %82 {offsets = [0, 128], sizes = [8, 128], strides = [1, 1]} : vector<8x384xf32> to vector<8x128xf32>
    %94 = vector.extract_strided_slice %84 {offsets = [0, 128], sizes = [8, 128], strides = [1, 1]} : vector<8x384xf32> to vector<8x128xf32>
    %95 = arith.addf %93, %94 : vector<8x128xf32>
    %96 = arith.negf %95 : vector<8x128xf32>
    %97 = math.exp %96 : vector<8x128xf32>
    %cst_43 = arith.constant 1.000000e+00 : f32
    %98 = vector.broadcast %cst_43 : f32 to vector<8x128xf32>
    %99 = arith.addf %98, %97 : vector<8x128xf32>
    %100 = arith.divf %98, %99 : vector<8x128xf32>
    %101 = vector.extract_strided_slice %82 {offsets = [0, 256], sizes = [8, 128], strides = [1, 1]} : vector<8x384xf32> to vector<8x128xf32>
    %102 = vector.extract_strided_slice %84 {offsets = [0, 256], sizes = [8, 128], strides = [1, 1]} : vector<8x384xf32> to vector<8x128xf32>
    %103 = vector.broadcast %1 : vector<1x128xf32> to vector<8x128xf32>
    %104 = arith.addf %102, %103 : vector<8x128xf32>
    %105 = arith.mulf %92, %104 : vector<8x128xf32>
    %106 = arith.addf %101, %105 : vector<8x128xf32>
    %107 = math.tanh %106 : vector<8x128xf32>
    %cst_44 = arith.constant 1.000000e+00 : f32
    %108 = vector.broadcast %cst_44 : f32 to vector<8x128xf32>
    %109 = arith.subf %108, %100 : vector<8x128xf32>
    %110 = arith.mulf %109, %107 : vector<8x128xf32>
    %111 = arith.mulf %100, %53 : vector<8x128xf32>
    %112 = arith.addf %110, %111 : vector<8x128xf32>
    %c2_i32_45 = arith.constant 2 : i32
    %113 = arith.cmpi sge, %c1_i32_30, %c2_i32_45 : i32
    %114 = arith.extui %113 : i1 to i32
    %c0_i32_46 = arith.constant 0 : i32
    %115 = arith.cmpi ne, %114, %c0_i32_46 : i32
    scf.if %115 {
      %c0_i32_201 = arith.constant 0 : i32
      %c0_i32_202 = arith.constant 0 : i32
      %493 = tpu.memref_slice %arg6[%68, %c0_i32_201, %c0_i32_202] : memref<2x8x128xbf16, #tpu.memory_space<vmem>> -> memref<1x8x128xbf16, #tpu.memory_space<vmem>>
      %494 = tpu.memref_squeeze %493 : memref<1x8x128xbf16, #tpu.memory_space<vmem>> -> memref<8x128xbf16, #tpu.memory_space<vmem>>
      %c0_i32_203 = arith.constant 0 : i32
      %c0_i32_204 = arith.constant 0 : i32
      %495 = tpu.memref_slice %arg4[%c1_i32_30, %c0_i32_203, %c0_i32_204] : memref<8x8x128xbf16, #tpu.memory_space<any>> -> memref<1x8x128xbf16, #tpu.memory_space<any>>
      %496 = tpu.memref_squeeze %495 : memref<1x8x128xbf16, #tpu.memory_space<any>> -> memref<8x128xbf16, #tpu.memory_space<any>>
      %497 = tpu.memref_slice %arg8[%68] : memref<2x!tpu.dma_semaphore, #tpu.memory_space<semaphore_mem>> -> memref<1x!tpu.dma_semaphore, #tpu.memory_space<semaphore_mem>>
      %498 = tpu.memref_squeeze %497 : memref<1x!tpu.dma_semaphore, #tpu.memory_space<semaphore_mem>> -> memref<!tpu.dma_semaphore, #tpu.memory_space<semaphore_mem>>
      tpu.wait_dma2 semaphore(%498 : memref<!tpu.dma_semaphore, #tpu.memory_space<semaphore_mem>>) src(%494 : memref<8x128xbf16, #tpu.memory_space<vmem>>) dst(%496 : memref<8x128xbf16, #tpu.memory_space<any>>)
    } else {
    }
    %116 = arith.truncf %112 : vector<8x128xf32> to vector<8x128xbf16>
    %117 = arith.index_cast %68 : i32 to index
    %c0_47 = arith.constant 0 : index
    %c0_48 = arith.constant 0 : index
    %118 = vector.load %arg6[%117, %c0_47, %c0_48] : memref<2x8x128xbf16, #tpu.memory_space<vmem>>, vector<1x8x128xbf16>
    %119 = vector.shape_cast %118 : vector<1x8x128xbf16> to vector<8x128xbf16>
    %120 = vector.shape_cast %116 : vector<8x128xbf16> to vector<1x8x128xbf16>
    tpu.vector_store %arg6[%117, %c0_47, %c0_48], %120 {strides = array<i32>} : memref<2x8x128xbf16, #tpu.memory_space<vmem>>, vector<1x8x128xbf16>,
    %c0_i32_49 = arith.constant 0 : i32
    %c0_i32_50 = arith.constant 0 : i32
    %121 = tpu.memref_slice %arg6[%68, %c0_i32_49, %c0_i32_50] : memref<2x8x128xbf16, #tpu.memory_space<vmem>> -> memref<1x8x128xbf16, #tpu.memory_space<vmem>>
    %122 = tpu.memref_squeeze %121 : memref<1x8x128xbf16, #tpu.memory_space<vmem>> -> memref<8x128xbf16, #tpu.memory_space<vmem>>
    %c0_i32_51 = arith.constant 0 : i32
    %c0_i32_52 = arith.constant 0 : i32
    %123 = tpu.memref_slice %arg4[%c1_i32_30, %c0_i32_51, %c0_i32_52] : memref<8x8x128xbf16, #tpu.memory_space<any>> -> memref<1x8x128xbf16, #tpu.memory_space<any>>
    %124 = tpu.memref_squeeze %123 : memref<1x8x128xbf16, #tpu.memory_space<any>> -> memref<8x128xbf16, #tpu.memory_space<any>>
    %125 = tpu.memref_slice %arg8[%68] : memref<2x!tpu.dma_semaphore, #tpu.memory_space<semaphore_mem>> -> memref<1x!tpu.dma_semaphore, #tpu.memory_space<semaphore_mem>>
    %126 = tpu.memref_squeeze %125 : memref<1x!tpu.dma_semaphore, #tpu.memory_space<semaphore_mem>> -> memref<!tpu.dma_semaphore, #tpu.memory_space<semaphore_mem>>
    tpu.enqueue_dma source(%122 : memref<8x128xbf16, #tpu.memory_space<vmem>>) target(%124 : memref<8x128xbf16, #tpu.memory_space<any>>) target_semaphore(%126 : memref<!tpu.dma_semaphore, #tpu.memory_space<semaphore_mem>>)
    %c2_i32_53 = arith.constant 2 : i32
    %c2_i32_54 = arith.constant 2 : i32
    %127 = arith.remsi %c2_i32_53, %c2_i32_54 : i32
    %c0_i32_55 = arith.constant 0 : i32
    %c0_i32_56 = arith.constant 0 : i32
    %128 = tpu.memref_slice %arg0[%c2_i32_53, %c0_i32_55, %c0_i32_56] : memref<8x8x384xbf16, #tpu.memory_space<any>> -> memref<1x8x384xbf16, #tpu.memory_space<any>>
    %129 = tpu.memref_squeeze %128 : memref<1x8x384xbf16, #tpu.memory_space<any>> -> memref<8x384xbf16, #tpu.memory_space<any>>
    %c0_i32_57 = arith.constant 0 : i32
    %c0_i32_58 = arith.constant 0 : i32
    %130 = tpu.memref_slice %arg5[%127, %c0_i32_57, %c0_i32_58] : memref<2x8x384xbf16, #tpu.memory_space<vmem>> -> memref<1x8x384xbf16, #tpu.memory_space<vmem>>
    %131 = tpu.memref_squeeze %130 : memref<1x8x384xbf16, #tpu.memory_space<vmem>> -> memref<8x384xbf16, #tpu.memory_space<vmem>>
    %132 = tpu.memref_slice %arg7[%127] : memref<2x!tpu.dma_semaphore, #tpu.memory_space<semaphore_mem>> -> memref<1x!tpu.dma_semaphore, #tpu.memory_space<semaphore_mem>>
    %133 = tpu.memref_squeeze %132 : memref<1x!tpu.dma_semaphore, #tpu.memory_space<semaphore_mem>> -> memref<!tpu.dma_semaphore, #tpu.memory_space<semaphore_mem>>
    tpu.wait_dma2 semaphore(%133 : memref<!tpu.dma_semaphore, #tpu.memory_space<semaphore_mem>>) src(%129 : memref<8x384xbf16, #tpu.memory_space<any>>) dst(%131 : memref<8x384xbf16, #tpu.memory_space<vmem>>)
    %c1_i32_59 = arith.constant 1 : i32
    %134 = arith.addi %c2_i32_53, %c1_i32_59 : i32
    %c8_i32_60 = arith.constant 8 : i32
    %135 = arith.cmpi slt, %134, %c8_i32_60 : i32
    %136 = arith.extui %135 : i1 to i32
    %c0_i32_61 = arith.constant 0 : i32
    %137 = arith.cmpi ne, %136, %c0_i32_61 : i32
    scf.if %137 {
      %c1_i32_201 = arith.constant 1 : i32
      %493 = arith.addi %c2_i32_53, %c1_i32_201 : i32
      %c1_i32_202 = arith.constant 1 : i32
      %494 = arith.subi %c1_i32_202, %127 : i32
      %c1_i32_203 = arith.constant 1 : i32
      %495 = arith.subi %c1_i32_203, %127 : i32
      %c0_i32_204 = arith.constant 0 : i32
      %c0_i32_205 = arith.constant 0 : i32
      %496 = tpu.memref_slice %arg0[%493, %c0_i32_204, %c0_i32_205] : memref<8x8x384xbf16, #tpu.memory_space<any>> -> memref<1x8x384xbf16, #tpu.memory_space<any>>
      %497 = tpu.memref_squeeze %496 : memref<1x8x384xbf16, #tpu.memory_space<any>> -> memref<8x384xbf16, #tpu.memory_space<any>>
      %c0_i32_206 = arith.constant 0 : i32
      %c0_i32_207 = arith.constant 0 : i32
      %498 = tpu.memref_slice %arg5[%494, %c0_i32_206, %c0_i32_207] : memref<2x8x384xbf16, #tpu.memory_space<vmem>> -> memref<1x8x384xbf16, #tpu.memory_space<vmem>>
      %499 = tpu.memref_squeeze %498 : memref<1x8x384xbf16, #tpu.memory_space<vmem>> -> memref<8x384xbf16, #tpu.memory_space<vmem>>
      %500 = tpu.memref_slice %arg7[%495] : memref<2x!tpu.dma_semaphore, #tpu.memory_space<semaphore_mem>> -> memref<1x!tpu.dma_semaphore, #tpu.memory_space<semaphore_mem>>
      %501 = tpu.memref_squeeze %500 : memref<1x!tpu.dma_semaphore, #tpu.memory_space<semaphore_mem>> -> memref<!tpu.dma_semaphore, #tpu.memory_space<semaphore_mem>>
      tpu.enqueue_dma source(%497 : memref<8x384xbf16, #tpu.memory_space<any>>) target(%499 : memref<8x384xbf16, #tpu.memory_space<vmem>>) target_semaphore(%501 : memref<!tpu.dma_semaphore, #tpu.memory_space<semaphore_mem>>)
    } else {
    }
    %138 = arith.index_cast %127 : i32 to index
    %c0_62 = arith.constant 0 : index
    %c0_63 = arith.constant 0 : index
    %139 = vector.load %arg5[%138, %c0_62, %c0_63] : memref<2x8x384xbf16, #tpu.memory_space<vmem>>, vector<1x8x384xbf16>
    %140 = vector.shape_cast %139 : vector<1x8x384xbf16> to vector<8x384xbf16>
    %141 = arith.extf %140 : vector<8x384xbf16> to vector<8x384xf32>
    %142 = arith.truncf %112 : vector<8x128xf32> to vector<8x128xbf16>
    %cst_64 = arith.constant dense<0.000000e+00> : vector<8x384xf32>
    %143 = tpu.matmul %142, %0, %cst_64 {dimension_numbers = #tpu.dot_dimension_numbers<[1], [0], [0], [1], [0, 0, 1, 1], [], []>} : vector<8x128xbf16>, vector<128x384xbf16>, vector<8x384xf32> -> vector<8x384xf32>
    %144 = vector.extract_strided_slice %141 {offsets = [0, 0], sizes = [8, 128], strides = [1, 1]} : vector<8x384xf32> to vector<8x128xf32>
    %145 = vector.extract_strided_slice %143 {offsets = [0, 0], sizes = [8, 128], strides = [1, 1]} : vector<8x384xf32> to vector<8x128xf32>
    %146 = arith.addf %144, %145 : vector<8x128xf32>
    %147 = arith.negf %146 : vector<8x128xf32>
    %148 = math.exp %147 : vector<8x128xf32>
    %cst_65 = arith.constant 1.000000e+00 : f32
    %149 = vector.broadcast %cst_65 : f32 to vector<8x128xf32>
    %150 = arith.addf %149, %148 : vector<8x128xf32>
    %151 = arith.divf %149, %150 : vector<8x128xf32>
    %152 = vector.extract_strided_slice %141 {offsets = [0, 128], sizes = [8, 128], strides = [1, 1]} : vector<8x384xf32> to vector<8x128xf32>
    %153 = vector.extract_strided_slice %143 {offsets = [0, 128], sizes = [8, 128], strides = [1, 1]} : vector<8x384xf32> to vector<8x128xf32>
    %154 = arith.addf %152, %153 : vector<8x128xf32>
    %155 = arith.negf %154 : vector<8x128xf32>
    %156 = math.exp %155 : vector<8x128xf32>
    %cst_66 = arith.constant 1.000000e+00 : f32
    %157 = vector.broadcast %cst_66 : f32 to vector<8x128xf32>
    %158 = arith.addf %157, %156 : vector<8x128xf32>
    %159 = arith.divf %157, %158 : vector<8x128xf32>
    %160 = vector.extract_strided_slice %141 {offsets = [0, 256], sizes = [8, 128], strides = [1, 1]} : vector<8x384xf32> to vector<8x128xf32>
    %161 = vector.extract_strided_slice %143 {offsets = [0, 256], sizes = [8, 128], strides = [1, 1]} : vector<8x384xf32> to vector<8x128xf32>
    %162 = vector.broadcast %1 : vector<1x128xf32> to vector<8x128xf32>
    %163 = arith.addf %161, %162 : vector<8x128xf32>
    %164 = arith.mulf %151, %163 : vector<8x128xf32>
    %165 = arith.addf %160, %164 : vector<8x128xf32>
    %166 = math.tanh %165 : vector<8x128xf32>
    %cst_67 = arith.constant 1.000000e+00 : f32
    %167 = vector.broadcast %cst_67 : f32 to vector<8x128xf32>
    %168 = arith.subf %167, %159 : vector<8x128xf32>
    %169 = arith.mulf %168, %166 : vector<8x128xf32>
    %170 = arith.mulf %159, %112 : vector<8x128xf32>
    %171 = arith.addf %169, %170 : vector<8x128xf32>
    %c2_i32_68 = arith.constant 2 : i32
    %172 = arith.cmpi sge, %c2_i32_53, %c2_i32_68 : i32
    %173 = arith.extui %172 : i1 to i32
    %c0_i32_69 = arith.constant 0 : i32
    %174 = arith.cmpi ne, %173, %c0_i32_69 : i32
    scf.if %174 {
      %c0_i32_201 = arith.constant 0 : i32
      %c0_i32_202 = arith.constant 0 : i32
      %493 = tpu.memref_slice %arg6[%127, %c0_i32_201, %c0_i32_202] : memref<2x8x128xbf16, #tpu.memory_space<vmem>> -> memref<1x8x128xbf16, #tpu.memory_space<vmem>>
      %494 = tpu.memref_squeeze %493 : memref<1x8x128xbf16, #tpu.memory_space<vmem>> -> memref<8x128xbf16, #tpu.memory_space<vmem>>
      %c0_i32_203 = arith.constant 0 : i32
      %c0_i32_204 = arith.constant 0 : i32
      %495 = tpu.memref_slice %arg4[%c2_i32_53, %c0_i32_203, %c0_i32_204] : memref<8x8x128xbf16, #tpu.memory_space<any>> -> memref<1x8x128xbf16, #tpu.memory_space<any>>
      %496 = tpu.memref_squeeze %495 : memref<1x8x128xbf16, #tpu.memory_space<any>> -> memref<8x128xbf16, #tpu.memory_space<any>>
      %497 = tpu.memref_slice %arg8[%127] : memref<2x!tpu.dma_semaphore, #tpu.memory_space<semaphore_mem>> -> memref<1x!tpu.dma_semaphore, #tpu.memory_space<semaphore_mem>>
      %498 = tpu.memref_squeeze %497 : memref<1x!tpu.dma_semaphore, #tpu.memory_space<semaphore_mem>> -> memref<!tpu.dma_semaphore, #tpu.memory_space<semaphore_mem>>
      tpu.wait_dma2 semaphore(%498 : memref<!tpu.dma_semaphore, #tpu.memory_space<semaphore_mem>>) src(%494 : memref<8x128xbf16, #tpu.memory_space<vmem>>) dst(%496 : memref<8x128xbf16, #tpu.memory_space<any>>)
    } else {
    }
    %175 = arith.truncf %171 : vector<8x128xf32> to vector<8x128xbf16>
    %176 = arith.index_cast %127 : i32 to index
    %c0_70 = arith.constant 0 : index
    %c0_71 = arith.constant 0 : index
    %177 = vector.load %arg6[%176, %c0_70, %c0_71] : memref<2x8x128xbf16, #tpu.memory_space<vmem>>, vector<1x8x128xbf16>
    %178 = vector.shape_cast %177 : vector<1x8x128xbf16> to vector<8x128xbf16>
    %179 = vector.shape_cast %175 : vector<8x128xbf16> to vector<1x8x128xbf16>
    tpu.vector_store %arg6[%176, %c0_70, %c0_71], %179 {strides = array<i32>} : memref<2x8x128xbf16, #tpu.memory_space<vmem>>, vector<1x8x128xbf16>,
    %c0_i32_72 = arith.constant 0 : i32
    %c0_i32_73 = arith.constant 0 : i32
    %180 = tpu.memref_slice %arg6[%127, %c0_i32_72, %c0_i32_73] : memref<2x8x128xbf16, #tpu.memory_space<vmem>> -> memref<1x8x128xbf16, #tpu.memory_space<vmem>>
    %181 = tpu.memref_squeeze %180 : memref<1x8x128xbf16, #tpu.memory_space<vmem>> -> memref<8x128xbf16, #tpu.memory_space<vmem>>
    %c0_i32_74 = arith.constant 0 : i32
    %c0_i32_75 = arith.constant 0 : i32
    %182 = tpu.memref_slice %arg4[%c2_i32_53, %c0_i32_74, %c0_i32_75] : memref<8x8x128xbf16, #tpu.memory_space<any>> -> memref<1x8x128xbf16, #tpu.memory_space<any>>
    %183 = tpu.memref_squeeze %182 : memref<1x8x128xbf16, #tpu.memory_space<any>> -> memref<8x128xbf16, #tpu.memory_space<any>>
    %184 = tpu.memref_slice %arg8[%127] : memref<2x!tpu.dma_semaphore, #tpu.memory_space<semaphore_mem>> -> memref<1x!tpu.dma_semaphore, #tpu.memory_space<semaphore_mem>>
    %185 = tpu.memref_squeeze %184 : memref<1x!tpu.dma_semaphore, #tpu.memory_space<semaphore_mem>> -> memref<!tpu.dma_semaphore, #tpu.memory_space<semaphore_mem>>
    tpu.enqueue_dma source(%181 : memref<8x128xbf16, #tpu.memory_space<vmem>>) target(%183 : memref<8x128xbf16, #tpu.memory_space<any>>) target_semaphore(%185 : memref<!tpu.dma_semaphore, #tpu.memory_space<semaphore_mem>>)
    %c3_i32 = arith.constant 3 : i32
    %c2_i32_76 = arith.constant 2 : i32
    %186 = arith.remsi %c3_i32, %c2_i32_76 : i32
    %c0_i32_77 = arith.constant 0 : i32
    %c0_i32_78 = arith.constant 0 : i32
    %187 = tpu.memref_slice %arg0[%c3_i32, %c0_i32_77, %c0_i32_78] : memref<8x8x384xbf16, #tpu.memory_space<any>> -> memref<1x8x384xbf16, #tpu.memory_space<any>>
    %188 = tpu.memref_squeeze %187 : memref<1x8x384xbf16, #tpu.memory_space<any>> -> memref<8x384xbf16, #tpu.memory_space<any>>
    %c0_i32_79 = arith.constant 0 : i32
    %c0_i32_80 = arith.constant 0 : i32
    %189 = tpu.memref_slice %arg5[%186, %c0_i32_79, %c0_i32_80] : memref<2x8x384xbf16, #tpu.memory_space<vmem>> -> memref<1x8x384xbf16, #tpu.memory_space<vmem>>
    %190 = tpu.memref_squeeze %189 : memref<1x8x384xbf16, #tpu.memory_space<vmem>> -> memref<8x384xbf16, #tpu.memory_space<vmem>>
    %191 = tpu.memref_slice %arg7[%186] : memref<2x!tpu.dma_semaphore, #tpu.memory_space<semaphore_mem>> -> memref<1x!tpu.dma_semaphore, #tpu.memory_space<semaphore_mem>>
    %192 = tpu.memref_squeeze %191 : memref<1x!tpu.dma_semaphore, #tpu.memory_space<semaphore_mem>> -> memref<!tpu.dma_semaphore, #tpu.memory_space<semaphore_mem>>
    tpu.wait_dma2 semaphore(%192 : memref<!tpu.dma_semaphore, #tpu.memory_space<semaphore_mem>>) src(%188 : memref<8x384xbf16, #tpu.memory_space<any>>) dst(%190 : memref<8x384xbf16, #tpu.memory_space<vmem>>)
    %c1_i32_81 = arith.constant 1 : i32
    %193 = arith.addi %c3_i32, %c1_i32_81 : i32
    %c8_i32_82 = arith.constant 8 : i32
    %194 = arith.cmpi slt, %193, %c8_i32_82 : i32
    %195 = arith.extui %194 : i1 to i32
    %c0_i32_83 = arith.constant 0 : i32
    %196 = arith.cmpi ne, %195, %c0_i32_83 : i32
    scf.if %196 {
      %c1_i32_201 = arith.constant 1 : i32
      %493 = arith.addi %c3_i32, %c1_i32_201 : i32
      %c1_i32_202 = arith.constant 1 : i32
      %494 = arith.subi %c1_i32_202, %186 : i32
      %c1_i32_203 = arith.constant 1 : i32
      %495 = arith.subi %c1_i32_203, %186 : i32
      %c0_i32_204 = arith.constant 0 : i32
      %c0_i32_205 = arith.constant 0 : i32
      %496 = tpu.memref_slice %arg0[%493, %c0_i32_204, %c0_i32_205] : memref<8x8x384xbf16, #tpu.memory_space<any>> -> memref<1x8x384xbf16, #tpu.memory_space<any>>
      %497 = tpu.memref_squeeze %496 : memref<1x8x384xbf16, #tpu.memory_space<any>> -> memref<8x384xbf16, #tpu.memory_space<any>>
      %c0_i32_206 = arith.constant 0 : i32
      %c0_i32_207 = arith.constant 0 : i32
      %498 = tpu.memref_slice %arg5[%494, %c0_i32_206, %c0_i32_207] : memref<2x8x384xbf16, #tpu.memory_space<vmem>> -> memref<1x8x384xbf16, #tpu.memory_space<vmem>>
      %499 = tpu.memref_squeeze %498 : memref<1x8x384xbf16, #tpu.memory_space<vmem>> -> memref<8x384xbf16, #tpu.memory_space<vmem>>
      %500 = tpu.memref_slice %arg7[%495] : memref<2x!tpu.dma_semaphore, #tpu.memory_space<semaphore_mem>> -> memref<1x!tpu.dma_semaphore, #tpu.memory_space<semaphore_mem>>
      %501 = tpu.memref_squeeze %500 : memref<1x!tpu.dma_semaphore, #tpu.memory_space<semaphore_mem>> -> memref<!tpu.dma_semaphore, #tpu.memory_space<semaphore_mem>>
      tpu.enqueue_dma source(%497 : memref<8x384xbf16, #tpu.memory_space<any>>) target(%499 : memref<8x384xbf16, #tpu.memory_space<vmem>>) target_semaphore(%501 : memref<!tpu.dma_semaphore, #tpu.memory_space<semaphore_mem>>)
    } else {
    }
    %197 = arith.index_cast %186 : i32 to index
    %c0_84 = arith.constant 0 : index
    %c0_85 = arith.constant 0 : index
    %198 = vector.load %arg5[%197, %c0_84, %c0_85] : memref<2x8x384xbf16, #tpu.memory_space<vmem>>, vector<1x8x384xbf16>
    %199 = vector.shape_cast %198 : vector<1x8x384xbf16> to vector<8x384xbf16>
    %200 = arith.extf %199 : vector<8x384xbf16> to vector<8x384xf32>
    %201 = arith.truncf %171 : vector<8x128xf32> to vector<8x128xbf16>
    %cst_86 = arith.constant dense<0.000000e+00> : vector<8x384xf32>
    %202 = tpu.matmul %201, %0, %cst_86 {dimension_numbers = #tpu.dot_dimension_numbers<[1], [0], [0], [1], [0, 0, 1, 1], [], []>} : vector<8x128xbf16>, vector<128x384xbf16>, vector<8x384xf32> -> vector<8x384xf32>
    %203 = vector.extract_strided_slice %200 {offsets = [0, 0], sizes = [8, 128], strides = [1, 1]} : vector<8x384xf32> to vector<8x128xf32>
    %204 = vector.extract_strided_slice %202 {offsets = [0, 0], sizes = [8, 128], strides = [1, 1]} : vector<8x384xf32> to vector<8x128xf32>
    %205 = arith.addf %203, %204 : vector<8x128xf32>
    %206 = arith.negf %205 : vector<8x128xf32>
    %207 = math.exp %206 : vector<8x128xf32>
    %cst_87 = arith.constant 1.000000e+00 : f32
    %208 = vector.broadcast %cst_87 : f32 to vector<8x128xf32>
    %209 = arith.addf %208, %207 : vector<8x128xf32>
    %210 = arith.divf %208, %209 : vector<8x128xf32>
    %211 = vector.extract_strided_slice %200 {offsets = [0, 128], sizes = [8, 128], strides = [1, 1]} : vector<8x384xf32> to vector<8x128xf32>
    %212 = vector.extract_strided_slice %202 {offsets = [0, 128], sizes = [8, 128], strides = [1, 1]} : vector<8x384xf32> to vector<8x128xf32>
    %213 = arith.addf %211, %212 : vector<8x128xf32>
    %214 = arith.negf %213 : vector<8x128xf32>
    %215 = math.exp %214 : vector<8x128xf32>
    %cst_88 = arith.constant 1.000000e+00 : f32
    %216 = vector.broadcast %cst_88 : f32 to vector<8x128xf32>
    %217 = arith.addf %216, %215 : vector<8x128xf32>
    %218 = arith.divf %216, %217 : vector<8x128xf32>
    %219 = vector.extract_strided_slice %200 {offsets = [0, 256], sizes = [8, 128], strides = [1, 1]} : vector<8x384xf32> to vector<8x128xf32>
    %220 = vector.extract_strided_slice %202 {offsets = [0, 256], sizes = [8, 128], strides = [1, 1]} : vector<8x384xf32> to vector<8x128xf32>
    %221 = vector.broadcast %1 : vector<1x128xf32> to vector<8x128xf32>
    %222 = arith.addf %220, %221 : vector<8x128xf32>
    %223 = arith.mulf %210, %222 : vector<8x128xf32>
    %224 = arith.addf %219, %223 : vector<8x128xf32>
    %225 = math.tanh %224 : vector<8x128xf32>
    %cst_89 = arith.constant 1.000000e+00 : f32
    %226 = vector.broadcast %cst_89 : f32 to vector<8x128xf32>
    %227 = arith.subf %226, %218 : vector<8x128xf32>
    %228 = arith.mulf %227, %225 : vector<8x128xf32>
    %229 = arith.mulf %218, %171 : vector<8x128xf32>
    %230 = arith.addf %228, %229 : vector<8x128xf32>
    %c2_i32_90 = arith.constant 2 : i32
    %231 = arith.cmpi sge, %c3_i32, %c2_i32_90 : i32
    %232 = arith.extui %231 : i1 to i32
    %c0_i32_91 = arith.constant 0 : i32
    %233 = arith.cmpi ne, %232, %c0_i32_91 : i32
    scf.if %233 {
      %c0_i32_201 = arith.constant 0 : i32
      %c0_i32_202 = arith.constant 0 : i32
      %493 = tpu.memref_slice %arg6[%186, %c0_i32_201, %c0_i32_202] : memref<2x8x128xbf16, #tpu.memory_space<vmem>> -> memref<1x8x128xbf16, #tpu.memory_space<vmem>>
      %494 = tpu.memref_squeeze %493 : memref<1x8x128xbf16, #tpu.memory_space<vmem>> -> memref<8x128xbf16, #tpu.memory_space<vmem>>
      %c0_i32_203 = arith.constant 0 : i32
      %c0_i32_204 = arith.constant 0 : i32
      %495 = tpu.memref_slice %arg4[%c3_i32, %c0_i32_203, %c0_i32_204] : memref<8x8x128xbf16, #tpu.memory_space<any>> -> memref<1x8x128xbf16, #tpu.memory_space<any>>
      %496 = tpu.memref_squeeze %495 : memref<1x8x128xbf16, #tpu.memory_space<any>> -> memref<8x128xbf16, #tpu.memory_space<any>>
      %497 = tpu.memref_slice %arg8[%186] : memref<2x!tpu.dma_semaphore, #tpu.memory_space<semaphore_mem>> -> memref<1x!tpu.dma_semaphore, #tpu.memory_space<semaphore_mem>>
      %498 = tpu.memref_squeeze %497 : memref<1x!tpu.dma_semaphore, #tpu.memory_space<semaphore_mem>> -> memref<!tpu.dma_semaphore, #tpu.memory_space<semaphore_mem>>
      tpu.wait_dma2 semaphore(%498 : memref<!tpu.dma_semaphore, #tpu.memory_space<semaphore_mem>>) src(%494 : memref<8x128xbf16, #tpu.memory_space<vmem>>) dst(%496 : memref<8x128xbf16, #tpu.memory_space<any>>)
    } else {
    }
    %234 = arith.truncf %230 : vector<8x128xf32> to vector<8x128xbf16>
    %235 = arith.index_cast %186 : i32 to index
    %c0_92 = arith.constant 0 : index
    %c0_93 = arith.constant 0 : index
    %236 = vector.load %arg6[%235, %c0_92, %c0_93] : memref<2x8x128xbf16, #tpu.memory_space<vmem>>, vector<1x8x128xbf16>
    %237 = vector.shape_cast %236 : vector<1x8x128xbf16> to vector<8x128xbf16>
    %238 = vector.shape_cast %234 : vector<8x128xbf16> to vector<1x8x128xbf16>
    tpu.vector_store %arg6[%235, %c0_92, %c0_93], %238 {strides = array<i32>} : memref<2x8x128xbf16, #tpu.memory_space<vmem>>, vector<1x8x128xbf16>,
    %c0_i32_94 = arith.constant 0 : i32
    %c0_i32_95 = arith.constant 0 : i32
    %239 = tpu.memref_slice %arg6[%186, %c0_i32_94, %c0_i32_95] : memref<2x8x128xbf16, #tpu.memory_space<vmem>> -> memref<1x8x128xbf16, #tpu.memory_space<vmem>>
    %240 = tpu.memref_squeeze %239 : memref<1x8x128xbf16, #tpu.memory_space<vmem>> -> memref<8x128xbf16, #tpu.memory_space<vmem>>
    %c0_i32_96 = arith.constant 0 : i32
    %c0_i32_97 = arith.constant 0 : i32
    %241 = tpu.memref_slice %arg4[%c3_i32, %c0_i32_96, %c0_i32_97] : memref<8x8x128xbf16, #tpu.memory_space<any>> -> memref<1x8x128xbf16, #tpu.memory_space<any>>
    %242 = tpu.memref_squeeze %241 : memref<1x8x128xbf16, #tpu.memory_space<any>> -> memref<8x128xbf16, #tpu.memory_space<any>>
    %243 = tpu.memref_slice %arg8[%186] : memref<2x!tpu.dma_semaphore, #tpu.memory_space<semaphore_mem>> -> memref<1x!tpu.dma_semaphore, #tpu.memory_space<semaphore_mem>>
    %244 = tpu.memref_squeeze %243 : memref<1x!tpu.dma_semaphore, #tpu.memory_space<semaphore_mem>> -> memref<!tpu.dma_semaphore, #tpu.memory_space<semaphore_mem>>
    tpu.enqueue_dma source(%240 : memref<8x128xbf16, #tpu.memory_space<vmem>>) target(%242 : memref<8x128xbf16, #tpu.memory_space<any>>) target_semaphore(%244 : memref<!tpu.dma_semaphore, #tpu.memory_space<semaphore_mem>>)
    %c4_i32 = arith.constant 4 : i32
    %c2_i32_98 = arith.constant 2 : i32
    %245 = arith.remsi %c4_i32, %c2_i32_98 : i32
    %c0_i32_99 = arith.constant 0 : i32
    %c0_i32_100 = arith.constant 0 : i32
    %246 = tpu.memref_slice %arg0[%c4_i32, %c0_i32_99, %c0_i32_100] : memref<8x8x384xbf16, #tpu.memory_space<any>> -> memref<1x8x384xbf16, #tpu.memory_space<any>>
    %247 = tpu.memref_squeeze %246 : memref<1x8x384xbf16, #tpu.memory_space<any>> -> memref<8x384xbf16, #tpu.memory_space<any>>
    %c0_i32_101 = arith.constant 0 : i32
    %c0_i32_102 = arith.constant 0 : i32
    %248 = tpu.memref_slice %arg5[%245, %c0_i32_101, %c0_i32_102] : memref<2x8x384xbf16, #tpu.memory_space<vmem>> -> memref<1x8x384xbf16, #tpu.memory_space<vmem>>
    %249 = tpu.memref_squeeze %248 : memref<1x8x384xbf16, #tpu.memory_space<vmem>> -> memref<8x384xbf16, #tpu.memory_space<vmem>>
    %250 = tpu.memref_slice %arg7[%245] : memref<2x!tpu.dma_semaphore, #tpu.memory_space<semaphore_mem>> -> memref<1x!tpu.dma_semaphore, #tpu.memory_space<semaphore_mem>>
    %251 = tpu.memref_squeeze %250 : memref<1x!tpu.dma_semaphore, #tpu.memory_space<semaphore_mem>> -> memref<!tpu.dma_semaphore, #tpu.memory_space<semaphore_mem>>
    tpu.wait_dma2 semaphore(%251 : memref<!tpu.dma_semaphore, #tpu.memory_space<semaphore_mem>>) src(%247 : memref<8x384xbf16, #tpu.memory_space<any>>) dst(%249 : memref<8x384xbf16, #tpu.memory_space<vmem>>)
    %c1_i32_103 = arith.constant 1 : i32
    %252 = arith.addi %c4_i32, %c1_i32_103 : i32
    %c8_i32_104 = arith.constant 8 : i32
    %253 = arith.cmpi slt, %252, %c8_i32_104 : i32
    %254 = arith.extui %253 : i1 to i32
    %c0_i32_105 = arith.constant 0 : i32
    %255 = arith.cmpi ne, %254, %c0_i32_105 : i32
    scf.if %255 {
      %c1_i32_201 = arith.constant 1 : i32
      %493 = arith.addi %c4_i32, %c1_i32_201 : i32
      %c1_i32_202 = arith.constant 1 : i32
      %494 = arith.subi %c1_i32_202, %245 : i32
      %c1_i32_203 = arith.constant 1 : i32
      %495 = arith.subi %c1_i32_203, %245 : i32
      %c0_i32_204 = arith.constant 0 : i32
      %c0_i32_205 = arith.constant 0 : i32
      %496 = tpu.memref_slice %arg0[%493, %c0_i32_204, %c0_i32_205] : memref<8x8x384xbf16, #tpu.memory_space<any>> -> memref<1x8x384xbf16, #tpu.memory_space<any>>
      %497 = tpu.memref_squeeze %496 : memref<1x8x384xbf16, #tpu.memory_space<any>> -> memref<8x384xbf16, #tpu.memory_space<any>>
      %c0_i32_206 = arith.constant 0 : i32
      %c0_i32_207 = arith.constant 0 : i32
      %498 = tpu.memref_slice %arg5[%494, %c0_i32_206, %c0_i32_207] : memref<2x8x384xbf16, #tpu.memory_space<vmem>> -> memref<1x8x384xbf16, #tpu.memory_space<vmem>>
      %499 = tpu.memref_squeeze %498 : memref<1x8x384xbf16, #tpu.memory_space<vmem>> -> memref<8x384xbf16, #tpu.memory_space<vmem>>
      %500 = tpu.memref_slice %arg7[%495] : memref<2x!tpu.dma_semaphore, #tpu.memory_space<semaphore_mem>> -> memref<1x!tpu.dma_semaphore, #tpu.memory_space<semaphore_mem>>
      %501 = tpu.memref_squeeze %500 : memref<1x!tpu.dma_semaphore, #tpu.memory_space<semaphore_mem>> -> memref<!tpu.dma_semaphore, #tpu.memory_space<semaphore_mem>>
      tpu.enqueue_dma source(%497 : memref<8x384xbf16, #tpu.memory_space<any>>) target(%499 : memref<8x384xbf16, #tpu.memory_space<vmem>>) target_semaphore(%501 : memref<!tpu.dma_semaphore, #tpu.memory_space<semaphore_mem>>)
    } else {
    }
    %256 = arith.index_cast %245 : i32 to index
    %c0_106 = arith.constant 0 : index
    %c0_107 = arith.constant 0 : index
    %257 = vector.load %arg5[%256, %c0_106, %c0_107] : memref<2x8x384xbf16, #tpu.memory_space<vmem>>, vector<1x8x384xbf16>
    %258 = vector.shape_cast %257 : vector<1x8x384xbf16> to vector<8x384xbf16>
    %259 = arith.extf %258 : vector<8x384xbf16> to vector<8x384xf32>
    %260 = arith.truncf %230 : vector<8x128xf32> to vector<8x128xbf16>
    %cst_108 = arith.constant dense<0.000000e+00> : vector<8x384xf32>
    %261 = tpu.matmul %260, %0, %cst_108 {dimension_numbers = #tpu.dot_dimension_numbers<[1], [0], [0], [1], [0, 0, 1, 1], [], []>} : vector<8x128xbf16>, vector<128x384xbf16>, vector<8x384xf32> -> vector<8x384xf32>
    %262 = vector.extract_strided_slice %259 {offsets = [0, 0], sizes = [8, 128], strides = [1, 1]} : vector<8x384xf32> to vector<8x128xf32>
    %263 = vector.extract_strided_slice %261 {offsets = [0, 0], sizes = [8, 128], strides = [1, 1]} : vector<8x384xf32> to vector<8x128xf32>
    %264 = arith.addf %262, %263 : vector<8x128xf32>
    %265 = arith.negf %264 : vector<8x128xf32>
    %266 = math.exp %265 : vector<8x128xf32>
    %cst_109 = arith.constant 1.000000e+00 : f32
    %267 = vector.broadcast %cst_109 : f32 to vector<8x128xf32>
    %268 = arith.addf %267, %266 : vector<8x128xf32>
    %269 = arith.divf %267, %268 : vector<8x128xf32>
    %270 = vector.extract_strided_slice %259 {offsets = [0, 128], sizes = [8, 128], strides = [1, 1]} : vector<8x384xf32> to vector<8x128xf32>
    %271 = vector.extract_strided_slice %261 {offsets = [0, 128], sizes = [8, 128], strides = [1, 1]} : vector<8x384xf32> to vector<8x128xf32>
    %272 = arith.addf %270, %271 : vector<8x128xf32>
    %273 = arith.negf %272 : vector<8x128xf32>
    %274 = math.exp %273 : vector<8x128xf32>
    %cst_110 = arith.constant 1.000000e+00 : f32
    %275 = vector.broadcast %cst_110 : f32 to vector<8x128xf32>
    %276 = arith.addf %275, %274 : vector<8x128xf32>
    %277 = arith.divf %275, %276 : vector<8x128xf32>
    %278 = vector.extract_strided_slice %259 {offsets = [0, 256], sizes = [8, 128], strides = [1, 1]} : vector<8x384xf32> to vector<8x128xf32>
    %279 = vector.extract_strided_slice %261 {offsets = [0, 256], sizes = [8, 128], strides = [1, 1]} : vector<8x384xf32> to vector<8x128xf32>
    %280 = vector.broadcast %1 : vector<1x128xf32> to vector<8x128xf32>
    %281 = arith.addf %279, %280 : vector<8x128xf32>
    %282 = arith.mulf %269, %281 : vector<8x128xf32>
    %283 = arith.addf %278, %282 : vector<8x128xf32>
    %284 = math.tanh %283 : vector<8x128xf32>
    %cst_111 = arith.constant 1.000000e+00 : f32
    %285 = vector.broadcast %cst_111 : f32 to vector<8x128xf32>
    %286 = arith.subf %285, %277 : vector<8x128xf32>
    %287 = arith.mulf %286, %284 : vector<8x128xf32>
    %288 = arith.mulf %277, %230 : vector<8x128xf32>
    %289 = arith.addf %287, %288 : vector<8x128xf32>
    %c2_i32_112 = arith.constant 2 : i32
    %290 = arith.cmpi sge, %c4_i32, %c2_i32_112 : i32
    %291 = arith.extui %290 : i1 to i32
    %c0_i32_113 = arith.constant 0 : i32
    %292 = arith.cmpi ne, %291, %c0_i32_113 : i32
    scf.if %292 {
      %c0_i32_201 = arith.constant 0 : i32
      %c0_i32_202 = arith.constant 0 : i32
      %493 = tpu.memref_slice %arg6[%245, %c0_i32_201, %c0_i32_202] : memref<2x8x128xbf16, #tpu.memory_space<vmem>> -> memref<1x8x128xbf16, #tpu.memory_space<vmem>>
      %494 = tpu.memref_squeeze %493 : memref<1x8x128xbf16, #tpu.memory_space<vmem>> -> memref<8x128xbf16, #tpu.memory_space<vmem>>
      %c0_i32_203 = arith.constant 0 : i32
      %c0_i32_204 = arith.constant 0 : i32
      %495 = tpu.memref_slice %arg4[%c4_i32, %c0_i32_203, %c0_i32_204] : memref<8x8x128xbf16, #tpu.memory_space<any>> -> memref<1x8x128xbf16, #tpu.memory_space<any>>
      %496 = tpu.memref_squeeze %495 : memref<1x8x128xbf16, #tpu.memory_space<any>> -> memref<8x128xbf16, #tpu.memory_space<any>>
      %497 = tpu.memref_slice %arg8[%245] : memref<2x!tpu.dma_semaphore, #tpu.memory_space<semaphore_mem>> -> memref<1x!tpu.dma_semaphore, #tpu.memory_space<semaphore_mem>>
      %498 = tpu.memref_squeeze %497 : memref<1x!tpu.dma_semaphore, #tpu.memory_space<semaphore_mem>> -> memref<!tpu.dma_semaphore, #tpu.memory_space<semaphore_mem>>
      tpu.wait_dma2 semaphore(%498 : memref<!tpu.dma_semaphore, #tpu.memory_space<semaphore_mem>>) src(%494 : memref<8x128xbf16, #tpu.memory_space<vmem>>) dst(%496 : memref<8x128xbf16, #tpu.memory_space<any>>)
    } else {
    }
    %293 = arith.truncf %289 : vector<8x128xf32> to vector<8x128xbf16>
    %294 = arith.index_cast %245 : i32 to index
    %c0_114 = arith.constant 0 : index
    %c0_115 = arith.constant 0 : index
    %295 = vector.load %arg6[%294, %c0_114, %c0_115] : memref<2x8x128xbf16, #tpu.memory_space<vmem>>, vector<1x8x128xbf16>
    %296 = vector.shape_cast %295 : vector<1x8x128xbf16> to vector<8x128xbf16>
    %297 = vector.shape_cast %293 : vector<8x128xbf16> to vector<1x8x128xbf16>
    tpu.vector_store %arg6[%294, %c0_114, %c0_115], %297 {strides = array<i32>} : memref<2x8x128xbf16, #tpu.memory_space<vmem>>, vector<1x8x128xbf16>,
    %c0_i32_116 = arith.constant 0 : i32
    %c0_i32_117 = arith.constant 0 : i32
    %298 = tpu.memref_slice %arg6[%245, %c0_i32_116, %c0_i32_117] : memref<2x8x128xbf16, #tpu.memory_space<vmem>> -> memref<1x8x128xbf16, #tpu.memory_space<vmem>>
    %299 = tpu.memref_squeeze %298 : memref<1x8x128xbf16, #tpu.memory_space<vmem>> -> memref<8x128xbf16, #tpu.memory_space<vmem>>
    %c0_i32_118 = arith.constant 0 : i32
    %c0_i32_119 = arith.constant 0 : i32
    %300 = tpu.memref_slice %arg4[%c4_i32, %c0_i32_118, %c0_i32_119] : memref<8x8x128xbf16, #tpu.memory_space<any>> -> memref<1x8x128xbf16, #tpu.memory_space<any>>
    %301 = tpu.memref_squeeze %300 : memref<1x8x128xbf16, #tpu.memory_space<any>> -> memref<8x128xbf16, #tpu.memory_space<any>>
    %302 = tpu.memref_slice %arg8[%245] : memref<2x!tpu.dma_semaphore, #tpu.memory_space<semaphore_mem>> -> memref<1x!tpu.dma_semaphore, #tpu.memory_space<semaphore_mem>>
    %303 = tpu.memref_squeeze %302 : memref<1x!tpu.dma_semaphore, #tpu.memory_space<semaphore_mem>> -> memref<!tpu.dma_semaphore, #tpu.memory_space<semaphore_mem>>
    tpu.enqueue_dma source(%299 : memref<8x128xbf16, #tpu.memory_space<vmem>>) target(%301 : memref<8x128xbf16, #tpu.memory_space<any>>) target_semaphore(%303 : memref<!tpu.dma_semaphore, #tpu.memory_space<semaphore_mem>>)
    %c5_i32 = arith.constant 5 : i32
    %c2_i32_120 = arith.constant 2 : i32
    %304 = arith.remsi %c5_i32, %c2_i32_120 : i32
    %c0_i32_121 = arith.constant 0 : i32
    %c0_i32_122 = arith.constant 0 : i32
    %305 = tpu.memref_slice %arg0[%c5_i32, %c0_i32_121, %c0_i32_122] : memref<8x8x384xbf16, #tpu.memory_space<any>> -> memref<1x8x384xbf16, #tpu.memory_space<any>>
    %306 = tpu.memref_squeeze %305 : memref<1x8x384xbf16, #tpu.memory_space<any>> -> memref<8x384xbf16, #tpu.memory_space<any>>
    %c0_i32_123 = arith.constant 0 : i32
    %c0_i32_124 = arith.constant 0 : i32
    %307 = tpu.memref_slice %arg5[%304, %c0_i32_123, %c0_i32_124] : memref<2x8x384xbf16, #tpu.memory_space<vmem>> -> memref<1x8x384xbf16, #tpu.memory_space<vmem>>
    %308 = tpu.memref_squeeze %307 : memref<1x8x384xbf16, #tpu.memory_space<vmem>> -> memref<8x384xbf16, #tpu.memory_space<vmem>>
    %309 = tpu.memref_slice %arg7[%304] : memref<2x!tpu.dma_semaphore, #tpu.memory_space<semaphore_mem>> -> memref<1x!tpu.dma_semaphore, #tpu.memory_space<semaphore_mem>>
    %310 = tpu.memref_squeeze %309 : memref<1x!tpu.dma_semaphore, #tpu.memory_space<semaphore_mem>> -> memref<!tpu.dma_semaphore, #tpu.memory_space<semaphore_mem>>
    tpu.wait_dma2 semaphore(%310 : memref<!tpu.dma_semaphore, #tpu.memory_space<semaphore_mem>>) src(%306 : memref<8x384xbf16, #tpu.memory_space<any>>) dst(%308 : memref<8x384xbf16, #tpu.memory_space<vmem>>)
    %c1_i32_125 = arith.constant 1 : i32
    %311 = arith.addi %c5_i32, %c1_i32_125 : i32
    %c8_i32_126 = arith.constant 8 : i32
    %312 = arith.cmpi slt, %311, %c8_i32_126 : i32
    %313 = arith.extui %312 : i1 to i32
    %c0_i32_127 = arith.constant 0 : i32
    %314 = arith.cmpi ne, %313, %c0_i32_127 : i32
    scf.if %314 {
      %c1_i32_201 = arith.constant 1 : i32
      %493 = arith.addi %c5_i32, %c1_i32_201 : i32
      %c1_i32_202 = arith.constant 1 : i32
      %494 = arith.subi %c1_i32_202, %304 : i32
      %c1_i32_203 = arith.constant 1 : i32
      %495 = arith.subi %c1_i32_203, %304 : i32
      %c0_i32_204 = arith.constant 0 : i32
      %c0_i32_205 = arith.constant 0 : i32
      %496 = tpu.memref_slice %arg0[%493, %c0_i32_204, %c0_i32_205] : memref<8x8x384xbf16, #tpu.memory_space<any>> -> memref<1x8x384xbf16, #tpu.memory_space<any>>
      %497 = tpu.memref_squeeze %496 : memref<1x8x384xbf16, #tpu.memory_space<any>> -> memref<8x384xbf16, #tpu.memory_space<any>>
      %c0_i32_206 = arith.constant 0 : i32
      %c0_i32_207 = arith.constant 0 : i32
      %498 = tpu.memref_slice %arg5[%494, %c0_i32_206, %c0_i32_207] : memref<2x8x384xbf16, #tpu.memory_space<vmem>> -> memref<1x8x384xbf16, #tpu.memory_space<vmem>>
      %499 = tpu.memref_squeeze %498 : memref<1x8x384xbf16, #tpu.memory_space<vmem>> -> memref<8x384xbf16, #tpu.memory_space<vmem>>
      %500 = tpu.memref_slice %arg7[%495] : memref<2x!tpu.dma_semaphore, #tpu.memory_space<semaphore_mem>> -> memref<1x!tpu.dma_semaphore, #tpu.memory_space<semaphore_mem>>
      %501 = tpu.memref_squeeze %500 : memref<1x!tpu.dma_semaphore, #tpu.memory_space<semaphore_mem>> -> memref<!tpu.dma_semaphore, #tpu.memory_space<semaphore_mem>>
      tpu.enqueue_dma source(%497 : memref<8x384xbf16, #tpu.memory_space<any>>) target(%499 : memref<8x384xbf16, #tpu.memory_space<vmem>>) target_semaphore(%501 : memref<!tpu.dma_semaphore, #tpu.memory_space<semaphore_mem>>)
    } else {
    }
    %315 = arith.index_cast %304 : i32 to index
    %c0_128 = arith.constant 0 : index
    %c0_129 = arith.constant 0 : index
    %316 = vector.load %arg5[%315, %c0_128, %c0_129] : memref<2x8x384xbf16, #tpu.memory_space<vmem>>, vector<1x8x384xbf16>
    %317 = vector.shape_cast %316 : vector<1x8x384xbf16> to vector<8x384xbf16>
    %318 = arith.extf %317 : vector<8x384xbf16> to vector<8x384xf32>
    %319 = arith.truncf %289 : vector<8x128xf32> to vector<8x128xbf16>
    %cst_130 = arith.constant dense<0.000000e+00> : vector<8x384xf32>
    %320 = tpu.matmul %319, %0, %cst_130 {dimension_numbers = #tpu.dot_dimension_numbers<[1], [0], [0], [1], [0, 0, 1, 1], [], []>} : vector<8x128xbf16>, vector<128x384xbf16>, vector<8x384xf32> -> vector<8x384xf32>
    %321 = vector.extract_strided_slice %318 {offsets = [0, 0], sizes = [8, 128], strides = [1, 1]} : vector<8x384xf32> to vector<8x128xf32>
    %322 = vector.extract_strided_slice %320 {offsets = [0, 0], sizes = [8, 128], strides = [1, 1]} : vector<8x384xf32> to vector<8x128xf32>
    %323 = arith.addf %321, %322 : vector<8x128xf32>
    %324 = arith.negf %323 : vector<8x128xf32>
    %325 = math.exp %324 : vector<8x128xf32>
    %cst_131 = arith.constant 1.000000e+00 : f32
    %326 = vector.broadcast %cst_131 : f32 to vector<8x128xf32>
    %327 = arith.addf %326, %325 : vector<8x128xf32>
    %328 = arith.divf %326, %327 : vector<8x128xf32>
    %329 = vector.extract_strided_slice %318 {offsets = [0, 128], sizes = [8, 128], strides = [1, 1]} : vector<8x384xf32> to vector<8x128xf32>
    %330 = vector.extract_strided_slice %320 {offsets = [0, 128], sizes = [8, 128], strides = [1, 1]} : vector<8x384xf32> to vector<8x128xf32>
    %331 = arith.addf %329, %330 : vector<8x128xf32>
    %332 = arith.negf %331 : vector<8x128xf32>
    %333 = math.exp %332 : vector<8x128xf32>
    %cst_132 = arith.constant 1.000000e+00 : f32
    %334 = vector.broadcast %cst_132 : f32 to vector<8x128xf32>
    %335 = arith.addf %334, %333 : vector<8x128xf32>
    %336 = arith.divf %334, %335 : vector<8x128xf32>
    %337 = vector.extract_strided_slice %318 {offsets = [0, 256], sizes = [8, 128], strides = [1, 1]} : vector<8x384xf32> to vector<8x128xf32>
    %338 = vector.extract_strided_slice %320 {offsets = [0, 256], sizes = [8, 128], strides = [1, 1]} : vector<8x384xf32> to vector<8x128xf32>
    %339 = vector.broadcast %1 : vector<1x128xf32> to vector<8x128xf32>
    %340 = arith.addf %338, %339 : vector<8x128xf32>
    %341 = arith.mulf %328, %340 : vector<8x128xf32>
    %342 = arith.addf %337, %341 : vector<8x128xf32>
    %343 = math.tanh %342 : vector<8x128xf32>
    %cst_133 = arith.constant 1.000000e+00 : f32
    %344 = vector.broadcast %cst_133 : f32 to vector<8x128xf32>
    %345 = arith.subf %344, %336 : vector<8x128xf32>
    %346 = arith.mulf %345, %343 : vector<8x128xf32>
    %347 = arith.mulf %336, %289 : vector<8x128xf32>
    %348 = arith.addf %346, %347 : vector<8x128xf32>
    %c2_i32_134 = arith.constant 2 : i32
    %349 = arith.cmpi sge, %c5_i32, %c2_i32_134 : i32
    %350 = arith.extui %349 : i1 to i32
    %c0_i32_135 = arith.constant 0 : i32
    %351 = arith.cmpi ne, %350, %c0_i32_135 : i32
    scf.if %351 {
      %c0_i32_201 = arith.constant 0 : i32
      %c0_i32_202 = arith.constant 0 : i32
      %493 = tpu.memref_slice %arg6[%304, %c0_i32_201, %c0_i32_202] : memref<2x8x128xbf16, #tpu.memory_space<vmem>> -> memref<1x8x128xbf16, #tpu.memory_space<vmem>>
      %494 = tpu.memref_squeeze %493 : memref<1x8x128xbf16, #tpu.memory_space<vmem>> -> memref<8x128xbf16, #tpu.memory_space<vmem>>
      %c0_i32_203 = arith.constant 0 : i32
      %c0_i32_204 = arith.constant 0 : i32
      %495 = tpu.memref_slice %arg4[%c5_i32, %c0_i32_203, %c0_i32_204] : memref<8x8x128xbf16, #tpu.memory_space<any>> -> memref<1x8x128xbf16, #tpu.memory_space<any>>
      %496 = tpu.memref_squeeze %495 : memref<1x8x128xbf16, #tpu.memory_space<any>> -> memref<8x128xbf16, #tpu.memory_space<any>>
      %497 = tpu.memref_slice %arg8[%304] : memref<2x!tpu.dma_semaphore, #tpu.memory_space<semaphore_mem>> -> memref<1x!tpu.dma_semaphore, #tpu.memory_space<semaphore_mem>>
      %498 = tpu.memref_squeeze %497 : memref<1x!tpu.dma_semaphore, #tpu.memory_space<semaphore_mem>> -> memref<!tpu.dma_semaphore, #tpu.memory_space<semaphore_mem>>
      tpu.wait_dma2 semaphore(%498 : memref<!tpu.dma_semaphore, #tpu.memory_space<semaphore_mem>>) src(%494 : memref<8x128xbf16, #tpu.memory_space<vmem>>) dst(%496 : memref<8x128xbf16, #tpu.memory_space<any>>)
    } else {
    }
    %352 = arith.truncf %348 : vector<8x128xf32> to vector<8x128xbf16>
    %353 = arith.index_cast %304 : i32 to index
    %c0_136 = arith.constant 0 : index
    %c0_137 = arith.constant 0 : index
    %354 = vector.load %arg6[%353, %c0_136, %c0_137] : memref<2x8x128xbf16, #tpu.memory_space<vmem>>, vector<1x8x128xbf16>
    %355 = vector.shape_cast %354 : vector<1x8x128xbf16> to vector<8x128xbf16>
    %356 = vector.shape_cast %352 : vector<8x128xbf16> to vector<1x8x128xbf16>
    tpu.vector_store %arg6[%353, %c0_136, %c0_137], %356 {strides = array<i32>} : memref<2x8x128xbf16, #tpu.memory_space<vmem>>, vector<1x8x128xbf16>,
    %c0_i32_138 = arith.constant 0 : i32
    %c0_i32_139 = arith.constant 0 : i32
    %357 = tpu.memref_slice %arg6[%304, %c0_i32_138, %c0_i32_139] : memref<2x8x128xbf16, #tpu.memory_space<vmem>> -> memref<1x8x128xbf16, #tpu.memory_space<vmem>>
    %358 = tpu.memref_squeeze %357 : memref<1x8x128xbf16, #tpu.memory_space<vmem>> -> memref<8x128xbf16, #tpu.memory_space<vmem>>
    %c0_i32_140 = arith.constant 0 : i32
    %c0_i32_141 = arith.constant 0 : i32
    %359 = tpu.memref_slice %arg4[%c5_i32, %c0_i32_140, %c0_i32_141] : memref<8x8x128xbf16, #tpu.memory_space<any>> -> memref<1x8x128xbf16, #tpu.memory_space<any>>
    %360 = tpu.memref_squeeze %359 : memref<1x8x128xbf16, #tpu.memory_space<any>> -> memref<8x128xbf16, #tpu.memory_space<any>>
    %361 = tpu.memref_slice %arg8[%304] : memref<2x!tpu.dma_semaphore, #tpu.memory_space<semaphore_mem>> -> memref<1x!tpu.dma_semaphore, #tpu.memory_space<semaphore_mem>>
    %362 = tpu.memref_squeeze %361 : memref<1x!tpu.dma_semaphore, #tpu.memory_space<semaphore_mem>> -> memref<!tpu.dma_semaphore, #tpu.memory_space<semaphore_mem>>
    tpu.enqueue_dma source(%358 : memref<8x128xbf16, #tpu.memory_space<vmem>>) target(%360 : memref<8x128xbf16, #tpu.memory_space<any>>) target_semaphore(%362 : memref<!tpu.dma_semaphore, #tpu.memory_space<semaphore_mem>>)
    %c6_i32 = arith.constant 6 : i32
    %c2_i32_142 = arith.constant 2 : i32
    %363 = arith.remsi %c6_i32, %c2_i32_142 : i32
    %c0_i32_143 = arith.constant 0 : i32
    %c0_i32_144 = arith.constant 0 : i32
    %364 = tpu.memref_slice %arg0[%c6_i32, %c0_i32_143, %c0_i32_144] : memref<8x8x384xbf16, #tpu.memory_space<any>> -> memref<1x8x384xbf16, #tpu.memory_space<any>>
    %365 = tpu.memref_squeeze %364 : memref<1x8x384xbf16, #tpu.memory_space<any>> -> memref<8x384xbf16, #tpu.memory_space<any>>
    %c0_i32_145 = arith.constant 0 : i32
    %c0_i32_146 = arith.constant 0 : i32
    %366 = tpu.memref_slice %arg5[%363, %c0_i32_145, %c0_i32_146] : memref<2x8x384xbf16, #tpu.memory_space<vmem>> -> memref<1x8x384xbf16, #tpu.memory_space<vmem>>
    %367 = tpu.memref_squeeze %366 : memref<1x8x384xbf16, #tpu.memory_space<vmem>> -> memref<8x384xbf16, #tpu.memory_space<vmem>>
    %368 = tpu.memref_slice %arg7[%363] : memref<2x!tpu.dma_semaphore, #tpu.memory_space<semaphore_mem>> -> memref<1x!tpu.dma_semaphore, #tpu.memory_space<semaphore_mem>>
    %369 = tpu.memref_squeeze %368 : memref<1x!tpu.dma_semaphore, #tpu.memory_space<semaphore_mem>> -> memref<!tpu.dma_semaphore, #tpu.memory_space<semaphore_mem>>
    tpu.wait_dma2 semaphore(%369 : memref<!tpu.dma_semaphore, #tpu.memory_space<semaphore_mem>>) src(%365 : memref<8x384xbf16, #tpu.memory_space<any>>) dst(%367 : memref<8x384xbf16, #tpu.memory_space<vmem>>)
    %c1_i32_147 = arith.constant 1 : i32
    %370 = arith.addi %c6_i32, %c1_i32_147 : i32
    %c8_i32_148 = arith.constant 8 : i32
    %371 = arith.cmpi slt, %370, %c8_i32_148 : i32
    %372 = arith.extui %371 : i1 to i32
    %c0_i32_149 = arith.constant 0 : i32
    %373 = arith.cmpi ne, %372, %c0_i32_149 : i32
    scf.if %373 {
      %c1_i32_201 = arith.constant 1 : i32
      %493 = arith.addi %c6_i32, %c1_i32_201 : i32
      %c1_i32_202 = arith.constant 1 : i32
      %494 = arith.subi %c1_i32_202, %363 : i32
      %c1_i32_203 = arith.constant 1 : i32
      %495 = arith.subi %c1_i32_203, %363 : i32
      %c0_i32_204 = arith.constant 0 : i32
      %c0_i32_205 = arith.constant 0 : i32
      %496 = tpu.memref_slice %arg0[%493, %c0_i32_204, %c0_i32_205] : memref<8x8x384xbf16, #tpu.memory_space<any>> -> memref<1x8x384xbf16, #tpu.memory_space<any>>
      %497 = tpu.memref_squeeze %496 : memref<1x8x384xbf16, #tpu.memory_space<any>> -> memref<8x384xbf16, #tpu.memory_space<any>>
      %c0_i32_206 = arith.constant 0 : i32
      %c0_i32_207 = arith.constant 0 : i32
      %498 = tpu.memref_slice %arg5[%494, %c0_i32_206, %c0_i32_207] : memref<2x8x384xbf16, #tpu.memory_space<vmem>> -> memref<1x8x384xbf16, #tpu.memory_space<vmem>>
      %499 = tpu.memref_squeeze %498 : memref<1x8x384xbf16, #tpu.memory_space<vmem>> -> memref<8x384xbf16, #tpu.memory_space<vmem>>
      %500 = tpu.memref_slice %arg7[%495] : memref<2x!tpu.dma_semaphore, #tpu.memory_space<semaphore_mem>> -> memref<1x!tpu.dma_semaphore, #tpu.memory_space<semaphore_mem>>
      %501 = tpu.memref_squeeze %500 : memref<1x!tpu.dma_semaphore, #tpu.memory_space<semaphore_mem>> -> memref<!tpu.dma_semaphore, #tpu.memory_space<semaphore_mem>>
      tpu.enqueue_dma source(%497 : memref<8x384xbf16, #tpu.memory_space<any>>) target(%499 : memref<8x384xbf16, #tpu.memory_space<vmem>>) target_semaphore(%501 : memref<!tpu.dma_semaphore, #tpu.memory_space<semaphore_mem>>)
    } else {
    }
    %374 = arith.index_cast %363 : i32 to index
    %c0_150 = arith.constant 0 : index
    %c0_151 = arith.constant 0 : index
    %375 = vector.load %arg5[%374, %c0_150, %c0_151] : memref<2x8x384xbf16, #tpu.memory_space<vmem>>, vector<1x8x384xbf16>
    %376 = vector.shape_cast %375 : vector<1x8x384xbf16> to vector<8x384xbf16>
    %377 = arith.extf %376 : vector<8x384xbf16> to vector<8x384xf32>
    %378 = arith.truncf %348 : vector<8x128xf32> to vector<8x128xbf16>
    %cst_152 = arith.constant dense<0.000000e+00> : vector<8x384xf32>
    %379 = tpu.matmul %378, %0, %cst_152 {dimension_numbers = #tpu.dot_dimension_numbers<[1], [0], [0], [1], [0, 0, 1, 1], [], []>} : vector<8x128xbf16>, vector<128x384xbf16>, vector<8x384xf32> -> vector<8x384xf32>
    %380 = vector.extract_strided_slice %377 {offsets = [0, 0], sizes = [8, 128], strides = [1, 1]} : vector<8x384xf32> to vector<8x128xf32>
    %381 = vector.extract_strided_slice %379 {offsets = [0, 0], sizes = [8, 128], strides = [1, 1]} : vector<8x384xf32> to vector<8x128xf32>
    %382 = arith.addf %380, %381 : vector<8x128xf32>
    %383 = arith.negf %382 : vector<8x128xf32>
    %384 = math.exp %383 : vector<8x128xf32>
    %cst_153 = arith.constant 1.000000e+00 : f32
    %385 = vector.broadcast %cst_153 : f32 to vector<8x128xf32>
    %386 = arith.addf %385, %384 : vector<8x128xf32>
    %387 = arith.divf %385, %386 : vector<8x128xf32>
    %388 = vector.extract_strided_slice %377 {offsets = [0, 128], sizes = [8, 128], strides = [1, 1]} : vector<8x384xf32> to vector<8x128xf32>
    %389 = vector.extract_strided_slice %379 {offsets = [0, 128], sizes = [8, 128], strides = [1, 1]} : vector<8x384xf32> to vector<8x128xf32>
    %390 = arith.addf %388, %389 : vector<8x128xf32>
    %391 = arith.negf %390 : vector<8x128xf32>
    %392 = math.exp %391 : vector<8x128xf32>
    %cst_154 = arith.constant 1.000000e+00 : f32
    %393 = vector.broadcast %cst_154 : f32 to vector<8x128xf32>
    %394 = arith.addf %393, %392 : vector<8x128xf32>
    %395 = arith.divf %393, %394 : vector<8x128xf32>
    %396 = vector.extract_strided_slice %377 {offsets = [0, 256], sizes = [8, 128], strides = [1, 1]} : vector<8x384xf32> to vector<8x128xf32>
    %397 = vector.extract_strided_slice %379 {offsets = [0, 256], sizes = [8, 128], strides = [1, 1]} : vector<8x384xf32> to vector<8x128xf32>
    %398 = vector.broadcast %1 : vector<1x128xf32> to vector<8x128xf32>
    %399 = arith.addf %397, %398 : vector<8x128xf32>
    %400 = arith.mulf %387, %399 : vector<8x128xf32>
    %401 = arith.addf %396, %400 : vector<8x128xf32>
    %402 = math.tanh %401 : vector<8x128xf32>
    %cst_155 = arith.constant 1.000000e+00 : f32
    %403 = vector.broadcast %cst_155 : f32 to vector<8x128xf32>
    %404 = arith.subf %403, %395 : vector<8x128xf32>
    %405 = arith.mulf %404, %402 : vector<8x128xf32>
    %406 = arith.mulf %395, %348 : vector<8x128xf32>
    %407 = arith.addf %405, %406 : vector<8x128xf32>
    %c2_i32_156 = arith.constant 2 : i32
    %408 = arith.cmpi sge, %c6_i32, %c2_i32_156 : i32
    %409 = arith.extui %408 : i1 to i32
    %c0_i32_157 = arith.constant 0 : i32
    %410 = arith.cmpi ne, %409, %c0_i32_157 : i32
    scf.if %410 {
      %c0_i32_201 = arith.constant 0 : i32
      %c0_i32_202 = arith.constant 0 : i32
      %493 = tpu.memref_slice %arg6[%363, %c0_i32_201, %c0_i32_202] : memref<2x8x128xbf16, #tpu.memory_space<vmem>> -> memref<1x8x128xbf16, #tpu.memory_space<vmem>>
      %494 = tpu.memref_squeeze %493 : memref<1x8x128xbf16, #tpu.memory_space<vmem>> -> memref<8x128xbf16, #tpu.memory_space<vmem>>
      %c0_i32_203 = arith.constant 0 : i32
      %c0_i32_204 = arith.constant 0 : i32
      %495 = tpu.memref_slice %arg4[%c6_i32, %c0_i32_203, %c0_i32_204] : memref<8x8x128xbf16, #tpu.memory_space<any>> -> memref<1x8x128xbf16, #tpu.memory_space<any>>
      %496 = tpu.memref_squeeze %495 : memref<1x8x128xbf16, #tpu.memory_space<any>> -> memref<8x128xbf16, #tpu.memory_space<any>>
      %497 = tpu.memref_slice %arg8[%363] : memref<2x!tpu.dma_semaphore, #tpu.memory_space<semaphore_mem>> -> memref<1x!tpu.dma_semaphore, #tpu.memory_space<semaphore_mem>>
      %498 = tpu.memref_squeeze %497 : memref<1x!tpu.dma_semaphore, #tpu.memory_space<semaphore_mem>> -> memref<!tpu.dma_semaphore, #tpu.memory_space<semaphore_mem>>
      tpu.wait_dma2 semaphore(%498 : memref<!tpu.dma_semaphore, #tpu.memory_space<semaphore_mem>>) src(%494 : memref<8x128xbf16, #tpu.memory_space<vmem>>) dst(%496 : memref<8x128xbf16, #tpu.memory_space<any>>)
    } else {
    }
    %411 = arith.truncf %407 : vector<8x128xf32> to vector<8x128xbf16>
    %412 = arith.index_cast %363 : i32 to index
    %c0_158 = arith.constant 0 : index
    %c0_159 = arith.constant 0 : index
    %413 = vector.load %arg6[%412, %c0_158, %c0_159] : memref<2x8x128xbf16, #tpu.memory_space<vmem>>, vector<1x8x128xbf16>
    %414 = vector.shape_cast %413 : vector<1x8x128xbf16> to vector<8x128xbf16>
    %415 = vector.shape_cast %411 : vector<8x128xbf16> to vector<1x8x128xbf16>
    tpu.vector_store %arg6[%412, %c0_158, %c0_159], %415 {strides = array<i32>} : memref<2x8x128xbf16, #tpu.memory_space<vmem>>, vector<1x8x128xbf16>,
    %c0_i32_160 = arith.constant 0 : i32
    %c0_i32_161 = arith.constant 0 : i32
    %416 = tpu.memref_slice %arg6[%363, %c0_i32_160, %c0_i32_161] : memref<2x8x128xbf16, #tpu.memory_space<vmem>> -> memref<1x8x128xbf16, #tpu.memory_space<vmem>>
    %417 = tpu.memref_squeeze %416 : memref<1x8x128xbf16, #tpu.memory_space<vmem>> -> memref<8x128xbf16, #tpu.memory_space<vmem>>
    %c0_i32_162 = arith.constant 0 : i32
    %c0_i32_163 = arith.constant 0 : i32
    %418 = tpu.memref_slice %arg4[%c6_i32, %c0_i32_162, %c0_i32_163] : memref<8x8x128xbf16, #tpu.memory_space<any>> -> memref<1x8x128xbf16, #tpu.memory_space<any>>
    %419 = tpu.memref_squeeze %418 : memref<1x8x128xbf16, #tpu.memory_space<any>> -> memref<8x128xbf16, #tpu.memory_space<any>>
    %420 = tpu.memref_slice %arg8[%363] : memref<2x!tpu.dma_semaphore, #tpu.memory_space<semaphore_mem>> -> memref<1x!tpu.dma_semaphore, #tpu.memory_space<semaphore_mem>>
    %421 = tpu.memref_squeeze %420 : memref<1x!tpu.dma_semaphore, #tpu.memory_space<semaphore_mem>> -> memref<!tpu.dma_semaphore, #tpu.memory_space<semaphore_mem>>
    tpu.enqueue_dma source(%417 : memref<8x128xbf16, #tpu.memory_space<vmem>>) target(%419 : memref<8x128xbf16, #tpu.memory_space<any>>) target_semaphore(%421 : memref<!tpu.dma_semaphore, #tpu.memory_space<semaphore_mem>>)
    %c7_i32 = arith.constant 7 : i32
    %c2_i32_164 = arith.constant 2 : i32
    %422 = arith.remsi %c7_i32, %c2_i32_164 : i32
    %c0_i32_165 = arith.constant 0 : i32
    %c0_i32_166 = arith.constant 0 : i32
    %423 = tpu.memref_slice %arg0[%c7_i32, %c0_i32_165, %c0_i32_166] : memref<8x8x384xbf16, #tpu.memory_space<any>> -> memref<1x8x384xbf16, #tpu.memory_space<any>>
    %424 = tpu.memref_squeeze %423 : memref<1x8x384xbf16, #tpu.memory_space<any>> -> memref<8x384xbf16, #tpu.memory_space<any>>
    %c0_i32_167 = arith.constant 0 : i32
    %c0_i32_168 = arith.constant 0 : i32
    %425 = tpu.memref_slice %arg5[%422, %c0_i32_167, %c0_i32_168] : memref<2x8x384xbf16, #tpu.memory_space<vmem>> -> memref<1x8x384xbf16, #tpu.memory_space<vmem>>
    %426 = tpu.memref_squeeze %425 : memref<1x8x384xbf16, #tpu.memory_space<vmem>> -> memref<8x384xbf16, #tpu.memory_space<vmem>>
    %427 = tpu.memref_slice %arg7[%422] : memref<2x!tpu.dma_semaphore, #tpu.memory_space<semaphore_mem>> -> memref<1x!tpu.dma_semaphore, #tpu.memory_space<semaphore_mem>>
    %428 = tpu.memref_squeeze %427 : memref<1x!tpu.dma_semaphore, #tpu.memory_space<semaphore_mem>> -> memref<!tpu.dma_semaphore, #tpu.memory_space<semaphore_mem>>
    tpu.wait_dma2 semaphore(%428 : memref<!tpu.dma_semaphore, #tpu.memory_space<semaphore_mem>>) src(%424 : memref<8x384xbf16, #tpu.memory_space<any>>) dst(%426 : memref<8x384xbf16, #tpu.memory_space<vmem>>)
    %c1_i32_169 = arith.constant 1 : i32
    %429 = arith.addi %c7_i32, %c1_i32_169 : i32
    %c8_i32_170 = arith.constant 8 : i32
    %430 = arith.cmpi slt, %429, %c8_i32_170 : i32
    %431 = arith.extui %430 : i1 to i32
    %c0_i32_171 = arith.constant 0 : i32
    %432 = arith.cmpi ne, %431, %c0_i32_171 : i32
    scf.if %432 {
      %c1_i32_201 = arith.constant 1 : i32
      %493 = arith.addi %c7_i32, %c1_i32_201 : i32
      %c1_i32_202 = arith.constant 1 : i32
      %494 = arith.subi %c1_i32_202, %422 : i32
      %c1_i32_203 = arith.constant 1 : i32
      %495 = arith.subi %c1_i32_203, %422 : i32
      %c0_i32_204 = arith.constant 0 : i32
      %c0_i32_205 = arith.constant 0 : i32
      %496 = tpu.memref_slice %arg0[%493, %c0_i32_204, %c0_i32_205] : memref<8x8x384xbf16, #tpu.memory_space<any>> -> memref<1x8x384xbf16, #tpu.memory_space<any>>
      %497 = tpu.memref_squeeze %496 : memref<1x8x384xbf16, #tpu.memory_space<any>> -> memref<8x384xbf16, #tpu.memory_space<any>>
      %c0_i32_206 = arith.constant 0 : i32
      %c0_i32_207 = arith.constant 0 : i32
      %498 = tpu.memref_slice %arg5[%494, %c0_i32_206, %c0_i32_207] : memref<2x8x384xbf16, #tpu.memory_space<vmem>> -> memref<1x8x384xbf16, #tpu.memory_space<vmem>>
      %499 = tpu.memref_squeeze %498 : memref<1x8x384xbf16, #tpu.memory_space<vmem>> -> memref<8x384xbf16, #tpu.memory_space<vmem>>
      %500 = tpu.memref_slice %arg7[%495] : memref<2x!tpu.dma_semaphore, #tpu.memory_space<semaphore_mem>> -> memref<1x!tpu.dma_semaphore, #tpu.memory_space<semaphore_mem>>
      %501 = tpu.memref_squeeze %500 : memref<1x!tpu.dma_semaphore, #tpu.memory_space<semaphore_mem>> -> memref<!tpu.dma_semaphore, #tpu.memory_space<semaphore_mem>>
      tpu.enqueue_dma source(%497 : memref<8x384xbf16, #tpu.memory_space<any>>) target(%499 : memref<8x384xbf16, #tpu.memory_space<vmem>>) target_semaphore(%501 : memref<!tpu.dma_semaphore, #tpu.memory_space<semaphore_mem>>)
    } else {
    }
    %433 = arith.index_cast %422 : i32 to index
    %c0_172 = arith.constant 0 : index
    %c0_173 = arith.constant 0 : index
    %434 = vector.load %arg5[%433, %c0_172, %c0_173] : memref<2x8x384xbf16, #tpu.memory_space<vmem>>, vector<1x8x384xbf16>
    %435 = vector.shape_cast %434 : vector<1x8x384xbf16> to vector<8x384xbf16>
    %436 = arith.extf %435 : vector<8x384xbf16> to vector<8x384xf32>
    %437 = arith.truncf %407 : vector<8x128xf32> to vector<8x128xbf16>
    %cst_174 = arith.constant dense<0.000000e+00> : vector<8x384xf32>
    %438 = tpu.matmul %437, %0, %cst_174 {dimension_numbers = #tpu.dot_dimension_numbers<[1], [0], [0], [1], [0, 0, 1, 1], [], []>} : vector<8x128xbf16>, vector<128x384xbf16>, vector<8x384xf32> -> vector<8x384xf32>
    %439 = vector.extract_strided_slice %436 {offsets = [0, 0], sizes = [8, 128], strides = [1, 1]} : vector<8x384xf32> to vector<8x128xf32>
    %440 = vector.extract_strided_slice %438 {offsets = [0, 0], sizes = [8, 128], strides = [1, 1]} : vector<8x384xf32> to vector<8x128xf32>
    %441 = arith.addf %439, %440 : vector<8x128xf32>
    %442 = arith.negf %441 : vector<8x128xf32>
    %443 = math.exp %442 : vector<8x128xf32>
    %cst_175 = arith.constant 1.000000e+00 : f32
    %444 = vector.broadcast %cst_175 : f32 to vector<8x128xf32>
    %445 = arith.addf %444, %443 : vector<8x128xf32>
    %446 = arith.divf %444, %445 : vector<8x128xf32>
    %447 = vector.extract_strided_slice %436 {offsets = [0, 128], sizes = [8, 128], strides = [1, 1]} : vector<8x384xf32> to vector<8x128xf32>
    %448 = vector.extract_strided_slice %438 {offsets = [0, 128], sizes = [8, 128], strides = [1, 1]} : vector<8x384xf32> to vector<8x128xf32>
    %449 = arith.addf %447, %448 : vector<8x128xf32>
    %450 = arith.negf %449 : vector<8x128xf32>
    %451 = math.exp %450 : vector<8x128xf32>
    %cst_176 = arith.constant 1.000000e+00 : f32
    %452 = vector.broadcast %cst_176 : f32 to vector<8x128xf32>
    %453 = arith.addf %452, %451 : vector<8x128xf32>
    %454 = arith.divf %452, %453 : vector<8x128xf32>
    %455 = vector.extract_strided_slice %436 {offsets = [0, 256], sizes = [8, 128], strides = [1, 1]} : vector<8x384xf32> to vector<8x128xf32>
    %456 = vector.extract_strided_slice %438 {offsets = [0, 256], sizes = [8, 128], strides = [1, 1]} : vector<8x384xf32> to vector<8x128xf32>
    %457 = vector.broadcast %1 : vector<1x128xf32> to vector<8x128xf32>
    %458 = arith.addf %456, %457 : vector<8x128xf32>
    %459 = arith.mulf %446, %458 : vector<8x128xf32>
    %460 = arith.addf %455, %459 : vector<8x128xf32>
    %461 = math.tanh %460 : vector<8x128xf32>
    %cst_177 = arith.constant 1.000000e+00 : f32
    %462 = vector.broadcast %cst_177 : f32 to vector<8x128xf32>
    %463 = arith.subf %462, %454 : vector<8x128xf32>
    %464 = arith.mulf %463, %461 : vector<8x128xf32>
    %465 = arith.mulf %454, %407 : vector<8x128xf32>
    %466 = arith.addf %464, %465 : vector<8x128xf32>
    %c2_i32_178 = arith.constant 2 : i32
    %467 = arith.cmpi sge, %c7_i32, %c2_i32_178 : i32
    %468 = arith.extui %467 : i1 to i32
    %c0_i32_179 = arith.constant 0 : i32
    %469 = arith.cmpi ne, %468, %c0_i32_179 : i32
    scf.if %469 {
      %c0_i32_201 = arith.constant 0 : i32
      %c0_i32_202 = arith.constant 0 : i32
      %493 = tpu.memref_slice %arg6[%422, %c0_i32_201, %c0_i32_202] : memref<2x8x128xbf16, #tpu.memory_space<vmem>> -> memref<1x8x128xbf16, #tpu.memory_space<vmem>>
      %494 = tpu.memref_squeeze %493 : memref<1x8x128xbf16, #tpu.memory_space<vmem>> -> memref<8x128xbf16, #tpu.memory_space<vmem>>
      %c0_i32_203 = arith.constant 0 : i32
      %c0_i32_204 = arith.constant 0 : i32
      %495 = tpu.memref_slice %arg4[%c7_i32, %c0_i32_203, %c0_i32_204] : memref<8x8x128xbf16, #tpu.memory_space<any>> -> memref<1x8x128xbf16, #tpu.memory_space<any>>
      %496 = tpu.memref_squeeze %495 : memref<1x8x128xbf16, #tpu.memory_space<any>> -> memref<8x128xbf16, #tpu.memory_space<any>>
      %497 = tpu.memref_slice %arg8[%422] : memref<2x!tpu.dma_semaphore, #tpu.memory_space<semaphore_mem>> -> memref<1x!tpu.dma_semaphore, #tpu.memory_space<semaphore_mem>>
      %498 = tpu.memref_squeeze %497 : memref<1x!tpu.dma_semaphore, #tpu.memory_space<semaphore_mem>> -> memref<!tpu.dma_semaphore, #tpu.memory_space<semaphore_mem>>
      tpu.wait_dma2 semaphore(%498 : memref<!tpu.dma_semaphore, #tpu.memory_space<semaphore_mem>>) src(%494 : memref<8x128xbf16, #tpu.memory_space<vmem>>) dst(%496 : memref<8x128xbf16, #tpu.memory_space<any>>)
    } else {
    }
    %470 = arith.truncf %466 : vector<8x128xf32> to vector<8x128xbf16>
    %471 = arith.index_cast %422 : i32 to index
    %c0_180 = arith.constant 0 : index
    %c0_181 = arith.constant 0 : index
    %472 = vector.load %arg6[%471, %c0_180, %c0_181] : memref<2x8x128xbf16, #tpu.memory_space<vmem>>, vector<1x8x128xbf16>
    %473 = vector.shape_cast %472 : vector<1x8x128xbf16> to vector<8x128xbf16>
    %474 = vector.shape_cast %470 : vector<8x128xbf16> to vector<1x8x128xbf16>
    tpu.vector_store %arg6[%471, %c0_180, %c0_181], %474 {strides = array<i32>} : memref<2x8x128xbf16, #tpu.memory_space<vmem>>, vector<1x8x128xbf16>,
    %c0_i32_182 = arith.constant 0 : i32
    %c0_i32_183 = arith.constant 0 : i32
    %475 = tpu.memref_slice %arg6[%422, %c0_i32_182, %c0_i32_183] : memref<2x8x128xbf16, #tpu.memory_space<vmem>> -> memref<1x8x128xbf16, #tpu.memory_space<vmem>>
    %476 = tpu.memref_squeeze %475 : memref<1x8x128xbf16, #tpu.memory_space<vmem>> -> memref<8x128xbf16, #tpu.memory_space<vmem>>
    %c0_i32_184 = arith.constant 0 : i32
    %c0_i32_185 = arith.constant 0 : i32
    %477 = tpu.memref_slice %arg4[%c7_i32, %c0_i32_184, %c0_i32_185] : memref<8x8x128xbf16, #tpu.memory_space<any>> -> memref<1x8x128xbf16, #tpu.memory_space<any>>
    %478 = tpu.memref_squeeze %477 : memref<1x8x128xbf16, #tpu.memory_space<any>> -> memref<8x128xbf16, #tpu.memory_space<any>>
    %479 = tpu.memref_slice %arg8[%422] : memref<2x!tpu.dma_semaphore, #tpu.memory_space<semaphore_mem>> -> memref<1x!tpu.dma_semaphore, #tpu.memory_space<semaphore_mem>>
    %480 = tpu.memref_squeeze %479 : memref<1x!tpu.dma_semaphore, #tpu.memory_space<semaphore_mem>> -> memref<!tpu.dma_semaphore, #tpu.memory_space<semaphore_mem>>
    tpu.enqueue_dma source(%476 : memref<8x128xbf16, #tpu.memory_space<vmem>>) target(%478 : memref<8x128xbf16, #tpu.memory_space<any>>) target_semaphore(%480 : memref<!tpu.dma_semaphore, #tpu.memory_space<semaphore_mem>>)
    %c8_i32_186 = arith.constant 8 : i32
    %c0_i32_187 = arith.constant 0 : i32
    %c0_i32_188 = arith.constant 0 : i32
    %c0_i32_189 = arith.constant 0 : i32
    %c0_i32_190 = arith.constant 0 : i32
    %c0_i32_191 = arith.constant 0 : i32
    %481 = tpu.memref_slice %arg6[%c0_i32_187, %c0_i32_190, %c0_i32_191] : memref<2x8x128xbf16, #tpu.memory_space<vmem>> -> memref<1x8x128xbf16, #tpu.memory_space<vmem>>
    %482 = tpu.memref_squeeze %481 : memref<1x8x128xbf16, #tpu.memory_space<vmem>> -> memref<8x128xbf16, #tpu.memory_space<vmem>>
    %c0_i32_192 = arith.constant 0 : i32
    %c0_i32_193 = arith.constant 0 : i32
    %483 = tpu.memref_slice %arg4[%c0_i32_188, %c0_i32_192, %c0_i32_193] : memref<8x8x128xbf16, #tpu.memory_space<any>> -> memref<1x8x128xbf16, #tpu.memory_space<any>>
    %484 = tpu.memref_squeeze %483 : memref<1x8x128xbf16, #tpu.memory_space<any>> -> memref<8x128xbf16, #tpu.memory_space<any>>
    %485 = tpu.memref_slice %arg8[%c0_i32_189] : memref<2x!tpu.dma_semaphore, #tpu.memory_space<semaphore_mem>> -> memref<1x!tpu.dma_semaphore, #tpu.memory_space<semaphore_mem>>
    %486 = tpu.memref_squeeze %485 : memref<1x!tpu.dma_semaphore, #tpu.memory_space<semaphore_mem>> -> memref<!tpu.dma_semaphore, #tpu.memory_space<semaphore_mem>>
    tpu.wait_dma2 semaphore(%486 : memref<!tpu.dma_semaphore, #tpu.memory_space<semaphore_mem>>) src(%482 : memref<8x128xbf16, #tpu.memory_space<vmem>>) dst(%484 : memref<8x128xbf16, #tpu.memory_space<any>>)
    %c1_i32_194 = arith.constant 1 : i32
    %c0_i32_195 = arith.constant 0 : i32
    %c1_i32_196 = arith.constant 1 : i32
    %c0_i32_197 = arith.constant 0 : i32
    %c0_i32_198 = arith.constant 0 : i32
    %487 = tpu.memref_slice %arg6[%c1_i32_194, %c0_i32_197, %c0_i32_198] : memref<2x8x128xbf16, #tpu.memory_space<vmem>> -> memref<1x8x128xbf16, #tpu.memory_space<vmem>>
    %488 = tpu.memref_squeeze %487 : memref<1x8x128xbf16, #tpu.memory_space<vmem>> -> memref<8x128xbf16, #tpu.memory_space<vmem>>
    %c0_i32_199 = arith.constant 0 : i32
    %c0_i32_200 = arith.constant 0 : i32
    %489 = tpu.memref_slice %arg4[%c0_i32_195, %c0_i32_199, %c0_i32_200] : memref<8x8x128xbf16, #tpu.memory_space<any>> -> memref<1x8x128xbf16, #tpu.memory_space<any>>
    %490 = tpu.memref_squeeze %489 : memref<1x8x128xbf16, #tpu.memory_space<any>> -> memref<8x128xbf16, #tpu.memory_space<any>>
    %491 = tpu.memref_slice %arg8[%c1_i32_196] : memref<2x!tpu.dma_semaphore, #tpu.memory_space<semaphore_mem>> -> memref<1x!tpu.dma_semaphore, #tpu.memory_space<semaphore_mem>>
    %492 = tpu.memref_squeeze %491 : memref<1x!tpu.dma_semaphore, #tpu.memory_space<semaphore_mem>> -> memref<!tpu.dma_semaphore, #tpu.memory_space<semaphore_mem>>
    tpu.wait_dma2 semaphore(%492 : memref<!tpu.dma_semaphore, #tpu.memory_space<semaphore_mem>>) src(%488 : memref<8x128xbf16, #tpu.memory_space<vmem>>) dst(%490 : memref<8x128xbf16, #tpu.memory_space<any>>)
    return
  }
}

</mosaic_0001>

<llo_original>
// kernel: seq2seq_forward.5
$region0: #{seq2seq_forward.5}
  #allocation0 [shape = 'u32[]', space=smem, size = 0x4, offset = 0x4, fixed_abs, tag = 'smem constant byte address 0x4 - core index']
  #allocation1 [shape = 'u32[144,128]{1,0:T(1,128)}', space=vmem, size = 0x12000, scoped, tag = 'internal scratch']
  #allocation2 [shape = 'f32[64,128]{1,0:T(8,128)}', space=vmem, size = 0x8000, scoped, tag = 'scratch operand']
  %s0 = inlined_call_operand.vmem [shape: bf16[64,32], index: 0, kind: input, shape index: {}]
  %s1 = inlined_call_operand.vmem [shape: bf16[32,384], index: 1, kind: input, shape index: {}]
  %s2 = inlined_call_operand.vmem [shape: f32[1,384], index: 2, kind: input, shape index: {}]
  %s3 = inlined_call_operand.vmem [shape: bf16[64,384], index: 3, kind: output, shape index: {}]
  %s4 = sld [smem:[#allocation0]]
  $region131: #{seq2seq_forward.5} parent=0
    _
  %s6 = ssub.s32 1, %s4
  %s7 = scalar_select 0, %s6, %s4
  $region1: #{seq2seq_forward.5} parent=0
    #allocation3 [shape = 'u8[16384]{0}', space=vmem, size = 0x4000, scoped, tag = 'input window, operand 1']
    #allocation4 [shape = 'u8[32768]{0}', space=vmem, size = 0x8000, scoped, tag = 'output window, operand 0']
    loop: start=0, step=1, limit=5
    $region2: #{seq2seq_forward.5} parent=1 // loop_pre_header
      _
    $region3: #{seq2seq_forward.5} parent=1 // loop_header
      %s9 = sphi 0, %s13
      %p10 = scmp.ge.s32.totalorder %s9, 5
      %s16 = sphi 0, %s35
      %s17 = sphi 0, %s31
      %s18 = sphi 0, %s27
      %s19 = sphi 0, %s16
      %s20 = sphi 0, %s17
      %s21 = sphi 0, %s18
      %s22 = sphi 0, %s19
      %s23 = sphi 0, %s20
      %s24 = sphi 0, %s21
      %s40 = sphi 0, %s42
      %s43 = sphi 0, %s40
      %s44 = sphi 0, %s43
      %s60 = sphi 0, %s44
      %s68 = sphi 0, %s70
      %s71 = sphi 0, %s68
      %s72 = sphi 0, %s71
      %s88 = sphi 0, %s72
      %s94 = sphi 0, %s96
      %s97 = sphi 0, %s94
      %s98 = sphi 0, %s97
      %s114 = sphi 0, %s98
      %s122 = sphi 0, %s124
      %s125 = sphi 0, %s122
      %s126 = sphi 0, %s125
      %s142 = sphi 0, %s126
    $region4: #{seq2seq_forward.5} parent=1 // loop_header_branch
      %12 = sbr.rel (%p10) target = $region8
    $region5: #{seq2seq_forward.5} parent=1 // loop_body
      %s14 = ssub.s32 %s9, 1
      %s15 = ssub.s32 %s9, 2
      %s25 = sadd.s32 1, %s18
      %p26 = scmp.ge.s32.totalorder %s25, 1
      %s27 = scalar_select %p26, 0, %s25
      %s28 = sadd.s32 1, %s17
      %s29 = scalar_select %p26, %s28, %s17
      %p30 = scmp.ge.s32.totalorder %s29, 3
      %s31 = scalar_select %p30, 0, %s29
      %s32 = sadd.s32 1, %s16
      %s33 = scalar_select %p30, %s32, %s16
      %p34 = scmp.ge.s32.totalorder %s33, 1
      %s35 = scalar_select %p34, 0, %s33
      %s36 = ssub.s32 %s16, %s35
      %s37 = ssub.s32 %s18, %s27
      %s38 = sor.u32 %s36, %s37
      %p39 = scmp.eq.s32.totalorder %s38, 0
      %s41 = sadd.s32 %s40, 1
      %s42 = scalar_select %p39, %s40, %s41
      %p45 = pneg %p39
      %p46 = scmp.eq.s32.totalorder %s9, 2
      %p47 = por %p45, %p46
      %p48 = scmp.ne.s32.totalorder %s40, %s43
      %p49 = scmp.eq.s32.totalorder %s9, 0
      %p50 = por %p48, %p49
      %p51 = scmp.ne.s32.totalorder %s40, %s43
      %p52 = scmp.eq.s32.totalorder %s14, 2
      %p53 = por %p51, %p52
      %p54 = scmp.ne.s32.totalorder %s43, %s44
      %p55 = scmp.eq.s32.totalorder %s14, 0
      %p56 = por %p54, %p55
      %p57 = scmp.ne.s32.totalorder %s43, %s44
      %p58 = scmp.eq.s32.totalorder %s15, 2
      %p59 = por %p57, %p58
      %p61 = scmp.ne.s32.totalorder %s44, %s60
      %p62 = scmp.eq.s32.totalorder %s15, 0
      %p63 = por %p61, %p62
      %s64 = ssub.s32 %s18, %s27
      %s65 = ssub.s32 %s17, %s31
      %s66 = sor.u32 %s64, %s65
      %p67 = scmp.eq.s32.totalorder %s66, 0
      %s69 = sadd.s32 %s68, 1
      %s70 = scalar_select %p67, %s68, %s69
      %p73 = pneg %p67
      %p74 = scmp.eq.s32.totalorder %s9, 2
      %p75 = por %p73, %p74
      %p76 = scmp.ne.s32.totalorder %s68, %s71
      %p77 = scmp.eq.s32.totalorder %s9, 0
      %p78 = por %p76, %p77
      %p79 = scmp.ne.s32.totalorder %s68, %s71
      %p80 = scmp.eq.s32.totalorder %s14, 2
      %p81 = por %p79, %p80
      %p82 = scmp.ne.s32.totalorder %s71, %s72
      %p83 = scmp.eq.s32.totalorder %s14, 0
      %p84 = por %p82, %p83
      %p85 = scmp.ne.s32.totalorder %s71, %s72
      %p86 = scmp.eq.s32.totalorder %s15, 2
      %p87 = por %p85, %p86
      %p89 = scmp.ne.s32.totalorder %s72, %s88
      %p90 = scmp.eq.s32.totalorder %s15, 0
      %p91 = por %p89, %p90
      %s92 = ssub.s32 %s17, %s31
      %p93 = scmp.eq.s32.totalorder %s92, 0
      %s95 = sadd.s32 %s94, 1
      %s96 = scalar_select %p93, %s94, %s95
      %p99 = pneg %p93
      %p100 = scmp.eq.s32.totalorder %s9, 2
      %p101 = por %p99, %p100
      %p102 = scmp.ne.s32.totalorder %s94, %s97
      %p103 = scmp.eq.s32.totalorder %s9, 0
      %p104 = por %p102, %p103
      %p105 = scmp.ne.s32.totalorder %s94, %s97
      %p106 = scmp.eq.s32.totalorder %s14, 2
      %p107 = por %p105, %p106
      %p108 = scmp.ne.s32.totalorder %s97, %s98
      %p109 = scmp.eq.s32.totalorder %s14, 0
      %p110 = por %p108, %p109
      %p111 = scmp.ne.s32.totalorder %s97, %s98
      %p112 = scmp.eq.s32.totalorder %s15, 2
      %p113 = por %p111, %p112
      %p115 = scmp.ne.s32.totalorder %s98, %s114
      %p116 = scmp.eq.s32.totalorder %s15, 0
      %p117 = por %p115, %p116
      %s118 = ssub.s32 %s16, %s35
      %s119 = ssub.s32 %s17, %s31
      %s120 = sor.u32 %s118, %s119
      %p121 = scmp.eq.s32.totalorder %s120, 0
      %s123 = sadd.s32 %s122, 1
      %s124 = scalar_select %p121, %s122, %s123
      %p127 = pneg %p121
      %p128 = scmp.eq.s32.totalorder %s9, 2
      %p129 = por %p127, %p128
      %p130 = scmp.ne.s32.totalorder %s122, %s125
      %p131 = scmp.eq.s32.totalorder %s9, 0
      %p132 = por %p130, %p131
      %p133 = scmp.ne.s32.totalorder %s122, %s125
      %p134 = scmp.eq.s32.totalorder %s14, 2
      %p135 = por %p133, %p134
      %p136 = scmp.ne.s32.totalorder %s125, %s126
      %p137 = scmp.eq.s32.totalorder %s14, 0
      %p138 = por %p136, %p137
      %p139 = scmp.ne.s32.totalorder %s125, %s126
      %p140 = scmp.eq.s32.totalorder %s15, 2
      %p141 = por %p139, %p140
      %p143 = scmp.ne.s32.totalorder %s126, %s142
      %p144 = scmp.eq.s32.totalorder %s15, 0
      %p145 = por %p143, %p144
      %p146 = scmp.le.s32.totalorder 1, %s9
      %p147 = scmp.lt.s32.totalorder %s9, 4
      %p148 = pnand %p146, %p147
      %p149 = pneg %p148
      // Predicated region
      $region9: #{seq2seq_forward.5} parent=5 // pred_check
        _
      $region10: #{seq2seq_forward.5} parent=5 // pred_check_branch
        %151 = sbr.rel (%p148) target = $region12
      $region11: #{seq2seq_forward.5} parent=5 // pred_region
        %s152 = ssub.s32 %s9, 1
        // Predicated region
        $region13: #{seq2seq_forward.5} parent=11 // pred_check
          %p153 = pneg %p56
        $region14: #{seq2seq_forward.5} parent=11 // pred_check_branch
          %155 = sbr.rel (%p153) target = $region16
        $region15: #{seq2seq_forward.5} parent=11 // pred_region
          %s156 = smul.u32 8, %s19
          %p157 = scmp.lt.s32.totalorder %s156, 7
          %s158 = scalar_select %p157, %s156, 7
          %p159 = scmp.lt.s32.totalorder %s21, 0
          %s160 = scalar_select %p159, %s21, 0
          %s161 = sadd.s32 %s160, %s158
          %s162 = smul.addr %s161, 4
          %s163 = scalar_lea.vmem %s0, %s162
          %s164 = smul.u32 8, %s19
        $region16: #{seq2seq_forward.5} parent=11 // pred_fallthru
          _
      $region12: #{seq2seq_forward.5} parent=5 // pred_fallthru
        _
      %p165 = scmp.lt.s32.totalorder %s9, 3
      // Predicated region
      $region17: #{seq2seq_forward.5} parent=5 // pred_check
        %p166 = pneg %p165
      $region18: #{seq2seq_forward.5} parent=5 // pred_check_branch
        %168 = sbr.rel (%p166) target = $region20
      $region19: #{seq2seq_forward.5} parent=5 // pred_region
        // Predicated region
        $region21: #{seq2seq_forward.5} parent=19 // pred_check
          %p169 = pneg %p78
        $region22: #{seq2seq_forward.5} parent=19 // pred_check_branch
          %171 = sbr.rel (%p169) target = $region24
        $region23: #{seq2seq_forward.5} parent=19 // pred_region
          %s172 = sand.u32 %s68, 1
          %s173 = sand.u32 %s68, 1
          %s174 = smul.addr %s173, 16
          %s175 = scalar_lea.vmem [#allocation3], %s174
          %s176 = smul.u32 4, %s18
          %s177 = smul.addr %s176, 3
          %s178 = sadd.s32 %s17, %s177
          %s179 = smul.addr %s178, 4
          %s180 = scalar_lea.vmem %s1, %s179
          // Predicated region
          $region25: #{seq2seq_forward.5} parent=23 // pred_check
            _
          $region26: #{seq2seq_forward.5} parent=23 // pred_check_branch
            %182 = sbr.rel (0) target = $region28
          $region27: #{seq2seq_forward.5} parent=23 // pred_region
            // Predicated region
            $region29: #{seq2seq_forward.5} parent=27 // pred_check
              _
            $region30: #{seq2seq_forward.5} parent=27 // pred_check_branch
              %184 = sbr.rel target = $region32
            $region31: #{seq2seq_forward.5} parent=27 // pred_region
              // Predicated region
              $region44: #{seq2seq_forward.5} parent=31 // pred_check
                _
              $region45: #{seq2seq_forward.5} parent=31 // pred_check_branch
                %205 = sbr.rel (0) target = $region47
              $region46: #{seq2seq_forward.5} parent=31 // pred_region
                loop: start=0, step=1, limit=1
                $region48: #{seq2seq_forward.5} parent=46 // loop_pre_header
                  _
                $region49: #{seq2seq_forward.5} parent=46 // loop_header
                  %s207 = sphi 0, %s211
                  %p208 = scmp.ge.s32.totalorder %s207, 1
                  %s212 = sphi %s180, %s180
                  %s213 = sphi %s175, %s175
                $region50: #{seq2seq_forward.5} parent=46 // loop_header_branch
                  %210 = sbr.rel (%p208) target = $region54
                $region51: #{seq2seq_forward.5} parent=46 // loop_body
                  _
                $region52: #{seq2seq_forward.5} parent=46 // loop_footer
                  %s211 = sadd.s32 1, %s207
                $region53: #{seq2seq_forward.5} parent=46 // loop_footer_branch
                  %206 = sbr.rel target = $region49
                $region54: #{seq2seq_forward.5} parent=46 // loop_exit
                  _
                loop: start=0, step=1, limit=1
                $region55: #{seq2seq_forward.5} parent=46 // loop_pre_header
                  _
                $region56: #{seq2seq_forward.5} parent=46 // loop_header
                  %s216 = sphi 0, %s220
                  %p217 = scmp.ge.s32.totalorder %s216, 1
                  %s221 = sphi %s180, %s180
                  %s222 = sphi %s175, %s175
                $region57: #{seq2seq_forward.5} parent=46 // loop_header_branch
                  %219 = sbr.rel (%p217) target = $region61
                $region58: #{seq2seq_forward.5} parent=46 // loop_body
                  %v223 = vld [vmem:[%s221] sm:$0xf]
                  %224 = vst [vmem:[%s222] sm:$0xf] %v223
                  %v225 = vld [vmem:[%s221 + $0xc] sm:$0xf]
                  %226 = vst [vmem:[%s222 + $0x4] sm:$0xf] %v225
                  %v227 = vld [vmem:[%s221 + $0x18] sm:$0xf]
                  %228 = vst [vmem:[%s222 + $0x8] sm:$0xf] %v227
                  %v229 = vld [vmem:[%s221 + $0x24] sm:$0xf]
                  %230 = vst [vmem:[%s222 + $0xc] sm:$0xf] %v229
                $region59: #{seq2seq_forward.5} parent=46 // loop_footer
                  %s220 = sadd.s32 1, %s216
                $region60: #{seq2seq_forward.5} parent=46 // loop_footer_branch
                  %215 = sbr.rel target = $region56
                $region61: #{seq2seq_forward.5} parent=46 // loop_exit
                  _
              $region47: #{seq2seq_forward.5} parent=31 // pred_fallthru
                _
            $region32: #{seq2seq_forward.5} parent=27 // pred_fallthru
              _
            // Predicated region
            $region33: #{seq2seq_forward.5} parent=27 // pred_check
              _
            $region34: #{seq2seq_forward.5} parent=27 // pred_check_branch
              %186 = sbr.rel (0) target = $region36
            $region35: #{seq2seq_forward.5} parent=27 // pred_region
              loop: start=0, step=1, limit=1
              $region37: #{seq2seq_forward.5} parent=35 // loop_pre_header
                _
              $region38: #{seq2seq_forward.5} parent=35 // loop_header
                %s189 = sphi 0, %s193
                %p190 = scmp.ge.s32.totalorder %s189, 1
                %s194 = sphi %s180, %s180
                %s195 = sphi %s175, %s175
              $region39: #{seq2seq_forward.5} parent=35 // loop_header_branch
                %192 = sbr.rel (%p190) target = $region43
              $region40: #{seq2seq_forward.5} parent=35 // loop_body
                %v196 = vld [vmem:[%s194] sm:$0xf]
                %197 = vst [vmem:[%s195] sm:$0xf] %v196
                %v198 = vld [vmem:[%s194 + $0xc] sm:$0xf]
                %199 = vst [vmem:[%s195 + $0x4] sm:$0xf] %v198
                %v200 = vld [vmem:[%s194 + $0x18] sm:$0xf]
                %201 = vst [vmem:[%s195 + $0x8] sm:$0xf] %v200
                %v202 = vld [vmem:[%s194 + $0x24] sm:$0xf]
                %203 = vst [vmem:[%s195 + $0xc] sm:$0xf] %v202
              $region41: #{seq2seq_forward.5} parent=35 // loop_footer
                %s193 = sadd.s32 1, %s189
              $region42: #{seq2seq_forward.5} parent=35 // loop_footer_branch
                %188 = sbr.rel target = $region38
              $region43: #{seq2seq_forward.5} parent=35 // loop_exit
                _
            $region36: #{seq2seq_forward.5} parent=27 // pred_fallthru
              _
          $region28: #{seq2seq_forward.5} parent=23 // pred_fallthru
            _
          %231 = vnop
        $region24: #{seq2seq_forward.5} parent=19 // pred_fallthru
          _
        // Predicated region
        $region62: #{seq2seq_forward.5} parent=19 // pred_check
          %p232 = pneg %p104
        $region63: #{seq2seq_forward.5} parent=19 // pred_check_branch
          %234 = sbr.rel (%p232) target = $region65
        $region64: #{seq2seq_forward.5} parent=19 // pred_region
          %p235 = scmp.lt.s32.totalorder %s17, 2
          %s236 = scalar_select %p235, %s17, 2
          %s237 = scalar_lea.vmem %s2, %s236
        $region65: #{seq2seq_forward.5} parent=19 // pred_fallthru
          _
      $region20: #{seq2seq_forward.5} parent=5 // pred_fallthru
        _
      %p238 = scmp.le.s32.totalorder 1, %s9
      %p239 = scmp.lt.s32.totalorder %s9, 4
      %p240 = pnand %p238, %p239
      %p241 = pneg %p240
      // Predicated region
      $region66: #{seq2seq_forward.5} parent=5 // pred_check
        _
      $region67: #{seq2seq_forward.5} parent=5 // pred_check_branch
        %243 = sbr.rel (%p240) target = $region69
      $region68: #{seq2seq_forward.5} parent=5 // pred_region
        %s244 = ssub.s32 %s9, 1
        %s245 = sand.u32 %s71, 1
        %s246 = sand.u32 %s71, 1
        %s247 = smul.addr %s246, 16
        %s248 = scalar_lea.vmem [#allocation3], %s247
        // Predicated region
        $region70: #{seq2seq_forward.5} parent=68 // pred_check
          %p249 = pneg %p84
        $region71: #{seq2seq_forward.5} parent=68 // pred_check_branch
          %251 = sbr.rel (%p249) target = $region73
        $region72: #{seq2seq_forward.5} parent=68 // pred_region
          _
        $region73: #{seq2seq_forward.5} parent=68 // pred_fallthru
          _
        %s252 = smul.u32 8, %s19
        %p253 = scmp.lt.s32.totalorder %s252, 7
        %s254 = scalar_select %p253, %s252, 7
        %p255 = scmp.lt.s32.totalorder %s21, 0
        %s256 = scalar_select %p255, %s21, 0
        %s257 = sadd.s32 %s256, %s254
        %s258 = smul.addr %s257, 4
        %s259 = scalar_lea.vmem %s0, %s258
        %p260 = pneg %p56
        %p261 = pneg %p53
        %s262 = sand.u32 %s71, 1
        %s263 = sand.u32 %s71, 1
        %s264 = smul.addr %s263, 16
        %s265 = scalar_lea.vmem [#allocation3], %s264
        %p266 = pneg %p84
        %p267 = pneg %p81
        %p268 = scmp.lt.s32.totalorder %s20, 2
        %s269 = scalar_select %p268, %s20, 2
        %s270 = scalar_lea.vmem %s2, %s269
        %p271 = pneg %p110
        %p272 = pneg %p107
        %p273 = pneg %p138
        %p274 = pneg %p135
        %s275 = sand.u32 %s125, 1
        %s276 = sand.u32 %s125, 1
        %s277 = smul.addr %s276, 32
        %s278 = scalar_lea.vmem [#allocation4], %s277
        %s279 = smul.u32 8, %s19
        %p280 = scmp.lt.s32.totalorder %s279, 7
        %s281 = scalar_select %p280, %s279, 7
        %p282 = scmp.lt.s32.totalorder %s21, 0
        %s283 = scalar_select %p282, %s21, 0
        %s284 = sadd.s32 %s283, %s281
        %s285 = smul.addr %s284, 4
        %s286 = scalar_lea.vmem %s0, %s285
        %s287 = smul.u32 8, %s19
        %s288 = smul.u32 4, %s21
        %p289 = scmp.lt.s32.totalorder %s20, 2
        %s290 = scalar_select %p289, %s20, 2
        %s291 = scalar_lea.vmem %s2, %s290
        %s292 = smul.u32 8, %s19
        %p294 = scmp.eq.s32.totalorder %s21, 0
        // Predicated region
        $region74: #{seq2seq_forward.5} parent=68 // pred_check
          %p295 = pneg %p294
        $region75: #{seq2seq_forward.5} parent=68 // pred_check_branch
          %297 = sbr.rel (%p295) target = $region77
        $region76: #{seq2seq_forward.5} parent=68 // pred_region
          %298 = vst [vmem:[#allocation2] sm:$0xff] 0.0
          %299 = vst [vmem:[#allocation2 + $0x8] sm:$0xff] 0.0
          %300 = vst [vmem:[#allocation2 + $0x10] sm:$0xff] 0.0
          %301 = vst [vmem:[#allocation2 + $0x18] sm:$0xff] 0.0
          %302 = vst [vmem:[#allocation2 + $0x20] sm:$0xff] 0.0
          %303 = vst [vmem:[#allocation2 + $0x28] sm:$0xff] 0.0
          %304 = vst [vmem:[#allocation2 + $0x30] sm:$0xff] 0.0
          %305 = vst [vmem:[#allocation2 + $0x38] sm:$0xff] 0.0
        $region77: #{seq2seq_forward.5} parent=68 // pred_fallthru
          _
        %v306 = vld [vmem:[#allocation2] sm:$0xff]
        %v307 = vld [vmem:[#allocation2 + $0x8] sm:$0xff]
        %v308 = vld [vmem:[#allocation2 + $0x10] sm:$0xff]
        %v309 = vld [vmem:[#allocation2 + $0x18] sm:$0xff]
        %v310 = vld [vmem:[#allocation2 + $0x20] sm:$0xff]
        %v311 = vld [vmem:[#allocation2 + $0x28] sm:$0xff]
        %v312 = vld [vmem:[#allocation2 + $0x30] sm:$0xff]
        %v313 = vld [vmem:[#allocation2 + $0x38] sm:$0xff]
        %v314 = vld [vmem:[%s286] sm:$0xf]
        %v315 = vld [vmem:[%s286 + $0x4] sm:$0xf]
        %v316 = vld [vmem:[%s286 + $0x8] sm:$0xf]
        %v317 = vld [vmem:[%s286 + $0xc] sm:$0xf]
        %v318 = vld [vmem:[%s286 + $0x10] sm:$0xf]
        %v319 = vld [vmem:[%s286 + $0x14] sm:$0xf]
        %v320 = vld [vmem:[%s286 + $0x18] sm:$0xf]
        %v321 = vld [vmem:[%s286 + $0x1c] sm:$0xf]
        %v322 = vld [vmem:[%s248] sm:$0xf]
        %v323 = vld [vmem:[%s248 + $0x4] sm:$0xf]
        %v324 = vld [vmem:[%s248 + $0x8] sm:$0xf]
        %v325 = vld [vmem:[%s248 + $0xc] sm:$0xf]
        %v334 = vunpack.c.l.b16 %v314
        %v335 = vunpack.c.l.b16 %v315
        %v336 = vunpack.c.l.b16 %v316
        %v337 = vunpack.c.l.b16 %v317
        %v338 = vunpack.c.l.b16 %v318
        %v339 = vunpack.c.l.b16 %v319
        %v340 = vunpack.c.l.b16 %v320
        %v341 = vunpack.c.l.b16 %v321
        %v342 = vpack.c.b16 %v335, %v334
        %v343 = vpack.c.b16 %v337, %v336
        %v344 = vpack.c.b16 %v339, %v338
        %v345 = vpack.c.b16 %v341, %v340
        %v350 = vunpack.c.l.b16 %v322
        %v351 = vunpack.c.l.b16 %v323
        %v352 = vunpack.c.l.b16 %v324
        %v353 = vunpack.c.l.b16 %v325
        %v354 = vpack.c.b16 %v351, %v350
        %v355 = vpack.c.b16 %v353, %v352
        %vm358 = vcmask 261120
        %v360 = vsel %vm358, %v342, 0
        %v363 = vsel %vm358, %v343, 0
        %v366 = vsel %vm358, %v344, 0
        %v369 = vsel %vm358, %v345, 0
        %371 = vmatprep.subr.bf16.mxu0 0
        %372 = vmatpush1.bf16.msra.mxu0 %v354
        %373 = vmatprep.subr.bf16.mxu0 0
        %374 = vmatpush1.bf16.msra.mxu0 %v355
        %375 = vmatprep.subr.bf16.mxu0 0
        %376 = vmatpush1.bf16.msra.mxu0 0
        %377 = vmatprep.subr.bf16.mxu0 0
        %378 = vmatpush1.bf16.msra.mxu0 0
        %379 = vmatprep.subr.bf16.mxu0 0
        %380 = vmatpush1.bf16.msra.mxu0 0
        %381 = vmatprep.subr.bf16.mxu0 0
        %382 = vmatpush1.bf16.msra.mxu0 0
        %383 = vmatprep.subr.bf16.mxu0 0
        %384 = vmatpush1.bf16.msra.mxu0 0
        %385 = vmatprep.subr.bf16.mxu0 0
        %386 = vmatpush1.bf16.msra.mxu0 0
        %387 = vmatprep.subr.bf16.mxu0 0
        %388 = vmatpush1.bf16.msra.mxu0 0
        %389 = vmatprep.subr.bf16.mxu0 0
        %390 = vmatpush1.bf16.msra.mxu0 0
        %391 = vmatprep.subr.bf16.mxu0 0
        %392 = vmatpush1.bf16.msra.mxu0 0
        %393 = vmatprep.subr.bf16.mxu0 0
        %394 = vmatpush1.bf16.msra.mxu0 0
        %395 = vmatprep.subr.bf16.mxu0 0
        %396 = vmatpush1.bf16.msra.mxu0 0
        %397 = vmatprep.subr.bf16.mxu0 0
        %398 = vmatpush1.bf16.msra.mxu0 0
        %399 = vmatprep.subr.bf16.mxu0 0
        %400 = vmatpush1.bf16.msra.mxu0 0
        %401 = vmatprep.subr.bf16.mxu0 0
        %402 = vmatpush1.bf16.msra.mxu0 0
        %403 = vmatprep.mubr.bf16.mxu0 0
        %404 = vmatmul.mubr.bf16.gmra.mrb[0].mxu0 %v360
        %v405 = vpop.f32.mrb[0].mxu0
        %v406 = vadd.f32 0.0, %v405
        %v407 = vpop.f32.mrb[0].mxu0
        %v408 = vpop.f32.mrb[0].mxu0
        %v409 = vadd.f32 0.0, %v408
        %v410 = vpop.f32.mrb[0].mxu0
        %411 = vmatprep.mubr.bf16.mxu0 0
        %412 = vmatmul.mubr.bf16.gmra.mrb[0].mxu0 %v363
        %v413 = vpop.f32.mrb[0].mxu0
        %v414 = vadd.f32 0.0, %v413
        %v415 = vpop.f32.mrb[0].mxu0
        %v416 = vpop.f32.mrb[0].mxu0
        %v417 = vadd.f32 0.0, %v416
        %v418 = vpop.f32.mrb[0].mxu0
        %419 = vmatprep.mubr.bf16.mxu0 0
        %420 = vmatmul.mubr.bf16.gmra.mrb[0].mxu0 %v366
        %v421 = vpop.f32.mrb[0].mxu0
        %v422 = vadd.f32 0.0, %v421
        %v423 = vpop.f32.mrb[0].mxu0
        %v424 = vpop.f32.mrb[0].mxu0
        %v425 = vadd.f32 0.0, %v424
        %v426 = vpop.f32.mrb[0].mxu0
        %427 = vmatprep.mubr.bf16.mxu0 0
        %428 = vmatmul.mubr.bf16.gmra.mrb[0].mxu0 %v369
        %v429 = vpop.f32.mrb[0].mxu0
        %v430 = vadd.f32 0.0, %v429
        %v431 = vpop.f32.mrb[0].mxu0
        %v432 = vpop.f32.mrb[0].mxu0
        %v433 = vadd.f32 0.0, %v432
        %v434 = vpop.f32.mrb[0].mxu0
        %435 = vdwg.mxu0
        %v436 = vadd.f32 %v306, %v406
        %v437 = vadd.f32 %v307, %v409
        %v438 = vadd.f32 %v308, %v414
        %v439 = vadd.f32 %v309, %v417
        %v440 = vadd.f32 %v310, %v422
        %v441 = vadd.f32 %v311, %v425
        %v442 = vadd.f32 %v312, %v430
        %v443 = vadd.f32 %v313, %v433
        %444 = vst [vmem:[#allocation2] sm:$0xff] %v436
        %445 = vst [vmem:[#allocation2 + $0x8] sm:$0xff] %v437
        %446 = vst [vmem:[#allocation2 + $0x10] sm:$0xff] %v438
        %447 = vst [vmem:[#allocation2 + $0x18] sm:$0xff] %v439
        %448 = vst [vmem:[#allocation2 + $0x20] sm:$0xff] %v440
        %449 = vst [vmem:[#allocation2 + $0x28] sm:$0xff] %v441
        %450 = vst [vmem:[#allocation2 + $0x30] sm:$0xff] %v442
        %451 = vst [vmem:[#allocation2 + $0x38] sm:$0xff] %v443
        // Predicated region
        $region78: #{seq2seq_forward.5} parent=68 // pred_check
          %p452 = pneg %p294
        $region79: #{seq2seq_forward.5} parent=68 // pred_check_branch
          %454 = sbr.rel (%p452) target = $region81
        $region80: #{seq2seq_forward.5} parent=68 // pred_region
          %v455 = vld [vmem:[#allocation2] sm:$0xff]
          %v456 = vld [vmem:[#allocation2 + $0x8] sm:$0xff]
          %v457 = vld [vmem:[#allocation2 + $0x10] sm:$0xff]
          %v458 = vld [vmem:[#allocation2 + $0x18] sm:$0xff]
          %v459 = vld [vmem:[#allocation2 + $0x20] sm:$0xff]
          %v460 = vld [vmem:[#allocation2 + $0x28] sm:$0xff]
          %v461 = vld [vmem:[#allocation2 + $0x30] sm:$0xff]
          %v462 = vld [vmem:[#allocation2 + $0x38] sm:$0xff]
          %v463 = vld [vmem:[%s291] sm:$0x1]
          %v465 = vlaneseq
          %v466 = vshrl.u32 %v465, 7
          %v467 = vsub.s32 0, %v466
          %v468 = vrot.slane %v463, %v467
          %v470 = vadd.f32 %v455, %v468
          %v471 = vadd.f32 %v456, %v468
          %v472 = vadd.f32 %v457, %v468
          %v473 = vadd.f32 %v458, %v468
          %v474 = vadd.f32 %v459, %v468
          %v475 = vadd.f32 %v460, %v468
          %v476 = vadd.f32 %v461, %v468
          %v477 = vadd.f32 %v462, %v468
          %v478 = vpack.c.bf16 %v471, %v470
          %v479 = vpack.c.bf16 %v473, %v472
          %v480 = vpack.c.bf16 %v475, %v474
          %v481 = vpack.c.bf16 %v477, %v476
          %v486 = vunpack.c.l.b16 %v478
          %v487 = vunpack.c.h.b16 %v478
          %v488 = vunpack.c.l.b16 %v479
          %v489 = vunpack.c.h.b16 %v479
          %v490 = vunpack.c.l.b16 %v480
          %v491 = vunpack.c.h.b16 %v480
          %v492 = vunpack.c.l.b16 %v481
          %v493 = vunpack.c.h.b16 %v481
          %v494 = vpack.c.b16 %v486, %v486
          %v495 = vpack.c.b16 %v487, %v487
          %v496 = vpack.c.b16 %v488, %v488
          %v497 = vpack.c.b16 %v489, %v489
          %v498 = vpack.c.b16 %v490, %v490
          %v499 = vpack.c.b16 %v491, %v491
          %v500 = vpack.c.b16 %v492, %v492
          %v501 = vpack.c.b16 %v493, %v493
          %510 = vst [vmem:[%s278] sm:$0xf] %v494
          %511 = vst [vmem:[%s278 + $0x4] sm:$0xf] %v495
          %512 = vst [vmem:[%s278 + $0x8] sm:$0xf] %v496
          %513 = vst [vmem:[%s278 + $0xc] sm:$0xf] %v497
          %514 = vst [vmem:[%s278 + $0x10] sm:$0xf] %v498
          %515 = vst [vmem:[%s278 + $0x14] sm:$0xf] %v499
          %516 = vst [vmem:[%s278 + $0x18] sm:$0xf] %v500
          %517 = vst [vmem:[%s278 + $0x1c] sm:$0xf] %v501
        $region81: #{seq2seq_forward.5} parent=68 // pred_fallthru
          _
        %s518 = sand.u32 %s125, 1
        %s519 = sand.u32 %s125, 1
        %s520 = smul.addr %s519, 32
        %s521 = scalar_lea.vmem [#allocation4], %s520
        // Predicated region
        $region82: #{seq2seq_forward.5} parent=68 // pred_check
          %p522 = pneg %p135
        $region83: #{seq2seq_forward.5} parent=68 // pred_check_branch
          %524 = sbr.rel (%p522) target = $region85
        $region84: #{seq2seq_forward.5} parent=68 // pred_region
          %s525 = smul.u32 8, %s19
          %s526 = smul.addr %s525, 3
          %s527 = sadd.s32 %s20, %s526
          %s528 = smul.addr %s527, 4
          %s529 = scalar_lea.vmem %s3, %s528
          // Predicated region
          $region86: #{seq2seq_forward.5} parent=84 // pred_check
            _
          $region87: #{seq2seq_forward.5} parent=84 // pred_check_branch
            %531 = sbr.rel (0) target = $region89
          $region88: #{seq2seq_forward.5} parent=84 // pred_region
            // Predicated region
            $region90: #{seq2seq_forward.5} parent=88 // pred_check
              _
            $region91: #{seq2seq_forward.5} parent=88 // pred_check_branch
              %533 = sbr.rel target = $region93
            $region92: #{seq2seq_forward.5} parent=88 // pred_region
              // Predicated region
              $region105: #{seq2seq_forward.5} parent=92 // pred_check
                _
              $region106: #{seq2seq_forward.5} parent=92 // pred_check_branch
                %562 = sbr.rel (0) target = $region108
              $region107: #{seq2seq_forward.5} parent=92 // pred_region
                loop: start=0, step=1, limit=1
                $region109: #{seq2seq_forward.5} parent=107 // loop_pre_header
                  _
                $region110: #{seq2seq_forward.5} parent=107 // loop_header
                  %s564 = sphi 0, %s568
                  %p565 = scmp.ge.s32.totalorder %s564, 1
                  %s569 = sphi %s521, %s521
                  %s570 = sphi %s529, %s529
                $region111: #{seq2seq_forward.5} parent=107 // loop_header_branch
                  %567 = sbr.rel (%p565) target = $region115
                $region112: #{seq2seq_forward.5} parent=107 // loop_body
                  _
                $region113: #{seq2seq_forward.5} parent=107 // loop_footer
                  %s568 = sadd.s32 1, %s564
                $region114: #{seq2seq_forward.5} parent=107 // loop_footer_branch
                  %563 = sbr.rel target = $region110
                $region115: #{seq2seq_forward.5} parent=107 // loop_exit
                  _
                loop: start=0, step=1, limit=1
                $region116: #{seq2seq_forward.5} parent=107 // loop_pre_header
                  _
                $region117: #{seq2seq_forward.5} parent=107 // loop_header
                  %s573 = sphi 0, %s577
                  %p574 = scmp.ge.s32.totalorder %s573, 1
                  %s578 = sphi %s521, %s521
                  %s579 = sphi %s529, %s529
                $region118: #{seq2seq_forward.5} parent=107 // loop_header_branch
                  %576 = sbr.rel (%p574) target = $region122
                $region119: #{seq2seq_forward.5} parent=107 // loop_body
                  %v580 = vld [vmem:[%s578] sm:$0xf]
                  %581 = vst [vmem:[%s579] sm:$0xf] %v580
                  %v582 = vld [vmem:[%s578 + $0x4] sm:$0xf]
                  %583 = vst [vmem:[%s579 + $0xc] sm:$0xf] %v582
                  %v584 = vld [vmem:[%s578 + $0x8] sm:$0xf]
                  %585 = vst [vmem:[%s579 + $0x18] sm:$0xf] %v584
                  %v586 = vld [vmem:[%s578 + $0xc] sm:$0xf]
                  %587 = vst [vmem:[%s579 + $0x24] sm:$0xf] %v586
                  %v588 = vld [vmem:[%s578 + $0x10] sm:$0xf]
                  %589 = vst [vmem:[%s579 + $0x30] sm:$0xf] %v588
                  %v590 = vld [vmem:[%s578 + $0x14] sm:$0xf]
                  %591 = vst [vmem:[%s579 + $0x3c] sm:$0xf] %v590
                  %v592 = vld [vmem:[%s578 + $0x18] sm:$0xf]
                  %593 = vst [vmem:[%s579 + $0x48] sm:$0xf] %v592
                  %v594 = vld [vmem:[%s578 + $0x1c] sm:$0xf]
                  %595 = vst [vmem:[%s579 + $0x54] sm:$0xf] %v594
                $region120: #{seq2seq_forward.5} parent=107 // loop_footer
                  %s577 = sadd.s32 1, %s573
                $region121: #{seq2seq_forward.5} parent=107 // loop_footer_branch
                  %572 = sbr.rel target = $region117
                $region122: #{seq2seq_forward.5} parent=107 // loop_exit
                  _
              $region108: #{seq2seq_forward.5} parent=92 // pred_fallthru
                _
            $region93: #{seq2seq_forward.5} parent=88 // pred_fallthru
              _
            // Predicated region
            $region94: #{seq2seq_forward.5} parent=88 // pred_check
              _
            $region95: #{seq2seq_forward.5} parent=88 // pred_check_branch
              %535 = sbr.rel (0) target = $region97
            $region96: #{seq2seq_forward.5} parent=88 // pred_region
              loop: start=0, step=1, limit=1
              $region98: #{seq2seq_forward.5} parent=96 // loop_pre_header
                _
              $region99: #{seq2seq_forward.5} parent=96 // loop_header
                %s538 = sphi 0, %s542
                %p539 = scmp.ge.s32.totalorder %s538, 1
                %s543 = sphi %s521, %s521
                %s544 = sphi %s529, %s529
              $region100: #{seq2seq_forward.5} parent=96 // loop_header_branch
                %541 = sbr.rel (%p539) target = $region104
              $region101: #{seq2seq_forward.5} parent=96 // loop_body
                %v545 = vld [vmem:[%s543] sm:$0xf]
                %546 = vst [vmem:[%s544] sm:$0xf] %v545
                %v547 = vld [vmem:[%s543 + $0x4] sm:$0xf]
                %548 = vst [vmem:[%s544 + $0xc] sm:$0xf] %v547
                %v549 = vld [vmem:[%s543 + $0x8] sm:$0xf]
                %550 = vst [vmem:[%s544 + $0x18] sm:$0xf] %v549
                %v551 = vld [vmem:[%s543 + $0xc] sm:$0xf]
                %552 = vst [vmem:[%s544 + $0x24] sm:$0xf] %v551
                %v553 = vld [vmem:[%s543 + $0x10] sm:$0xf]
                %554 = vst [vmem:[%s544 + $0x30] sm:$0xf] %v553
                %v555 = vld [vmem:[%s543 + $0x14] sm:$0xf]
                %556 = vst [vmem:[%s544 + $0x3c] sm:$0xf] %v555
                %v557 = vld [vmem:[%s543 + $0x18] sm:$0xf]
                %558 = vst [vmem:[%s544 + $0x48] sm:$0xf] %v557
                %v559 = vld [vmem:[%s543 + $0x1c] sm:$0xf]
                %560 = vst [vmem:[%s544 + $0x54] sm:$0xf] %v559
              $region102: #{seq2seq_forward.5} parent=96 // loop_footer
                %s542 = sadd.s32 1, %s538
              $region103: #{seq2seq_forward.5} parent=96 // loop_footer_branch
                %537 = sbr.rel target = $region99
              $region104: #{seq2seq_forward.5} parent=96 // loop_exit
                _
            $region97: #{seq2seq_forward.5} parent=88 // pred_fallthru
              _
          $region89: #{seq2seq_forward.5} parent=84 // pred_fallthru
            _
          %596 = vnop
        $region85: #{seq2seq_forward.5} parent=68 // pred_fallthru
          _
      $region69: #{seq2seq_forward.5} parent=5 // pred_fallthru
        _
      %p597 = scmp.le.s32.totalorder 2, %s9
      // Predicated region
      $region123: #{seq2seq_forward.5} parent=5 // pred_check
        %p598 = pneg %p597
      $region124: #{seq2seq_forward.5} parent=5 // pred_check_branch
        %600 = sbr.rel (%p598) target = $region126
      $region125: #{seq2seq_forward.5} parent=5 // pred_region
        %s601 = ssub.s32 %s9, 2
        // Predicated region
        $region127: #{seq2seq_forward.5} parent=125 // pred_check
          %p602 = pneg %p141
        $region128: #{seq2seq_forward.5} parent=125 // pred_check_branch
          %604 = sbr.rel (%p602) target = $region130
        $region129: #{seq2seq_forward.5} parent=125 // pred_region
          %s605 = sand.u32 %s126, 1
          %s606 = sand.u32 %s126, 1
          %s607 = smul.addr %s606, 32
          %s608 = scalar_lea.vmem [#allocation4], %s607
        $region130: #{seq2seq_forward.5} parent=125 // pred_fallthru
          _
      $region126: #{seq2seq_forward.5} parent=5 // pred_fallthru
        _
    $region6: #{seq2seq_forward.5} parent=1 // loop_footer
      %s13 = sadd.s32 1, %s9
    $region7: #{seq2seq_forward.5} parent=1 // loop_footer_branch
      %8 = sbr.rel target = $region3
    $region8: #{seq2seq_forward.5} parent=1 // loop_exit
      _

// kernel: seq2seq_forward.9
$region0: #{seq2seq_forward.9}
  #allocation0 [shape = 'u32[]', space=smem, size = 0x4, offset = 0x4, fixed_abs, tag = 'smem constant byte address 0x4 - core index']
  #allocation1 [shape = 'u32[144,128]{1,0:T(1,128)}', space=vmem, size = 0x12000, scoped, tag = 'internal scratch']
  #allocation2 [shape = 'f32[64,128]{1,0:T(8,128)}', space=vmem, size = 0x8000, scoped, tag = 'scratch operand']
  %s0 = inlined_call_operand.vmem [shape: bf16[64,128], index: 0, kind: input, shape index: {}]
  %s1 = inlined_call_operand.vmem [shape: bf16[128,128], index: 1, kind: input, shape index: {}]
  %s2 = inlined_call_operand.vmem [shape: f32[1,128], index: 2, kind: input, shape index: {}]
  %s3 = inlined_call_operand.vmem [shape: f32[64,128], index: 3, kind: output, shape index: {}]
  %s4 = sld [smem:[#allocation0]]
  $region30: #{seq2seq_forward.9} parent=0
    _
  %s6 = ssub.s32 1, %s4
  %s7 = scalar_select 0, %s6, %s4
  // Predicated region
  $region2: #{seq2seq_forward.9} parent=0 // pred_check
    _
  $region3: #{seq2seq_forward.9} parent=0 // pred_check_branch
    %9 = sbr.rel (0) target = $region5
  $region4: #{seq2seq_forward.9} parent=0 // pred_region
    _
  $region5: #{seq2seq_forward.9} parent=0 // pred_fallthru
    _
  // Predicated region
  $region6: #{seq2seq_forward.9} parent=0 // pred_check
    _
  $region7: #{seq2seq_forward.9} parent=0 // pred_check_branch
    %11 = sbr.rel (0) target = $region9
  $region8: #{seq2seq_forward.9} parent=0 // pred_region
    _
  $region9: #{seq2seq_forward.9} parent=0 // pred_fallthru
    _
  // Predicated region
  $region10: #{seq2seq_forward.9} parent=0 // pred_check
    _
  $region11: #{seq2seq_forward.9} parent=0 // pred_check_branch
    %13 = sbr.rel (0) target = $region13
  $region12: #{seq2seq_forward.9} parent=0 // pred_region
    _
  $region13: #{seq2seq_forward.9} parent=0 // pred_fallthru
    _
  %p15 = scmp.eq.s32.totalorder 0, 0
  // Predicated region
  $region14: #{seq2seq_forward.9} parent=0 // pred_check
    %p16 = pneg %p15
  $region15: #{seq2seq_forward.9} parent=0 // pred_check_branch
    %18 = sbr.rel (%p16) target = $region17
  $region16: #{seq2seq_forward.9} parent=0 // pred_region
    %19 = vst [vmem:[#allocation2] sm:$0xff] 0.0
    %20 = vst [vmem:[#allocation2 + $0x8] sm:$0xff] 0.0
    %21 = vst [vmem:[#allocation2 + $0x10] sm:$0xff] 0.0
    %22 = vst [vmem:[#allocation2 + $0x18] sm:$0xff] 0.0
    %23 = vst [vmem:[#allocation2 + $0x20] sm:$0xff] 0.0
    %24 = vst [vmem:[#allocation2 + $0x28] sm:$0xff] 0.0
    %25 = vst [vmem:[#allocation2 + $0x30] sm:$0xff] 0.0
    %26 = vst [vmem:[#allocation2 + $0x38] sm:$0xff] 0.0
  $region17: #{seq2seq_forward.9} parent=0 // pred_fallthru
    _
  %v27 = vld [vmem:[#allocation2] sm:$0xff]
  %v28 = vld [vmem:[#allocation2 + $0x8] sm:$0xff]
  %v29 = vld [vmem:[#allocation2 + $0x10] sm:$0xff]
  %v30 = vld [vmem:[#allocation2 + $0x18] sm:$0xff]
  %v31 = vld [vmem:[#allocation2 + $0x20] sm:$0xff]
  %v32 = vld [vmem:[#allocation2 + $0x28] sm:$0xff]
  %v33 = vld [vmem:[#allocation2 + $0x30] sm:$0xff]
  %v34 = vld [vmem:[#allocation2 + $0x38] sm:$0xff]
  %v35 = vld [vmem:[%s0] sm:$0xf]
  %v36 = vld [vmem:[%s0 + $0x4] sm:$0xf]
  %v37 = vld [vmem:[%s0 + $0x8] sm:$0xf]
  %v38 = vld [vmem:[%s0 + $0xc] sm:$0xf]
  %v39 = vld [vmem:[%s0 + $0x10] sm:$0xf]
  %v40 = vld [vmem:[%s0 + $0x14] sm:$0xf]
  %v41 = vld [vmem:[%s0 + $0x18] sm:$0xf]
  %v42 = vld [vmem:[%s0 + $0x1c] sm:$0xf]
  %v43 = vld [vmem:[%s1] sm:$0xf]
  %v44 = vld [vmem:[%s1 + $0x4] sm:$0xf]
  %v45 = vld [vmem:[%s1 + $0x8] sm:$0xf]
  %v46 = vld [vmem:[%s1 + $0xc] sm:$0xf]
  %v47 = vld [vmem:[%s1 + $0x10] sm:$0xf]
  %v48 = vld [vmem:[%s1 + $0x14] sm:$0xf]
  %v49 = vld [vmem:[%s1 + $0x18] sm:$0xf]
  %v50 = vld [vmem:[%s1 + $0x1c] sm:$0xf]
  %v51 = vld [vmem:[%s1 + $0x20] sm:$0xf]
  %v52 = vld [vmem:[%s1 + $0x24] sm:$0xf]
  %v53 = vld [vmem:[%s1 + $0x28] sm:$0xf]
  %v54 = vld [vmem:[%s1 + $0x2c] sm:$0xf]
  %v55 = vld [vmem:[%s1 + $0x30] sm:$0xf]
  %v56 = vld [vmem:[%s1 + $0x34] sm:$0xf]
  %v57 = vld [vmem:[%s1 + $0x38] sm:$0xf]
  %v58 = vld [vmem:[%s1 + $0x3c] sm:$0xf]
  %v67 = vunpack.c.l.b16 %v35
  %v68 = vunpack.c.l.b16 %v36
  %v69 = vunpack.c.l.b16 %v37
  %v70 = vunpack.c.l.b16 %v38
  %v71 = vunpack.c.l.b16 %v39
  %v72 = vunpack.c.l.b16 %v40
  %v73 = vunpack.c.l.b16 %v41
  %v74 = vunpack.c.l.b16 %v42
  %v75 = vpack.c.b16 %v68, %v67
  %v76 = vpack.c.b16 %v70, %v69
  %v77 = vpack.c.b16 %v72, %v71
  %v78 = vpack.c.b16 %v74, %v73
  %v99 = vunpack.c.l.b16 %v43
  %v100 = vunpack.c.l.b16 %v44
  %v101 = vunpack.c.l.b16 %v45
  %v102 = vunpack.c.l.b16 %v46
  %v103 = vunpack.c.l.b16 %v47
  %v104 = vunpack.c.l.b16 %v48
  %v105 = vunpack.c.l.b16 %v49
  %v106 = vunpack.c.l.b16 %v50
  %v107 = vunpack.c.l.b16 %v51
  %v108 = vunpack.c.l.b16 %v52
  %v109 = vunpack.c.l.b16 %v53
  %v110 = vunpack.c.l.b16 %v54
  %v111 = vunpack.c.l.b16 %v55
  %v112 = vunpack.c.l.b16 %v56
  %v113 = vunpack.c.l.b16 %v57
  %v114 = vunpack.c.l.b16 %v58
  %v115 = vpack.c.b16 %v100, %v99
  %v116 = vpack.c.b16 %v102, %v101
  %v117 = vpack.c.b16 %v104, %v103
  %v118 = vpack.c.b16 %v106, %v105
  %v119 = vpack.c.b16 %v108, %v107
  %v120 = vpack.c.b16 %v110, %v109
  %v121 = vpack.c.b16 %v112, %v111
  %v122 = vpack.c.b16 %v114, %v113
  %131 = vmatprep.subr.bf16.mxu0 0
  %132 = vmatpush1.bf16.msra.mxu0 %v115
  %133 = vmatprep.subr.bf16.mxu0 0
  %134 = vmatpush1.bf16.msra.mxu0 %v116
  %135 = vmatprep.subr.bf16.mxu0 0
  %136 = vmatpush1.bf16.msra.mxu0 %v117
  %137 = vmatprep.subr.bf16.mxu0 0
  %138 = vmatpush1.bf16.msra.mxu0 %v118
  %139 = vmatprep.subr.bf16.mxu0 0
  %140 = vmatpush1.bf16.msra.mxu0 %v119
  %141 = vmatprep.subr.bf16.mxu0 0
  %142 = vmatpush1.bf16.msra.mxu0 %v120
  %143 = vmatprep.subr.bf16.mxu0 0
  %144 = vmatpush1.bf16.msra.mxu0 %v121
  %145 = vmatprep.subr.bf16.mxu0 0
  %146 = vmatpush1.bf16.msra.mxu0 %v122
  %147 = vmatprep.subr.bf16.mxu0 0
  %148 = vmatpush1.bf16.msra.mxu0 0
  %149 = vmatprep.subr.bf16.mxu0 0
  %150 = vmatpush1.bf16.msra.mxu0 0
  %151 = vmatprep.subr.bf16.mxu0 0
  %152 = vmatpush1.bf16.msra.mxu0 0
  %153 = vmatprep.subr.bf16.mxu0 0
  %154 = vmatpush1.bf16.msra.mxu0 0
  %155 = vmatprep.subr.bf16.mxu0 0
  %156 = vmatpush1.bf16.msra.mxu0 0
  %157 = vmatprep.subr.bf16.mxu0 0
  %158 = vmatpush1.bf16.msra.mxu0 0
  %159 = vmatprep.subr.bf16.mxu0 0
  %160 = vmatpush1.bf16.msra.mxu0 0
  %161 = vmatprep.subr.bf16.mxu0 0
  %162 = vmatpush1.bf16.msra.mxu0 0
  %163 = vmatprep.mubr.bf16.mxu0 0
  %164 = vmatmul.mubr.bf16.gmra.mrb[0].mxu0 %v75
  %v165 = vpop.f32.mrb[0].mxu0
  %v166 = vadd.f32 0.0, %v165
  %v167 = vpop.f32.mrb[0].mxu0
  %v168 = vpop.f32.mrb[0].mxu0
  %v169 = vadd.f32 0.0, %v168
  %v170 = vpop.f32.mrb[0].mxu0
  %171 = vmatprep.mubr.bf16.mxu0 0
  %172 = vmatmul.mubr.bf16.gmra.mrb[0].mxu0 %v76
  %v173 = vpop.f32.mrb[0].mxu0
  %v174 = vadd.f32 0.0, %v173
  %v175 = vpop.f32.mrb[0].mxu0
  %v176 = vpop.f32.mrb[0].mxu0
  %v177 = vadd.f32 0.0, %v176
  %v178 = vpop.f32.mrb[0].mxu0
  %179 = vmatprep.mubr.bf16.mxu0 0
  %180 = vmatmul.mubr.bf16.gmra.mrb[0].mxu0 %v77
  %v181 = vpop.f32.mrb[0].mxu0
  %v182 = vadd.f32 0.0, %v181
  %v183 = vpop.f32.mrb[0].mxu0
  %v184 = vpop.f32.mrb[0].mxu0
  %v185 = vadd.f32 0.0, %v184
  %v186 = vpop.f32.mrb[0].mxu0
  %187 = vmatprep.mubr.bf16.mxu0 0
  %188 = vmatmul.mubr.bf16.gmra.mrb[0].mxu0 %v78
  %v189 = vpop.f32.mrb[0].mxu0
  %v190 = vadd.f32 0.0, %v189
  %v191 = vpop.f32.mrb[0].mxu0
  %v192 = vpop.f32.mrb[0].mxu0
  %v193 = vadd.f32 0.0, %v192
  %v194 = vpop.f32.mrb[0].mxu0
  %195 = vdwg.mxu0
  %v196 = vadd.f32 %v27, %v166
  %v197 = vadd.f32 %v28, %v169
  %v198 = vadd.f32 %v29, %v174
  %v199 = vadd.f32 %v30, %v177
  %v200 = vadd.f32 %v31, %v182
  %v201 = vadd.f32 %v32, %v185
  %v202 = vadd.f32 %v33, %v190
  %v203 = vadd.f32 %v34, %v193
  %204 = vst [vmem:[#allocation2] sm:$0xff] %v196
  %205 = vst [vmem:[#allocation2 + $0x8] sm:$0xff] %v197
  %206 = vst [vmem:[#allocation2 + $0x10] sm:$0xff] %v198
  %207 = vst [vmem:[#allocation2 + $0x18] sm:$0xff] %v199
  %208 = vst [vmem:[#allocation2 + $0x20] sm:$0xff] %v200
  %209 = vst [vmem:[#allocation2 + $0x28] sm:$0xff] %v201
  %210 = vst [vmem:[#allocation2 + $0x30] sm:$0xff] %v202
  %211 = vst [vmem:[#allocation2 + $0x38] sm:$0xff] %v203
  // Predicated region
  $region18: #{seq2seq_forward.9} parent=0 // pred_check
    %p212 = pneg %p15
  $region19: #{seq2seq_forward.9} parent=0 // pred_check_branch
    %214 = sbr.rel (%p212) target = $region21
  $region20: #{seq2seq_forward.9} parent=0 // pred_region
    %v215 = vld [vmem:[#allocation2] sm:$0xff]
    %v216 = vld [vmem:[#allocation2 + $0x8] sm:$0xff]
    %v217 = vld [vmem:[#allocation2 + $0x10] sm:$0xff]
    %v218 = vld [vmem:[#allocation2 + $0x18] sm:$0xff]
    %v219 = vld [vmem:[#allocation2 + $0x20] sm:$0xff]
    %v220 = vld [vmem:[#allocation2 + $0x28] sm:$0xff]
    %v221 = vld [vmem:[#allocation2 + $0x30] sm:$0xff]
    %v222 = vld [vmem:[#allocation2 + $0x38] sm:$0xff]
    %v223 = vld [vmem:[%s2] sm:$0x1]
    %v225 = vlaneseq
    %v226 = vshrl.u32 %v225, 7
    %v227 = vsub.s32 0, %v226
    %v228 = vrot.slane %v223, %v227
    %v230 = vadd.f32 %v215, %v228
    %v231 = vadd.f32 %v216, %v228
    %v232 = vadd.f32 %v217, %v228
    %v233 = vadd.f32 %v218, %v228
    %v234 = vadd.f32 %v219, %v228
    %v235 = vadd.f32 %v220, %v228
    %v236 = vadd.f32 %v221, %v228
    %v237 = vadd.f32 %v222, %v228
    %238 = vst [vmem:[%s3] sm:$0xff] %v230
    %239 = vst [vmem:[%s3 + $0x8] sm:$0xff] %v231
    %240 = vst [vmem:[%s3 + $0x10] sm:$0xff] %v232
    %241 = vst [vmem:[%s3 + $0x18] sm:$0xff] %v233
    %242 = vst [vmem:[%s3 + $0x20] sm:$0xff] %v234
    %243 = vst [vmem:[%s3 + $0x28] sm:$0xff] %v235
    %244 = vst [vmem:[%s3 + $0x30] sm:$0xff] %v236
    %245 = vst [vmem:[%s3 + $0x38] sm:$0xff] %v237
  $region21: #{seq2seq_forward.9} parent=0 // pred_fallthru
    _
  // Predicated region
  $region22: #{seq2seq_forward.9} parent=0 // pred_check
    _
  $region23: #{seq2seq_forward.9} parent=0 // pred_check_branch
    %247 = sbr.rel (0) target = $region25
  $region24: #{seq2seq_forward.9} parent=0 // pred_region
    _
  $region25: #{seq2seq_forward.9} parent=0 // pred_fallthru
    _
  // Predicated region
  $region26: #{seq2seq_forward.9} parent=0 // pred_check
    _
  $region27: #{seq2seq_forward.9} parent=0 // pred_check_branch
    %249 = sbr.rel (0) target = $region29
  $region28: #{seq2seq_forward.9} parent=0 // pred_region
    _
  $region29: #{seq2seq_forward.9} parent=0 // pred_fallthru
    _

// kernel: seq2seq_forward.7
$region0: #{seq2seq_forward.7}
  #allocation0 [shape = 'u32[]', space=smem, size = 0x4, offset = 0x4, fixed_abs, tag = 'smem constant byte address 0x4 - core index']
  #allocation1 [shape = 'u32[144,128]{1,0:T(1,128)}', space=vmem, size = 0x12000, scoped, tag = 'internal scratch']
  #allocation2 [shape = 'bf16[2,8,384]{2,1,0:T(8,128)(2,1)}', space=vmem, size = 0x3000, scoped, tag = 'scratch operand']
  #allocation3 [shape = 's32[2]{0}', space=sflag, size = 0x8, scoped, tag = 'scratch operand']
  #allocation4 [shape = 's32[]', space=sflag, size = 0x4, offset = 0, fixed_abs, tag = 'sflag constant byte address 0x0 - dummy sync flag']
  #allocation5 [shape = 's32[]', space=sflag, size = 0x4, offset = 0, fixed_abs, tag = 'sflag constant byte address 0x0 - dummy sync flag']
  #allocation6 [shape = 's32[]', space=sflag, size = 0x4, offset = 0, fixed_abs, tag = 'sflag constant byte address 0x0 - dummy sync flag']
  #allocation7 [shape = 's32[]', space=sflag, size = 0x4, offset = 0, fixed_abs, tag = 'sflag constant byte address 0x0 - dummy sync flag']
  #allocation8 [shape = 's32[]', space=sflag, size = 0x4, offset = 0, fixed_abs, tag = 'sflag constant byte address 0x0 - dummy sync flag']
  #allocation9 [shape = 's32[]', space=sflag, size = 0x4, offset = 0, fixed_abs, tag = 'sflag constant byte address 0x0 - dummy sync flag']
  #allocation10 [shape = 's32[]', space=sflag, size = 0x4, offset = 0, fixed_abs, tag = 'sflag constant byte address 0x0 - dummy sync flag']
  #allocation11 [shape = 's32[]', space=sflag, size = 0x4, offset = 0, fixed_abs, tag = 'sflag constant byte address 0x0 - dummy sync flag']
  %s0 = inlined_call_operand.vmem [shape: bf16[8,8,384], index: 0, kind: input, shape index: {}]
  %s1 = inlined_call_operand.vmem [shape: bf16[128,384], index: 1, kind: input, shape index: {}]
  %s2 = inlined_call_operand.vmem [shape: f32[1,128], index: 2, kind: input, shape index: {}]
  %s3 = inlined_call_operand.vmem [shape: f32[8,128], index: 3, kind: output, shape index: {}]
  %s4 = sld [smem:[#allocation0]]
  $region314: #{seq2seq_forward.7} parent=0
    _
  %s6 = ssub.s32 1, %s4
  %s7 = scalar_select 0, %s6, %s4
  // Predicated region
  $region2: #{seq2seq_forward.7} parent=0 // pred_check
    _
  $region3: #{seq2seq_forward.7} parent=0 // pred_check_branch
    %9 = sbr.rel (0) target = $region5
  $region4: #{seq2seq_forward.7} parent=0 // pred_region
    _
  $region5: #{seq2seq_forward.7} parent=0 // pred_fallthru
    _
  // Predicated region
  $region6: #{seq2seq_forward.7} parent=0 // pred_check
    _
  $region7: #{seq2seq_forward.7} parent=0 // pred_check_branch
    %11 = sbr.rel (0) target = $region9
  $region8: #{seq2seq_forward.7} parent=0 // pred_region
    _
  $region9: #{seq2seq_forward.7} parent=0 // pred_fallthru
    _
  %v13 = vld [vmem:[%s1] sm:$0xff]
  %v14 = vld [vmem:[%s1 + $0x8] sm:$0xf]
  %v15 = vld [vmem:[%s1 + $0xc] sm:$0xff]
  %v16 = vld [vmem:[%s1 + $0x14] sm:$0xf]
  %v17 = vld [vmem:[%s1 + $0x18] sm:$0xff]
  %v18 = vld [vmem:[%s1 + $0x20] sm:$0xf]
  %v19 = vld [vmem:[%s1 + $0x24] sm:$0xff]
  %v20 = vld [vmem:[%s1 + $0x2c] sm:$0xf]
  %v21 = vld [vmem:[%s1 + $0x30] sm:$0xff]
  %v22 = vld [vmem:[%s1 + $0x38] sm:$0xf]
  %v23 = vld [vmem:[%s1 + $0x3c] sm:$0xff]
  %v24 = vld [vmem:[%s1 + $0x44] sm:$0xf]
  %v25 = vld [vmem:[%s1 + $0x48] sm:$0xff]
  %v26 = vld [vmem:[%s1 + $0x50] sm:$0xf]
  %v27 = vld [vmem:[%s1 + $0x54] sm:$0xff]
  %v28 = vld [vmem:[%s1 + $0x5c] sm:$0xf]
  %v29 = vld [vmem:[%s1 + $0x60] sm:$0xff]
  %v30 = vld [vmem:[%s1 + $0x68] sm:$0xf]
  %v31 = vld [vmem:[%s1 + $0x6c] sm:$0xff]
  %v32 = vld [vmem:[%s1 + $0x74] sm:$0xf]
  %v33 = vld [vmem:[%s1 + $0x78] sm:$0xff]
  %v34 = vld [vmem:[%s1 + $0x80] sm:$0xf]
  %v35 = vld [vmem:[%s1 + $0x84] sm:$0xff]
  %v36 = vld [vmem:[%s1 + $0x8c] sm:$0xf]
  %v37 = vld [vmem:[%s1 + $0x90] sm:$0xff]
  %v38 = vld [vmem:[%s1 + $0x98] sm:$0xf]
  %v39 = vld [vmem:[%s1 + $0x9c] sm:$0xff]
  %v40 = vld [vmem:[%s1 + $0xa4] sm:$0xf]
  %v41 = vld [vmem:[%s1 + $0xa8] sm:$0xff]
  %v42 = vld [vmem:[%s1 + $0xb0] sm:$0xf]
  %v43 = vld [vmem:[%s1 + $0xb4] sm:$0xff]
  %v44 = vld [vmem:[%s1 + $0xbc] sm:$0xf]
  %v45 = vld [vmem:[%s2] sm:$0x1]
  %p47 = scmp.lt.u32.totalorder 12, 8
  %p48 = pneg %p47
  // Predicated region
  $region10: #{seq2seq_forward.7} parent=0 // pred_check
    _
  $region11: #{seq2seq_forward.7} parent=0 // pred_check_branch
    %50 = sbr.rel (%p47) target = $region13
  $region12: #{seq2seq_forward.7} parent=0 // pred_region
    %s65 = sand.u32 12, 7
    %p66 = scmp.eq.s32.totalorder %s65, 0
    %p67 = pneg %p66
    // Predicated region
    $region25: #{seq2seq_forward.7} parent=12 // pred_check
      _
    $region26: #{seq2seq_forward.7} parent=12 // pred_check_branch
      %69 = sbr.rel (%p66) target = $region28
    $region27: #{seq2seq_forward.7} parent=12 // pred_region
      %s70 = sand.u32 12, 7
      %s71 = ssub.s32 12, %s70
      %s72 = scalar_lea.vmem %s0, %s71
      %s73 = ssub.s32 12, %s70
      %s74 = scalar_lea.vmem [#allocation2], %s73
      loop: start=0, step=1, limit=1
      $region29: #{seq2seq_forward.7} parent=27 // loop_pre_header
        _
      $region30: #{seq2seq_forward.7} parent=27 // loop_header
        %s76 = sphi 0, %s80
        %p77 = scmp.ge.s32.totalorder %s76, 1
        %s81 = sphi %s0, %s0
        %s82 = sphi [#allocation2], [#allocation2]
      $region31: #{seq2seq_forward.7} parent=27 // loop_header_branch
        %79 = sbr.rel (%p77) target = $region35
      $region32: #{seq2seq_forward.7} parent=27 // loop_body
        %v83 = vld [vmem:[%s81] sm:$0xff]
        %84 = vst [vmem:[%s82] sm:$0xff] %v83
      $region33: #{seq2seq_forward.7} parent=27 // loop_footer
        %s80 = sadd.s32 1, %s76
      $region34: #{seq2seq_forward.7} parent=27 // loop_footer_branch
        %75 = sbr.rel target = $region30
      $region35: #{seq2seq_forward.7} parent=27 // loop_exit
        _
      %s85 = sshllo.u32 0, %s70
      loop: start=0, step=1, limit=1
      $region36: #{seq2seq_forward.7} parent=27 // loop_pre_header
        _
      $region37: #{seq2seq_forward.7} parent=27 // loop_header
        %s87 = sphi 0, %s91
        %p88 = scmp.ge.s32.totalorder %s87, 1
        %s92 = sphi %s72, %s72
        %s93 = sphi %s74, %s74
      $region38: #{seq2seq_forward.7} parent=27 // loop_header_branch
        %90 = sbr.rel (%p88) target = $region42
      $region39: #{seq2seq_forward.7} parent=27 // loop_body
        %v94 = vld [vmem:[%s92] sm:%s85]
        %95 = vst [vmem:[%s93] sm:%s85] %v94
      $region40: #{seq2seq_forward.7} parent=27 // loop_footer
        %s91 = sadd.s32 1, %s87
      $region41: #{seq2seq_forward.7} parent=27 // loop_footer_branch
        %86 = sbr.rel target = $region37
      $region42: #{seq2seq_forward.7} parent=27 // loop_exit
        _
    $region28: #{seq2seq_forward.7} parent=12 // pred_fallthru
      _
  $region13: #{seq2seq_forward.7} parent=0 // pred_fallthru
    _
  // Predicated region
  $region14: #{seq2seq_forward.7} parent=0 // pred_check
    %p51 = pneg %p47
  $region15: #{seq2seq_forward.7} parent=0 // pred_check_branch
    %53 = sbr.rel (%p51) target = $region17
  $region16: #{seq2seq_forward.7} parent=0 // pred_region
    %s54 = sshllo.u32 0, 12
    loop: start=0, step=1, limit=1
    $region18: #{seq2seq_forward.7} parent=16 // loop_pre_header
      _
    $region19: #{seq2seq_forward.7} parent=16 // loop_header
      %s56 = sphi 0, %s60
      %p57 = scmp.ge.s32.totalorder %s56, 1
      %s61 = sphi %s0, %s0
      %s62 = sphi [#allocation2], [#allocation2]
    $region20: #{seq2seq_forward.7} parent=16 // loop_header_branch
      %59 = sbr.rel (%p57) target = $region24
    $region21: #{seq2seq_forward.7} parent=16 // loop_body
      %v63 = vld [vmem:[%s61] sm:%s54]
      %64 = vst [vmem:[%s62] sm:%s54] %v63
    $region22: #{seq2seq_forward.7} parent=16 // loop_footer
      %s60 = sadd.s32 1, %s56
    $region23: #{seq2seq_forward.7} parent=16 // loop_footer_branch
      %55 = sbr.rel target = $region19
    $region24: #{seq2seq_forward.7} parent=16 // loop_exit
      _
  $region17: #{seq2seq_forward.7} parent=0 // pred_fallthru
    _
  // Predicated region
  $region43: #{seq2seq_forward.7} parent=0 // pred_check
    _
  $region44: #{seq2seq_forward.7} parent=0 // pred_check_branch
    %98 = sbr.rel (0) target = $region46
  $region45: #{seq2seq_forward.7} parent=0 // pred_region
    %99 = vsyncadd [#allocation3], 192
  $region46: #{seq2seq_forward.7} parent=0 // pred_fallthru
    _
  %s100 = smul.u32 4, 1
  %s101 = smul.u32 %s100, 3
  %s102 = sshll.u32 %s101, 4
  %103 = dma.done [#allocation3], %s102
  %s104 = scalar_lea.vmem %s0, 12
  %s105 = scalar_lea.vmem [#allocation2], 12
  %s106 = scalar_lea.sflag [#allocation3], 1
  %p108 = scmp.lt.u32.totalorder 12, 8
  %p109 = pneg %p108
  // Predicated region
  $region47: #{seq2seq_forward.7} parent=0 // pred_check
    _
  $region48: #{seq2seq_forward.7} parent=0 // pred_check_branch
    %111 = sbr.rel (%p108) target = $region50
  $region49: #{seq2seq_forward.7} parent=0 // pred_region
    %s126 = sand.u32 12, 7
    %p127 = scmp.eq.s32.totalorder %s126, 0
    %p128 = pneg %p127
    // Predicated region
    $region62: #{seq2seq_forward.7} parent=49 // pred_check
      _
    $region63: #{seq2seq_forward.7} parent=49 // pred_check_branch
      %130 = sbr.rel (%p127) target = $region65
    $region64: #{seq2seq_forward.7} parent=49 // pred_region
      %s131 = sand.u32 12, 7
      %s132 = ssub.s32 12, %s131
      %s133 = scalar_lea.vmem %s104, %s132
      %s134 = ssub.s32 12, %s131
      %s135 = scalar_lea.vmem %s105, %s134 [#allocation2]
      loop: start=0, step=1, limit=1
      $region66: #{seq2seq_forward.7} parent=64 // loop_pre_header
        _
      $region67: #{seq2seq_forward.7} parent=64 // loop_header
        %s137 = sphi 0, %s141
        %p138 = scmp.ge.s32.totalorder %s137, 1
        %s142 = sphi %s104, %s104
        %s143 = sphi %s105, %s105
      $region68: #{seq2seq_forward.7} parent=64 // loop_header_branch
        %140 = sbr.rel (%p138) target = $region72
      $region69: #{seq2seq_forward.7} parent=64 // loop_body
        %v144 = vld [vmem:[%s142] sm:$0xff]
        %145 = vst [vmem:[%s143] sm:$0xff] %v144
      $region70: #{seq2seq_forward.7} parent=64 // loop_footer
        %s141 = sadd.s32 1, %s137
      $region71: #{seq2seq_forward.7} parent=64 // loop_footer_branch
        %136 = sbr.rel target = $region67
      $region72: #{seq2seq_forward.7} parent=64 // loop_exit
        _
      %s146 = sshllo.u32 0, %s131
      loop: start=0, step=1, limit=1
      $region73: #{seq2seq_forward.7} parent=64 // loop_pre_header
        _
      $region74: #{seq2seq_forward.7} parent=64 // loop_header
        %s148 = sphi 0, %s152
        %p149 = scmp.ge.s32.totalorder %s148, 1
        %s153 = sphi %s133, %s133
        %s154 = sphi %s135, %s135
      $region75: #{seq2seq_forward.7} parent=64 // loop_header_branch
        %151 = sbr.rel (%p149) target = $region79
      $region76: #{seq2seq_forward.7} parent=64 // loop_body
        %v155 = vld [vmem:[%s153] sm:%s146]
        %156 = vst [vmem:[%s154] sm:%s146] %v155
      $region77: #{seq2seq_forward.7} parent=64 // loop_footer
        %s152 = sadd.s32 1, %s148
      $region78: #{seq2seq_forward.7} parent=64 // loop_footer_branch
        %147 = sbr.rel target = $region74
      $region79: #{seq2seq_forward.7} parent=64 // loop_exit
        _
    $region65: #{seq2seq_forward.7} parent=49 // pred_fallthru
      _
  $region50: #{seq2seq_forward.7} parent=0 // pred_fallthru
    _
  // Predicated region
  $region51: #{seq2seq_forward.7} parent=0 // pred_check
    %p112 = pneg %p108
  $region52: #{seq2seq_forward.7} parent=0 // pred_check_branch
    %114 = sbr.rel (%p112) target = $region54
  $region53: #{seq2seq_forward.7} parent=0 // pred_region
    %s115 = sshllo.u32 0, 12
    loop: start=0, step=1, limit=1
    $region55: #{seq2seq_forward.7} parent=53 // loop_pre_header
      _
    $region56: #{seq2seq_forward.7} parent=53 // loop_header
      %s117 = sphi 0, %s121
      %p118 = scmp.ge.s32.totalorder %s117, 1
      %s122 = sphi %s104, %s104
      %s123 = sphi %s105, %s105
    $region57: #{seq2seq_forward.7} parent=53 // loop_header_branch
      %120 = sbr.rel (%p118) target = $region61
    $region58: #{seq2seq_forward.7} parent=53 // loop_body
      %v124 = vld [vmem:[%s122] sm:%s115]
      %125 = vst [vmem:[%s123] sm:%s115] %v124
    $region59: #{seq2seq_forward.7} parent=53 // loop_footer
      %s121 = sadd.s32 1, %s117
    $region60: #{seq2seq_forward.7} parent=53 // loop_footer_branch
      %116 = sbr.rel target = $region56
    $region61: #{seq2seq_forward.7} parent=53 // loop_exit
      _
  $region54: #{seq2seq_forward.7} parent=0 // pred_fallthru
    _
  // Predicated region
  $region80: #{seq2seq_forward.7} parent=0 // pred_check
    _
  $region81: #{seq2seq_forward.7} parent=0 // pred_check_branch
    %159 = sbr.rel (0) target = $region83
  $region82: #{seq2seq_forward.7} parent=0 // pred_region
    %160 = vsyncadd %s106, 192
  $region83: #{seq2seq_forward.7} parent=0 // pred_fallthru
    _
  %v161 = vld [vmem:[#allocation2] sm:$0xff]
  %v162 = vld [vmem:[#allocation2 + $0x8] sm:$0xf]
  %v163 = vunpack.c.l.bf16 %v161
  %v164 = vunpack.c.h.bf16 %v161
  %v165 = vunpack.c.l.bf16 %v162
  %v198 = vunpack.c.l.b16 %v13
  %v199 = vunpack.c.h.b16 %v13
  %v200 = vunpack.c.l.b16 %v14
  %v201 = vunpack.c.l.b16 %v15
  %v202 = vunpack.c.h.b16 %v15
  %v203 = vunpack.c.l.b16 %v16
  %v204 = vunpack.c.l.b16 %v17
  %v205 = vunpack.c.h.b16 %v17
  %v206 = vunpack.c.l.b16 %v18
  %v207 = vunpack.c.l.b16 %v19
  %v208 = vunpack.c.h.b16 %v19
  %v209 = vunpack.c.l.b16 %v20
  %v210 = vunpack.c.l.b16 %v21
  %v211 = vunpack.c.h.b16 %v21
  %v212 = vunpack.c.l.b16 %v22
  %v213 = vunpack.c.l.b16 %v23
  %v214 = vunpack.c.h.b16 %v23
  %v215 = vunpack.c.l.b16 %v24
  %v216 = vunpack.c.l.b16 %v25
  %v217 = vunpack.c.h.b16 %v25
  %v218 = vunpack.c.l.b16 %v26
  %v219 = vunpack.c.l.b16 %v27
  %v220 = vunpack.c.h.b16 %v27
  %v221 = vunpack.c.l.b16 %v28
  %v222 = vunpack.c.l.b16 %v29
  %v223 = vunpack.c.h.b16 %v29
  %v224 = vunpack.c.l.b16 %v30
  %v225 = vunpack.c.l.b16 %v31
  %v226 = vunpack.c.h.b16 %v31
  %v227 = vunpack.c.l.b16 %v32
  %v228 = vunpack.c.l.b16 %v33
  %v229 = vunpack.c.h.b16 %v33
  %v230 = vunpack.c.l.b16 %v34
  %v231 = vunpack.c.l.b16 %v35
  %v232 = vunpack.c.h.b16 %v35
  %v233 = vunpack.c.l.b16 %v36
  %v234 = vunpack.c.l.b16 %v37
  %v235 = vunpack.c.h.b16 %v37
  %v236 = vunpack.c.l.b16 %v38
  %v237 = vunpack.c.l.b16 %v39
  %v238 = vunpack.c.h.b16 %v39
  %v239 = vunpack.c.l.b16 %v40
  %v240 = vunpack.c.l.b16 %v41
  %v241 = vunpack.c.h.b16 %v41
  %v242 = vunpack.c.l.b16 %v42
  %v243 = vunpack.c.l.b16 %v43
  %v244 = vunpack.c.h.b16 %v43
  %v245 = vunpack.c.l.b16 %v44
  %v246 = vpack.c.b16 %v201, %v198
  %v247 = vpack.c.b16 %v202, %v199
  %v248 = vpack.c.b16 %v203, %v200
  %v249 = vpack.c.b16 %v207, %v204
  %v250 = vpack.c.b16 %v208, %v205
  %v251 = vpack.c.b16 %v209, %v206
  %v252 = vpack.c.b16 %v213, %v210
  %v253 = vpack.c.b16 %v214, %v211
  %v254 = vpack.c.b16 %v215, %v212
  %v255 = vpack.c.b16 %v219, %v216
  %v256 = vpack.c.b16 %v220, %v217
  %v257 = vpack.c.b16 %v221, %v218
  %v258 = vpack.c.b16 %v225, %v222
  %v259 = vpack.c.b16 %v226, %v223
  %v260 = vpack.c.b16 %v227, %v224
  %v261 = vpack.c.b16 %v231, %v228
  %v262 = vpack.c.b16 %v232, %v229
  %v263 = vpack.c.b16 %v233, %v230
  %v264 = vpack.c.b16 %v237, %v234
  %v265 = vpack.c.b16 %v238, %v235
  %v266 = vpack.c.b16 %v239, %v236
  %v267 = vpack.c.b16 %v243, %v240
  %v268 = vpack.c.b16 %v244, %v241
  %v269 = vpack.c.b16 %v245, %v242
  %294 = vmatprep.subr.bf16.mxu0 %v247
  %295 = vmatpush1.bf16.msra.mxu0 %v246
  %296 = vmatprep.subr.bf16.mxu0 %v250
  %297 = vmatpush1.bf16.msra.mxu0 %v249
  %298 = vmatprep.subr.bf16.mxu0 %v253
  %299 = vmatpush1.bf16.msra.mxu0 %v252
  %300 = vmatprep.subr.bf16.mxu0 %v256
  %301 = vmatpush1.bf16.msra.mxu0 %v255
  %302 = vmatprep.subr.bf16.mxu0 %v259
  %303 = vmatpush1.bf16.msra.mxu0 %v258
  %304 = vmatprep.subr.bf16.mxu0 %v262
  %305 = vmatpush1.bf16.msra.mxu0 %v261
  %306 = vmatprep.subr.bf16.mxu0 %v265
  %307 = vmatpush1.bf16.msra.mxu0 %v264
  %308 = vmatprep.subr.bf16.mxu0 %v268
  %309 = vmatpush1.bf16.msra.mxu0 %v267
  %310 = vmatprep.subr.bf16.mxu0 0
  %311 = vmatpush1.bf16.msra.mxu0 0
  %312 = vmatprep.subr.bf16.mxu0 0
  %313 = vmatpush1.bf16.msra.mxu0 0
  %314 = vmatprep.subr.bf16.mxu0 0
  %315 = vmatpush1.bf16.msra.mxu0 0
  %316 = vmatprep.subr.bf16.mxu0 0
  %317 = vmatpush1.bf16.msra.mxu0 0
  %318 = vmatprep.subr.bf16.mxu0 0
  %319 = vmatpush1.bf16.msra.mxu0 0
  %320 = vmatprep.subr.bf16.mxu0 0
  %321 = vmatpush1.bf16.msra.mxu0 0
  %322 = vmatprep.subr.bf16.mxu0 0
  %323 = vmatpush1.bf16.msra.mxu0 0
  %324 = vmatprep.subr.bf16.mxu0 0
  %325 = vmatpush1.bf16.msra.mxu0 0
  %326 = vmatprep.mubr.bf16.mxu0 0
  %327 = vmatmul.mubr.bf16.gmra.mrb[0].mxu0 0
  %v328 = vpop.f32.mrb[0].mxu0
  %v329 = vadd.f32 0.0, %v328
  %v330 = vpop.f32.mrb[0].mxu0
  %v331 = vadd.f32 0.0, %v330
  %v332 = vpop.f32.mrb[0].mxu0
  %v333 = vpop.f32.mrb[0].mxu0
  %334 = vdwg.mxu0
  %335 = vmatprep.subr.bf16.mxu0 0
  %336 = vmatpush1.bf16.msra.mxu0 %v248
  %337 = vmatprep.subr.bf16.mxu0 0
  %338 = vmatpush1.bf16.msra.mxu0 %v251
  %339 = vmatprep.subr.bf16.mxu0 0
  %340 = vmatpush1.bf16.msra.mxu0 %v254
  %341 = vmatprep.subr.bf16.mxu0 0
  %342 = vmatpush1.bf16.msra.mxu0 %v257
  %343 = vmatprep.subr.bf16.mxu0 0
  %344 = vmatpush1.bf16.msra.mxu0 %v260
  %345 = vmatprep.subr.bf16.mxu0 0
  %346 = vmatpush1.bf16.msra.mxu0 %v263
  %347 = vmatprep.subr.bf16.mxu0 0
  %348 = vmatpush1.bf16.msra.mxu0 %v266
  %349 = vmatprep.subr.bf16.mxu0 0
  %350 = vmatpush1.bf16.msra.mxu0 %v269
  %351 = vmatprep.subr.bf16.mxu0 0
  %352 = vmatpush1.bf16.msra.mxu0 0
  %353 = vmatprep.subr.bf16.mxu0 0
  %354 = vmatpush1.bf16.msra.mxu0 0
  %355 = vmatprep.subr.bf16.mxu0 0
  %356 = vmatpush1.bf16.msra.mxu0 0
  %357 = vmatprep.subr.bf16.mxu0 0
  %358 = vmatpush1.bf16.msra.mxu0 0
  %359 = vmatprep.subr.bf16.mxu0 0
  %360 = vmatpush1.bf16.msra.mxu0 0
  %361 = vmatprep.subr.bf16.mxu0 0
  %362 = vmatpush1.bf16.msra.mxu0 0
  %363 = vmatprep.subr.bf16.mxu0 0
  %364 = vmatpush1.bf16.msra.mxu0 0
  %365 = vmatprep.subr.bf16.mxu0 0
  %366 = vmatpush1.bf16.msra.mxu0 0
  %367 = vmatprep.mubr.bf16.mxu0 0
  %368 = vmatmul.mubr.bf16.gmra.mrb[0].mxu0 0
  %v369 = vpop.f32.mrb[0].mxu0
  %v370 = vadd.f32 0.0, %v369
  %v371 = vpop.f32.mrb[0].mxu0
  %v372 = vpop.f32.mrb[0].mxu0
  %v373 = vpop.f32.mrb[0].mxu0
  %374 = vdwg.mxu0
  %v375 = vadd.f32 %v163, %v329
  %v376 = vxor.u32 %v375, 2147483648
  %v377 = vmul.f32 %v376, 1.442695
  %v378 = vpow.pop %v377
  %v379 = vadd.f32 %v378, 1.0
  %v380 = vrcp.pop %v379
  %v381 = vmul.f32 1.0, %v380
  %v382 = vadd.f32 %v164, %v331
  %v383 = vxor.u32 %v382, 2147483648
  %v384 = vmul.f32 %v383, 1.442695
  %v385 = vpow.pop %v384
  %v386 = vadd.f32 %v385, 1.0
  %v387 = vrcp.pop %v386
  %v388 = vmul.f32 1.0, %v387
  %v390 = vlaneseq
  %v391 = vshrl.u32 %v390, 7
  %v392 = vsub.s32 0, %v391
  %v393 = vrot.slane %v45, %v392
  %v395 = vadd.f32 %v370, %v393
  %v396 = vmul.f32 %v381, %v395
  %v397 = vadd.f32 %v165, %v396
  %v398 = vtanh.pop %v397
  %v399 = vsub.f32 1.0, %v388
  %v400 = vmul.f32 %v399, %v398
  %v401 = vmul.f32 %v388, 0.0
  %v402 = vadd.f32 %v400, %v401
  %s403 = sshll.u32 %s101, 4
  %404 = dma.done %s106, %s403
  %s405 = scalar_lea.vmem %s0, 24
  %p407 = scmp.lt.u32.totalorder 12, 8
  %p408 = pneg %p407
  // Predicated region
  $region84: #{seq2seq_forward.7} parent=0 // pred_check
    _
  $region85: #{seq2seq_forward.7} parent=0 // pred_check_branch
    %410 = sbr.rel (%p407) target = $region87
  $region86: #{seq2seq_forward.7} parent=0 // pred_region
    %s425 = sand.u32 12, 7
    %p426 = scmp.eq.s32.totalorder %s425, 0
    %p427 = pneg %p426
    // Predicated region
    $region99: #{seq2seq_forward.7} parent=86 // pred_check
      _
    $region100: #{seq2seq_forward.7} parent=86 // pred_check_branch
      %429 = sbr.rel (%p426) target = $region102
    $region101: #{seq2seq_forward.7} parent=86 // pred_region
      %s430 = sand.u32 12, 7
      %s431 = ssub.s32 12, %s430
      %s432 = scalar_lea.vmem %s405, %s431
      %s433 = ssub.s32 12, %s430
      %s434 = scalar_lea.vmem [#allocation2], %s433
      loop: start=0, step=1, limit=1
      $region103: #{seq2seq_forward.7} parent=101 // loop_pre_header
        _
      $region104: #{seq2seq_forward.7} parent=101 // loop_header
        %s436 = sphi 0, %s440
        %p437 = scmp.ge.s32.totalorder %s436, 1
        %s441 = sphi %s405, %s405
        %s442 = sphi [#allocation2], [#allocation2]
      $region105: #{seq2seq_forward.7} parent=101 // loop_header_branch
        %439 = sbr.rel (%p437) target = $region109
      $region106: #{seq2seq_forward.7} parent=101 // loop_body
        %v443 = vld [vmem:[%s441] sm:$0xff]
        %444 = vst [vmem:[%s442] sm:$0xff] %v443
      $region107: #{seq2seq_forward.7} parent=101 // loop_footer
        %s440 = sadd.s32 1, %s436
      $region108: #{seq2seq_forward.7} parent=101 // loop_footer_branch
        %435 = sbr.rel target = $region104
      $region109: #{seq2seq_forward.7} parent=101 // loop_exit
        _
      %s445 = sshllo.u32 0, %s430
      loop: start=0, step=1, limit=1
      $region110: #{seq2seq_forward.7} parent=101 // loop_pre_header
        _
      $region111: #{seq2seq_forward.7} parent=101 // loop_header
        %s447 = sphi 0, %s451
        %p448 = scmp.ge.s32.totalorder %s447, 1
        %s452 = sphi %s432, %s432
        %s453 = sphi %s434, %s434
      $region112: #{seq2seq_forward.7} parent=101 // loop_header_branch
        %450 = sbr.rel (%p448) target = $region116
      $region113: #{seq2seq_forward.7} parent=101 // loop_body
        %v454 = vld [vmem:[%s452] sm:%s445]
        %455 = vst [vmem:[%s453] sm:%s445] %v454
      $region114: #{seq2seq_forward.7} parent=101 // loop_footer
        %s451 = sadd.s32 1, %s447
      $region115: #{seq2seq_forward.7} parent=101 // loop_footer_branch
        %446 = sbr.rel target = $region111
      $region116: #{seq2seq_forward.7} parent=101 // loop_exit
        _
    $region102: #{seq2seq_forward.7} parent=86 // pred_fallthru
      _
  $region87: #{seq2seq_forward.7} parent=0 // pred_fallthru
    _
  // Predicated region
  $region88: #{seq2seq_forward.7} parent=0 // pred_check
    %p411 = pneg %p407
  $region89: #{seq2seq_forward.7} parent=0 // pred_check_branch
    %413 = sbr.rel (%p411) target = $region91
  $region90: #{seq2seq_forward.7} parent=0 // pred_region
    %s414 = sshllo.u32 0, 12
    loop: start=0, step=1, limit=1
    $region92: #{seq2seq_forward.7} parent=90 // loop_pre_header
      _
    $region93: #{seq2seq_forward.7} parent=90 // loop_header
      %s416 = sphi 0, %s420
      %p417 = scmp.ge.s32.totalorder %s416, 1
      %s421 = sphi %s405, %s405
      %s422 = sphi [#allocation2], [#allocation2]
    $region94: #{seq2seq_forward.7} parent=90 // loop_header_branch
      %419 = sbr.rel (%p417) target = $region98
    $region95: #{seq2seq_forward.7} parent=90 // loop_body
      %v423 = vld [vmem:[%s421] sm:%s414]
      %424 = vst [vmem:[%s422] sm:%s414] %v423
    $region96: #{seq2seq_forward.7} parent=90 // loop_footer
      %s420 = sadd.s32 1, %s416
    $region97: #{seq2seq_forward.7} parent=90 // loop_footer_branch
      %415 = sbr.rel target = $region93
    $region98: #{seq2seq_forward.7} parent=90 // loop_exit
      _
  $region91: #{seq2seq_forward.7} parent=0 // pred_fallthru
    _
  // Predicated region
  $region117: #{seq2seq_forward.7} parent=0 // pred_check
    _
  $region118: #{seq2seq_forward.7} parent=0 // pred_check_branch
    %458 = sbr.rel (0) target = $region120
  $region119: #{seq2seq_forward.7} parent=0 // pred_region
    %459 = vsyncadd [#allocation3], 192
  $region120: #{seq2seq_forward.7} parent=0 // pred_fallthru
    _
  %v460 = vld [vmem:[%s105] sm:$0xff]
  %v461 = vld [vmem:[%s105 + $0x8] sm:$0xf]
  %v462 = vunpack.c.l.bf16 %v460
  %v463 = vunpack.c.h.bf16 %v460
  %v464 = vunpack.c.l.bf16 %v461
  %v465 = vpack.c.bf16 %v402, %v402
  %466 = vmatprep.subr.bf16.mxu0 %v247
  %467 = vmatpush1.bf16.msra.mxu0 %v246
  %468 = vmatprep.subr.bf16.mxu0 %v250
  %469 = vmatpush1.bf16.msra.mxu0 %v249
  %470 = vmatprep.subr.bf16.mxu0 %v253
  %471 = vmatpush1.bf16.msra.mxu0 %v252
  %472 = vmatprep.subr.bf16.mxu0 %v256
  %473 = vmatpush1.bf16.msra.mxu0 %v255
  %474 = vmatprep.subr.bf16.mxu0 %v259
  %475 = vmatpush1.bf16.msra.mxu0 %v258
  %476 = vmatprep.subr.bf16.mxu0 %v262
  %477 = vmatpush1.bf16.msra.mxu0 %v261
  %478 = vmatprep.subr.bf16.mxu0 %v265
  %479 = vmatpush1.bf16.msra.mxu0 %v264
  %480 = vmatprep.subr.bf16.mxu0 %v268
  %481 = vmatpush1.bf16.msra.mxu0 %v267
  %482 = vmatprep.subr.bf16.mxu0 0
  %483 = vmatpush1.bf16.msra.mxu0 0
  %484 = vmatprep.subr.bf16.mxu0 0
  %485 = vmatpush1.bf16.msra.mxu0 0
  %486 = vmatprep.subr.bf16.mxu0 0
  %487 = vmatpush1.bf16.msra.mxu0 0
  %488 = vmatprep.subr.bf16.mxu0 0
  %489 = vmatpush1.bf16.msra.mxu0 0
  %490 = vmatprep.subr.bf16.mxu0 0
  %491 = vmatpush1.bf16.msra.mxu0 0
  %492 = vmatprep.subr.bf16.mxu0 0
  %493 = vmatpush1.bf16.msra.mxu0 0
  %494 = vmatprep.subr.bf16.mxu0 0
  %495 = vmatpush1.bf16.msra.mxu0 0
  %496 = vmatprep.subr.bf16.mxu0 0
  %497 = vmatpush1.bf16.msra.mxu0 0
  %498 = vmatprep.mubr.bf16.mxu0 0
  %499 = vmatmul.mubr.bf16.gmra.mrb[0].mxu0 %v465
  %v500 = vpop.f32.mrb[0].mxu0
  %v501 = vadd.f32 0.0, %v500
  %v502 = vpop.f32.mrb[0].mxu0
  %v503 = vadd.f32 0.0, %v502
  %v504 = vpop.f32.mrb[0].mxu0
  %v505 = vpop.f32.mrb[0].mxu0
  %506 = vdwg.mxu0
  %507 = vmatprep.subr.bf16.mxu0 0
  %508 = vmatpush1.bf16.msra.mxu0 %v248
  %509 = vmatprep.subr.bf16.mxu0 0
  %510 = vmatpush1.bf16.msra.mxu0 %v251
  %511 = vmatprep.subr.bf16.mxu0 0
  %512 = vmatpush1.bf16.msra.mxu0 %v254
  %513 = vmatprep.subr.bf16.mxu0 0
  %514 = vmatpush1.bf16.msra.mxu0 %v257
  %515 = vmatprep.subr.bf16.mxu0 0
  %516 = vmatpush1.bf16.msra.mxu0 %v260
  %517 = vmatprep.subr.bf16.mxu0 0
  %518 = vmatpush1.bf16.msra.mxu0 %v263
  %519 = vmatprep.subr.bf16.mxu0 0
  %520 = vmatpush1.bf16.msra.mxu0 %v266
  %521 = vmatprep.subr.bf16.mxu0 0
  %522 = vmatpush1.bf16.msra.mxu0 %v269
  %523 = vmatprep.subr.bf16.mxu0 0
  %524 = vmatpush1.bf16.msra.mxu0 0
  %525 = vmatprep.subr.bf16.mxu0 0
  %526 = vmatpush1.bf16.msra.mxu0 0
  %527 = vmatprep.subr.bf16.mxu0 0
  %528 = vmatpush1.bf16.msra.mxu0 0
  %529 = vmatprep.subr.bf16.mxu0 0
  %530 = vmatpush1.bf16.msra.mxu0 0
  %531 = vmatprep.subr.bf16.mxu0 0
  %532 = vmatpush1.bf16.msra.mxu0 0
  %533 = vmatprep.subr.bf16.mxu0 0
  %534 = vmatpush1.bf16.msra.mxu0 0
  %535 = vmatprep.subr.bf16.mxu0 0
  %536 = vmatpush1.bf16.msra.mxu0 0
  %537 = vmatprep.subr.bf16.mxu0 0
  %538 = vmatpush1.bf16.msra.mxu0 0
  %539 = vmatprep.mubr.bf16.mxu0 0
  %540 = vmatmul.mubr.bf16.gmra.mrb[0].mxu0 %v465
  %v541 = vpop.f32.mrb[0].mxu0
  %v542 = vadd.f32 0.0, %v541
  %v543 = vpop.f32.mrb[0].mxu0
  %v544 = vpop.f32.mrb[0].mxu0
  %v545 = vpop.f32.mrb[0].mxu0
  %546 = vdwg.mxu0
  %v547 = vadd.f32 %v462, %v501
  %v548 = vxor.u32 %v547, 2147483648
  %v549 = vmul.f32 %v548, 1.442695
  %v550 = vpow.pop %v549
  %v551 = vadd.f32 %v550, 1.0
  %v552 = vrcp.pop %v551
  %v553 = vmul.f32 1.0, %v552
  %v554 = vadd.f32 %v463, %v503
  %v555 = vxor.u32 %v554, 2147483648
  %v556 = vmul.f32 %v555, 1.442695
  %v557 = vpow.pop %v556
  %v558 = vadd.f32 %v557, 1.0
  %v559 = vrcp.pop %v558
  %v560 = vmul.f32 1.0, %v559
  %v561 = vadd.f32 %v542, %v393
  %v562 = vmul.f32 %v553, %v561
  %v563 = vadd.f32 %v464, %v562
  %v564 = vtanh.pop %v563
  %v565 = vsub.f32 1.0, %v560
  %v566 = vmul.f32 %v565, %v564
  %v567 = vmul.f32 %v560, %v402
  %v568 = vadd.f32 %v566, %v567
  %s569 = sshll.u32 %s101, 4
  %570 = dma.done [#allocation3], %s569
  %s571 = scalar_lea.vmem %s0, 36
  %p573 = scmp.lt.u32.totalorder 12, 8
  %p574 = pneg %p573
  // Predicated region
  $region121: #{seq2seq_forward.7} parent=0 // pred_check
    _
  $region122: #{seq2seq_forward.7} parent=0 // pred_check_branch
    %576 = sbr.rel (%p573) target = $region124
  $region123: #{seq2seq_forward.7} parent=0 // pred_region
    %s591 = sand.u32 12, 7
    %p592 = scmp.eq.s32.totalorder %s591, 0
    %p593 = pneg %p592
    // Predicated region
    $region136: #{seq2seq_forward.7} parent=123 // pred_check
      _
    $region137: #{seq2seq_forward.7} parent=123 // pred_check_branch
      %595 = sbr.rel (%p592) target = $region139
    $region138: #{seq2seq_forward.7} parent=123 // pred_region
      %s596 = sand.u32 12, 7
      %s597 = ssub.s32 12, %s596
      %s598 = scalar_lea.vmem %s571, %s597
      %s599 = ssub.s32 12, %s596
      %s600 = scalar_lea.vmem %s105, %s599 [#allocation2]
      loop: start=0, step=1, limit=1
      $region140: #{seq2seq_forward.7} parent=138 // loop_pre_header
        _
      $region141: #{seq2seq_forward.7} parent=138 // loop_header
        %s602 = sphi 0, %s606
        %p603 = scmp.ge.s32.totalorder %s602, 1
        %s607 = sphi %s571, %s571
        %s608 = sphi %s105, %s105
      $region142: #{seq2seq_forward.7} parent=138 // loop_header_branch
        %605 = sbr.rel (%p603) target = $region146
      $region143: #{seq2seq_forward.7} parent=138 // loop_body
        %v609 = vld [vmem:[%s607] sm:$0xff]
        %610 = vst [vmem:[%s608] sm:$0xff] %v609
      $region144: #{seq2seq_forward.7} parent=138 // loop_footer
        %s606 = sadd.s32 1, %s602
      $region145: #{seq2seq_forward.7} parent=138 // loop_footer_branch
        %601 = sbr.rel target = $region141
      $region146: #{seq2seq_forward.7} parent=138 // loop_exit
        _
      %s611 = sshllo.u32 0, %s596
      loop: start=0, step=1, limit=1
      $region147: #{seq2seq_forward.7} parent=138 // loop_pre_header
        _
      $region148: #{seq2seq_forward.7} parent=138 // loop_header
        %s613 = sphi 0, %s617
        %p614 = scmp.ge.s32.totalorder %s613, 1
        %s618 = sphi %s598, %s598
        %s619 = sphi %s600, %s600
      $region149: #{seq2seq_forward.7} parent=138 // loop_header_branch
        %616 = sbr.rel (%p614) target = $region153
      $region150: #{seq2seq_forward.7} parent=138 // loop_body
        %v620 = vld [vmem:[%s618] sm:%s611]
        %621 = vst [vmem:[%s619] sm:%s611] %v620
      $region151: #{seq2seq_forward.7} parent=138 // loop_footer
        %s617 = sadd.s32 1, %s613
      $region152: #{seq2seq_forward.7} parent=138 // loop_footer_branch
        %612 = sbr.rel target = $region148
      $region153: #{seq2seq_forward.7} parent=138 // loop_exit
        _
    $region139: #{seq2seq_forward.7} parent=123 // pred_fallthru
      _
  $region124: #{seq2seq_forward.7} parent=0 // pred_fallthru
    _
  // Predicated region
  $region125: #{seq2seq_forward.7} parent=0 // pred_check
    %p577 = pneg %p573
  $region126: #{seq2seq_forward.7} parent=0 // pred_check_branch
    %579 = sbr.rel (%p577) target = $region128
  $region127: #{seq2seq_forward.7} parent=0 // pred_region
    %s580 = sshllo.u32 0, 12
    loop: start=0, step=1, limit=1
    $region129: #{seq2seq_forward.7} parent=127 // loop_pre_header
      _
    $region130: #{seq2seq_forward.7} parent=127 // loop_header
      %s582 = sphi 0, %s586
      %p583 = scmp.ge.s32.totalorder %s582, 1
      %s587 = sphi %s571, %s571
      %s588 = sphi %s105, %s105
    $region131: #{seq2seq_forward.7} parent=127 // loop_header_branch
      %585 = sbr.rel (%p583) target = $region135
    $region132: #{seq2seq_forward.7} parent=127 // loop_body
      %v589 = vld [vmem:[%s587] sm:%s580]
      %590 = vst [vmem:[%s588] sm:%s580] %v589
    $region133: #{seq2seq_forward.7} parent=127 // loop_footer
      %s586 = sadd.s32 1, %s582
    $region134: #{seq2seq_forward.7} parent=127 // loop_footer_branch
      %581 = sbr.rel target = $region130
    $region135: #{seq2seq_forward.7} parent=127 // loop_exit
      _
  $region128: #{seq2seq_forward.7} parent=0 // pred_fallthru
    _
  // Predicated region
  $region154: #{seq2seq_forward.7} parent=0 // pred_check
    _
  $region155: #{seq2seq_forward.7} parent=0 // pred_check_branch
    %624 = sbr.rel (0) target = $region157
  $region156: #{seq2seq_forward.7} parent=0 // pred_region
    %625 = vsyncadd %s106, 192
  $region157: #{seq2seq_forward.7} parent=0 // pred_fallthru
    _
  %v626 = vld [vmem:[#allocation2] sm:$0xff]
  %v627 = vld [vmem:[#allocation2 + $0x8] sm:$0xf]
  %v628 = vunpack.c.l.bf16 %v626
  %v629 = vunpack.c.h.bf16 %v626
  %v630 = vunpack.c.l.bf16 %v627
  %v631 = vpack.c.bf16 %v568, %v568
  %632 = vmatprep.subr.bf16.mxu0 %v247
  %633 = vmatpush1.bf16.msra.mxu0 %v246
  %634 = vmatprep.subr.bf16.mxu0 %v250
  %635 = vmatpush1.bf16.msra.mxu0 %v249
  %636 = vmatprep.subr.bf16.mxu0 %v253
  %637 = vmatpush1.bf16.msra.mxu0 %v252
  %638 = vmatprep.subr.bf16.mxu0 %v256
  %639 = vmatpush1.bf16.msra.mxu0 %v255
  %640 = vmatprep.subr.bf16.mxu0 %v259
  %641 = vmatpush1.bf16.msra.mxu0 %v258
  %642 = vmatprep.subr.bf16.mxu0 %v262
  %643 = vmatpush1.bf16.msra.mxu0 %v261
  %644 = vmatprep.subr.bf16.mxu0 %v265
  %645 = vmatpush1.bf16.msra.mxu0 %v264
  %646 = vmatprep.subr.bf16.mxu0 %v268
  %647 = vmatpush1.bf16.msra.mxu0 %v267
  %648 = vmatprep.subr.bf16.mxu0 0
  %649 = vmatpush1.bf16.msra.mxu0 0
  %650 = vmatprep.subr.bf16.mxu0 0
  %651 = vmatpush1.bf16.msra.mxu0 0
  %652 = vmatprep.subr.bf16.mxu0 0
  %653 = vmatpush1.bf16.msra.mxu0 0
  %654 = vmatprep.subr.bf16.mxu0 0
  %655 = vmatpush1.bf16.msra.mxu0 0
  %656 = vmatprep.subr.bf16.mxu0 0
  %657 = vmatpush1.bf16.msra.mxu0 0
  %658 = vmatprep.subr.bf16.mxu0 0
  %659 = vmatpush1.bf16.msra.mxu0 0
  %660 = vmatprep.subr.bf16.mxu0 0
  %661 = vmatpush1.bf16.msra.mxu0 0
  %662 = vmatprep.subr.bf16.mxu0 0
  %663 = vmatpush1.bf16.msra.mxu0 0
  %664 = vmatprep.mubr.bf16.mxu0 0
  %665 = vmatmul.mubr.bf16.gmra.mrb[0].mxu0 %v631
  %v666 = vpop.f32.mrb[0].mxu0
  %v667 = vadd.f32 0.0, %v666
  %v668 = vpop.f32.mrb[0].mxu0
  %v669 = vadd.f32 0.0, %v668
  %v670 = vpop.f32.mrb[0].mxu0
  %v671 = vpop.f32.mrb[0].mxu0
  %672 = vdwg.mxu0
  %673 = vmatprep.subr.bf16.mxu0 0
  %674 = vmatpush1.bf16.msra.mxu0 %v248
  %675 = vmatprep.subr.bf16.mxu0 0
  %676 = vmatpush1.bf16.msra.mxu0 %v251
  %677 = vmatprep.subr.bf16.mxu0 0
  %678 = vmatpush1.bf16.msra.mxu0 %v254
  %679 = vmatprep.subr.bf16.mxu0 0
  %680 = vmatpush1.bf16.msra.mxu0 %v257
  %681 = vmatprep.subr.bf16.mxu0 0
  %682 = vmatpush1.bf16.msra.mxu0 %v260
  %683 = vmatprep.subr.bf16.mxu0 0
  %684 = vmatpush1.bf16.msra.mxu0 %v263
  %685 = vmatprep.subr.bf16.mxu0 0
  %686 = vmatpush1.bf16.msra.mxu0 %v266
  %687 = vmatprep.subr.bf16.mxu0 0
  %688 = vmatpush1.bf16.msra.mxu0 %v269
  %689 = vmatprep.subr.bf16.mxu0 0
  %690 = vmatpush1.bf16.msra.mxu0 0
  %691 = vmatprep.subr.bf16.mxu0 0
  %692 = vmatpush1.bf16.msra.mxu0 0
  %693 = vmatprep.subr.bf16.mxu0 0
  %694 = vmatpush1.bf16.msra.mxu0 0
  %695 = vmatprep.subr.bf16.mxu0 0
  %696 = vmatpush1.bf16.msra.mxu0 0
  %697 = vmatprep.subr.bf16.mxu0 0
  %698 = vmatpush1.bf16.msra.mxu0 0
  %699 = vmatprep.subr.bf16.mxu0 0
  %700 = vmatpush1.bf16.msra.mxu0 0
  %701 = vmatprep.subr.bf16.mxu0 0
  %702 = vmatpush1.bf16.msra.mxu0 0
  %703 = vmatprep.subr.bf16.mxu0 0
  %704 = vmatpush1.bf16.msra.mxu0 0
  %705 = vmatprep.mubr.bf16.mxu0 0
  %706 = vmatmul.mubr.bf16.gmra.mrb[0].mxu0 %v631
  %v707 = vpop.f32.mrb[0].mxu0
  %v708 = vadd.f32 0.0, %v707
  %v709 = vpop.f32.mrb[0].mxu0
  %v710 = vpop.f32.mrb[0].mxu0
  %v711 = vpop.f32.mrb[0].mxu0
  %712 = vdwg.mxu0
  %v713 = vadd.f32 %v628, %v667
  %v714 = vxor.u32 %v713, 2147483648
  %v715 = vmul.f32 %v714, 1.442695
  %v716 = vpow.pop %v715
  %v717 = vadd.f32 %v716, 1.0
  %v718 = vrcp.pop %v717
  %v719 = vmul.f32 1.0, %v718
  %v720 = vadd.f32 %v629, %v669
  %v721 = vxor.u32 %v720, 2147483648
  %v722 = vmul.f32 %v721, 1.442695
  %v723 = vpow.pop %v722
  %v724 = vadd.f32 %v723, 1.0
  %v725 = vrcp.pop %v724
  %v726 = vmul.f32 1.0, %v725
  %v727 = vadd.f32 %v708, %v393
  %v728 = vmul.f32 %v719, %v727
  %v729 = vadd.f32 %v630, %v728
  %v730 = vtanh.pop %v729
  %v731 = vsub.f32 1.0, %v726
  %v732 = vmul.f32 %v731, %v730
  %v733 = vmul.f32 %v726, %v568
  %v734 = vadd.f32 %v732, %v733
  %s735 = sshll.u32 %s101, 4
  %736 = dma.done %s106, %s735
  %s737 = scalar_lea.vmem %s0, 48
  %p739 = scmp.lt.u32.totalorder 12, 8
  %p740 = pneg %p739
  // Predicated region
  $region158: #{seq2seq_forward.7} parent=0 // pred_check
    _
  $region159: #{seq2seq_forward.7} parent=0 // pred_check_branch
    %742 = sbr.rel (%p739) target = $region161
  $region160: #{seq2seq_forward.7} parent=0 // pred_region
    %s757 = sand.u32 12, 7
    %p758 = scmp.eq.s32.totalorder %s757, 0
    %p759 = pneg %p758
    // Predicated region
    $region173: #{seq2seq_forward.7} parent=160 // pred_check
      _
    $region174: #{seq2seq_forward.7} parent=160 // pred_check_branch
      %761 = sbr.rel (%p758) target = $region176
    $region175: #{seq2seq_forward.7} parent=160 // pred_region
      %s762 = sand.u32 12, 7
      %s763 = ssub.s32 12, %s762
      %s764 = scalar_lea.vmem %s737, %s763
      %s765 = ssub.s32 12, %s762
      %s766 = scalar_lea.vmem [#allocation2], %s765
      loop: start=0, step=1, limit=1
      $region177: #{seq2seq_forward.7} parent=175 // loop_pre_header
        _
      $region178: #{seq2seq_forward.7} parent=175 // loop_header
        %s768 = sphi 0, %s772
        %p769 = scmp.ge.s32.totalorder %s768, 1
        %s773 = sphi %s737, %s737
        %s774 = sphi [#allocation2], [#allocation2]
      $region179: #{seq2seq_forward.7} parent=175 // loop_header_branch
        %771 = sbr.rel (%p769) target = $region183
      $region180: #{seq2seq_forward.7} parent=175 // loop_body
        %v775 = vld [vmem:[%s773] sm:$0xff]
        %776 = vst [vmem:[%s774] sm:$0xff] %v775
      $region181: #{seq2seq_forward.7} parent=175 // loop_footer
        %s772 = sadd.s32 1, %s768
      $region182: #{seq2seq_forward.7} parent=175 // loop_footer_branch
        %767 = sbr.rel target = $region178
      $region183: #{seq2seq_forward.7} parent=175 // loop_exit
        _
      %s777 = sshllo.u32 0, %s762
      loop: start=0, step=1, limit=1
      $region184: #{seq2seq_forward.7} parent=175 // loop_pre_header
        _
      $region185: #{seq2seq_forward.7} parent=175 // loop_header
        %s779 = sphi 0, %s783
        %p780 = scmp.ge.s32.totalorder %s779, 1
        %s784 = sphi %s764, %s764
        %s785 = sphi %s766, %s766
      $region186: #{seq2seq_forward.7} parent=175 // loop_header_branch
        %782 = sbr.rel (%p780) target = $region190
      $region187: #{seq2seq_forward.7} parent=175 // loop_body
        %v786 = vld [vmem:[%s784] sm:%s777]
        %787 = vst [vmem:[%s785] sm:%s777] %v786
      $region188: #{seq2seq_forward.7} parent=175 // loop_footer
        %s783 = sadd.s32 1, %s779
      $region189: #{seq2seq_forward.7} parent=175 // loop_footer_branch
        %778 = sbr.rel target = $region185
      $region190: #{seq2seq_forward.7} parent=175 // loop_exit
        _
    $region176: #{seq2seq_forward.7} parent=160 // pred_fallthru
      _
  $region161: #{seq2seq_forward.7} parent=0 // pred_fallthru
    _
  // Predicated region
  $region162: #{seq2seq_forward.7} parent=0 // pred_check
    %p743 = pneg %p739
  $region163: #{seq2seq_forward.7} parent=0 // pred_check_branch
    %745 = sbr.rel (%p743) target = $region165
  $region164: #{seq2seq_forward.7} parent=0 // pred_region
    %s746 = sshllo.u32 0, 12
    loop: start=0, step=1, limit=1
    $region166: #{seq2seq_forward.7} parent=164 // loop_pre_header
      _
    $region167: #{seq2seq_forward.7} parent=164 // loop_header
      %s748 = sphi 0, %s752
      %p749 = scmp.ge.s32.totalorder %s748, 1
      %s753 = sphi %s737, %s737
      %s754 = sphi [#allocation2], [#allocation2]
    $region168: #{seq2seq_forward.7} parent=164 // loop_header_branch
      %751 = sbr.rel (%p749) target = $region172
    $region169: #{seq2seq_forward.7} parent=164 // loop_body
      %v755 = vld [vmem:[%s753] sm:%s746]
      %756 = vst [vmem:[%s754] sm:%s746] %v755
    $region170: #{seq2seq_forward.7} parent=164 // loop_footer
      %s752 = sadd.s32 1, %s748
    $region171: #{seq2seq_forward.7} parent=164 // loop_footer_branch
      %747 = sbr.rel target = $region167
    $region172: #{seq2seq_forward.7} parent=164 // loop_exit
      _
  $region165: #{seq2seq_forward.7} parent=0 // pred_fallthru
    _
  // Predicated region
  $region191: #{seq2seq_forward.7} parent=0 // pred_check
    _
  $region192: #{seq2seq_forward.7} parent=0 // pred_check_branch
    %790 = sbr.rel (0) target = $region194
  $region193: #{seq2seq_forward.7} parent=0 // pred_region
    %791 = vsyncadd [#allocation3], 192
  $region194: #{seq2seq_forward.7} parent=0 // pred_fallthru
    _
  %v792 = vld [vmem:[%s105] sm:$0xff]
  %v793 = vld [vmem:[%s105 + $0x8] sm:$0xf]
  %v794 = vunpack.c.l.bf16 %v792
  %v795 = vunpack.c.h.bf16 %v792
  %v796 = vunpack.c.l.bf16 %v793
  %v797 = vpack.c.bf16 %v734, %v734
  %798 = vmatprep.subr.bf16.mxu0 %v247
  %799 = vmatpush1.bf16.msra.mxu0 %v246
  %800 = vmatprep.subr.bf16.mxu0 %v250
  %801 = vmatpush1.bf16.msra.mxu0 %v249
  %802 = vmatprep.subr.bf16.mxu0 %v253
  %803 = vmatpush1.bf16.msra.mxu0 %v252
  %804 = vmatprep.subr.bf16.mxu0 %v256
  %805 = vmatpush1.bf16.msra.mxu0 %v255
  %806 = vmatprep.subr.bf16.mxu0 %v259
  %807 = vmatpush1.bf16.msra.mxu0 %v258
  %808 = vmatprep.subr.bf16.mxu0 %v262
  %809 = vmatpush1.bf16.msra.mxu0 %v261
  %810 = vmatprep.subr.bf16.mxu0 %v265
  %811 = vmatpush1.bf16.msra.mxu0 %v264
  %812 = vmatprep.subr.bf16.mxu0 %v268
  %813 = vmatpush1.bf16.msra.mxu0 %v267
  %814 = vmatprep.subr.bf16.mxu0 0
  %815 = vmatpush1.bf16.msra.mxu0 0
  %816 = vmatprep.subr.bf16.mxu0 0
  %817 = vmatpush1.bf16.msra.mxu0 0
  %818 = vmatprep.subr.bf16.mxu0 0
  %819 = vmatpush1.bf16.msra.mxu0 0
  %820 = vmatprep.subr.bf16.mxu0 0
  %821 = vmatpush1.bf16.msra.mxu0 0
  %822 = vmatprep.subr.bf16.mxu0 0
  %823 = vmatpush1.bf16.msra.mxu0 0
  %824 = vmatprep.subr.bf16.mxu0 0
  %825 = vmatpush1.bf16.msra.mxu0 0
  %826 = vmatprep.subr.bf16.mxu0 0
  %827 = vmatpush1.bf16.msra.mxu0 0
  %828 = vmatprep.subr.bf16.mxu0 0
  %829 = vmatpush1.bf16.msra.mxu0 0
  %830 = vmatprep.mubr.bf16.mxu0 0
  %831 = vmatmul.mubr.bf16.gmra.mrb[0].mxu0 %v797
  %v832 = vpop.f32.mrb[0].mxu0
  %v833 = vadd.f32 0.0, %v832
  %v834 = vpop.f32.mrb[0].mxu0
  %v835 = vadd.f32 0.0, %v834
  %v836 = vpop.f32.mrb[0].mxu0
  %v837 = vpop.f32.mrb[0].mxu0
  %838 = vdwg.mxu0
  %839 = vmatprep.subr.bf16.mxu0 0
  %840 = vmatpush1.bf16.msra.mxu0 %v248
  %841 = vmatprep.subr.bf16.mxu0 0
  %842 = vmatpush1.bf16.msra.mxu0 %v251
  %843 = vmatprep.subr.bf16.mxu0 0
  %844 = vmatpush1.bf16.msra.mxu0 %v254
  %845 = vmatprep.subr.bf16.mxu0 0
  %846 = vmatpush1.bf16.msra.mxu0 %v257
  %847 = vmatprep.subr.bf16.mxu0 0
  %848 = vmatpush1.bf16.msra.mxu0 %v260
  %849 = vmatprep.subr.bf16.mxu0 0
  %850 = vmatpush1.bf16.msra.mxu0 %v263
  %851 = vmatprep.subr.bf16.mxu0 0
  %852 = vmatpush1.bf16.msra.mxu0 %v266
  %853 = vmatprep.subr.bf16.mxu0 0
  %854 = vmatpush1.bf16.msra.mxu0 %v269
  %855 = vmatprep.subr.bf16.mxu0 0
  %856 = vmatpush1.bf16.msra.mxu0 0
  %857 = vmatprep.subr.bf16.mxu0 0
  %858 = vmatpush1.bf16.msra.mxu0 0
  %859 = vmatprep.subr.bf16.mxu0 0
  %860 = vmatpush1.bf16.msra.mxu0 0
  %861 = vmatprep.subr.bf16.mxu0 0
  %862 = vmatpush1.bf16.msra.mxu0 0
  %863 = vmatprep.subr.bf16.mxu0 0
  %864 = vmatpush1.bf16.msra.mxu0 0
  %865 = vmatprep.subr.bf16.mxu0 0
  %866 = vmatpush1.bf16.msra.mxu0 0
  %867 = vmatprep.subr.bf16.mxu0 0
  %868 = vmatpush1.bf16.msra.mxu0 0
  %869 = vmatprep.subr.bf16.mxu0 0
  %870 = vmatpush1.bf16.msra.mxu0 0
  %871 = vmatprep.mubr.bf16.mxu0 0
  %872 = vmatmul.mubr.bf16.gmra.mrb[0].mxu0 %v797
  %v873 = vpop.f32.mrb[0].mxu0
  %v874 = vadd.f32 0.0, %v873
  %v875 = vpop.f32.mrb[0].mxu0
  %v876 = vpop.f32.mrb[0].mxu0
  %v877 = vpop.f32.mrb[0].mxu0
  %878 = vdwg.mxu0
  %v879 = vadd.f32 %v794, %v833
  %v880 = vxor.u32 %v879, 2147483648
  %v881 = vmul.f32 %v880, 1.442695
  %v882 = vpow.pop %v881
  %v883 = vadd.f32 %v882, 1.0
  %v884 = vrcp.pop %v883
  %v885 = vmul.f32 1.0, %v884
  %v886 = vadd.f32 %v795, %v835
  %v887 = vxor.u32 %v886, 2147483648
  %v888 = vmul.f32 %v887, 1.442695
  %v889 = vpow.pop %v888
  %v890 = vadd.f32 %v889, 1.0
  %v891 = vrcp.pop %v890
  %v892 = vmul.f32 1.0, %v891
  %v893 = vadd.f32 %v874, %v393
  %v894 = vmul.f32 %v885, %v893
  %v895 = vadd.f32 %v796, %v894
  %v896 = vtanh.pop %v895
  %v897 = vsub.f32 1.0, %v892
  %v898 = vmul.f32 %v897, %v896
  %v899 = vmul.f32 %v892, %v734
  %v900 = vadd.f32 %v898, %v899
  %s901 = sshll.u32 %s101, 4
  %902 = dma.done [#allocation3], %s901
  %s903 = scalar_lea.vmem %s0, 60
  %p905 = scmp.lt.u32.totalorder 12, 8
  %p906 = pneg %p905
  // Predicated region
  $region195: #{seq2seq_forward.7} parent=0 // pred_check
    _
  $region196: #{seq2seq_forward.7} parent=0 // pred_check_branch
    %908 = sbr.rel (%p905) target = $region198
  $region197: #{seq2seq_forward.7} parent=0 // pred_region
    %s923 = sand.u32 12, 7
    %p924 = scmp.eq.s32.totalorder %s923, 0
    %p925 = pneg %p924
    // Predicated region
    $region210: #{seq2seq_forward.7} parent=197 // pred_check
      _
    $region211: #{seq2seq_forward.7} parent=197 // pred_check_branch
      %927 = sbr.rel (%p924) target = $region213
    $region212: #{seq2seq_forward.7} parent=197 // pred_region
      %s928 = sand.u32 12, 7
      %s929 = ssub.s32 12, %s928
      %s930 = scalar_lea.vmem %s903, %s929
      %s931 = ssub.s32 12, %s928
      %s932 = scalar_lea.vmem %s105, %s931 [#allocation2]
      loop: start=0, step=1, limit=1
      $region214: #{seq2seq_forward.7} parent=212 // loop_pre_header
        _
      $region215: #{seq2seq_forward.7} parent=212 // loop_header
        %s934 = sphi 0, %s938
        %p935 = scmp.ge.s32.totalorder %s934, 1
        %s939 = sphi %s903, %s903
        %s940 = sphi %s105, %s105
      $region216: #{seq2seq_forward.7} parent=212 // loop_header_branch
        %937 = sbr.rel (%p935) target = $region220
      $region217: #{seq2seq_forward.7} parent=212 // loop_body
        %v941 = vld [vmem:[%s939] sm:$0xff]
        %942 = vst [vmem:[%s940] sm:$0xff] %v941
      $region218: #{seq2seq_forward.7} parent=212 // loop_footer
        %s938 = sadd.s32 1, %s934
      $region219: #{seq2seq_forward.7} parent=212 // loop_footer_branch
        %933 = sbr.rel target = $region215
      $region220: #{seq2seq_forward.7} parent=212 // loop_exit
        _
      %s943 = sshllo.u32 0, %s928
      loop: start=0, step=1, limit=1
      $region221: #{seq2seq_forward.7} parent=212 // loop_pre_header
        _
      $region222: #{seq2seq_forward.7} parent=212 // loop_header
        %s945 = sphi 0, %s949
        %p946 = scmp.ge.s32.totalorder %s945, 1
        %s950 = sphi %s930, %s930
        %s951 = sphi %s932, %s932
      $region223: #{seq2seq_forward.7} parent=212 // loop_header_branch
        %948 = sbr.rel (%p946) target = $region227
      $region224: #{seq2seq_forward.7} parent=212 // loop_body
        %v952 = vld [vmem:[%s950] sm:%s943]
        %953 = vst [vmem:[%s951] sm:%s943] %v952
      $region225: #{seq2seq_forward.7} parent=212 // loop_footer
        %s949 = sadd.s32 1, %s945
      $region226: #{seq2seq_forward.7} parent=212 // loop_footer_branch
        %944 = sbr.rel target = $region222
      $region227: #{seq2seq_forward.7} parent=212 // loop_exit
        _
    $region213: #{seq2seq_forward.7} parent=197 // pred_fallthru
      _
  $region198: #{seq2seq_forward.7} parent=0 // pred_fallthru
    _
  // Predicated region
  $region199: #{seq2seq_forward.7} parent=0 // pred_check
    %p909 = pneg %p905
  $region200: #{seq2seq_forward.7} parent=0 // pred_check_branch
    %911 = sbr.rel (%p909) target = $region202
  $region201: #{seq2seq_forward.7} parent=0 // pred_region
    %s912 = sshllo.u32 0, 12
    loop: start=0, step=1, limit=1
    $region203: #{seq2seq_forward.7} parent=201 // loop_pre_header
      _
    $region204: #{seq2seq_forward.7} parent=201 // loop_header
      %s914 = sphi 0, %s918
      %p915 = scmp.ge.s32.totalorder %s914, 1
      %s919 = sphi %s903, %s903
      %s920 = sphi %s105, %s105
    $region205: #{seq2seq_forward.7} parent=201 // loop_header_branch
      %917 = sbr.rel (%p915) target = $region209
    $region206: #{seq2seq_forward.7} parent=201 // loop_body
      %v921 = vld [vmem:[%s919] sm:%s912]
      %922 = vst [vmem:[%s920] sm:%s912] %v921
    $region207: #{seq2seq_forward.7} parent=201 // loop_footer
      %s918 = sadd.s32 1, %s914
    $region208: #{seq2seq_forward.7} parent=201 // loop_footer_branch
      %913 = sbr.rel target = $region204
    $region209: #{seq2seq_forward.7} parent=201 // loop_exit
      _
  $region202: #{seq2seq_forward.7} parent=0 // pred_fallthru
    _
  // Predicated region
  $region228: #{seq2seq_forward.7} parent=0 // pred_check
    _
  $region229: #{seq2seq_forward.7} parent=0 // pred_check_branch
    %956 = sbr.rel (0) target = $region231
  $region230: #{seq2seq_forward.7} parent=0 // pred_region
    %957 = vsyncadd %s106, 192
  $region231: #{seq2seq_forward.7} parent=0 // pred_fallthru
    _
  %v958 = vld [vmem:[#allocation2] sm:$0xff]
  %v959 = vld [vmem:[#allocation2 + $0x8] sm:$0xf]
  %v960 = vunpack.c.l.bf16 %v958
  %v961 = vunpack.c.h.bf16 %v958
  %v962 = vunpack.c.l.bf16 %v959
  %v963 = vpack.c.bf16 %v900, %v900
  %964 = vmatprep.subr.bf16.mxu0 %v247
  %965 = vmatpush1.bf16.msra.mxu0 %v246
  %966 = vmatprep.subr.bf16.mxu0 %v250
  %967 = vmatpush1.bf16.msra.mxu0 %v249
  %968 = vmatprep.subr.bf16.mxu0 %v253
  %969 = vmatpush1.bf16.msra.mxu0 %v252
  %970 = vmatprep.subr.bf16.mxu0 %v256
  %971 = vmatpush1.bf16.msra.mxu0 %v255
  %972 = vmatprep.subr.bf16.mxu0 %v259
  %973 = vmatpush1.bf16.msra.mxu0 %v258
  %974 = vmatprep.subr.bf16.mxu0 %v262
  %975 = vmatpush1.bf16.msra.mxu0 %v261
  %976 = vmatprep.subr.bf16.mxu0 %v265
  %977 = vmatpush1.bf16.msra.mxu0 %v264
  %978 = vmatprep.subr.bf16.mxu0 %v268
  %979 = vmatpush1.bf16.msra.mxu0 %v267
  %980 = vmatprep.subr.bf16.mxu0 0
  %981 = vmatpush1.bf16.msra.mxu0 0
  %982 = vmatprep.subr.bf16.mxu0 0
  %983 = vmatpush1.bf16.msra.mxu0 0
  %984 = vmatprep.subr.bf16.mxu0 0
  %985 = vmatpush1.bf16.msra.mxu0 0
  %986 = vmatprep.subr.bf16.mxu0 0
  %987 = vmatpush1.bf16.msra.mxu0 0
  %988 = vmatprep.subr.bf16.mxu0 0
  %989 = vmatpush1.bf16.msra.mxu0 0
  %990 = vmatprep.subr.bf16.mxu0 0
  %991 = vmatpush1.bf16.msra.mxu0 0
  %992 = vmatprep.subr.bf16.mxu0 0
  %993 = vmatpush1.bf16.msra.mxu0 0
  %994 = vmatprep.subr.bf16.mxu0 0
  %995 = vmatpush1.bf16.msra.mxu0 0
  %996 = vmatprep.mubr.bf16.mxu0 0
  %997 = vmatmul.mubr.bf16.gmra.mrb[0].mxu0 %v963
  %v998 = vpop.f32.mrb[0].mxu0
  %v999 = vadd.f32 0.0, %v998
  %v1000 = vpop.f32.mrb[0].mxu0
  %v1001 = vadd.f32 0.0, %v1000
  %v1002 = vpop.f32.mrb[0].mxu0
  %v1003 = vpop.f32.mrb[0].mxu0
  %1004 = vdwg.mxu0
  %1005 = vmatprep.subr.bf16.mxu0 0
  %1006 = vmatpush1.bf16.msra.mxu0 %v248
  %1007 = vmatprep.subr.bf16.mxu0 0
  %1008 = vmatpush1.bf16.msra.mxu0 %v251
  %1009 = vmatprep.subr.bf16.mxu0 0
  %1010 = vmatpush1.bf16.msra.mxu0 %v254
  %1011 = vmatprep.subr.bf16.mxu0 0
  %1012 = vmatpush1.bf16.msra.mxu0 %v257
  %1013 = vmatprep.subr.bf16.mxu0 0
  %1014 = vmatpush1.bf16.msra.mxu0 %v260
  %1015 = vmatprep.subr.bf16.mxu0 0
  %1016 = vmatpush1.bf16.msra.mxu0 %v263
  %1017 = vmatprep.subr.bf16.mxu0 0
  %1018 = vmatpush1.bf16.msra.mxu0 %v266
  %1019 = vmatprep.subr.bf16.mxu0 0
  %1020 = vmatpush1.bf16.msra.mxu0 %v269
  %1021 = vmatprep.subr.bf16.mxu0 0
  %1022 = vmatpush1.bf16.msra.mxu0 0
  %1023 = vmatprep.subr.bf16.mxu0 0
  %1024 = vmatpush1.bf16.msra.mxu0 0
  %1025 = vmatprep.subr.bf16.mxu0 0
  %1026 = vmatpush1.bf16.msra.mxu0 0
  %1027 = vmatprep.subr.bf16.mxu0 0
  %1028 = vmatpush1.bf16.msra.mxu0 0
  %1029 = vmatprep.subr.bf16.mxu0 0
  %1030 = vmatpush1.bf16.msra.mxu0 0
  %1031 = vmatprep.subr.bf16.mxu0 0
  %1032 = vmatpush1.bf16.msra.mxu0 0
  %1033 = vmatprep.subr.bf16.mxu0 0
  %1034 = vmatpush1.bf16.msra.mxu0 0
  %1035 = vmatprep.subr.bf16.mxu0 0
  %1036 = vmatpush1.bf16.msra.mxu0 0
  %1037 = vmatprep.mubr.bf16.mxu0 0
  %1038 = vmatmul.mubr.bf16.gmra.mrb[0].mxu0 %v963
  %v1039 = vpop.f32.mrb[0].mxu0
  %v1040 = vadd.f32 0.0, %v1039
  %v1041 = vpop.f32.mrb[0].mxu0
  %v1042 = vpop.f32.mrb[0].mxu0
  %v1043 = vpop.f32.mrb[0].mxu0
  %1044 = vdwg.mxu0
  %v1045 = vadd.f32 %v960, %v999
  %v1046 = vxor.u32 %v1045, 2147483648
  %v1047 = vmul.f32 %v1046, 1.442695
  %v1048 = vpow.pop %v1047
  %v1049 = vadd.f32 %v1048, 1.0
  %v1050 = vrcp.pop %v1049
  %v1051 = vmul.f32 1.0, %v1050
  %v1052 = vadd.f32 %v961, %v1001
  %v1053 = vxor.u32 %v1052, 2147483648
  %v1054 = vmul.f32 %v1053, 1.442695
  %v1055 = vpow.pop %v1054
  %v1056 = vadd.f32 %v1055, 1.0
  %v1057 = vrcp.pop %v1056
  %v1058 = vmul.f32 1.0, %v1057
  %v1059 = vadd.f32 %v1040, %v393
  %v1060 = vmul.f32 %v1051, %v1059
  %v1061 = vadd.f32 %v962, %v1060
  %v1062 = vtanh.pop %v1061
  %v1063 = vsub.f32 1.0, %v1058
  %v1064 = vmul.f32 %v1063, %v1062
  %v1065 = vmul.f32 %v1058, %v900
  %v1066 = vadd.f32 %v1064, %v1065
  %s1067 = sshll.u32 %s101, 4
  %1068 = dma.done %s106, %s1067
  %s1069 = scalar_lea.vmem %s0, 72
  %p1071 = scmp.lt.u32.totalorder 12, 8
  %p1072 = pneg %p1071
  // Predicated region
  $region232: #{seq2seq_forward.7} parent=0 // pred_check
    _
  $region233: #{seq2seq_forward.7} parent=0 // pred_check_branch
    %1074 = sbr.rel (%p1071) target = $region235
  $region234: #{seq2seq_forward.7} parent=0 // pred_region
    %s1089 = sand.u32 12, 7
    %p1090 = scmp.eq.s32.totalorder %s1089, 0
    %p1091 = pneg %p1090
    // Predicated region
    $region247: #{seq2seq_forward.7} parent=234 // pred_check
      _
    $region248: #{seq2seq_forward.7} parent=234 // pred_check_branch
      %1093 = sbr.rel (%p1090) target = $region250
    $region249: #{seq2seq_forward.7} parent=234 // pred_region
      %s1094 = sand.u32 12, 7
      %s1095 = ssub.s32 12, %s1094
      %s1096 = scalar_lea.vmem %s1069, %s1095
      %s1097 = ssub.s32 12, %s1094
      %s1098 = scalar_lea.vmem [#allocation2], %s1097
      loop: start=0, step=1, limit=1
      $region251: #{seq2seq_forward.7} parent=249 // loop_pre_header
        _
      $region252: #{seq2seq_forward.7} parent=249 // loop_header
        %s1100 = sphi 0, %s1104
        %p1101 = scmp.ge.s32.totalorder %s1100, 1
        %s1105 = sphi %s1069, %s1069
        %s1106 = sphi [#allocation2], [#allocation2]
      $region253: #{seq2seq_forward.7} parent=249 // loop_header_branch
        %1103 = sbr.rel (%p1101) target = $region257
      $region254: #{seq2seq_forward.7} parent=249 // loop_body
        %v1107 = vld [vmem:[%s1105] sm:$0xff]
        %1108 = vst [vmem:[%s1106] sm:$0xff] %v1107
      $region255: #{seq2seq_forward.7} parent=249 // loop_footer
        %s1104 = sadd.s32 1, %s1100
      $region256: #{seq2seq_forward.7} parent=249 // loop_footer_branch
        %1099 = sbr.rel target = $region252
      $region257: #{seq2seq_forward.7} parent=249 // loop_exit
        _
      %s1109 = sshllo.u32 0, %s1094
      loop: start=0, step=1, limit=1
      $region258: #{seq2seq_forward.7} parent=249 // loop_pre_header
        _
      $region259: #{seq2seq_forward.7} parent=249 // loop_header
        %s1111 = sphi 0, %s1115
        %p1112 = scmp.ge.s32.totalorder %s1111, 1
        %s1116 = sphi %s1096, %s1096
        %s1117 = sphi %s1098, %s1098
      $region260: #{seq2seq_forward.7} parent=249 // loop_header_branch
        %1114 = sbr.rel (%p1112) target = $region264
      $region261: #{seq2seq_forward.7} parent=249 // loop_body
        %v1118 = vld [vmem:[%s1116] sm:%s1109]
        %1119 = vst [vmem:[%s1117] sm:%s1109] %v1118
      $region262: #{seq2seq_forward.7} parent=249 // loop_footer
        %s1115 = sadd.s32 1, %s1111
      $region263: #{seq2seq_forward.7} parent=249 // loop_footer_branch
        %1110 = sbr.rel target = $region259
      $region264: #{seq2seq_forward.7} parent=249 // loop_exit
        _
    $region250: #{seq2seq_forward.7} parent=234 // pred_fallthru
      _
  $region235: #{seq2seq_forward.7} parent=0 // pred_fallthru
    _
  // Predicated region
  $region236: #{seq2seq_forward.7} parent=0 // pred_check
    %p1075 = pneg %p1071
  $region237: #{seq2seq_forward.7} parent=0 // pred_check_branch
    %1077 = sbr.rel (%p1075) target = $region239
  $region238: #{seq2seq_forward.7} parent=0 // pred_region
    %s1078 = sshllo.u32 0, 12
    loop: start=0, step=1, limit=1
    $region240: #{seq2seq_forward.7} parent=238 // loop_pre_header
      _
    $region241: #{seq2seq_forward.7} parent=238 // loop_header
      %s1080 = sphi 0, %s1084
      %p1081 = scmp.ge.s32.totalorder %s1080, 1
      %s1085 = sphi %s1069, %s1069
      %s1086 = sphi [#allocation2], [#allocation2]
    $region242: #{seq2seq_forward.7} parent=238 // loop_header_branch
      %1083 = sbr.rel (%p1081) target = $region246
    $region243: #{seq2seq_forward.7} parent=238 // loop_body
      %v1087 = vld [vmem:[%s1085] sm:%s1078]
      %1088 = vst [vmem:[%s1086] sm:%s1078] %v1087
    $region244: #{seq2seq_forward.7} parent=238 // loop_footer
      %s1084 = sadd.s32 1, %s1080
    $region245: #{seq2seq_forward.7} parent=238 // loop_footer_branch
      %1079 = sbr.rel target = $region241
    $region246: #{seq2seq_forward.7} parent=238 // loop_exit
      _
  $region239: #{seq2seq_forward.7} parent=0 // pred_fallthru
    _
  // Predicated region
  $region265: #{seq2seq_forward.7} parent=0 // pred_check
    _
  $region266: #{seq2seq_forward.7} parent=0 // pred_check_branch
    %1122 = sbr.rel (0) target = $region268
  $region267: #{seq2seq_forward.7} parent=0 // pred_region
    %1123 = vsyncadd [#allocation3], 192
  $region268: #{seq2seq_forward.7} parent=0 // pred_fallthru
    _
  %v1124 = vld [vmem:[%s105] sm:$0xff]
  %v1125 = vld [vmem:[%s105 + $0x8] sm:$0xf]
  %v1126 = vunpack.c.l.bf16 %v1124
  %v1127 = vunpack.c.h.bf16 %v1124
  %v1128 = vunpack.c.l.bf16 %v1125
  %v1129 = vpack.c.bf16 %v1066, %v1066
  %1130 = vmatprep.subr.bf16.mxu0 %v247
  %1131 = vmatpush1.bf16.msra.mxu0 %v246
  %1132 = vmatprep.subr.bf16.mxu0 %v250
  %1133 = vmatpush1.bf16.msra.mxu0 %v249
  %1134 = vmatprep.subr.bf16.mxu0 %v253
  %1135 = vmatpush1.bf16.msra.mxu0 %v252
  %1136 = vmatprep.subr.bf16.mxu0 %v256
  %1137 = vmatpush1.bf16.msra.mxu0 %v255
  %1138 = vmatprep.subr.bf16.mxu0 %v259
  %1139 = vmatpush1.bf16.msra.mxu0 %v258
  %1140 = vmatprep.subr.bf16.mxu0 %v262
  %1141 = vmatpush1.bf16.msra.mxu0 %v261
  %1142 = vmatprep.subr.bf16.mxu0 %v265
  %1143 = vmatpush1.bf16.msra.mxu0 %v264
  %1144 = vmatprep.subr.bf16.mxu0 %v268
  %1145 = vmatpush1.bf16.msra.mxu0 %v267
  %1146 = vmatprep.subr.bf16.mxu0 0
  %1147 = vmatpush1.bf16.msra.mxu0 0
  %1148 = vmatprep.subr.bf16.mxu0 0
  %1149 = vmatpush1.bf16.msra.mxu0 0
  %1150 = vmatprep.subr.bf16.mxu0 0
  %1151 = vmatpush1.bf16.msra.mxu0 0
  %1152 = vmatprep.subr.bf16.mxu0 0
  %1153 = vmatpush1.bf16.msra.mxu0 0
  %1154 = vmatprep.subr.bf16.mxu0 0
  %1155 = vmatpush1.bf16.msra.mxu0 0
  %1156 = vmatprep.subr.bf16.mxu0 0
  %1157 = vmatpush1.bf16.msra.mxu0 0
  %1158 = vmatprep.subr.bf16.mxu0 0
  %1159 = vmatpush1.bf16.msra.mxu0 0
  %1160 = vmatprep.subr.bf16.mxu0 0
  %1161 = vmatpush1.bf16.msra.mxu0 0
  %1162 = vmatprep.mubr.bf16.mxu0 0
  %1163 = vmatmul.mubr.bf16.gmra.mrb[0].mxu0 %v1129
  %v1164 = vpop.f32.mrb[0].mxu0
  %v1165 = vadd.f32 0.0, %v1164
  %v1166 = vpop.f32.mrb[0].mxu0
  %v1167 = vadd.f32 0.0, %v1166
  %v1168 = vpop.f32.mrb[0].mxu0
  %v1169 = vpop.f32.mrb[0].mxu0
  %1170 = vdwg.mxu0
  %1171 = vmatprep.subr.bf16.mxu0 0
  %1172 = vmatpush1.bf16.msra.mxu0 %v248
  %1173 = vmatprep.subr.bf16.mxu0 0
  %1174 = vmatpush1.bf16.msra.mxu0 %v251
  %1175 = vmatprep.subr.bf16.mxu0 0
  %1176 = vmatpush1.bf16.msra.mxu0 %v254
  %1177 = vmatprep.subr.bf16.mxu0 0
  %1178 = vmatpush1.bf16.msra.mxu0 %v257
  %1179 = vmatprep.subr.bf16.mxu0 0
  %1180 = vmatpush1.bf16.msra.mxu0 %v260
  %1181 = vmatprep.subr.bf16.mxu0 0
  %1182 = vmatpush1.bf16.msra.mxu0 %v263
  %1183 = vmatprep.subr.bf16.mxu0 0
  %1184 = vmatpush1.bf16.msra.mxu0 %v266
  %1185 = vmatprep.subr.bf16.mxu0 0
  %1186 = vmatpush1.bf16.msra.mxu0 %v269
  %1187 = vmatprep.subr.bf16.mxu0 0
  %1188 = vmatpush1.bf16.msra.mxu0 0
  %1189 = vmatprep.subr.bf16.mxu0 0
  %1190 = vmatpush1.bf16.msra.mxu0 0
  %1191 = vmatprep.subr.bf16.mxu0 0
  %1192 = vmatpush1.bf16.msra.mxu0 0
  %1193 = vmatprep.subr.bf16.mxu0 0
  %1194 = vmatpush1.bf16.msra.mxu0 0
  %1195 = vmatprep.subr.bf16.mxu0 0
  %1196 = vmatpush1.bf16.msra.mxu0 0
  %1197 = vmatprep.subr.bf16.mxu0 0
  %1198 = vmatpush1.bf16.msra.mxu0 0
  %1199 = vmatprep.subr.bf16.mxu0 0
  %1200 = vmatpush1.bf16.msra.mxu0 0
  %1201 = vmatprep.subr.bf16.mxu0 0
  %1202 = vmatpush1.bf16.msra.mxu0 0
  %1203 = vmatprep.mubr.bf16.mxu0 0
  %1204 = vmatmul.mubr.bf16.gmra.mrb[0].mxu0 %v1129
  %v1205 = vpop.f32.mrb[0].mxu0
  %v1206 = vadd.f32 0.0, %v1205
  %v1207 = vpop.f32.mrb[0].mxu0
  %v1208 = vpop.f32.mrb[0].mxu0
  %v1209 = vpop.f32.mrb[0].mxu0
  %1210 = vdwg.mxu0
  %v1211 = vadd.f32 %v1126, %v1165
  %v1212 = vxor.u32 %v1211, 2147483648
  %v1213 = vmul.f32 %v1212, 1.442695
  %v1214 = vpow.pop %v1213
  %v1215 = vadd.f32 %v1214, 1.0
  %v1216 = vrcp.pop %v1215
  %v1217 = vmul.f32 1.0, %v1216
  %v1218 = vadd.f32 %v1127, %v1167
  %v1219 = vxor.u32 %v1218, 2147483648
  %v1220 = vmul.f32 %v1219, 1.442695
  %v1221 = vpow.pop %v1220
  %v1222 = vadd.f32 %v1221, 1.0
  %v1223 = vrcp.pop %v1222
  %v1224 = vmul.f32 1.0, %v1223
  %v1225 = vadd.f32 %v1206, %v393
  %v1226 = vmul.f32 %v1217, %v1225
  %v1227 = vadd.f32 %v1128, %v1226
  %v1228 = vtanh.pop %v1227
  %v1229 = vsub.f32 1.0, %v1224
  %v1230 = vmul.f32 %v1229, %v1228
  %v1231 = vmul.f32 %v1224, %v1066
  %v1232 = vadd.f32 %v1230, %v1231
  %s1233 = sshll.u32 %s101, 4
  %1234 = dma.done [#allocation3], %s1233
  %s1235 = scalar_lea.vmem %s0, 84
  %p1237 = scmp.lt.u32.totalorder 12, 8
  %p1238 = pneg %p1237
  // Predicated region
  $region269: #{seq2seq_forward.7} parent=0 // pred_check
    _
  $region270: #{seq2seq_forward.7} parent=0 // pred_check_branch
    %1240 = sbr.rel (%p1237) target = $region272
  $region271: #{seq2seq_forward.7} parent=0 // pred_region
    %s1255 = sand.u32 12, 7
    %p1256 = scmp.eq.s32.totalorder %s1255, 0
    %p1257 = pneg %p1256
    // Predicated region
    $region284: #{seq2seq_forward.7} parent=271 // pred_check
      _
    $region285: #{seq2seq_forward.7} parent=271 // pred_check_branch
      %1259 = sbr.rel (%p1256) target = $region287
    $region286: #{seq2seq_forward.7} parent=271 // pred_region
      %s1260 = sand.u32 12, 7
      %s1261 = ssub.s32 12, %s1260
      %s1262 = scalar_lea.vmem %s1235, %s1261
      %s1263 = ssub.s32 12, %s1260
      %s1264 = scalar_lea.vmem %s105, %s1263 [#allocation2]
      loop: start=0, step=1, limit=1
      $region288: #{seq2seq_forward.7} parent=286 // loop_pre_header
        _
      $region289: #{seq2seq_forward.7} parent=286 // loop_header
        %s1266 = sphi 0, %s1270
        %p1267 = scmp.ge.s32.totalorder %s1266, 1
        %s1271 = sphi %s1235, %s1235
        %s1272 = sphi %s105, %s105
      $region290: #{seq2seq_forward.7} parent=286 // loop_header_branch
        %1269 = sbr.rel (%p1267) target = $region294
      $region291: #{seq2seq_forward.7} parent=286 // loop_body
        %v1273 = vld [vmem:[%s1271] sm:$0xff]
        %1274 = vst [vmem:[%s1272] sm:$0xff] %v1273
      $region292: #{seq2seq_forward.7} parent=286 // loop_footer
        %s1270 = sadd.s32 1, %s1266
      $region293: #{seq2seq_forward.7} parent=286 // loop_footer_branch
        %1265 = sbr.rel target = $region289
      $region294: #{seq2seq_forward.7} parent=286 // loop_exit
        _
      %s1275 = sshllo.u32 0, %s1260
      loop: start=0, step=1, limit=1
      $region295: #{seq2seq_forward.7} parent=286 // loop_pre_header
        _
      $region296: #{seq2seq_forward.7} parent=286 // loop_header
        %s1277 = sphi 0, %s1281
        %p1278 = scmp.ge.s32.totalorder %s1277, 1
        %s1282 = sphi %s1262, %s1262
        %s1283 = sphi %s1264, %s1264
      $region297: #{seq2seq_forward.7} parent=286 // loop_header_branch
        %1280 = sbr.rel (%p1278) target = $region301
      $region298: #{seq2seq_forward.7} parent=286 // loop_body
        %v1284 = vld [vmem:[%s1282] sm:%s1275]
        %1285 = vst [vmem:[%s1283] sm:%s1275] %v1284
      $region299: #{seq2seq_forward.7} parent=286 // loop_footer
        %s1281 = sadd.s32 1, %s1277
      $region300: #{seq2seq_forward.7} parent=286 // loop_footer_branch
        %1276 = sbr.rel target = $region296
      $region301: #{seq2seq_forward.7} parent=286 // loop_exit
        _
    $region287: #{seq2seq_forward.7} parent=271 // pred_fallthru
      _
  $region272: #{seq2seq_forward.7} parent=0 // pred_fallthru
    _
  // Predicated region
  $region273: #{seq2seq_forward.7} parent=0 // pred_check
    %p1241 = pneg %p1237
  $region274: #{seq2seq_forward.7} parent=0 // pred_check_branch
    %1243 = sbr.rel (%p1241) target = $region276
  $region275: #{seq2seq_forward.7} parent=0 // pred_region
    %s1244 = sshllo.u32 0, 12
    loop: start=0, step=1, limit=1
    $region277: #{seq2seq_forward.7} parent=275 // loop_pre_header
      _
    $region278: #{seq2seq_forward.7} parent=275 // loop_header
      %s1246 = sphi 0, %s1250
      %p1247 = scmp.ge.s32.totalorder %s1246, 1
      %s1251 = sphi %s1235, %s1235
      %s1252 = sphi %s105, %s105
    $region279: #{seq2seq_forward.7} parent=275 // loop_header_branch
      %1249 = sbr.rel (%p1247) target = $region283
    $region280: #{seq2seq_forward.7} parent=275 // loop_body
      %v1253 = vld [vmem:[%s1251] sm:%s1244]
      %1254 = vst [vmem:[%s1252] sm:%s1244] %v1253
    $region281: #{seq2seq_forward.7} parent=275 // loop_footer
      %s1250 = sadd.s32 1, %s1246
    $region282: #{seq2seq_forward.7} parent=275 // loop_footer_branch
      %1245 = sbr.rel target = $region278
    $region283: #{seq2seq_forward.7} parent=275 // loop_exit
      _
  $region276: #{seq2seq_forward.7} parent=0 // pred_fallthru
    _
  // Predicated region
  $region302: #{seq2seq_forward.7} parent=0 // pred_check
    _
  $region303: #{seq2seq_forward.7} parent=0 // pred_check_branch
    %1288 = sbr.rel (0) target = $region305
  $region304: #{seq2seq_forward.7} parent=0 // pred_region
    %1289 = vsyncadd %s106, 192
  $region305: #{seq2seq_forward.7} parent=0 // pred_fallthru
    _
  %v1290 = vld [vmem:[#allocation2] sm:$0xff]
  %v1291 = vld [vmem:[#allocation2 + $0x8] sm:$0xf]
  %v1292 = vunpack.c.l.bf16 %v1290
  %v1293 = vunpack.c.h.bf16 %v1290
  %v1294 = vunpack.c.l.bf16 %v1291
  %v1295 = vpack.c.bf16 %v1232, %v1232
  %1296 = vmatprep.subr.bf16.mxu0 %v247
  %1297 = vmatpush1.bf16.msra.mxu0 %v246
  %1298 = vmatprep.subr.bf16.mxu0 %v250
  %1299 = vmatpush1.bf16.msra.mxu0 %v249
  %1300 = vmatprep.subr.bf16.mxu0 %v253
  %1301 = vmatpush1.bf16.msra.mxu0 %v252
  %1302 = vmatprep.subr.bf16.mxu0 %v256
  %1303 = vmatpush1.bf16.msra.mxu0 %v255
  %1304 = vmatprep.subr.bf16.mxu0 %v259
  %1305 = vmatpush1.bf16.msra.mxu0 %v258
  %1306 = vmatprep.subr.bf16.mxu0 %v262
  %1307 = vmatpush1.bf16.msra.mxu0 %v261
  %1308 = vmatprep.subr.bf16.mxu0 %v265
  %1309 = vmatpush1.bf16.msra.mxu0 %v264
  %1310 = vmatprep.subr.bf16.mxu0 %v268
  %1311 = vmatpush1.bf16.msra.mxu0 %v267
  %1312 = vmatprep.subr.bf16.mxu0 0
  %1313 = vmatpush1.bf16.msra.mxu0 0
  %1314 = vmatprep.subr.bf16.mxu0 0
  %1315 = vmatpush1.bf16.msra.mxu0 0
  %1316 = vmatprep.subr.bf16.mxu0 0
  %1317 = vmatpush1.bf16.msra.mxu0 0
  %1318 = vmatprep.subr.bf16.mxu0 0
  %1319 = vmatpush1.bf16.msra.mxu0 0
  %1320 = vmatprep.subr.bf16.mxu0 0
  %1321 = vmatpush1.bf16.msra.mxu0 0
  %1322 = vmatprep.subr.bf16.mxu0 0
  %1323 = vmatpush1.bf16.msra.mxu0 0
  %1324 = vmatprep.subr.bf16.mxu0 0
  %1325 = vmatpush1.bf16.msra.mxu0 0
  %1326 = vmatprep.subr.bf16.mxu0 0
  %1327 = vmatpush1.bf16.msra.mxu0 0
  %1328 = vmatprep.mubr.bf16.mxu0 0
  %1329 = vmatmul.mubr.bf16.gmra.mrb[0].mxu0 %v1295
  %v1330 = vpop.f32.mrb[0].mxu0
  %v1331 = vadd.f32 0.0, %v1330
  %v1332 = vpop.f32.mrb[0].mxu0
  %v1333 = vadd.f32 0.0, %v1332
  %v1334 = vpop.f32.mrb[0].mxu0
  %v1335 = vpop.f32.mrb[0].mxu0
  %1336 = vdwg.mxu0
  %1337 = vmatprep.subr.bf16.mxu0 0
  %1338 = vmatpush1.bf16.msra.mxu0 %v248
  %1339 = vmatprep.subr.bf16.mxu0 0
  %1340 = vmatpush1.bf16.msra.mxu0 %v251
  %1341 = vmatprep.subr.bf16.mxu0 0
  %1342 = vmatpush1.bf16.msra.mxu0 %v254
  %1343 = vmatprep.subr.bf16.mxu0 0
  %1344 = vmatpush1.bf16.msra.mxu0 %v257
  %1345 = vmatprep.subr.bf16.mxu0 0
  %1346 = vmatpush1.bf16.msra.mxu0 %v260
  %1347 = vmatprep.subr.bf16.mxu0 0
  %1348 = vmatpush1.bf16.msra.mxu0 %v263
  %1349 = vmatprep.subr.bf16.mxu0 0
  %1350 = vmatpush1.bf16.msra.mxu0 %v266
  %1351 = vmatprep.subr.bf16.mxu0 0
  %1352 = vmatpush1.bf16.msra.mxu0 %v269
  %1353 = vmatprep.subr.bf16.mxu0 0
  %1354 = vmatpush1.bf16.msra.mxu0 0
  %1355 = vmatprep.subr.bf16.mxu0 0
  %1356 = vmatpush1.bf16.msra.mxu0 0
  %1357 = vmatprep.subr.bf16.mxu0 0
  %1358 = vmatpush1.bf16.msra.mxu0 0
  %1359 = vmatprep.subr.bf16.mxu0 0
  %1360 = vmatpush1.bf16.msra.mxu0 0
  %1361 = vmatprep.subr.bf16.mxu0 0
  %1362 = vmatpush1.bf16.msra.mxu0 0
  %1363 = vmatprep.subr.bf16.mxu0 0
  %1364 = vmatpush1.bf16.msra.mxu0 0
  %1365 = vmatprep.subr.bf16.mxu0 0
  %1366 = vmatpush1.bf16.msra.mxu0 0
  %1367 = vmatprep.subr.bf16.mxu0 0
  %1368 = vmatpush1.bf16.msra.mxu0 0
  %1369 = vmatprep.mubr.bf16.mxu0 0
  %1370 = vmatmul.mubr.bf16.gmra.mrb[0].mxu0 %v1295
  %v1371 = vpop.f32.mrb[0].mxu0
  %v1372 = vadd.f32 0.0, %v1371
  %v1373 = vpop.f32.mrb[0].mxu0
  %v1374 = vpop.f32.mrb[0].mxu0
  %v1375 = vpop.f32.mrb[0].mxu0
  %1376 = vdwg.mxu0
  %v1377 = vadd.f32 %v1292, %v1331
  %v1378 = vxor.u32 %v1377, 2147483648
  %v1379 = vmul.f32 %v1378, 1.442695
  %v1380 = vpow.pop %v1379
  %v1381 = vadd.f32 %v1380, 1.0
  %v1382 = vrcp.pop %v1381
  %v1383 = vmul.f32 1.0, %v1382
  %v1384 = vadd.f32 %v1293, %v1333
  %v1385 = vxor.u32 %v1384, 2147483648
  %v1386 = vmul.f32 %v1385, 1.442695
  %v1387 = vpow.pop %v1386
  %v1388 = vadd.f32 %v1387, 1.0
  %v1389 = vrcp.pop %v1388
  %v1390 = vmul.f32 1.0, %v1389
  %v1391 = vadd.f32 %v1372, %v393
  %v1392 = vmul.f32 %v1383, %v1391
  %v1393 = vadd.f32 %v1294, %v1392
  %v1394 = vtanh.pop %v1393
  %v1395 = vsub.f32 1.0, %v1390
  %v1396 = vmul.f32 %v1395, %v1394
  %v1397 = vmul.f32 %v1390, %v1232
  %v1398 = vadd.f32 %v1396, %v1397
  %s1399 = sshll.u32 %s101, 4
  %1400 = dma.done %s106, %s1399
  %v1401 = vld [vmem:[%s105] sm:$0xff]
  %v1402 = vld [vmem:[%s105 + $0x8] sm:$0xf]
  %v1403 = vunpack.c.l.bf16 %v1401
  %v1404 = vunpack.c.h.bf16 %v1401
  %v1405 = vunpack.c.l.bf16 %v1402
  %v1406 = vpack.c.bf16 %v1398, %v1398
  %1407 = vmatprep.subr.bf16.mxu0 %v247
  %1408 = vmatpush1.bf16.msra.mxu0 %v246
  %1409 = vmatprep.subr.bf16.mxu0 %v250
  %1410 = vmatpush1.bf16.msra.mxu0 %v249
  %1411 = vmatprep.subr.bf16.mxu0 %v253
  %1412 = vmatpush1.bf16.msra.mxu0 %v252
  %1413 = vmatprep.subr.bf16.mxu0 %v256
  %1414 = vmatpush1.bf16.msra.mxu0 %v255
  %1415 = vmatprep.subr.bf16.mxu0 %v259
  %1416 = vmatpush1.bf16.msra.mxu0 %v258
  %1417 = vmatprep.subr.bf16.mxu0 %v262
  %1418 = vmatpush1.bf16.msra.mxu0 %v261
  %1419 = vmatprep.subr.bf16.mxu0 %v265
  %1420 = vmatpush1.bf16.msra.mxu0 %v264
  %1421 = vmatprep.subr.bf16.mxu0 %v268
  %1422 = vmatpush1.bf16.msra.mxu0 %v267
  %1423 = vmatprep.subr.bf16.mxu0 0
  %1424 = vmatpush1.bf16.msra.mxu0 0
  %1425 = vmatprep.subr.bf16.mxu0 0
  %1426 = vmatpush1.bf16.msra.mxu0 0
  %1427 = vmatprep.subr.bf16.mxu0 0
  %1428 = vmatpush1.bf16.msra.mxu0 0
  %1429 = vmatprep.subr.bf16.mxu0 0
  %1430 = vmatpush1.bf16.msra.mxu0 0
  %1431 = vmatprep.subr.bf16.mxu0 0
  %1432 = vmatpush1.bf16.msra.mxu0 0
  %1433 = vmatprep.subr.bf16.mxu0 0
  %1434 = vmatpush1.bf16.msra.mxu0 0
  %1435 = vmatprep.subr.bf16.mxu0 0
  %1436 = vmatpush1.bf16.msra.mxu0 0
  %1437 = vmatprep.subr.bf16.mxu0 0
  %1438 = vmatpush1.bf16.msra.mxu0 0
  %1439 = vmatprep.mubr.bf16.mxu0 0
  %1440 = vmatmul.mubr.bf16.gmra.mrb[0].mxu0 %v1406
  %v1441 = vpop.f32.mrb[0].mxu0
  %v1442 = vadd.f32 0.0, %v1441
  %v1443 = vpop.f32.mrb[0].mxu0
  %v1444 = vadd.f32 0.0, %v1443
  %v1445 = vpop.f32.mrb[0].mxu0
  %v1446 = vpop.f32.mrb[0].mxu0
  %1447 = vdwg.mxu0
  %1448 = vmatprep.subr.bf16.mxu0 0
  %1449 = vmatpush1.bf16.msra.mxu0 %v248
  %1450 = vmatprep.subr.bf16.mxu0 0
  %1451 = vmatpush1.bf16.msra.mxu0 %v251
  %1452 = vmatprep.subr.bf16.mxu0 0
  %1453 = vmatpush1.bf16.msra.mxu0 %v254
  %1454 = vmatprep.subr.bf16.mxu0 0
  %1455 = vmatpush1.bf16.msra.mxu0 %v257
  %1456 = vmatprep.subr.bf16.mxu0 0
  %1457 = vmatpush1.bf16.msra.mxu0 %v260
  %1458 = vmatprep.subr.bf16.mxu0 0
  %1459 = vmatpush1.bf16.msra.mxu0 %v263
  %1460 = vmatprep.subr.bf16.mxu0 0
  %1461 = vmatpush1.bf16.msra.mxu0 %v266
  %1462 = vmatprep.subr.bf16.mxu0 0
  %1463 = vmatpush1.bf16.msra.mxu0 %v269
  %1464 = vmatprep.subr.bf16.mxu0 0
  %1465 = vmatpush1.bf16.msra.mxu0 0
  %1466 = vmatprep.subr.bf16.mxu0 0
  %1467 = vmatpush1.bf16.msra.mxu0 0
  %1468 = vmatprep.subr.bf16.mxu0 0
  %1469 = vmatpush1.bf16.msra.mxu0 0
  %1470 = vmatprep.subr.bf16.mxu0 0
  %1471 = vmatpush1.bf16.msra.mxu0 0
  %1472 = vmatprep.subr.bf16.mxu0 0
  %1473 = vmatpush1.bf16.msra.mxu0 0
  %1474 = vmatprep.subr.bf16.mxu0 0
  %1475 = vmatpush1.bf16.msra.mxu0 0
  %1476 = vmatprep.subr.bf16.mxu0 0
  %1477 = vmatpush1.bf16.msra.mxu0 0
  %1478 = vmatprep.subr.bf16.mxu0 0
  %1479 = vmatpush1.bf16.msra.mxu0 0
  %1480 = vmatprep.mubr.bf16.mxu0 0
  %1481 = vmatmul.mubr.bf16.gmra.mrb[0].mxu0 %v1406
  %v1482 = vpop.f32.mrb[0].mxu0
  %v1483 = vadd.f32 0.0, %v1482
  %v1484 = vpop.f32.mrb[0].mxu0
  %v1485 = vpop.f32.mrb[0].mxu0
  %v1486 = vpop.f32.mrb[0].mxu0
  %1487 = vdwg.mxu0
  %v1488 = vadd.f32 %v1403, %v1442
  %v1489 = vxor.u32 %v1488, 2147483648
  %v1490 = vmul.f32 %v1489, 1.442695
  %v1491 = vpow.pop %v1490
  %v1492 = vadd.f32 %v1491, 1.0
  %v1493 = vrcp.pop %v1492
  %v1494 = vmul.f32 1.0, %v1493
  %v1495 = vadd.f32 %v1404, %v1444
  %v1496 = vxor.u32 %v1495, 2147483648
  %v1497 = vmul.f32 %v1496, 1.442695
  %v1498 = vpow.pop %v1497
  %v1499 = vadd.f32 %v1498, 1.0
  %v1500 = vrcp.pop %v1499
  %v1501 = vmul.f32 1.0, %v1500
  %v1502 = vadd.f32 %v1483, %v393
  %v1503 = vmul.f32 %v1494, %v1502
  %v1504 = vadd.f32 %v1405, %v1503
  %v1505 = vtanh.pop %v1504
  %v1506 = vsub.f32 1.0, %v1501
  %v1507 = vmul.f32 %v1506, %v1505
  %v1508 = vmul.f32 %v1501, %v1398
  %v1509 = vadd.f32 %v1507, %v1508
  %1510 = vst [vmem:[%s3] sm:$0xff] %v1509
  // Predicated region
  $region306: #{seq2seq_forward.7} parent=0 // pred_check
    _
  $region307: #{seq2seq_forward.7} parent=0 // pred_check_branch
    %1512 = sbr.rel (0) target = $region309
  $region308: #{seq2seq_forward.7} parent=0 // pred_region
    _
  $region309: #{seq2seq_forward.7} parent=0 // pred_fallthru
    _
  // Predicated region
  $region310: #{seq2seq_forward.7} parent=0 // pred_check
    _
  $region311: #{seq2seq_forward.7} parent=0 // pred_check_branch
    %1514 = sbr.rel (0) target = $region313
  $region312: #{seq2seq_forward.7} parent=0 // pred_region
    _
  $region313: #{seq2seq_forward.7} parent=0 // pred_fallthru
    _
  %1515 = vsyncmov [#allocation3]
  %s1516 = vpop.sfrf %1515
  %p1517 = scmp.eq.s32.totalorder %s1516, 0
  %p1518 = pneg %p1517
  %1520 = shalt.err (%p1518)
  %s1521 = scalar_lea.sflag [#allocation3], 1
  %1522 = vsyncmov %s1521
  %s1523 = vpop.sfrf %1522
  %p1524 = scmp.eq.s32.totalorder %s1523, 0
  %p1525 = pneg %p1524
  %1527 = shalt.err (%p1525)

// kernel: seq2seq_forward.8
$region0: #{seq2seq_forward.8}
  #allocation0 [shape = 'u32[]', space=smem, size = 0x4, offset = 0x4, fixed_abs, tag = 'smem constant byte address 0x4 - core index']
  #allocation1 [shape = 'u32[144,128]{1,0:T(1,128)}', space=vmem, size = 0x12000, scoped, tag = 'internal scratch']
  #allocation2 [shape = 'bf16[2,8,384]{2,1,0:T(8,128)(2,1)}', space=vmem, size = 0x3000, scoped, tag = 'scratch operand']
  #allocation3 [shape = 'bf16[2,8,128]{2,1,0:T(8,128)(2,1)}', space=vmem, size = 0x1000, scoped, tag = 'scratch operand']
  #allocation4 [shape = 's32[2]{0}', space=sflag, size = 0x8, scoped, tag = 'scratch operand']
  #allocation5 [shape = 's32[2]{0}', space=sflag, size = 0x8, scoped, tag = 'scratch operand']
  #allocation6 [shape = 's32[]', space=sflag, size = 0x4, offset = 0, fixed_abs, tag = 'sflag constant byte address 0x0 - dummy sync flag']
  #allocation7 [shape = 's32[]', space=sflag, size = 0x4, offset = 0, fixed_abs, tag = 'sflag constant byte address 0x0 - dummy sync flag']
  #allocation8 [shape = 's32[]', space=sflag, size = 0x4, offset = 0, fixed_abs, tag = 'sflag constant byte address 0x0 - dummy sync flag']
  #allocation9 [shape = 's32[]', space=sflag, size = 0x4, offset = 0, fixed_abs, tag = 'sflag constant byte address 0x0 - dummy sync flag']
  #allocation10 [shape = 's32[]', space=sflag, size = 0x4, offset = 0, fixed_abs, tag = 'sflag constant byte address 0x0 - dummy sync flag']
  #allocation11 [shape = 's32[]', space=sflag, size = 0x4, offset = 0, fixed_abs, tag = 'sflag constant byte address 0x0 - dummy sync flag']
  #allocation12 [shape = 's32[]', space=sflag, size = 0x4, offset = 0, fixed_abs, tag = 'sflag constant byte address 0x0 - dummy sync flag']
  #allocation13 [shape = 's32[]', space=sflag, size = 0x4, offset = 0, fixed_abs, tag = 'sflag constant byte address 0x0 - dummy sync flag']
  #allocation14 [shape = 's32[]', space=sflag, size = 0x4, offset = 0, fixed_abs, tag = 'sflag constant byte address 0x0 - dummy sync flag']
  #allocation15 [shape = 's32[]', space=sflag, size = 0x4, offset = 0, fixed_abs, tag = 'sflag constant byte address 0x0 - dummy sync flag']
  #allocation16 [shape = 's32[]', space=sflag, size = 0x4, offset = 0, fixed_abs, tag = 'sflag constant byte address 0x0 - dummy sync flag']
  #allocation17 [shape = 's32[]', space=sflag, size = 0x4, offset = 0, fixed_abs, tag = 'sflag constant byte address 0x0 - dummy sync flag']
  #allocation18 [shape = 's32[]', space=sflag, size = 0x4, offset = 0, fixed_abs, tag = 'sflag constant byte address 0x0 - dummy sync flag']
  #allocation19 [shape = 's32[]', space=sflag, size = 0x4, offset = 0, fixed_abs, tag = 'sflag constant byte address 0x0 - dummy sync flag']
  #allocation20 [shape = 's32[]', space=sflag, size = 0x4, offset = 0, fixed_abs, tag = 'sflag constant byte address 0x0 - dummy sync flag']
  #allocation21 [shape = 's32[]', space=sflag, size = 0x4, offset = 0, fixed_abs, tag = 'sflag constant byte address 0x0 - dummy sync flag']
  %s0 = inlined_call_operand.vmem [shape: bf16[8,8,384], index: 0, kind: input, shape index: {}]
  %s1 = inlined_call_operand.vmem [shape: f32[8,128], index: 1, kind: input, shape index: {}]
  %s2 = inlined_call_operand.vmem [shape: bf16[128,384], index: 2, kind: input, shape index: {}]
  %s3 = inlined_call_operand.vmem [shape: f32[1,128], index: 3, kind: input, shape index: {}]
  %s4 = inlined_call_operand.vmem [shape: bf16[8,8,128], index: 4, kind: output, shape index: {}]
  %s5 = sld [smem:[#allocation0]]
  $region550: #{seq2seq_forward.8} parent=0
    _
  %s7 = ssub.s32 1, %s5
  %s8 = scalar_select 0, %s7, %s5
  // Predicated region
  $region2: #{seq2seq_forward.8} parent=0 // pred_check
    _
  $region3: #{seq2seq_forward.8} parent=0 // pred_check_branch
    %10 = sbr.rel (0) target = $region5
  $region4: #{seq2seq_forward.8} parent=0 // pred_region
    _
  $region5: #{seq2seq_forward.8} parent=0 // pred_fallthru
    _
  // Predicated region
  $region6: #{seq2seq_forward.8} parent=0 // pred_check
    _
  $region7: #{seq2seq_forward.8} parent=0 // pred_check_branch
    %12 = sbr.rel (0) target = $region9
  $region8: #{seq2seq_forward.8} parent=0 // pred_region
    _
  $region9: #{seq2seq_forward.8} parent=0 // pred_fallthru
    _
  // Predicated region
  $region10: #{seq2seq_forward.8} parent=0 // pred_check
    _
  $region11: #{seq2seq_forward.8} parent=0 // pred_check_branch
    %14 = sbr.rel (0) target = $region13
  $region12: #{seq2seq_forward.8} parent=0 // pred_region
    _
  $region13: #{seq2seq_forward.8} parent=0 // pred_fallthru
    _
  %v16 = vld [vmem:[%s2] sm:$0xff]
  %v17 = vld [vmem:[%s2 + $0x8] sm:$0xf]
  %v18 = vld [vmem:[%s2 + $0xc] sm:$0xff]
  %v19 = vld [vmem:[%s2 + $0x14] sm:$0xf]
  %v20 = vld [vmem:[%s2 + $0x18] sm:$0xff]
  %v21 = vld [vmem:[%s2 + $0x20] sm:$0xf]
  %v22 = vld [vmem:[%s2 + $0x24] sm:$0xff]
  %v23 = vld [vmem:[%s2 + $0x2c] sm:$0xf]
  %v24 = vld [vmem:[%s2 + $0x30] sm:$0xff]
  %v25 = vld [vmem:[%s2 + $0x38] sm:$0xf]
  %v26 = vld [vmem:[%s2 + $0x3c] sm:$0xff]
  %v27 = vld [vmem:[%s2 + $0x44] sm:$0xf]
  %v28 = vld [vmem:[%s2 + $0x48] sm:$0xff]
  %v29 = vld [vmem:[%s2 + $0x50] sm:$0xf]
  %v30 = vld [vmem:[%s2 + $0x54] sm:$0xff]
  %v31 = vld [vmem:[%s2 + $0x5c] sm:$0xf]
  %v32 = vld [vmem:[%s2 + $0x60] sm:$0xff]
  %v33 = vld [vmem:[%s2 + $0x68] sm:$0xf]
  %v34 = vld [vmem:[%s2 + $0x6c] sm:$0xff]
  %v35 = vld [vmem:[%s2 + $0x74] sm:$0xf]
  %v36 = vld [vmem:[%s2 + $0x78] sm:$0xff]
  %v37 = vld [vmem:[%s2 + $0x80] sm:$0xf]
  %v38 = vld [vmem:[%s2 + $0x84] sm:$0xff]
  %v39 = vld [vmem:[%s2 + $0x8c] sm:$0xf]
  %v40 = vld [vmem:[%s2 + $0x90] sm:$0xff]
  %v41 = vld [vmem:[%s2 + $0x98] sm:$0xf]
  %v42 = vld [vmem:[%s2 + $0x9c] sm:$0xff]
  %v43 = vld [vmem:[%s2 + $0xa4] sm:$0xf]
  %v44 = vld [vmem:[%s2 + $0xa8] sm:$0xff]
  %v45 = vld [vmem:[%s2 + $0xb0] sm:$0xf]
  %v46 = vld [vmem:[%s2 + $0xb4] sm:$0xff]
  %v47 = vld [vmem:[%s2 + $0xbc] sm:$0xf]
  %v48 = vld [vmem:[%s3] sm:$0x1]
  %p50 = scmp.lt.u32.totalorder 12, 8
  %p51 = pneg %p50
  // Predicated region
  $region14: #{seq2seq_forward.8} parent=0 // pred_check
    _
  $region15: #{seq2seq_forward.8} parent=0 // pred_check_branch
    %53 = sbr.rel (%p50) target = $region17
  $region16: #{seq2seq_forward.8} parent=0 // pred_region
    %s68 = sand.u32 12, 7
    %p69 = scmp.eq.s32.totalorder %s68, 0
    %p70 = pneg %p69
    // Predicated region
    $region29: #{seq2seq_forward.8} parent=16 // pred_check
      _
    $region30: #{seq2seq_forward.8} parent=16 // pred_check_branch
      %72 = sbr.rel (%p69) target = $region32
    $region31: #{seq2seq_forward.8} parent=16 // pred_region
      %s73 = sand.u32 12, 7
      %s74 = ssub.s32 12, %s73
      %s75 = scalar_lea.vmem %s0, %s74
      %s76 = ssub.s32 12, %s73
      %s77 = scalar_lea.vmem [#allocation2], %s76
      loop: start=0, step=1, limit=1
      $region33: #{seq2seq_forward.8} parent=31 // loop_pre_header
        _
      $region34: #{seq2seq_forward.8} parent=31 // loop_header
        %s79 = sphi 0, %s83
        %p80 = scmp.ge.s32.totalorder %s79, 1
        %s84 = sphi %s0, %s0
        %s85 = sphi [#allocation2], [#allocation2]
      $region35: #{seq2seq_forward.8} parent=31 // loop_header_branch
        %82 = sbr.rel (%p80) target = $region39
      $region36: #{seq2seq_forward.8} parent=31 // loop_body
        %v86 = vld [vmem:[%s84] sm:$0xff]
        %87 = vst [vmem:[%s85] sm:$0xff] %v86
      $region37: #{seq2seq_forward.8} parent=31 // loop_footer
        %s83 = sadd.s32 1, %s79
      $region38: #{seq2seq_forward.8} parent=31 // loop_footer_branch
        %78 = sbr.rel target = $region34
      $region39: #{seq2seq_forward.8} parent=31 // loop_exit
        _
      %s88 = sshllo.u32 0, %s73
      loop: start=0, step=1, limit=1
      $region40: #{seq2seq_forward.8} parent=31 // loop_pre_header
        _
      $region41: #{seq2seq_forward.8} parent=31 // loop_header
        %s90 = sphi 0, %s94
        %p91 = scmp.ge.s32.totalorder %s90, 1
        %s95 = sphi %s75, %s75
        %s96 = sphi %s77, %s77
      $region42: #{seq2seq_forward.8} parent=31 // loop_header_branch
        %93 = sbr.rel (%p91) target = $region46
      $region43: #{seq2seq_forward.8} parent=31 // loop_body
        %v97 = vld [vmem:[%s95] sm:%s88]
        %98 = vst [vmem:[%s96] sm:%s88] %v97
      $region44: #{seq2seq_forward.8} parent=31 // loop_footer
        %s94 = sadd.s32 1, %s90
      $region45: #{seq2seq_forward.8} parent=31 // loop_footer_branch
        %89 = sbr.rel target = $region41
      $region46: #{seq2seq_forward.8} parent=31 // loop_exit
        _
    $region32: #{seq2seq_forward.8} parent=16 // pred_fallthru
      _
  $region17: #{seq2seq_forward.8} parent=0 // pred_fallthru
    _
  // Predicated region
  $region18: #{seq2seq_forward.8} parent=0 // pred_check
    %p54 = pneg %p50
  $region19: #{seq2seq_forward.8} parent=0 // pred_check_branch
    %56 = sbr.rel (%p54) target = $region21
  $region20: #{seq2seq_forward.8} parent=0 // pred_region
    %s57 = sshllo.u32 0, 12
    loop: start=0, step=1, limit=1
    $region22: #{seq2seq_forward.8} parent=20 // loop_pre_header
      _
    $region23: #{seq2seq_forward.8} parent=20 // loop_header
      %s59 = sphi 0, %s63
      %p60 = scmp.ge.s32.totalorder %s59, 1
      %s64 = sphi %s0, %s0
      %s65 = sphi [#allocation2], [#allocation2]
    $region24: #{seq2seq_forward.8} parent=20 // loop_header_branch
      %62 = sbr.rel (%p60) target = $region28
    $region25: #{seq2seq_forward.8} parent=20 // loop_body
      %v66 = vld [vmem:[%s64] sm:%s57]
      %67 = vst [vmem:[%s65] sm:%s57] %v66
    $region26: #{seq2seq_forward.8} parent=20 // loop_footer
      %s63 = sadd.s32 1, %s59
    $region27: #{seq2seq_forward.8} parent=20 // loop_footer_branch
      %58 = sbr.rel target = $region23
    $region28: #{seq2seq_forward.8} parent=20 // loop_exit
      _
  $region21: #{seq2seq_forward.8} parent=0 // pred_fallthru
    _
  // Predicated region
  $region47: #{seq2seq_forward.8} parent=0 // pred_check
    _
  $region48: #{seq2seq_forward.8} parent=0 // pred_check_branch
    %101 = sbr.rel (0) target = $region50
  $region49: #{seq2seq_forward.8} parent=0 // pred_region
    %102 = vsyncadd [#allocation4], 192
  $region50: #{seq2seq_forward.8} parent=0 // pred_fallthru
    _
  %v103 = vld [vmem:[%s1] sm:$0xff]
  %s104 = smul.u32 4, 1
  %s105 = smul.u32 %s104, 3
  %s106 = sshll.u32 %s105, 4
  %107 = dma.done [#allocation4], %s106
  %s108 = scalar_lea.vmem %s0, 12
  %s109 = scalar_lea.vmem [#allocation2], 12
  %s110 = scalar_lea.sflag [#allocation4], 1
  %p112 = scmp.lt.u32.totalorder 12, 8
  %p113 = pneg %p112
  // Predicated region
  $region51: #{seq2seq_forward.8} parent=0 // pred_check
    _
  $region52: #{seq2seq_forward.8} parent=0 // pred_check_branch
    %115 = sbr.rel (%p112) target = $region54
  $region53: #{seq2seq_forward.8} parent=0 // pred_region
    %s130 = sand.u32 12, 7
    %p131 = scmp.eq.s32.totalorder %s130, 0
    %p132 = pneg %p131
    // Predicated region
    $region66: #{seq2seq_forward.8} parent=53 // pred_check
      _
    $region67: #{seq2seq_forward.8} parent=53 // pred_check_branch
      %134 = sbr.rel (%p131) target = $region69
    $region68: #{seq2seq_forward.8} parent=53 // pred_region
      %s135 = sand.u32 12, 7
      %s136 = ssub.s32 12, %s135
      %s137 = scalar_lea.vmem %s108, %s136
      %s138 = ssub.s32 12, %s135
      %s139 = scalar_lea.vmem %s109, %s138 [#allocation2]
      loop: start=0, step=1, limit=1
      $region70: #{seq2seq_forward.8} parent=68 // loop_pre_header
        _
      $region71: #{seq2seq_forward.8} parent=68 // loop_header
        %s141 = sphi 0, %s145
        %p142 = scmp.ge.s32.totalorder %s141, 1
        %s146 = sphi %s108, %s108
        %s147 = sphi %s109, %s109
      $region72: #{seq2seq_forward.8} parent=68 // loop_header_branch
        %144 = sbr.rel (%p142) target = $region76
      $region73: #{seq2seq_forward.8} parent=68 // loop_body
        %v148 = vld [vmem:[%s146] sm:$0xff]
        %149 = vst [vmem:[%s147] sm:$0xff] %v148
      $region74: #{seq2seq_forward.8} parent=68 // loop_footer
        %s145 = sadd.s32 1, %s141
      $region75: #{seq2seq_forward.8} parent=68 // loop_footer_branch
        %140 = sbr.rel target = $region71
      $region76: #{seq2seq_forward.8} parent=68 // loop_exit
        _
      %s150 = sshllo.u32 0, %s135
      loop: start=0, step=1, limit=1
      $region77: #{seq2seq_forward.8} parent=68 // loop_pre_header
        _
      $region78: #{seq2seq_forward.8} parent=68 // loop_header
        %s152 = sphi 0, %s156
        %p153 = scmp.ge.s32.totalorder %s152, 1
        %s157 = sphi %s137, %s137
        %s158 = sphi %s139, %s139
      $region79: #{seq2seq_forward.8} parent=68 // loop_header_branch
        %155 = sbr.rel (%p153) target = $region83
      $region80: #{seq2seq_forward.8} parent=68 // loop_body
        %v159 = vld [vmem:[%s157] sm:%s150]
        %160 = vst [vmem:[%s158] sm:%s150] %v159
      $region81: #{seq2seq_forward.8} parent=68 // loop_footer
        %s156 = sadd.s32 1, %s152
      $region82: #{seq2seq_forward.8} parent=68 // loop_footer_branch
        %151 = sbr.rel target = $region78
      $region83: #{seq2seq_forward.8} parent=68 // loop_exit
        _
    $region69: #{seq2seq_forward.8} parent=53 // pred_fallthru
      _
  $region54: #{seq2seq_forward.8} parent=0 // pred_fallthru
    _
  // Predicated region
  $region55: #{seq2seq_forward.8} parent=0 // pred_check
    %p116 = pneg %p112
  $region56: #{seq2seq_forward.8} parent=0 // pred_check_branch
    %118 = sbr.rel (%p116) target = $region58
  $region57: #{seq2seq_forward.8} parent=0 // pred_region
    %s119 = sshllo.u32 0, 12
    loop: start=0, step=1, limit=1
    $region59: #{seq2seq_forward.8} parent=57 // loop_pre_header
      _
    $region60: #{seq2seq_forward.8} parent=57 // loop_header
      %s121 = sphi 0, %s125
      %p122 = scmp.ge.s32.totalorder %s121, 1
      %s126 = sphi %s108, %s108
      %s127 = sphi %s109, %s109
    $region61: #{seq2seq_forward.8} parent=57 // loop_header_branch
      %124 = sbr.rel (%p122) target = $region65
    $region62: #{seq2seq_forward.8} parent=57 // loop_body
      %v128 = vld [vmem:[%s126] sm:%s119]
      %129 = vst [vmem:[%s127] sm:%s119] %v128
    $region63: #{seq2seq_forward.8} parent=57 // loop_footer
      %s125 = sadd.s32 1, %s121
    $region64: #{seq2seq_forward.8} parent=57 // loop_footer_branch
      %120 = sbr.rel target = $region60
    $region65: #{seq2seq_forward.8} parent=57 // loop_exit
      _
  $region58: #{seq2seq_forward.8} parent=0 // pred_fallthru
    _
  // Predicated region
  $region84: #{seq2seq_forward.8} parent=0 // pred_check
    _
  $region85: #{seq2seq_forward.8} parent=0 // pred_check_branch
    %163 = sbr.rel (0) target = $region87
  $region86: #{seq2seq_forward.8} parent=0 // pred_region
    %164 = vsyncadd %s110, 192
  $region87: #{seq2seq_forward.8} parent=0 // pred_fallthru
    _
  %v165 = vld [vmem:[#allocation2] sm:$0xff]
  %v166 = vld [vmem:[#allocation2 + $0x8] sm:$0xf]
  %v167 = vunpack.c.l.bf16 %v165
  %v168 = vunpack.c.h.bf16 %v165
  %v169 = vunpack.c.l.bf16 %v166
  %v170 = vpack.c.bf16 %v103, %v103
  %v203 = vunpack.c.l.b16 %v16
  %v204 = vunpack.c.h.b16 %v16
  %v205 = vunpack.c.l.b16 %v17
  %v206 = vunpack.c.l.b16 %v18
  %v207 = vunpack.c.h.b16 %v18
  %v208 = vunpack.c.l.b16 %v19
  %v209 = vunpack.c.l.b16 %v20
  %v210 = vunpack.c.h.b16 %v20
  %v211 = vunpack.c.l.b16 %v21
  %v212 = vunpack.c.l.b16 %v22
  %v213 = vunpack.c.h.b16 %v22
  %v214 = vunpack.c.l.b16 %v23
  %v215 = vunpack.c.l.b16 %v24
  %v216 = vunpack.c.h.b16 %v24
  %v217 = vunpack.c.l.b16 %v25
  %v218 = vunpack.c.l.b16 %v26
  %v219 = vunpack.c.h.b16 %v26
  %v220 = vunpack.c.l.b16 %v27
  %v221 = vunpack.c.l.b16 %v28
  %v222 = vunpack.c.h.b16 %v28
  %v223 = vunpack.c.l.b16 %v29
  %v224 = vunpack.c.l.b16 %v30
  %v225 = vunpack.c.h.b16 %v30
  %v226 = vunpack.c.l.b16 %v31
  %v227 = vunpack.c.l.b16 %v32
  %v228 = vunpack.c.h.b16 %v32
  %v229 = vunpack.c.l.b16 %v33
  %v230 = vunpack.c.l.b16 %v34
  %v231 = vunpack.c.h.b16 %v34
  %v232 = vunpack.c.l.b16 %v35
  %v233 = vunpack.c.l.b16 %v36
  %v234 = vunpack.c.h.b16 %v36
  %v235 = vunpack.c.l.b16 %v37
  %v236 = vunpack.c.l.b16 %v38
  %v237 = vunpack.c.h.b16 %v38
  %v238 = vunpack.c.l.b16 %v39
  %v239 = vunpack.c.l.b16 %v40
  %v240 = vunpack.c.h.b16 %v40
  %v241 = vunpack.c.l.b16 %v41
  %v242 = vunpack.c.l.b16 %v42
  %v243 = vunpack.c.h.b16 %v42
  %v244 = vunpack.c.l.b16 %v43
  %v245 = vunpack.c.l.b16 %v44
  %v246 = vunpack.c.h.b16 %v44
  %v247 = vunpack.c.l.b16 %v45
  %v248 = vunpack.c.l.b16 %v46
  %v249 = vunpack.c.h.b16 %v46
  %v250 = vunpack.c.l.b16 %v47
  %v251 = vpack.c.b16 %v206, %v203
  %v252 = vpack.c.b16 %v207, %v204
  %v253 = vpack.c.b16 %v208, %v205
  %v254 = vpack.c.b16 %v212, %v209
  %v255 = vpack.c.b16 %v213, %v210
  %v256 = vpack.c.b16 %v214, %v211
  %v257 = vpack.c.b16 %v218, %v215
  %v258 = vpack.c.b16 %v219, %v216
  %v259 = vpack.c.b16 %v220, %v217
  %v260 = vpack.c.b16 %v224, %v221
  %v261 = vpack.c.b16 %v225, %v222
  %v262 = vpack.c.b16 %v226, %v223
  %v263 = vpack.c.b16 %v230, %v227
  %v264 = vpack.c.b16 %v231, %v228
  %v265 = vpack.c.b16 %v232, %v229
  %v266 = vpack.c.b16 %v236, %v233
  %v267 = vpack.c.b16 %v237, %v234
  %v268 = vpack.c.b16 %v238, %v235
  %v269 = vpack.c.b16 %v242, %v239
  %v270 = vpack.c.b16 %v243, %v240
  %v271 = vpack.c.b16 %v244, %v241
  %v272 = vpack.c.b16 %v248, %v245
  %v273 = vpack.c.b16 %v249, %v246
  %v274 = vpack.c.b16 %v250, %v247
  %299 = vmatprep.subr.bf16.mxu0 %v252
  %300 = vmatpush1.bf16.msra.mxu0 %v251
  %301 = vmatprep.subr.bf16.mxu0 %v255
  %302 = vmatpush1.bf16.msra.mxu0 %v254
  %303 = vmatprep.subr.bf16.mxu0 %v258
  %304 = vmatpush1.bf16.msra.mxu0 %v257
  %305 = vmatprep.subr.bf16.mxu0 %v261
  %306 = vmatpush1.bf16.msra.mxu0 %v260
  %307 = vmatprep.subr.bf16.mxu0 %v264
  %308 = vmatpush1.bf16.msra.mxu0 %v263
  %309 = vmatprep.subr.bf16.mxu0 %v267
  %310 = vmatpush1.bf16.msra.mxu0 %v266
  %311 = vmatprep.subr.bf16.mxu0 %v270
  %312 = vmatpush1.bf16.msra.mxu0 %v269
  %313 = vmatprep.subr.bf16.mxu0 %v273
  %314 = vmatpush1.bf16.msra.mxu0 %v272
  %315 = vmatprep.subr.bf16.mxu0 0
  %316 = vmatpush1.bf16.msra.mxu0 0
  %317 = vmatprep.subr.bf16.mxu0 0
  %318 = vmatpush1.bf16.msra.mxu0 0
  %319 = vmatprep.subr.bf16.mxu0 0
  %320 = vmatpush1.bf16.msra.mxu0 0
  %321 = vmatprep.subr.bf16.mxu0 0
  %322 = vmatpush1.bf16.msra.mxu0 0
  %323 = vmatprep.subr.bf16.mxu0 0
  %324 = vmatpush1.bf16.msra.mxu0 0
  %325 = vmatprep.subr.bf16.mxu0 0
  %326 = vmatpush1.bf16.msra.mxu0 0
  %327 = vmatprep.subr.bf16.mxu0 0
  %328 = vmatpush1.bf16.msra.mxu0 0
  %329 = vmatprep.subr.bf16.mxu0 0
  %330 = vmatpush1.bf16.msra.mxu0 0
  %331 = vmatprep.mubr.bf16.mxu0 0
  %332 = vmatmul.mubr.bf16.gmra.mrb[0].mxu0 %v170
  %v333 = vpop.f32.mrb[0].mxu0
  %v334 = vadd.f32 0.0, %v333
  %v335 = vpop.f32.mrb[0].mxu0
  %v336 = vadd.f32 0.0, %v335
  %v337 = vpop.f32.mrb[0].mxu0
  %v338 = vpop.f32.mrb[0].mxu0
  %339 = vdwg.mxu0
  %340 = vmatprep.subr.bf16.mxu0 0
  %341 = vmatpush1.bf16.msra.mxu0 %v253
  %342 = vmatprep.subr.bf16.mxu0 0
  %343 = vmatpush1.bf16.msra.mxu0 %v256
  %344 = vmatprep.subr.bf16.mxu0 0
  %345 = vmatpush1.bf16.msra.mxu0 %v259
  %346 = vmatprep.subr.bf16.mxu0 0
  %347 = vmatpush1.bf16.msra.mxu0 %v262
  %348 = vmatprep.subr.bf16.mxu0 0
  %349 = vmatpush1.bf16.msra.mxu0 %v265
  %350 = vmatprep.subr.bf16.mxu0 0
  %351 = vmatpush1.bf16.msra.mxu0 %v268
  %352 = vmatprep.subr.bf16.mxu0 0
  %353 = vmatpush1.bf16.msra.mxu0 %v271
  %354 = vmatprep.subr.bf16.mxu0 0
  %355 = vmatpush1.bf16.msra.mxu0 %v274
  %356 = vmatprep.subr.bf16.mxu0 0
  %357 = vmatpush1.bf16.msra.mxu0 0
  %358 = vmatprep.subr.bf16.mxu0 0
  %359 = vmatpush1.bf16.msra.mxu0 0
  %360 = vmatprep.subr.bf16.mxu0 0
  %361 = vmatpush1.bf16.msra.mxu0 0
  %362 = vmatprep.subr.bf16.mxu0 0
  %363 = vmatpush1.bf16.msra.mxu0 0
  %364 = vmatprep.subr.bf16.mxu0 0
  %365 = vmatpush1.bf16.msra.mxu0 0
  %366 = vmatprep.subr.bf16.mxu0 0
  %367 = vmatpush1.bf16.msra.mxu0 0
  %368 = vmatprep.subr.bf16.mxu0 0
  %369 = vmatpush1.bf16.msra.mxu0 0
  %370 = vmatprep.subr.bf16.mxu0 0
  %371 = vmatpush1.bf16.msra.mxu0 0
  %372 = vmatprep.mubr.bf16.mxu0 0
  %373 = vmatmul.mubr.bf16.gmra.mrb[0].mxu0 %v170
  %v374 = vpop.f32.mrb[0].mxu0
  %v375 = vadd.f32 0.0, %v374
  %v376 = vpop.f32.mrb[0].mxu0
  %v377 = vpop.f32.mrb[0].mxu0
  %v378 = vpop.f32.mrb[0].mxu0
  %379 = vdwg.mxu0
  %v380 = vadd.f32 %v167, %v334
  %v381 = vxor.u32 %v380, 2147483648
  %v382 = vmul.f32 %v381, 1.442695
  %v383 = vpow.pop %v382
  %v384 = vadd.f32 %v383, 1.0
  %v385 = vrcp.pop %v384
  %v386 = vmul.f32 1.0, %v385
  %v387 = vadd.f32 %v168, %v336
  %v388 = vxor.u32 %v387, 2147483648
  %v389 = vmul.f32 %v388, 1.442695
  %v390 = vpow.pop %v389
  %v391 = vadd.f32 %v390, 1.0
  %v392 = vrcp.pop %v391
  %v393 = vmul.f32 1.0, %v392
  %v395 = vlaneseq
  %v396 = vshrl.u32 %v395, 7
  %v397 = vsub.s32 0, %v396
  %v398 = vrot.slane %v48, %v397
  %v400 = vadd.f32 %v375, %v398
  %v401 = vmul.f32 %v386, %v400
  %v402 = vadd.f32 %v169, %v401
  %v403 = vtanh.pop %v402
  %v404 = vsub.f32 1.0, %v393
  %v405 = vmul.f32 %v404, %v403
  %v406 = vmul.f32 %v393, %v103
  %v407 = vadd.f32 %v405, %v406
  %v408 = vpack.c.bf16 %v407, %v407
  %409 = vst [vmem:[#allocation3] sm:$0xf] %v408
  %p411 = scmp.lt.u32.totalorder 4, 8
  %p412 = pneg %p411
  // Predicated region
  $region88: #{seq2seq_forward.8} parent=0 // pred_check
    _
  $region89: #{seq2seq_forward.8} parent=0 // pred_check_branch
    %414 = sbr.rel (%p411) target = $region91
  $region90: #{seq2seq_forward.8} parent=0 // pred_region
    %s429 = sand.u32 4, 7
    %p430 = scmp.eq.s32.totalorder %s429, 0
    %p431 = pneg %p430
    // Predicated region
    $region103: #{seq2seq_forward.8} parent=90 // pred_check
      _
    $region104: #{seq2seq_forward.8} parent=90 // pred_check_branch
      %433 = sbr.rel (%p430) target = $region106
    $region105: #{seq2seq_forward.8} parent=90 // pred_region
      %s434 = sand.u32 4, 7
      %s435 = ssub.s32 4, %s434
      %s436 = scalar_lea.vmem [#allocation3], %s435
      %s437 = ssub.s32 4, %s434
      %s438 = scalar_lea.vmem %s4, %s437
      %s439 = sshllo.u32 0, %s434
      loop: start=0, step=1, limit=1
      $region107: #{seq2seq_forward.8} parent=105 // loop_pre_header
        _
      $region108: #{seq2seq_forward.8} parent=105 // loop_header
        %s441 = sphi 0, %s445
        %p442 = scmp.ge.s32.totalorder %s441, 1
        %s446 = sphi %s436, %s436
        %s447 = sphi %s438, %s438
      $region109: #{seq2seq_forward.8} parent=105 // loop_header_branch
        %444 = sbr.rel (%p442) target = $region113
      $region110: #{seq2seq_forward.8} parent=105 // loop_body
        %v448 = vld [vmem:[%s446] sm:%s439]
        %449 = vst [vmem:[%s447] sm:%s439] %v448
      $region111: #{seq2seq_forward.8} parent=105 // loop_footer
        %s445 = sadd.s32 1, %s441
      $region112: #{seq2seq_forward.8} parent=105 // loop_footer_branch
        %440 = sbr.rel target = $region108
      $region113: #{seq2seq_forward.8} parent=105 // loop_exit
        _
    $region106: #{seq2seq_forward.8} parent=90 // pred_fallthru
      _
  $region91: #{seq2seq_forward.8} parent=0 // pred_fallthru
    _
  // Predicated region
  $region92: #{seq2seq_forward.8} parent=0 // pred_check
    %p415 = pneg %p411
  $region93: #{seq2seq_forward.8} parent=0 // pred_check_branch
    %417 = sbr.rel (%p415) target = $region95
  $region94: #{seq2seq_forward.8} parent=0 // pred_region
    %s418 = sshllo.u32 0, 4
    loop: start=0, step=1, limit=1
    $region96: #{seq2seq_forward.8} parent=94 // loop_pre_header
      _
    $region97: #{seq2seq_forward.8} parent=94 // loop_header
      %s420 = sphi 0, %s424
      %p421 = scmp.ge.s32.totalorder %s420, 1
      %s425 = sphi [#allocation3], [#allocation3]
      %s426 = sphi %s4, %s4
    $region98: #{seq2seq_forward.8} parent=94 // loop_header_branch
      %423 = sbr.rel (%p421) target = $region102
    $region99: #{seq2seq_forward.8} parent=94 // loop_body
      %v427 = vld [vmem:[%s425] sm:%s418]
      %428 = vst [vmem:[%s426] sm:%s418] %v427
    $region100: #{seq2seq_forward.8} parent=94 // loop_footer
      %s424 = sadd.s32 1, %s420
    $region101: #{seq2seq_forward.8} parent=94 // loop_footer_branch
      %419 = sbr.rel target = $region97
    $region102: #{seq2seq_forward.8} parent=94 // loop_exit
      _
  $region95: #{seq2seq_forward.8} parent=0 // pred_fallthru
    _
  // Predicated region
  $region114: #{seq2seq_forward.8} parent=0 // pred_check
    _
  $region115: #{seq2seq_forward.8} parent=0 // pred_check_branch
    %452 = sbr.rel (0) target = $region117
  $region116: #{seq2seq_forward.8} parent=0 // pred_region
    %453 = vsyncadd [#allocation5], 64
  $region117: #{seq2seq_forward.8} parent=0 // pred_fallthru
    _
  %s454 = sshll.u32 %s105, 4
  %455 = dma.done %s110, %s454
  %s456 = scalar_lea.vmem %s0, 24
  %p458 = scmp.lt.u32.totalorder 12, 8
  %p459 = pneg %p458
  // Predicated region
  $region118: #{seq2seq_forward.8} parent=0 // pred_check
    _
  $region119: #{seq2seq_forward.8} parent=0 // pred_check_branch
    %461 = sbr.rel (%p458) target = $region121
  $region120: #{seq2seq_forward.8} parent=0 // pred_region
    %s476 = sand.u32 12, 7
    %p477 = scmp.eq.s32.totalorder %s476, 0
    %p478 = pneg %p477
    // Predicated region
    $region133: #{seq2seq_forward.8} parent=120 // pred_check
      _
    $region134: #{seq2seq_forward.8} parent=120 // pred_check_branch
      %480 = sbr.rel (%p477) target = $region136
    $region135: #{seq2seq_forward.8} parent=120 // pred_region
      %s481 = sand.u32 12, 7
      %s482 = ssub.s32 12, %s481
      %s483 = scalar_lea.vmem %s456, %s482
      %s484 = ssub.s32 12, %s481
      %s485 = scalar_lea.vmem [#allocation2], %s484
      loop: start=0, step=1, limit=1
      $region137: #{seq2seq_forward.8} parent=135 // loop_pre_header
        _
      $region138: #{seq2seq_forward.8} parent=135 // loop_header
        %s487 = sphi 0, %s491
        %p488 = scmp.ge.s32.totalorder %s487, 1
        %s492 = sphi %s456, %s456
        %s493 = sphi [#allocation2], [#allocation2]
      $region139: #{seq2seq_forward.8} parent=135 // loop_header_branch
        %490 = sbr.rel (%p488) target = $region143
      $region140: #{seq2seq_forward.8} parent=135 // loop_body
        %v494 = vld [vmem:[%s492] sm:$0xff]
        %495 = vst [vmem:[%s493] sm:$0xff] %v494
      $region141: #{seq2seq_forward.8} parent=135 // loop_footer
        %s491 = sadd.s32 1, %s487
      $region142: #{seq2seq_forward.8} parent=135 // loop_footer_branch
        %486 = sbr.rel target = $region138
      $region143: #{seq2seq_forward.8} parent=135 // loop_exit
        _
      %s496 = sshllo.u32 0, %s481
      loop: start=0, step=1, limit=1
      $region144: #{seq2seq_forward.8} parent=135 // loop_pre_header
        _
      $region145: #{seq2seq_forward.8} parent=135 // loop_header
        %s498 = sphi 0, %s502
        %p499 = scmp.ge.s32.totalorder %s498, 1
        %s503 = sphi %s483, %s483
        %s504 = sphi %s485, %s485
      $region146: #{seq2seq_forward.8} parent=135 // loop_header_branch
        %501 = sbr.rel (%p499) target = $region150
      $region147: #{seq2seq_forward.8} parent=135 // loop_body
        %v505 = vld [vmem:[%s503] sm:%s496]
        %506 = vst [vmem:[%s504] sm:%s496] %v505
      $region148: #{seq2seq_forward.8} parent=135 // loop_footer
        %s502 = sadd.s32 1, %s498
      $region149: #{seq2seq_forward.8} parent=135 // loop_footer_branch
        %497 = sbr.rel target = $region145
      $region150: #{seq2seq_forward.8} parent=135 // loop_exit
        _
    $region136: #{seq2seq_forward.8} parent=120 // pred_fallthru
      _
  $region121: #{seq2seq_forward.8} parent=0 // pred_fallthru
    _
  // Predicated region
  $region122: #{seq2seq_forward.8} parent=0 // pred_check
    %p462 = pneg %p458
  $region123: #{seq2seq_forward.8} parent=0 // pred_check_branch
    %464 = sbr.rel (%p462) target = $region125
  $region124: #{seq2seq_forward.8} parent=0 // pred_region
    %s465 = sshllo.u32 0, 12
    loop: start=0, step=1, limit=1
    $region126: #{seq2seq_forward.8} parent=124 // loop_pre_header
      _
    $region127: #{seq2seq_forward.8} parent=124 // loop_header
      %s467 = sphi 0, %s471
      %p468 = scmp.ge.s32.totalorder %s467, 1
      %s472 = sphi %s456, %s456
      %s473 = sphi [#allocation2], [#allocation2]
    $region128: #{seq2seq_forward.8} parent=124 // loop_header_branch
      %470 = sbr.rel (%p468) target = $region132
    $region129: #{seq2seq_forward.8} parent=124 // loop_body
      %v474 = vld [vmem:[%s472] sm:%s465]
      %475 = vst [vmem:[%s473] sm:%s465] %v474
    $region130: #{seq2seq_forward.8} parent=124 // loop_footer
      %s471 = sadd.s32 1, %s467
    $region131: #{seq2seq_forward.8} parent=124 // loop_footer_branch
      %466 = sbr.rel target = $region127
    $region132: #{seq2seq_forward.8} parent=124 // loop_exit
      _
  $region125: #{seq2seq_forward.8} parent=0 // pred_fallthru
    _
  // Predicated region
  $region151: #{seq2seq_forward.8} parent=0 // pred_check
    _
  $region152: #{seq2seq_forward.8} parent=0 // pred_check_branch
    %509 = sbr.rel (0) target = $region154
  $region153: #{seq2seq_forward.8} parent=0 // pred_region
    %510 = vsyncadd [#allocation4], 192
  $region154: #{seq2seq_forward.8} parent=0 // pred_fallthru
    _
  %v511 = vld [vmem:[%s109] sm:$0xff]
  %v512 = vld [vmem:[%s109 + $0x8] sm:$0xf]
  %v513 = vunpack.c.l.bf16 %v511
  %v514 = vunpack.c.h.bf16 %v511
  %v515 = vunpack.c.l.bf16 %v512
  %516 = vmatprep.subr.bf16.mxu0 %v252
  %517 = vmatpush1.bf16.msra.mxu0 %v251
  %518 = vmatprep.subr.bf16.mxu0 %v255
  %519 = vmatpush1.bf16.msra.mxu0 %v254
  %520 = vmatprep.subr.bf16.mxu0 %v258
  %521 = vmatpush1.bf16.msra.mxu0 %v257
  %522 = vmatprep.subr.bf16.mxu0 %v261
  %523 = vmatpush1.bf16.msra.mxu0 %v260
  %524 = vmatprep.subr.bf16.mxu0 %v264
  %525 = vmatpush1.bf16.msra.mxu0 %v263
  %526 = vmatprep.subr.bf16.mxu0 %v267
  %527 = vmatpush1.bf16.msra.mxu0 %v266
  %528 = vmatprep.subr.bf16.mxu0 %v270
  %529 = vmatpush1.bf16.msra.mxu0 %v269
  %530 = vmatprep.subr.bf16.mxu0 %v273
  %531 = vmatpush1.bf16.msra.mxu0 %v272
  %532 = vmatprep.subr.bf16.mxu0 0
  %533 = vmatpush1.bf16.msra.mxu0 0
  %534 = vmatprep.subr.bf16.mxu0 0
  %535 = vmatpush1.bf16.msra.mxu0 0
  %536 = vmatprep.subr.bf16.mxu0 0
  %537 = vmatpush1.bf16.msra.mxu0 0
  %538 = vmatprep.subr.bf16.mxu0 0
  %539 = vmatpush1.bf16.msra.mxu0 0
  %540 = vmatprep.subr.bf16.mxu0 0
  %541 = vmatpush1.bf16.msra.mxu0 0
  %542 = vmatprep.subr.bf16.mxu0 0
  %543 = vmatpush1.bf16.msra.mxu0 0
  %544 = vmatprep.subr.bf16.mxu0 0
  %545 = vmatpush1.bf16.msra.mxu0 0
  %546 = vmatprep.subr.bf16.mxu0 0
  %547 = vmatpush1.bf16.msra.mxu0 0
  %548 = vmatprep.mubr.bf16.mxu0 0
  %549 = vmatmul.mubr.bf16.gmra.mrb[0].mxu0 %v408
  %v550 = vpop.f32.mrb[0].mxu0
  %v551 = vadd.f32 0.0, %v550
  %v552 = vpop.f32.mrb[0].mxu0
  %v553 = vadd.f32 0.0, %v552
  %v554 = vpop.f32.mrb[0].mxu0
  %v555 = vpop.f32.mrb[0].mxu0
  %556 = vdwg.mxu0
  %557 = vmatprep.subr.bf16.mxu0 0
  %558 = vmatpush1.bf16.msra.mxu0 %v253
  %559 = vmatprep.subr.bf16.mxu0 0
  %560 = vmatpush1.bf16.msra.mxu0 %v256
  %561 = vmatprep.subr.bf16.mxu0 0
  %562 = vmatpush1.bf16.msra.mxu0 %v259
  %563 = vmatprep.subr.bf16.mxu0 0
  %564 = vmatpush1.bf16.msra.mxu0 %v262
  %565 = vmatprep.subr.bf16.mxu0 0
  %566 = vmatpush1.bf16.msra.mxu0 %v265
  %567 = vmatprep.subr.bf16.mxu0 0
  %568 = vmatpush1.bf16.msra.mxu0 %v268
  %569 = vmatprep.subr.bf16.mxu0 0
  %570 = vmatpush1.bf16.msra.mxu0 %v271
  %571 = vmatprep.subr.bf16.mxu0 0
  %572 = vmatpush1.bf16.msra.mxu0 %v274
  %573 = vmatprep.subr.bf16.mxu0 0
  %574 = vmatpush1.bf16.msra.mxu0 0
  %575 = vmatprep.subr.bf16.mxu0 0
  %576 = vmatpush1.bf16.msra.mxu0 0
  %577 = vmatprep.subr.bf16.mxu0 0
  %578 = vmatpush1.bf16.msra.mxu0 0
  %579 = vmatprep.subr.bf16.mxu0 0
  %580 = vmatpush1.bf16.msra.mxu0 0
  %581 = vmatprep.subr.bf16.mxu0 0
  %582 = vmatpush1.bf16.msra.mxu0 0
  %583 = vmatprep.subr.bf16.mxu0 0
  %584 = vmatpush1.bf16.msra.mxu0 0
  %585 = vmatprep.subr.bf16.mxu0 0
  %586 = vmatpush1.bf16.msra.mxu0 0
  %587 = vmatprep.subr.bf16.mxu0 0
  %588 = vmatpush1.bf16.msra.mxu0 0
  %589 = vmatprep.mubr.bf16.mxu0 0
  %590 = vmatmul.mubr.bf16.gmra.mrb[0].mxu0 %v408
  %v591 = vpop.f32.mrb[0].mxu0
  %v592 = vadd.f32 0.0, %v591
  %v593 = vpop.f32.mrb[0].mxu0
  %v594 = vpop.f32.mrb[0].mxu0
  %v595 = vpop.f32.mrb[0].mxu0
  %596 = vdwg.mxu0
  %v597 = vadd.f32 %v513, %v551
  %v598 = vxor.u32 %v597, 2147483648
  %v599 = vmul.f32 %v598, 1.442695
  %v600 = vpow.pop %v599
  %v601 = vadd.f32 %v600, 1.0
  %v602 = vrcp.pop %v601
  %v603 = vmul.f32 1.0, %v602
  %v604 = vadd.f32 %v514, %v553
  %v605 = vxor.u32 %v604, 2147483648
  %v606 = vmul.f32 %v605, 1.442695
  %v607 = vpow.pop %v606
  %v608 = vadd.f32 %v607, 1.0
  %v609 = vrcp.pop %v608
  %v610 = vmul.f32 1.0, %v609
  %v611 = vadd.f32 %v592, %v398
  %v612 = vmul.f32 %v603, %v611
  %v613 = vadd.f32 %v515, %v612
  %v614 = vtanh.pop %v613
  %v615 = vsub.f32 1.0, %v610
  %v616 = vmul.f32 %v615, %v614
  %v617 = vmul.f32 %v610, %v407
  %v618 = vadd.f32 %v616, %v617
  %v619 = vpack.c.bf16 %v618, %v618
  %s620 = scalar_lea.vmem [#allocation3], 4
  %621 = vst [vmem:[%s620] sm:$0xf] %v619
  %s622 = scalar_lea.vmem %s4, 4
  %s623 = scalar_lea.sflag [#allocation5], 1
  %p625 = scmp.lt.u32.totalorder 4, 8
  %p626 = pneg %p625
  // Predicated region
  $region155: #{seq2seq_forward.8} parent=0 // pred_check
    _
  $region156: #{seq2seq_forward.8} parent=0 // pred_check_branch
    %628 = sbr.rel (%p625) target = $region158
  $region157: #{seq2seq_forward.8} parent=0 // pred_region
    %s643 = sand.u32 4, 7
    %p644 = scmp.eq.s32.totalorder %s643, 0
    %p645 = pneg %p644
    // Predicated region
    $region170: #{seq2seq_forward.8} parent=157 // pred_check
      _
    $region171: #{seq2seq_forward.8} parent=157 // pred_check_branch
      %647 = sbr.rel (%p644) target = $region173
    $region172: #{seq2seq_forward.8} parent=157 // pred_region
      %s648 = sand.u32 4, 7
      %s649 = ssub.s32 4, %s648
      %s650 = scalar_lea.vmem %s620, %s649 [#allocation3]
      %s651 = ssub.s32 4, %s648
      %s652 = scalar_lea.vmem %s622, %s651
      %s653 = sshllo.u32 0, %s648
      loop: start=0, step=1, limit=1
      $region174: #{seq2seq_forward.8} parent=172 // loop_pre_header
        _
      $region175: #{seq2seq_forward.8} parent=172 // loop_header
        %s655 = sphi 0, %s659
        %p656 = scmp.ge.s32.totalorder %s655, 1
        %s660 = sphi %s650, %s650
        %s661 = sphi %s652, %s652
      $region176: #{seq2seq_forward.8} parent=172 // loop_header_branch
        %658 = sbr.rel (%p656) target = $region180
      $region177: #{seq2seq_forward.8} parent=172 // loop_body
        %v662 = vld [vmem:[%s660] sm:%s653]
        %663 = vst [vmem:[%s661] sm:%s653] %v662
      $region178: #{seq2seq_forward.8} parent=172 // loop_footer
        %s659 = sadd.s32 1, %s655
      $region179: #{seq2seq_forward.8} parent=172 // loop_footer_branch
        %654 = sbr.rel target = $region175
      $region180: #{seq2seq_forward.8} parent=172 // loop_exit
        _
    $region173: #{seq2seq_forward.8} parent=157 // pred_fallthru
      _
  $region158: #{seq2seq_forward.8} parent=0 // pred_fallthru
    _
  // Predicated region
  $region159: #{seq2seq_forward.8} parent=0 // pred_check
    %p629 = pneg %p625
  $region160: #{seq2seq_forward.8} parent=0 // pred_check_branch
    %631 = sbr.rel (%p629) target = $region162
  $region161: #{seq2seq_forward.8} parent=0 // pred_region
    %s632 = sshllo.u32 0, 4
    loop: start=0, step=1, limit=1
    $region163: #{seq2seq_forward.8} parent=161 // loop_pre_header
      _
    $region164: #{seq2seq_forward.8} parent=161 // loop_header
      %s634 = sphi 0, %s638
      %p635 = scmp.ge.s32.totalorder %s634, 1
      %s639 = sphi %s620, %s620
      %s640 = sphi %s622, %s622
    $region165: #{seq2seq_forward.8} parent=161 // loop_header_branch
      %637 = sbr.rel (%p635) target = $region169
    $region166: #{seq2seq_forward.8} parent=161 // loop_body
      %v641 = vld [vmem:[%s639] sm:%s632]
      %642 = vst [vmem:[%s640] sm:%s632] %v641
    $region167: #{seq2seq_forward.8} parent=161 // loop_footer
      %s638 = sadd.s32 1, %s634
    $region168: #{seq2seq_forward.8} parent=161 // loop_footer_branch
      %633 = sbr.rel target = $region164
    $region169: #{seq2seq_forward.8} parent=161 // loop_exit
      _
  $region162: #{seq2seq_forward.8} parent=0 // pred_fallthru
    _
  // Predicated region
  $region181: #{seq2seq_forward.8} parent=0 // pred_check
    _
  $region182: #{seq2seq_forward.8} parent=0 // pred_check_branch
    %666 = sbr.rel (0) target = $region184
  $region183: #{seq2seq_forward.8} parent=0 // pred_region
    %667 = vsyncadd %s623, 64
  $region184: #{seq2seq_forward.8} parent=0 // pred_fallthru
    _
  %s668 = sshll.u32 %s105, 4
  %669 = dma.done [#allocation4], %s668
  %s670 = scalar_lea.vmem %s0, 36
  %p672 = scmp.lt.u32.totalorder 12, 8
  %p673 = pneg %p672
  // Predicated region
  $region185: #{seq2seq_forward.8} parent=0 // pred_check
    _
  $region186: #{seq2seq_forward.8} parent=0 // pred_check_branch
    %675 = sbr.rel (%p672) target = $region188
  $region187: #{seq2seq_forward.8} parent=0 // pred_region
    %s690 = sand.u32 12, 7
    %p691 = scmp.eq.s32.totalorder %s690, 0
    %p692 = pneg %p691
    // Predicated region
    $region200: #{seq2seq_forward.8} parent=187 // pred_check
      _
    $region201: #{seq2seq_forward.8} parent=187 // pred_check_branch
      %694 = sbr.rel (%p691) target = $region203
    $region202: #{seq2seq_forward.8} parent=187 // pred_region
      %s695 = sand.u32 12, 7
      %s696 = ssub.s32 12, %s695
      %s697 = scalar_lea.vmem %s670, %s696
      %s698 = ssub.s32 12, %s695
      %s699 = scalar_lea.vmem %s109, %s698 [#allocation2]
      loop: start=0, step=1, limit=1
      $region204: #{seq2seq_forward.8} parent=202 // loop_pre_header
        _
      $region205: #{seq2seq_forward.8} parent=202 // loop_header
        %s701 = sphi 0, %s705
        %p702 = scmp.ge.s32.totalorder %s701, 1
        %s706 = sphi %s670, %s670
        %s707 = sphi %s109, %s109
      $region206: #{seq2seq_forward.8} parent=202 // loop_header_branch
        %704 = sbr.rel (%p702) target = $region210
      $region207: #{seq2seq_forward.8} parent=202 // loop_body
        %v708 = vld [vmem:[%s706] sm:$0xff]
        %709 = vst [vmem:[%s707] sm:$0xff] %v708
      $region208: #{seq2seq_forward.8} parent=202 // loop_footer
        %s705 = sadd.s32 1, %s701
      $region209: #{seq2seq_forward.8} parent=202 // loop_footer_branch
        %700 = sbr.rel target = $region205
      $region210: #{seq2seq_forward.8} parent=202 // loop_exit
        _
      %s710 = sshllo.u32 0, %s695
      loop: start=0, step=1, limit=1
      $region211: #{seq2seq_forward.8} parent=202 // loop_pre_header
        _
      $region212: #{seq2seq_forward.8} parent=202 // loop_header
        %s712 = sphi 0, %s716
        %p713 = scmp.ge.s32.totalorder %s712, 1
        %s717 = sphi %s697, %s697
        %s718 = sphi %s699, %s699
      $region213: #{seq2seq_forward.8} parent=202 // loop_header_branch
        %715 = sbr.rel (%p713) target = $region217
      $region214: #{seq2seq_forward.8} parent=202 // loop_body
        %v719 = vld [vmem:[%s717] sm:%s710]
        %720 = vst [vmem:[%s718] sm:%s710] %v719
      $region215: #{seq2seq_forward.8} parent=202 // loop_footer
        %s716 = sadd.s32 1, %s712
      $region216: #{seq2seq_forward.8} parent=202 // loop_footer_branch
        %711 = sbr.rel target = $region212
      $region217: #{seq2seq_forward.8} parent=202 // loop_exit
        _
    $region203: #{seq2seq_forward.8} parent=187 // pred_fallthru
      _
  $region188: #{seq2seq_forward.8} parent=0 // pred_fallthru
    _
  // Predicated region
  $region189: #{seq2seq_forward.8} parent=0 // pred_check
    %p676 = pneg %p672
  $region190: #{seq2seq_forward.8} parent=0 // pred_check_branch
    %678 = sbr.rel (%p676) target = $region192
  $region191: #{seq2seq_forward.8} parent=0 // pred_region
    %s679 = sshllo.u32 0, 12
    loop: start=0, step=1, limit=1
    $region193: #{seq2seq_forward.8} parent=191 // loop_pre_header
      _
    $region194: #{seq2seq_forward.8} parent=191 // loop_header
      %s681 = sphi 0, %s685
      %p682 = scmp.ge.s32.totalorder %s681, 1
      %s686 = sphi %s670, %s670
      %s687 = sphi %s109, %s109
    $region195: #{seq2seq_forward.8} parent=191 // loop_header_branch
      %684 = sbr.rel (%p682) target = $region199
    $region196: #{seq2seq_forward.8} parent=191 // loop_body
      %v688 = vld [vmem:[%s686] sm:%s679]
      %689 = vst [vmem:[%s687] sm:%s679] %v688
    $region197: #{seq2seq_forward.8} parent=191 // loop_footer
      %s685 = sadd.s32 1, %s681
    $region198: #{seq2seq_forward.8} parent=191 // loop_footer_branch
      %680 = sbr.rel target = $region194
    $region199: #{seq2seq_forward.8} parent=191 // loop_exit
      _
  $region192: #{seq2seq_forward.8} parent=0 // pred_fallthru
    _
  // Predicated region
  $region218: #{seq2seq_forward.8} parent=0 // pred_check
    _
  $region219: #{seq2seq_forward.8} parent=0 // pred_check_branch
    %723 = sbr.rel (0) target = $region221
  $region220: #{seq2seq_forward.8} parent=0 // pred_region
    %724 = vsyncadd %s110, 192
  $region221: #{seq2seq_forward.8} parent=0 // pred_fallthru
    _
  %v725 = vld [vmem:[#allocation2] sm:$0xff]
  %v726 = vld [vmem:[#allocation2 + $0x8] sm:$0xf]
  %v727 = vunpack.c.l.bf16 %v725
  %v728 = vunpack.c.h.bf16 %v725
  %v729 = vunpack.c.l.bf16 %v726
  %730 = vmatprep.subr.bf16.mxu0 %v252
  %731 = vmatpush1.bf16.msra.mxu0 %v251
  %732 = vmatprep.subr.bf16.mxu0 %v255
  %733 = vmatpush1.bf16.msra.mxu0 %v254
  %734 = vmatprep.subr.bf16.mxu0 %v258
  %735 = vmatpush1.bf16.msra.mxu0 %v257
  %736 = vmatprep.subr.bf16.mxu0 %v261
  %737 = vmatpush1.bf16.msra.mxu0 %v260
  %738 = vmatprep.subr.bf16.mxu0 %v264
  %739 = vmatpush1.bf16.msra.mxu0 %v263
  %740 = vmatprep.subr.bf16.mxu0 %v267
  %741 = vmatpush1.bf16.msra.mxu0 %v266
  %742 = vmatprep.subr.bf16.mxu0 %v270
  %743 = vmatpush1.bf16.msra.mxu0 %v269
  %744 = vmatprep.subr.bf16.mxu0 %v273
  %745 = vmatpush1.bf16.msra.mxu0 %v272
  %746 = vmatprep.subr.bf16.mxu0 0
  %747 = vmatpush1.bf16.msra.mxu0 0
  %748 = vmatprep.subr.bf16.mxu0 0
  %749 = vmatpush1.bf16.msra.mxu0 0
  %750 = vmatprep.subr.bf16.mxu0 0
  %751 = vmatpush1.bf16.msra.mxu0 0
  %752 = vmatprep.subr.bf16.mxu0 0
  %753 = vmatpush1.bf16.msra.mxu0 0
  %754 = vmatprep.subr.bf16.mxu0 0
  %755 = vmatpush1.bf16.msra.mxu0 0
  %756 = vmatprep.subr.bf16.mxu0 0
  %757 = vmatpush1.bf16.msra.mxu0 0
  %758 = vmatprep.subr.bf16.mxu0 0
  %759 = vmatpush1.bf16.msra.mxu0 0
  %760 = vmatprep.subr.bf16.mxu0 0
  %761 = vmatpush1.bf16.msra.mxu0 0
  %762 = vmatprep.mubr.bf16.mxu0 0
  %763 = vmatmul.mubr.bf16.gmra.mrb[0].mxu0 %v619
  %v764 = vpop.f32.mrb[0].mxu0
  %v765 = vadd.f32 0.0, %v764
  %v766 = vpop.f32.mrb[0].mxu0
  %v767 = vadd.f32 0.0, %v766
  %v768 = vpop.f32.mrb[0].mxu0
  %v769 = vpop.f32.mrb[0].mxu0
  %770 = vdwg.mxu0
  %771 = vmatprep.subr.bf16.mxu0 0
  %772 = vmatpush1.bf16.msra.mxu0 %v253
  %773 = vmatprep.subr.bf16.mxu0 0
  %774 = vmatpush1.bf16.msra.mxu0 %v256
  %775 = vmatprep.subr.bf16.mxu0 0
  %776 = vmatpush1.bf16.msra.mxu0 %v259
  %777 = vmatprep.subr.bf16.mxu0 0
  %778 = vmatpush1.bf16.msra.mxu0 %v262
  %779 = vmatprep.subr.bf16.mxu0 0
  %780 = vmatpush1.bf16.msra.mxu0 %v265
  %781 = vmatprep.subr.bf16.mxu0 0
  %782 = vmatpush1.bf16.msra.mxu0 %v268
  %783 = vmatprep.subr.bf16.mxu0 0
  %784 = vmatpush1.bf16.msra.mxu0 %v271
  %785 = vmatprep.subr.bf16.mxu0 0
  %786 = vmatpush1.bf16.msra.mxu0 %v274
  %787 = vmatprep.subr.bf16.mxu0 0
  %788 = vmatpush1.bf16.msra.mxu0 0
  %789 = vmatprep.subr.bf16.mxu0 0
  %790 = vmatpush1.bf16.msra.mxu0 0
  %791 = vmatprep.subr.bf16.mxu0 0
  %792 = vmatpush1.bf16.msra.mxu0 0
  %793 = vmatprep.subr.bf16.mxu0 0
  %794 = vmatpush1.bf16.msra.mxu0 0
  %795 = vmatprep.subr.bf16.mxu0 0
  %796 = vmatpush1.bf16.msra.mxu0 0
  %797 = vmatprep.subr.bf16.mxu0 0
  %798 = vmatpush1.bf16.msra.mxu0 0
  %799 = vmatprep.subr.bf16.mxu0 0
  %800 = vmatpush1.bf16.msra.mxu0 0
  %801 = vmatprep.subr.bf16.mxu0 0
  %802 = vmatpush1.bf16.msra.mxu0 0
  %803 = vmatprep.mubr.bf16.mxu0 0
  %804 = vmatmul.mubr.bf16.gmra.mrb[0].mxu0 %v619
  %v805 = vpop.f32.mrb[0].mxu0
  %v806 = vadd.f32 0.0, %v805
  %v807 = vpop.f32.mrb[0].mxu0
  %v808 = vpop.f32.mrb[0].mxu0
  %v809 = vpop.f32.mrb[0].mxu0
  %810 = vdwg.mxu0
  %v811 = vadd.f32 %v727, %v765
  %v812 = vxor.u32 %v811, 2147483648
  %v813 = vmul.f32 %v812, 1.442695
  %v814 = vpow.pop %v813
  %v815 = vadd.f32 %v814, 1.0
  %v816 = vrcp.pop %v815
  %v817 = vmul.f32 1.0, %v816
  %v818 = vadd.f32 %v728, %v767
  %v819 = vxor.u32 %v818, 2147483648
  %v820 = vmul.f32 %v819, 1.442695
  %v821 = vpow.pop %v820
  %v822 = vadd.f32 %v821, 1.0
  %v823 = vrcp.pop %v822
  %v824 = vmul.f32 1.0, %v823
  %v825 = vadd.f32 %v806, %v398
  %v826 = vmul.f32 %v817, %v825
  %v827 = vadd.f32 %v729, %v826
  %v828 = vtanh.pop %v827
  %v829 = vsub.f32 1.0, %v824
  %v830 = vmul.f32 %v829, %v828
  %v831 = vmul.f32 %v824, %v618
  %v832 = vadd.f32 %v830, %v831
  %s833 = scalar_lea.vmem %s4, 8
  %s834 = smul.u32 %s104, 1
  %s835 = sshll.u32 %s834, 4
  %836 = dma.done [#allocation5], %s835
  %v837 = vpack.c.bf16 %v832, %v832
  %838 = vst [vmem:[#allocation3] sm:$0xf] %v837
  %p840 = scmp.lt.u32.totalorder 4, 8
  %p841 = pneg %p840
  // Predicated region
  $region222: #{seq2seq_forward.8} parent=0 // pred_check
    _
  $region223: #{seq2seq_forward.8} parent=0 // pred_check_branch
    %843 = sbr.rel (%p840) target = $region225
  $region224: #{seq2seq_forward.8} parent=0 // pred_region
    %s858 = sand.u32 4, 7
    %p859 = scmp.eq.s32.totalorder %s858, 0
    %p860 = pneg %p859
    // Predicated region
    $region237: #{seq2seq_forward.8} parent=224 // pred_check
      _
    $region238: #{seq2seq_forward.8} parent=224 // pred_check_branch
      %862 = sbr.rel (%p859) target = $region240
    $region239: #{seq2seq_forward.8} parent=224 // pred_region
      %s863 = sand.u32 4, 7
      %s864 = ssub.s32 4, %s863
      %s865 = scalar_lea.vmem [#allocation3], %s864
      %s866 = ssub.s32 4, %s863
      %s867 = scalar_lea.vmem %s833, %s866
      %s868 = sshllo.u32 0, %s863
      loop: start=0, step=1, limit=1
      $region241: #{seq2seq_forward.8} parent=239 // loop_pre_header
        _
      $region242: #{seq2seq_forward.8} parent=239 // loop_header
        %s870 = sphi 0, %s874
        %p871 = scmp.ge.s32.totalorder %s870, 1
        %s875 = sphi %s865, %s865
        %s876 = sphi %s867, %s867
      $region243: #{seq2seq_forward.8} parent=239 // loop_header_branch
        %873 = sbr.rel (%p871) target = $region247
      $region244: #{seq2seq_forward.8} parent=239 // loop_body
        %v877 = vld [vmem:[%s875] sm:%s868]
        %878 = vst [vmem:[%s876] sm:%s868] %v877
      $region245: #{seq2seq_forward.8} parent=239 // loop_footer
        %s874 = sadd.s32 1, %s870
      $region246: #{seq2seq_forward.8} parent=239 // loop_footer_branch
        %869 = sbr.rel target = $region242
      $region247: #{seq2seq_forward.8} parent=239 // loop_exit
        _
    $region240: #{seq2seq_forward.8} parent=224 // pred_fallthru
      _
  $region225: #{seq2seq_forward.8} parent=0 // pred_fallthru
    _
  // Predicated region
  $region226: #{seq2seq_forward.8} parent=0 // pred_check
    %p844 = pneg %p840
  $region227: #{seq2seq_forward.8} parent=0 // pred_check_branch
    %846 = sbr.rel (%p844) target = $region229
  $region228: #{seq2seq_forward.8} parent=0 // pred_region
    %s847 = sshllo.u32 0, 4
    loop: start=0, step=1, limit=1
    $region230: #{seq2seq_forward.8} parent=228 // loop_pre_header
      _
    $region231: #{seq2seq_forward.8} parent=228 // loop_header
      %s849 = sphi 0, %s853
      %p850 = scmp.ge.s32.totalorder %s849, 1
      %s854 = sphi [#allocation3], [#allocation3]
      %s855 = sphi %s833, %s833
    $region232: #{seq2seq_forward.8} parent=228 // loop_header_branch
      %852 = sbr.rel (%p850) target = $region236
    $region233: #{seq2seq_forward.8} parent=228 // loop_body
      %v856 = vld [vmem:[%s854] sm:%s847]
      %857 = vst [vmem:[%s855] sm:%s847] %v856
    $region234: #{seq2seq_forward.8} parent=228 // loop_footer
      %s853 = sadd.s32 1, %s849
    $region235: #{seq2seq_forward.8} parent=228 // loop_footer_branch
      %848 = sbr.rel target = $region231
    $region236: #{seq2seq_forward.8} parent=228 // loop_exit
      _
  $region229: #{seq2seq_forward.8} parent=0 // pred_fallthru
    _
  // Predicated region
  $region248: #{seq2seq_forward.8} parent=0 // pred_check
    _
  $region249: #{seq2seq_forward.8} parent=0 // pred_check_branch
    %881 = sbr.rel (0) target = $region251
  $region250: #{seq2seq_forward.8} parent=0 // pred_region
    %882 = vsyncadd [#allocation5], 64
  $region251: #{seq2seq_forward.8} parent=0 // pred_fallthru
    _
  %s883 = sshll.u32 %s105, 4
  %884 = dma.done %s110, %s883
  %s885 = scalar_lea.vmem %s0, 48
  %p887 = scmp.lt.u32.totalorder 12, 8
  %p888 = pneg %p887
  // Predicated region
  $region252: #{seq2seq_forward.8} parent=0 // pred_check
    _
  $region253: #{seq2seq_forward.8} parent=0 // pred_check_branch
    %890 = sbr.rel (%p887) target = $region255
  $region254: #{seq2seq_forward.8} parent=0 // pred_region
    %s905 = sand.u32 12, 7
    %p906 = scmp.eq.s32.totalorder %s905, 0
    %p907 = pneg %p906
    // Predicated region
    $region267: #{seq2seq_forward.8} parent=254 // pred_check
      _
    $region268: #{seq2seq_forward.8} parent=254 // pred_check_branch
      %909 = sbr.rel (%p906) target = $region270
    $region269: #{seq2seq_forward.8} parent=254 // pred_region
      %s910 = sand.u32 12, 7
      %s911 = ssub.s32 12, %s910
      %s912 = scalar_lea.vmem %s885, %s911
      %s913 = ssub.s32 12, %s910
      %s914 = scalar_lea.vmem [#allocation2], %s913
      loop: start=0, step=1, limit=1
      $region271: #{seq2seq_forward.8} parent=269 // loop_pre_header
        _
      $region272: #{seq2seq_forward.8} parent=269 // loop_header
        %s916 = sphi 0, %s920
        %p917 = scmp.ge.s32.totalorder %s916, 1
        %s921 = sphi %s885, %s885
        %s922 = sphi [#allocation2], [#allocation2]
      $region273: #{seq2seq_forward.8} parent=269 // loop_header_branch
        %919 = sbr.rel (%p917) target = $region277
      $region274: #{seq2seq_forward.8} parent=269 // loop_body
        %v923 = vld [vmem:[%s921] sm:$0xff]
        %924 = vst [vmem:[%s922] sm:$0xff] %v923
      $region275: #{seq2seq_forward.8} parent=269 // loop_footer
        %s920 = sadd.s32 1, %s916
      $region276: #{seq2seq_forward.8} parent=269 // loop_footer_branch
        %915 = sbr.rel target = $region272
      $region277: #{seq2seq_forward.8} parent=269 // loop_exit
        _
      %s925 = sshllo.u32 0, %s910
      loop: start=0, step=1, limit=1
      $region278: #{seq2seq_forward.8} parent=269 // loop_pre_header
        _
      $region279: #{seq2seq_forward.8} parent=269 // loop_header
        %s927 = sphi 0, %s931
        %p928 = scmp.ge.s32.totalorder %s927, 1
        %s932 = sphi %s912, %s912
        %s933 = sphi %s914, %s914
      $region280: #{seq2seq_forward.8} parent=269 // loop_header_branch
        %930 = sbr.rel (%p928) target = $region284
      $region281: #{seq2seq_forward.8} parent=269 // loop_body
        %v934 = vld [vmem:[%s932] sm:%s925]
        %935 = vst [vmem:[%s933] sm:%s925] %v934
      $region282: #{seq2seq_forward.8} parent=269 // loop_footer
        %s931 = sadd.s32 1, %s927
      $region283: #{seq2seq_forward.8} parent=269 // loop_footer_branch
        %926 = sbr.rel target = $region279
      $region284: #{seq2seq_forward.8} parent=269 // loop_exit
        _
    $region270: #{seq2seq_forward.8} parent=254 // pred_fallthru
      _
  $region255: #{seq2seq_forward.8} parent=0 // pred_fallthru
    _
  // Predicated region
  $region256: #{seq2seq_forward.8} parent=0 // pred_check
    %p891 = pneg %p887
  $region257: #{seq2seq_forward.8} parent=0 // pred_check_branch
    %893 = sbr.rel (%p891) target = $region259
  $region258: #{seq2seq_forward.8} parent=0 // pred_region
    %s894 = sshllo.u32 0, 12
    loop: start=0, step=1, limit=1
    $region260: #{seq2seq_forward.8} parent=258 // loop_pre_header
      _
    $region261: #{seq2seq_forward.8} parent=258 // loop_header
      %s896 = sphi 0, %s900
      %p897 = scmp.ge.s32.totalorder %s896, 1
      %s901 = sphi %s885, %s885
      %s902 = sphi [#allocation2], [#allocation2]
    $region262: #{seq2seq_forward.8} parent=258 // loop_header_branch
      %899 = sbr.rel (%p897) target = $region266
    $region263: #{seq2seq_forward.8} parent=258 // loop_body
      %v903 = vld [vmem:[%s901] sm:%s894]
      %904 = vst [vmem:[%s902] sm:%s894] %v903
    $region264: #{seq2seq_forward.8} parent=258 // loop_footer
      %s900 = sadd.s32 1, %s896
    $region265: #{seq2seq_forward.8} parent=258 // loop_footer_branch
      %895 = sbr.rel target = $region261
    $region266: #{seq2seq_forward.8} parent=258 // loop_exit
      _
  $region259: #{seq2seq_forward.8} parent=0 // pred_fallthru
    _
  // Predicated region
  $region285: #{seq2seq_forward.8} parent=0 // pred_check
    _
  $region286: #{seq2seq_forward.8} parent=0 // pred_check_branch
    %938 = sbr.rel (0) target = $region288
  $region287: #{seq2seq_forward.8} parent=0 // pred_region
    %939 = vsyncadd [#allocation4], 192
  $region288: #{seq2seq_forward.8} parent=0 // pred_fallthru
    _
  %v940 = vld [vmem:[%s109] sm:$0xff]
  %v941 = vld [vmem:[%s109 + $0x8] sm:$0xf]
  %v942 = vunpack.c.l.bf16 %v940
  %v943 = vunpack.c.h.bf16 %v940
  %v944 = vunpack.c.l.bf16 %v941
  %945 = vmatprep.subr.bf16.mxu0 %v252
  %946 = vmatpush1.bf16.msra.mxu0 %v251
  %947 = vmatprep.subr.bf16.mxu0 %v255
  %948 = vmatpush1.bf16.msra.mxu0 %v254
  %949 = vmatprep.subr.bf16.mxu0 %v258
  %950 = vmatpush1.bf16.msra.mxu0 %v257
  %951 = vmatprep.subr.bf16.mxu0 %v261
  %952 = vmatpush1.bf16.msra.mxu0 %v260
  %953 = vmatprep.subr.bf16.mxu0 %v264
  %954 = vmatpush1.bf16.msra.mxu0 %v263
  %955 = vmatprep.subr.bf16.mxu0 %v267
  %956 = vmatpush1.bf16.msra.mxu0 %v266
  %957 = vmatprep.subr.bf16.mxu0 %v270
  %958 = vmatpush1.bf16.msra.mxu0 %v269
  %959 = vmatprep.subr.bf16.mxu0 %v273
  %960 = vmatpush1.bf16.msra.mxu0 %v272
  %961 = vmatprep.subr.bf16.mxu0 0
  %962 = vmatpush1.bf16.msra.mxu0 0
  %963 = vmatprep.subr.bf16.mxu0 0
  %964 = vmatpush1.bf16.msra.mxu0 0
  %965 = vmatprep.subr.bf16.mxu0 0
  %966 = vmatpush1.bf16.msra.mxu0 0
  %967 = vmatprep.subr.bf16.mxu0 0
  %968 = vmatpush1.bf16.msra.mxu0 0
  %969 = vmatprep.subr.bf16.mxu0 0
  %970 = vmatpush1.bf16.msra.mxu0 0
  %971 = vmatprep.subr.bf16.mxu0 0
  %972 = vmatpush1.bf16.msra.mxu0 0
  %973 = vmatprep.subr.bf16.mxu0 0
  %974 = vmatpush1.bf16.msra.mxu0 0
  %975 = vmatprep.subr.bf16.mxu0 0
  %976 = vmatpush1.bf16.msra.mxu0 0
  %977 = vmatprep.mubr.bf16.mxu0 0
  %978 = vmatmul.mubr.bf16.gmra.mrb[0].mxu0 %v837
  %v979 = vpop.f32.mrb[0].mxu0
  %v980 = vadd.f32 0.0, %v979
  %v981 = vpop.f32.mrb[0].mxu0
  %v982 = vadd.f32 0.0, %v981
  %v983 = vpop.f32.mrb[0].mxu0
  %v984 = vpop.f32.mrb[0].mxu0
  %985 = vdwg.mxu0
  %986 = vmatprep.subr.bf16.mxu0 0
  %987 = vmatpush1.bf16.msra.mxu0 %v253
  %988 = vmatprep.subr.bf16.mxu0 0
  %989 = vmatpush1.bf16.msra.mxu0 %v256
  %990 = vmatprep.subr.bf16.mxu0 0
  %991 = vmatpush1.bf16.msra.mxu0 %v259
  %992 = vmatprep.subr.bf16.mxu0 0
  %993 = vmatpush1.bf16.msra.mxu0 %v262
  %994 = vmatprep.subr.bf16.mxu0 0
  %995 = vmatpush1.bf16.msra.mxu0 %v265
  %996 = vmatprep.subr.bf16.mxu0 0
  %997 = vmatpush1.bf16.msra.mxu0 %v268
  %998 = vmatprep.subr.bf16.mxu0 0
  %999 = vmatpush1.bf16.msra.mxu0 %v271
  %1000 = vmatprep.subr.bf16.mxu0 0
  %1001 = vmatpush1.bf16.msra.mxu0 %v274
  %1002 = vmatprep.subr.bf16.mxu0 0
  %1003 = vmatpush1.bf16.msra.mxu0 0
  %1004 = vmatprep.subr.bf16.mxu0 0
  %1005 = vmatpush1.bf16.msra.mxu0 0
  %1006 = vmatprep.subr.bf16.mxu0 0
  %1007 = vmatpush1.bf16.msra.mxu0 0
  %1008 = vmatprep.subr.bf16.mxu0 0
  %1009 = vmatpush1.bf16.msra.mxu0 0
  %1010 = vmatprep.subr.bf16.mxu0 0
  %1011 = vmatpush1.bf16.msra.mxu0 0
  %1012 = vmatprep.subr.bf16.mxu0 0
  %1013 = vmatpush1.bf16.msra.mxu0 0
  %1014 = vmatprep.subr.bf16.mxu0 0
  %1015 = vmatpush1.bf16.msra.mxu0 0
  %1016 = vmatprep.subr.bf16.mxu0 0
  %1017 = vmatpush1.bf16.msra.mxu0 0
  %1018 = vmatprep.mubr.bf16.mxu0 0
  %1019 = vmatmul.mubr.bf16.gmra.mrb[0].mxu0 %v837
  %v1020 = vpop.f32.mrb[0].mxu0
  %v1021 = vadd.f32 0.0, %v1020
  %v1022 = vpop.f32.mrb[0].mxu0
  %v1023 = vpop.f32.mrb[0].mxu0
  %v1024 = vpop.f32.mrb[0].mxu0
  %1025 = vdwg.mxu0
  %v1026 = vadd.f32 %v942, %v980
  %v1027 = vxor.u32 %v1026, 2147483648
  %v1028 = vmul.f32 %v1027, 1.442695
  %v1029 = vpow.pop %v1028
  %v1030 = vadd.f32 %v1029, 1.0
  %v1031 = vrcp.pop %v1030
  %v1032 = vmul.f32 1.0, %v1031
  %v1033 = vadd.f32 %v943, %v982
  %v1034 = vxor.u32 %v1033, 2147483648
  %v1035 = vmul.f32 %v1034, 1.442695
  %v1036 = vpow.pop %v1035
  %v1037 = vadd.f32 %v1036, 1.0
  %v1038 = vrcp.pop %v1037
  %v1039 = vmul.f32 1.0, %v1038
  %v1040 = vadd.f32 %v1021, %v398
  %v1041 = vmul.f32 %v1032, %v1040
  %v1042 = vadd.f32 %v944, %v1041
  %v1043 = vtanh.pop %v1042
  %v1044 = vsub.f32 1.0, %v1039
  %v1045 = vmul.f32 %v1044, %v1043
  %v1046 = vmul.f32 %v1039, %v832
  %v1047 = vadd.f32 %v1045, %v1046
  %s1048 = scalar_lea.vmem %s4, 12
  %s1049 = sshll.u32 %s834, 4
  %1050 = dma.done %s623, %s1049
  %v1051 = vpack.c.bf16 %v1047, %v1047
  %1052 = vst [vmem:[%s620] sm:$0xf] %v1051
  %p1054 = scmp.lt.u32.totalorder 4, 8
  %p1055 = pneg %p1054
  // Predicated region
  $region289: #{seq2seq_forward.8} parent=0 // pred_check
    _
  $region290: #{seq2seq_forward.8} parent=0 // pred_check_branch
    %1057 = sbr.rel (%p1054) target = $region292
  $region291: #{seq2seq_forward.8} parent=0 // pred_region
    %s1072 = sand.u32 4, 7
    %p1073 = scmp.eq.s32.totalorder %s1072, 0
    %p1074 = pneg %p1073
    // Predicated region
    $region304: #{seq2seq_forward.8} parent=291 // pred_check
      _
    $region305: #{seq2seq_forward.8} parent=291 // pred_check_branch
      %1076 = sbr.rel (%p1073) target = $region307
    $region306: #{seq2seq_forward.8} parent=291 // pred_region
      %s1077 = sand.u32 4, 7
      %s1078 = ssub.s32 4, %s1077
      %s1079 = scalar_lea.vmem %s620, %s1078 [#allocation3]
      %s1080 = ssub.s32 4, %s1077
      %s1081 = scalar_lea.vmem %s1048, %s1080
      %s1082 = sshllo.u32 0, %s1077
      loop: start=0, step=1, limit=1
      $region308: #{seq2seq_forward.8} parent=306 // loop_pre_header
        _
      $region309: #{seq2seq_forward.8} parent=306 // loop_header
        %s1084 = sphi 0, %s1088
        %p1085 = scmp.ge.s32.totalorder %s1084, 1
        %s1089 = sphi %s1079, %s1079
        %s1090 = sphi %s1081, %s1081
      $region310: #{seq2seq_forward.8} parent=306 // loop_header_branch
        %1087 = sbr.rel (%p1085) target = $region314
      $region311: #{seq2seq_forward.8} parent=306 // loop_body
        %v1091 = vld [vmem:[%s1089] sm:%s1082]
        %1092 = vst [vmem:[%s1090] sm:%s1082] %v1091
      $region312: #{seq2seq_forward.8} parent=306 // loop_footer
        %s1088 = sadd.s32 1, %s1084
      $region313: #{seq2seq_forward.8} parent=306 // loop_footer_branch
        %1083 = sbr.rel target = $region309
      $region314: #{seq2seq_forward.8} parent=306 // loop_exit
        _
    $region307: #{seq2seq_forward.8} parent=291 // pred_fallthru
      _
  $region292: #{seq2seq_forward.8} parent=0 // pred_fallthru
    _
  // Predicated region
  $region293: #{seq2seq_forward.8} parent=0 // pred_check
    %p1058 = pneg %p1054
  $region294: #{seq2seq_forward.8} parent=0 // pred_check_branch
    %1060 = sbr.rel (%p1058) target = $region296
  $region295: #{seq2seq_forward.8} parent=0 // pred_region
    %s1061 = sshllo.u32 0, 4
    loop: start=0, step=1, limit=1
    $region297: #{seq2seq_forward.8} parent=295 // loop_pre_header
      _
    $region298: #{seq2seq_forward.8} parent=295 // loop_header
      %s1063 = sphi 0, %s1067
      %p1064 = scmp.ge.s32.totalorder %s1063, 1
      %s1068 = sphi %s620, %s620
      %s1069 = sphi %s1048, %s1048
    $region299: #{seq2seq_forward.8} parent=295 // loop_header_branch
      %1066 = sbr.rel (%p1064) target = $region303
    $region300: #{seq2seq_forward.8} parent=295 // loop_body
      %v1070 = vld [vmem:[%s1068] sm:%s1061]
      %1071 = vst [vmem:[%s1069] sm:%s1061] %v1070
    $region301: #{seq2seq_forward.8} parent=295 // loop_footer
      %s1067 = sadd.s32 1, %s1063
    $region302: #{seq2seq_forward.8} parent=295 // loop_footer_branch
      %1062 = sbr.rel target = $region298
    $region303: #{seq2seq_forward.8} parent=295 // loop_exit
      _
  $region296: #{seq2seq_forward.8} parent=0 // pred_fallthru
    _
  // Predicated region
  $region315: #{seq2seq_forward.8} parent=0 // pred_check
    _
  $region316: #{seq2seq_forward.8} parent=0 // pred_check_branch
    %1095 = sbr.rel (0) target = $region318
  $region317: #{seq2seq_forward.8} parent=0 // pred_region
    %1096 = vsyncadd %s623, 64
  $region318: #{seq2seq_forward.8} parent=0 // pred_fallthru
    _
  %s1097 = sshll.u32 %s105, 4
  %1098 = dma.done [#allocation4], %s1097
  %s1099 = scalar_lea.vmem %s0, 60
  %p1101 = scmp.lt.u32.totalorder 12, 8
  %p1102 = pneg %p1101
  // Predicated region
  $region319: #{seq2seq_forward.8} parent=0 // pred_check
    _
  $region320: #{seq2seq_forward.8} parent=0 // pred_check_branch
    %1104 = sbr.rel (%p1101) target = $region322
  $region321: #{seq2seq_forward.8} parent=0 // pred_region
    %s1119 = sand.u32 12, 7
    %p1120 = scmp.eq.s32.totalorder %s1119, 0
    %p1121 = pneg %p1120
    // Predicated region
    $region334: #{seq2seq_forward.8} parent=321 // pred_check
      _
    $region335: #{seq2seq_forward.8} parent=321 // pred_check_branch
      %1123 = sbr.rel (%p1120) target = $region337
    $region336: #{seq2seq_forward.8} parent=321 // pred_region
      %s1124 = sand.u32 12, 7
      %s1125 = ssub.s32 12, %s1124
      %s1126 = scalar_lea.vmem %s1099, %s1125
      %s1127 = ssub.s32 12, %s1124
      %s1128 = scalar_lea.vmem %s109, %s1127 [#allocation2]
      loop: start=0, step=1, limit=1
      $region338: #{seq2seq_forward.8} parent=336 // loop_pre_header
        _
      $region339: #{seq2seq_forward.8} parent=336 // loop_header
        %s1130 = sphi 0, %s1134
        %p1131 = scmp.ge.s32.totalorder %s1130, 1
        %s1135 = sphi %s1099, %s1099
        %s1136 = sphi %s109, %s109
      $region340: #{seq2seq_forward.8} parent=336 // loop_header_branch
        %1133 = sbr.rel (%p1131) target = $region344
      $region341: #{seq2seq_forward.8} parent=336 // loop_body
        %v1137 = vld [vmem:[%s1135] sm:$0xff]
        %1138 = vst [vmem:[%s1136] sm:$0xff] %v1137
      $region342: #{seq2seq_forward.8} parent=336 // loop_footer
        %s1134 = sadd.s32 1, %s1130
      $region343: #{seq2seq_forward.8} parent=336 // loop_footer_branch
        %1129 = sbr.rel target = $region339
      $region344: #{seq2seq_forward.8} parent=336 // loop_exit
        _
      %s1139 = sshllo.u32 0, %s1124
      loop: start=0, step=1, limit=1
      $region345: #{seq2seq_forward.8} parent=336 // loop_pre_header
        _
      $region346: #{seq2seq_forward.8} parent=336 // loop_header
        %s1141 = sphi 0, %s1145
        %p1142 = scmp.ge.s32.totalorder %s1141, 1
        %s1146 = sphi %s1126, %s1126
        %s1147 = sphi %s1128, %s1128
      $region347: #{seq2seq_forward.8} parent=336 // loop_header_branch
        %1144 = sbr.rel (%p1142) target = $region351
      $region348: #{seq2seq_forward.8} parent=336 // loop_body
        %v1148 = vld [vmem:[%s1146] sm:%s1139]
        %1149 = vst [vmem:[%s1147] sm:%s1139] %v1148
      $region349: #{seq2seq_forward.8} parent=336 // loop_footer
        %s1145 = sadd.s32 1, %s1141
      $region350: #{seq2seq_forward.8} parent=336 // loop_footer_branch
        %1140 = sbr.rel target = $region346
      $region351: #{seq2seq_forward.8} parent=336 // loop_exit
        _
    $region337: #{seq2seq_forward.8} parent=321 // pred_fallthru
      _
  $region322: #{seq2seq_forward.8} parent=0 // pred_fallthru
    _
  // Predicated region
  $region323: #{seq2seq_forward.8} parent=0 // pred_check
    %p1105 = pneg %p1101
  $region324: #{seq2seq_forward.8} parent=0 // pred_check_branch
    %1107 = sbr.rel (%p1105) target = $region326
  $region325: #{seq2seq_forward.8} parent=0 // pred_region
    %s1108 = sshllo.u32 0, 12
    loop: start=0, step=1, limit=1
    $region327: #{seq2seq_forward.8} parent=325 // loop_pre_header
      _
    $region328: #{seq2seq_forward.8} parent=325 // loop_header
      %s1110 = sphi 0, %s1114
      %p1111 = scmp.ge.s32.totalorder %s1110, 1
      %s1115 = sphi %s1099, %s1099
      %s1116 = sphi %s109, %s109
    $region329: #{seq2seq_forward.8} parent=325 // loop_header_branch
      %1113 = sbr.rel (%p1111) target = $region333
    $region330: #{seq2seq_forward.8} parent=325 // loop_body
      %v1117 = vld [vmem:[%s1115] sm:%s1108]
      %1118 = vst [vmem:[%s1116] sm:%s1108] %v1117
    $region331: #{seq2seq_forward.8} parent=325 // loop_footer
      %s1114 = sadd.s32 1, %s1110
    $region332: #{seq2seq_forward.8} parent=325 // loop_footer_branch
      %1109 = sbr.rel target = $region328
    $region333: #{seq2seq_forward.8} parent=325 // loop_exit
      _
  $region326: #{seq2seq_forward.8} parent=0 // pred_fallthru
    _
  // Predicated region
  $region352: #{seq2seq_forward.8} parent=0 // pred_check
    _
  $region353: #{seq2seq_forward.8} parent=0 // pred_check_branch
    %1152 = sbr.rel (0) target = $region355
  $region354: #{seq2seq_forward.8} parent=0 // pred_region
    %1153 = vsyncadd %s110, 192
  $region355: #{seq2seq_forward.8} parent=0 // pred_fallthru
    _
  %v1154 = vld [vmem:[#allocation2] sm:$0xff]
  %v1155 = vld [vmem:[#allocation2 + $0x8] sm:$0xf]
  %v1156 = vunpack.c.l.bf16 %v1154
  %v1157 = vunpack.c.h.bf16 %v1154
  %v1158 = vunpack.c.l.bf16 %v1155
  %1159 = vmatprep.subr.bf16.mxu0 %v252
  %1160 = vmatpush1.bf16.msra.mxu0 %v251
  %1161 = vmatprep.subr.bf16.mxu0 %v255
  %1162 = vmatpush1.bf16.msra.mxu0 %v254
  %1163 = vmatprep.subr.bf16.mxu0 %v258
  %1164 = vmatpush1.bf16.msra.mxu0 %v257
  %1165 = vmatprep.subr.bf16.mxu0 %v261
  %1166 = vmatpush1.bf16.msra.mxu0 %v260
  %1167 = vmatprep.subr.bf16.mxu0 %v264
  %1168 = vmatpush1.bf16.msra.mxu0 %v263
  %1169 = vmatprep.subr.bf16.mxu0 %v267
  %1170 = vmatpush1.bf16.msra.mxu0 %v266
  %1171 = vmatprep.subr.bf16.mxu0 %v270
  %1172 = vmatpush1.bf16.msra.mxu0 %v269
  %1173 = vmatprep.subr.bf16.mxu0 %v273
  %1174 = vmatpush1.bf16.msra.mxu0 %v272
  %1175 = vmatprep.subr.bf16.mxu0 0
  %1176 = vmatpush1.bf16.msra.mxu0 0
  %1177 = vmatprep.subr.bf16.mxu0 0
  %1178 = vmatpush1.bf16.msra.mxu0 0
  %1179 = vmatprep.subr.bf16.mxu0 0
  %1180 = vmatpush1.bf16.msra.mxu0 0
  %1181 = vmatprep.subr.bf16.mxu0 0
  %1182 = vmatpush1.bf16.msra.mxu0 0
  %1183 = vmatprep.subr.bf16.mxu0 0
  %1184 = vmatpush1.bf16.msra.mxu0 0
  %1185 = vmatprep.subr.bf16.mxu0 0
  %1186 = vmatpush1.bf16.msra.mxu0 0
  %1187 = vmatprep.subr.bf16.mxu0 0
  %1188 = vmatpush1.bf16.msra.mxu0 0
  %1189 = vmatprep.subr.bf16.mxu0 0
  %1190 = vmatpush1.bf16.msra.mxu0 0
  %1191 = vmatprep.mubr.bf16.mxu0 0
  %1192 = vmatmul.mubr.bf16.gmra.mrb[0].mxu0 %v1051
  %v1193 = vpop.f32.mrb[0].mxu0
  %v1194 = vadd.f32 0.0, %v1193
  %v1195 = vpop.f32.mrb[0].mxu0
  %v1196 = vadd.f32 0.0, %v1195
  %v1197 = vpop.f32.mrb[0].mxu0
  %v1198 = vpop.f32.mrb[0].mxu0
  %1199 = vdwg.mxu0
  %1200 = vmatprep.subr.bf16.mxu0 0
  %1201 = vmatpush1.bf16.msra.mxu0 %v253
  %1202 = vmatprep.subr.bf16.mxu0 0
  %1203 = vmatpush1.bf16.msra.mxu0 %v256
  %1204 = vmatprep.subr.bf16.mxu0 0
  %1205 = vmatpush1.bf16.msra.mxu0 %v259
  %1206 = vmatprep.subr.bf16.mxu0 0
  %1207 = vmatpush1.bf16.msra.mxu0 %v262
  %1208 = vmatprep.subr.bf16.mxu0 0
  %1209 = vmatpush1.bf16.msra.mxu0 %v265
  %1210 = vmatprep.subr.bf16.mxu0 0
  %1211 = vmatpush1.bf16.msra.mxu0 %v268
  %1212 = vmatprep.subr.bf16.mxu0 0
  %1213 = vmatpush1.bf16.msra.mxu0 %v271
  %1214 = vmatprep.subr.bf16.mxu0 0
  %1215 = vmatpush1.bf16.msra.mxu0 %v274
  %1216 = vmatprep.subr.bf16.mxu0 0
  %1217 = vmatpush1.bf16.msra.mxu0 0
  %1218 = vmatprep.subr.bf16.mxu0 0
  %1219 = vmatpush1.bf16.msra.mxu0 0
  %1220 = vmatprep.subr.bf16.mxu0 0
  %1221 = vmatpush1.bf16.msra.mxu0 0
  %1222 = vmatprep.subr.bf16.mxu0 0
  %1223 = vmatpush1.bf16.msra.mxu0 0
  %1224 = vmatprep.subr.bf16.mxu0 0
  %1225 = vmatpush1.bf16.msra.mxu0 0
  %1226 = vmatprep.subr.bf16.mxu0 0
  %1227 = vmatpush1.bf16.msra.mxu0 0
  %1228 = vmatprep.subr.bf16.mxu0 0
  %1229 = vmatpush1.bf16.msra.mxu0 0
  %1230 = vmatprep.subr.bf16.mxu0 0
  %1231 = vmatpush1.bf16.msra.mxu0 0
  %1232 = vmatprep.mubr.bf16.mxu0 0
  %1233 = vmatmul.mubr.bf16.gmra.mrb[0].mxu0 %v1051
  %v1234 = vpop.f32.mrb[0].mxu0
  %v1235 = vadd.f32 0.0, %v1234
  %v1236 = vpop.f32.mrb[0].mxu0
  %v1237 = vpop.f32.mrb[0].mxu0
  %v1238 = vpop.f32.mrb[0].mxu0
  %1239 = vdwg.mxu0
  %v1240 = vadd.f32 %v1156, %v1194
  %v1241 = vxor.u32 %v1240, 2147483648
  %v1242 = vmul.f32 %v1241, 1.442695
  %v1243 = vpow.pop %v1242
  %v1244 = vadd.f32 %v1243, 1.0
  %v1245 = vrcp.pop %v1244
  %v1246 = vmul.f32 1.0, %v1245
  %v1247 = vadd.f32 %v1157, %v1196
  %v1248 = vxor.u32 %v1247, 2147483648
  %v1249 = vmul.f32 %v1248, 1.442695
  %v1250 = vpow.pop %v1249
  %v1251 = vadd.f32 %v1250, 1.0
  %v1252 = vrcp.pop %v1251
  %v1253 = vmul.f32 1.0, %v1252
  %v1254 = vadd.f32 %v1235, %v398
  %v1255 = vmul.f32 %v1246, %v1254
  %v1256 = vadd.f32 %v1158, %v1255
  %v1257 = vtanh.pop %v1256
  %v1258 = vsub.f32 1.0, %v1253
  %v1259 = vmul.f32 %v1258, %v1257
  %v1260 = vmul.f32 %v1253, %v1047
  %v1261 = vadd.f32 %v1259, %v1260
  %s1262 = scalar_lea.vmem %s4, 16
  %s1263 = sshll.u32 %s834, 4
  %1264 = dma.done [#allocation5], %s1263
  %v1265 = vpack.c.bf16 %v1261, %v1261
  %1266 = vst [vmem:[#allocation3] sm:$0xf] %v1265
  %p1268 = scmp.lt.u32.totalorder 4, 8
  %p1269 = pneg %p1268
  // Predicated region
  $region356: #{seq2seq_forward.8} parent=0 // pred_check
    _
  $region357: #{seq2seq_forward.8} parent=0 // pred_check_branch
    %1271 = sbr.rel (%p1268) target = $region359
  $region358: #{seq2seq_forward.8} parent=0 // pred_region
    %s1286 = sand.u32 4, 7
    %p1287 = scmp.eq.s32.totalorder %s1286, 0
    %p1288 = pneg %p1287
    // Predicated region
    $region371: #{seq2seq_forward.8} parent=358 // pred_check
      _
    $region372: #{seq2seq_forward.8} parent=358 // pred_check_branch
      %1290 = sbr.rel (%p1287) target = $region374
    $region373: #{seq2seq_forward.8} parent=358 // pred_region
      %s1291 = sand.u32 4, 7
      %s1292 = ssub.s32 4, %s1291
      %s1293 = scalar_lea.vmem [#allocation3], %s1292
      %s1294 = ssub.s32 4, %s1291
      %s1295 = scalar_lea.vmem %s1262, %s1294
      %s1296 = sshllo.u32 0, %s1291
      loop: start=0, step=1, limit=1
      $region375: #{seq2seq_forward.8} parent=373 // loop_pre_header
        _
      $region376: #{seq2seq_forward.8} parent=373 // loop_header
        %s1298 = sphi 0, %s1302
        %p1299 = scmp.ge.s32.totalorder %s1298, 1
        %s1303 = sphi %s1293, %s1293
        %s1304 = sphi %s1295, %s1295
      $region377: #{seq2seq_forward.8} parent=373 // loop_header_branch
        %1301 = sbr.rel (%p1299) target = $region381
      $region378: #{seq2seq_forward.8} parent=373 // loop_body
        %v1305 = vld [vmem:[%s1303] sm:%s1296]
        %1306 = vst [vmem:[%s1304] sm:%s1296] %v1305
      $region379: #{seq2seq_forward.8} parent=373 // loop_footer
        %s1302 = sadd.s32 1, %s1298
      $region380: #{seq2seq_forward.8} parent=373 // loop_footer_branch
        %1297 = sbr.rel target = $region376
      $region381: #{seq2seq_forward.8} parent=373 // loop_exit
        _
    $region374: #{seq2seq_forward.8} parent=358 // pred_fallthru
      _
  $region359: #{seq2seq_forward.8} parent=0 // pred_fallthru
    _
  // Predicated region
  $region360: #{seq2seq_forward.8} parent=0 // pred_check
    %p1272 = pneg %p1268
  $region361: #{seq2seq_forward.8} parent=0 // pred_check_branch
    %1274 = sbr.rel (%p1272) target = $region363
  $region362: #{seq2seq_forward.8} parent=0 // pred_region
    %s1275 = sshllo.u32 0, 4
    loop: start=0, step=1, limit=1
    $region364: #{seq2seq_forward.8} parent=362 // loop_pre_header
      _
    $region365: #{seq2seq_forward.8} parent=362 // loop_header
      %s1277 = sphi 0, %s1281
      %p1278 = scmp.ge.s32.totalorder %s1277, 1
      %s1282 = sphi [#allocation3], [#allocation3]
      %s1283 = sphi %s1262, %s1262
    $region366: #{seq2seq_forward.8} parent=362 // loop_header_branch
      %1280 = sbr.rel (%p1278) target = $region370
    $region367: #{seq2seq_forward.8} parent=362 // loop_body
      %v1284 = vld [vmem:[%s1282] sm:%s1275]
      %1285 = vst [vmem:[%s1283] sm:%s1275] %v1284
    $region368: #{seq2seq_forward.8} parent=362 // loop_footer
      %s1281 = sadd.s32 1, %s1277
    $region369: #{seq2seq_forward.8} parent=362 // loop_footer_branch
      %1276 = sbr.rel target = $region365
    $region370: #{seq2seq_forward.8} parent=362 // loop_exit
      _
  $region363: #{seq2seq_forward.8} parent=0 // pred_fallthru
    _
  // Predicated region
  $region382: #{seq2seq_forward.8} parent=0 // pred_check
    _
  $region383: #{seq2seq_forward.8} parent=0 // pred_check_branch
    %1309 = sbr.rel (0) target = $region385
  $region384: #{seq2seq_forward.8} parent=0 // pred_region
    %1310 = vsyncadd [#allocation5], 64
  $region385: #{seq2seq_forward.8} parent=0 // pred_fallthru
    _
  %s1311 = sshll.u32 %s105, 4
  %1312 = dma.done %s110, %s1311
  %s1313 = scalar_lea.vmem %s0, 72
  %p1315 = scmp.lt.u32.totalorder 12, 8
  %p1316 = pneg %p1315
  // Predicated region
  $region386: #{seq2seq_forward.8} parent=0 // pred_check
    _
  $region387: #{seq2seq_forward.8} parent=0 // pred_check_branch
    %1318 = sbr.rel (%p1315) target = $region389
  $region388: #{seq2seq_forward.8} parent=0 // pred_region
    %s1333 = sand.u32 12, 7
    %p1334 = scmp.eq.s32.totalorder %s1333, 0
    %p1335 = pneg %p1334
    // Predicated region
    $region401: #{seq2seq_forward.8} parent=388 // pred_check
      _
    $region402: #{seq2seq_forward.8} parent=388 // pred_check_branch
      %1337 = sbr.rel (%p1334) target = $region404
    $region403: #{seq2seq_forward.8} parent=388 // pred_region
      %s1338 = sand.u32 12, 7
      %s1339 = ssub.s32 12, %s1338
      %s1340 = scalar_lea.vmem %s1313, %s1339
      %s1341 = ssub.s32 12, %s1338
      %s1342 = scalar_lea.vmem [#allocation2], %s1341
      loop: start=0, step=1, limit=1
      $region405: #{seq2seq_forward.8} parent=403 // loop_pre_header
        _
      $region406: #{seq2seq_forward.8} parent=403 // loop_header
        %s1344 = sphi 0, %s1348
        %p1345 = scmp.ge.s32.totalorder %s1344, 1
        %s1349 = sphi %s1313, %s1313
        %s1350 = sphi [#allocation2], [#allocation2]
      $region407: #{seq2seq_forward.8} parent=403 // loop_header_branch
        %1347 = sbr.rel (%p1345) target = $region411
      $region408: #{seq2seq_forward.8} parent=403 // loop_body
        %v1351 = vld [vmem:[%s1349] sm:$0xff]
        %1352 = vst [vmem:[%s1350] sm:$0xff] %v1351
      $region409: #{seq2seq_forward.8} parent=403 // loop_footer
        %s1348 = sadd.s32 1, %s1344
      $region410: #{seq2seq_forward.8} parent=403 // loop_footer_branch
        %1343 = sbr.rel target = $region406
      $region411: #{seq2seq_forward.8} parent=403 // loop_exit
        _
      %s1353 = sshllo.u32 0, %s1338
      loop: start=0, step=1, limit=1
      $region412: #{seq2seq_forward.8} parent=403 // loop_pre_header
        _
      $region413: #{seq2seq_forward.8} parent=403 // loop_header
        %s1355 = sphi 0, %s1359
        %p1356 = scmp.ge.s32.totalorder %s1355, 1
        %s1360 = sphi %s1340, %s1340
        %s1361 = sphi %s1342, %s1342
      $region414: #{seq2seq_forward.8} parent=403 // loop_header_branch
        %1358 = sbr.rel (%p1356) target = $region418
      $region415: #{seq2seq_forward.8} parent=403 // loop_body
        %v1362 = vld [vmem:[%s1360] sm:%s1353]
        %1363 = vst [vmem:[%s1361] sm:%s1353] %v1362
      $region416: #{seq2seq_forward.8} parent=403 // loop_footer
        %s1359 = sadd.s32 1, %s1355
      $region417: #{seq2seq_forward.8} parent=403 // loop_footer_branch
        %1354 = sbr.rel target = $region413
      $region418: #{seq2seq_forward.8} parent=403 // loop_exit
        _
    $region404: #{seq2seq_forward.8} parent=388 // pred_fallthru
      _
  $region389: #{seq2seq_forward.8} parent=0 // pred_fallthru
    _
  // Predicated region
  $region390: #{seq2seq_forward.8} parent=0 // pred_check
    %p1319 = pneg %p1315
  $region391: #{seq2seq_forward.8} parent=0 // pred_check_branch
    %1321 = sbr.rel (%p1319) target = $region393
  $region392: #{seq2seq_forward.8} parent=0 // pred_region
    %s1322 = sshllo.u32 0, 12
    loop: start=0, step=1, limit=1
    $region394: #{seq2seq_forward.8} parent=392 // loop_pre_header
      _
    $region395: #{seq2seq_forward.8} parent=392 // loop_header
      %s1324 = sphi 0, %s1328
      %p1325 = scmp.ge.s32.totalorder %s1324, 1
      %s1329 = sphi %s1313, %s1313
      %s1330 = sphi [#allocation2], [#allocation2]
    $region396: #{seq2seq_forward.8} parent=392 // loop_header_branch
      %1327 = sbr.rel (%p1325) target = $region400
    $region397: #{seq2seq_forward.8} parent=392 // loop_body
      %v1331 = vld [vmem:[%s1329] sm:%s1322]
      %1332 = vst [vmem:[%s1330] sm:%s1322] %v1331
    $region398: #{seq2seq_forward.8} parent=392 // loop_footer
      %s1328 = sadd.s32 1, %s1324
    $region399: #{seq2seq_forward.8} parent=392 // loop_footer_branch
      %1323 = sbr.rel target = $region395
    $region400: #{seq2seq_forward.8} parent=392 // loop_exit
      _
  $region393: #{seq2seq_forward.8} parent=0 // pred_fallthru
    _
  // Predicated region
  $region419: #{seq2seq_forward.8} parent=0 // pred_check
    _
  $region420: #{seq2seq_forward.8} parent=0 // pred_check_branch
    %1366 = sbr.rel (0) target = $region422
  $region421: #{seq2seq_forward.8} parent=0 // pred_region
    %1367 = vsyncadd [#allocation4], 192
  $region422: #{seq2seq_forward.8} parent=0 // pred_fallthru
    _
  %v1368 = vld [vmem:[%s109] sm:$0xff]
  %v1369 = vld [vmem:[%s109 + $0x8] sm:$0xf]
  %v1370 = vunpack.c.l.bf16 %v1368
  %v1371 = vunpack.c.h.bf16 %v1368
  %v1372 = vunpack.c.l.bf16 %v1369
  %1373 = vmatprep.subr.bf16.mxu0 %v252
  %1374 = vmatpush1.bf16.msra.mxu0 %v251
  %1375 = vmatprep.subr.bf16.mxu0 %v255
  %1376 = vmatpush1.bf16.msra.mxu0 %v254
  %1377 = vmatprep.subr.bf16.mxu0 %v258
  %1378 = vmatpush1.bf16.msra.mxu0 %v257
  %1379 = vmatprep.subr.bf16.mxu0 %v261
  %1380 = vmatpush1.bf16.msra.mxu0 %v260
  %1381 = vmatprep.subr.bf16.mxu0 %v264
  %1382 = vmatpush1.bf16.msra.mxu0 %v263
  %1383 = vmatprep.subr.bf16.mxu0 %v267
  %1384 = vmatpush1.bf16.msra.mxu0 %v266
  %1385 = vmatprep.subr.bf16.mxu0 %v270
  %1386 = vmatpush1.bf16.msra.mxu0 %v269
  %1387 = vmatprep.subr.bf16.mxu0 %v273
  %1388 = vmatpush1.bf16.msra.mxu0 %v272
  %1389 = vmatprep.subr.bf16.mxu0 0
  %1390 = vmatpush1.bf16.msra.mxu0 0
  %1391 = vmatprep.subr.bf16.mxu0 0
  %1392 = vmatpush1.bf16.msra.mxu0 0
  %1393 = vmatprep.subr.bf16.mxu0 0
  %1394 = vmatpush1.bf16.msra.mxu0 0
  %1395 = vmatprep.subr.bf16.mxu0 0
  %1396 = vmatpush1.bf16.msra.mxu0 0
  %1397 = vmatprep.subr.bf16.mxu0 0
  %1398 = vmatpush1.bf16.msra.mxu0 0
  %1399 = vmatprep.subr.bf16.mxu0 0
  %1400 = vmatpush1.bf16.msra.mxu0 0
  %1401 = vmatprep.subr.bf16.mxu0 0
  %1402 = vmatpush1.bf16.msra.mxu0 0
  %1403 = vmatprep.subr.bf16.mxu0 0
  %1404 = vmatpush1.bf16.msra.mxu0 0
  %1405 = vmatprep.mubr.bf16.mxu0 0
  %1406 = vmatmul.mubr.bf16.gmra.mrb[0].mxu0 %v1265
  %v1407 = vpop.f32.mrb[0].mxu0
  %v1408 = vadd.f32 0.0, %v1407
  %v1409 = vpop.f32.mrb[0].mxu0
  %v1410 = vadd.f32 0.0, %v1409
  %v1411 = vpop.f32.mrb[0].mxu0
  %v1412 = vpop.f32.mrb[0].mxu0
  %1413 = vdwg.mxu0
  %1414 = vmatprep.subr.bf16.mxu0 0
  %1415 = vmatpush1.bf16.msra.mxu0 %v253
  %1416 = vmatprep.subr.bf16.mxu0 0
  %1417 = vmatpush1.bf16.msra.mxu0 %v256
  %1418 = vmatprep.subr.bf16.mxu0 0
  %1419 = vmatpush1.bf16.msra.mxu0 %v259
  %1420 = vmatprep.subr.bf16.mxu0 0
  %1421 = vmatpush1.bf16.msra.mxu0 %v262
  %1422 = vmatprep.subr.bf16.mxu0 0
  %1423 = vmatpush1.bf16.msra.mxu0 %v265
  %1424 = vmatprep.subr.bf16.mxu0 0
  %1425 = vmatpush1.bf16.msra.mxu0 %v268
  %1426 = vmatprep.subr.bf16.mxu0 0
  %1427 = vmatpush1.bf16.msra.mxu0 %v271
  %1428 = vmatprep.subr.bf16.mxu0 0
  %1429 = vmatpush1.bf16.msra.mxu0 %v274
  %1430 = vmatprep.subr.bf16.mxu0 0
  %1431 = vmatpush1.bf16.msra.mxu0 0
  %1432 = vmatprep.subr.bf16.mxu0 0
  %1433 = vmatpush1.bf16.msra.mxu0 0
  %1434 = vmatprep.subr.bf16.mxu0 0
  %1435 = vmatpush1.bf16.msra.mxu0 0
  %1436 = vmatprep.subr.bf16.mxu0 0
  %1437 = vmatpush1.bf16.msra.mxu0 0
  %1438 = vmatprep.subr.bf16.mxu0 0
  %1439 = vmatpush1.bf16.msra.mxu0 0
  %1440 = vmatprep.subr.bf16.mxu0 0
  %1441 = vmatpush1.bf16.msra.mxu0 0
  %1442 = vmatprep.subr.bf16.mxu0 0
  %1443 = vmatpush1.bf16.msra.mxu0 0
  %1444 = vmatprep.subr.bf16.mxu0 0
  %1445 = vmatpush1.bf16.msra.mxu0 0
  %1446 = vmatprep.mubr.bf16.mxu0 0
  %1447 = vmatmul.mubr.bf16.gmra.mrb[0].mxu0 %v1265
  %v1448 = vpop.f32.mrb[0].mxu0
  %v1449 = vadd.f32 0.0, %v1448
  %v1450 = vpop.f32.mrb[0].mxu0
  %v1451 = vpop.f32.mrb[0].mxu0
  %v1452 = vpop.f32.mrb[0].mxu0
  %1453 = vdwg.mxu0
  %v1454 = vadd.f32 %v1370, %v1408
  %v1455 = vxor.u32 %v1454, 2147483648
  %v1456 = vmul.f32 %v1455, 1.442695
  %v1457 = vpow.pop %v1456
  %v1458 = vadd.f32 %v1457, 1.0
  %v1459 = vrcp.pop %v1458
  %v1460 = vmul.f32 1.0, %v1459
  %v1461 = vadd.f32 %v1371, %v1410
  %v1462 = vxor.u32 %v1461, 2147483648
  %v1463 = vmul.f32 %v1462, 1.442695
  %v1464 = vpow.pop %v1463
  %v1465 = vadd.f32 %v1464, 1.0
  %v1466 = vrcp.pop %v1465
  %v1467 = vmul.f32 1.0, %v1466
  %v1468 = vadd.f32 %v1449, %v398
  %v1469 = vmul.f32 %v1460, %v1468
  %v1470 = vadd.f32 %v1372, %v1469
  %v1471 = vtanh.pop %v1470
  %v1472 = vsub.f32 1.0, %v1467
  %v1473 = vmul.f32 %v1472, %v1471
  %v1474 = vmul.f32 %v1467, %v1261
  %v1475 = vadd.f32 %v1473, %v1474
  %s1476 = scalar_lea.vmem %s4, 20
  %s1477 = sshll.u32 %s834, 4
  %1478 = dma.done %s623, %s1477
  %v1479 = vpack.c.bf16 %v1475, %v1475
  %1480 = vst [vmem:[%s620] sm:$0xf] %v1479
  %p1482 = scmp.lt.u32.totalorder 4, 8
  %p1483 = pneg %p1482
  // Predicated region
  $region423: #{seq2seq_forward.8} parent=0 // pred_check
    _
  $region424: #{seq2seq_forward.8} parent=0 // pred_check_branch
    %1485 = sbr.rel (%p1482) target = $region426
  $region425: #{seq2seq_forward.8} parent=0 // pred_region
    %s1500 = sand.u32 4, 7
    %p1501 = scmp.eq.s32.totalorder %s1500, 0
    %p1502 = pneg %p1501
    // Predicated region
    $region438: #{seq2seq_forward.8} parent=425 // pred_check
      _
    $region439: #{seq2seq_forward.8} parent=425 // pred_check_branch
      %1504 = sbr.rel (%p1501) target = $region441
    $region440: #{seq2seq_forward.8} parent=425 // pred_region
      %s1505 = sand.u32 4, 7
      %s1506 = ssub.s32 4, %s1505
      %s1507 = scalar_lea.vmem %s620, %s1506 [#allocation3]
      %s1508 = ssub.s32 4, %s1505
      %s1509 = scalar_lea.vmem %s1476, %s1508
      %s1510 = sshllo.u32 0, %s1505
      loop: start=0, step=1, limit=1
      $region442: #{seq2seq_forward.8} parent=440 // loop_pre_header
        _
      $region443: #{seq2seq_forward.8} parent=440 // loop_header
        %s1512 = sphi 0, %s1516
        %p1513 = scmp.ge.s32.totalorder %s1512, 1
        %s1517 = sphi %s1507, %s1507
        %s1518 = sphi %s1509, %s1509
      $region444: #{seq2seq_forward.8} parent=440 // loop_header_branch
        %1515 = sbr.rel (%p1513) target = $region448
      $region445: #{seq2seq_forward.8} parent=440 // loop_body
        %v1519 = vld [vmem:[%s1517] sm:%s1510]
        %1520 = vst [vmem:[%s1518] sm:%s1510] %v1519
      $region446: #{seq2seq_forward.8} parent=440 // loop_footer
        %s1516 = sadd.s32 1, %s1512
      $region447: #{seq2seq_forward.8} parent=440 // loop_footer_branch
        %1511 = sbr.rel target = $region443
      $region448: #{seq2seq_forward.8} parent=440 // loop_exit
        _
    $region441: #{seq2seq_forward.8} parent=425 // pred_fallthru
      _
  $region426: #{seq2seq_forward.8} parent=0 // pred_fallthru
    _
  // Predicated region
  $region427: #{seq2seq_forward.8} parent=0 // pred_check
    %p1486 = pneg %p1482
  $region428: #{seq2seq_forward.8} parent=0 // pred_check_branch
    %1488 = sbr.rel (%p1486) target = $region430
  $region429: #{seq2seq_forward.8} parent=0 // pred_region
    %s1489 = sshllo.u32 0, 4
    loop: start=0, step=1, limit=1
    $region431: #{seq2seq_forward.8} parent=429 // loop_pre_header
      _
    $region432: #{seq2seq_forward.8} parent=429 // loop_header
      %s1491 = sphi 0, %s1495
      %p1492 = scmp.ge.s32.totalorder %s1491, 1
      %s1496 = sphi %s620, %s620
      %s1497 = sphi %s1476, %s1476
    $region433: #{seq2seq_forward.8} parent=429 // loop_header_branch
      %1494 = sbr.rel (%p1492) target = $region437
    $region434: #{seq2seq_forward.8} parent=429 // loop_body
      %v1498 = vld [vmem:[%s1496] sm:%s1489]
      %1499 = vst [vmem:[%s1497] sm:%s1489] %v1498
    $region435: #{seq2seq_forward.8} parent=429 // loop_footer
      %s1495 = sadd.s32 1, %s1491
    $region436: #{seq2seq_forward.8} parent=429 // loop_footer_branch
      %1490 = sbr.rel target = $region432
    $region437: #{seq2seq_forward.8} parent=429 // loop_exit
      _
  $region430: #{seq2seq_forward.8} parent=0 // pred_fallthru
    _
  // Predicated region
  $region449: #{seq2seq_forward.8} parent=0 // pred_check
    _
  $region450: #{seq2seq_forward.8} parent=0 // pred_check_branch
    %1523 = sbr.rel (0) target = $region452
  $region451: #{seq2seq_forward.8} parent=0 // pred_region
    %1524 = vsyncadd %s623, 64
  $region452: #{seq2seq_forward.8} parent=0 // pred_fallthru
    _
  %s1525 = sshll.u32 %s105, 4
  %1526 = dma.done [#allocation4], %s1525
  %s1527 = scalar_lea.vmem %s0, 84
  %p1529 = scmp.lt.u32.totalorder 12, 8
  %p1530 = pneg %p1529
  // Predicated region
  $region453: #{seq2seq_forward.8} parent=0 // pred_check
    _
  $region454: #{seq2seq_forward.8} parent=0 // pred_check_branch
    %1532 = sbr.rel (%p1529) target = $region456
  $region455: #{seq2seq_forward.8} parent=0 // pred_region
    %s1547 = sand.u32 12, 7
    %p1548 = scmp.eq.s32.totalorder %s1547, 0
    %p1549 = pneg %p1548
    // Predicated region
    $region468: #{seq2seq_forward.8} parent=455 // pred_check
      _
    $region469: #{seq2seq_forward.8} parent=455 // pred_check_branch
      %1551 = sbr.rel (%p1548) target = $region471
    $region470: #{seq2seq_forward.8} parent=455 // pred_region
      %s1552 = sand.u32 12, 7
      %s1553 = ssub.s32 12, %s1552
      %s1554 = scalar_lea.vmem %s1527, %s1553
      %s1555 = ssub.s32 12, %s1552
      %s1556 = scalar_lea.vmem %s109, %s1555 [#allocation2]
      loop: start=0, step=1, limit=1
      $region472: #{seq2seq_forward.8} parent=470 // loop_pre_header
        _
      $region473: #{seq2seq_forward.8} parent=470 // loop_header
        %s1558 = sphi 0, %s1562
        %p1559 = scmp.ge.s32.totalorder %s1558, 1
        %s1563 = sphi %s1527, %s1527
        %s1564 = sphi %s109, %s109
      $region474: #{seq2seq_forward.8} parent=470 // loop_header_branch
        %1561 = sbr.rel (%p1559) target = $region478
      $region475: #{seq2seq_forward.8} parent=470 // loop_body
        %v1565 = vld [vmem:[%s1563] sm:$0xff]
        %1566 = vst [vmem:[%s1564] sm:$0xff] %v1565
      $region476: #{seq2seq_forward.8} parent=470 // loop_footer
        %s1562 = sadd.s32 1, %s1558
      $region477: #{seq2seq_forward.8} parent=470 // loop_footer_branch
        %1557 = sbr.rel target = $region473
      $region478: #{seq2seq_forward.8} parent=470 // loop_exit
        _
      %s1567 = sshllo.u32 0, %s1552
      loop: start=0, step=1, limit=1
      $region479: #{seq2seq_forward.8} parent=470 // loop_pre_header
        _
      $region480: #{seq2seq_forward.8} parent=470 // loop_header
        %s1569 = sphi 0, %s1573
        %p1570 = scmp.ge.s32.totalorder %s1569, 1
        %s1574 = sphi %s1554, %s1554
        %s1575 = sphi %s1556, %s1556
      $region481: #{seq2seq_forward.8} parent=470 // loop_header_branch
        %1572 = sbr.rel (%p1570) target = $region485
      $region482: #{seq2seq_forward.8} parent=470 // loop_body
        %v1576 = vld [vmem:[%s1574] sm:%s1567]
        %1577 = vst [vmem:[%s1575] sm:%s1567] %v1576
      $region483: #{seq2seq_forward.8} parent=470 // loop_footer
        %s1573 = sadd.s32 1, %s1569
      $region484: #{seq2seq_forward.8} parent=470 // loop_footer_branch
        %1568 = sbr.rel target = $region480
      $region485: #{seq2seq_forward.8} parent=470 // loop_exit
        _
    $region471: #{seq2seq_forward.8} parent=455 // pred_fallthru
      _
  $region456: #{seq2seq_forward.8} parent=0 // pred_fallthru
    _
  // Predicated region
  $region457: #{seq2seq_forward.8} parent=0 // pred_check
    %p1533 = pneg %p1529
  $region458: #{seq2seq_forward.8} parent=0 // pred_check_branch
    %1535 = sbr.rel (%p1533) target = $region460
  $region459: #{seq2seq_forward.8} parent=0 // pred_region
    %s1536 = sshllo.u32 0, 12
    loop: start=0, step=1, limit=1
    $region461: #{seq2seq_forward.8} parent=459 // loop_pre_header
      _
    $region462: #{seq2seq_forward.8} parent=459 // loop_header
      %s1538 = sphi 0, %s1542
      %p1539 = scmp.ge.s32.totalorder %s1538, 1
      %s1543 = sphi %s1527, %s1527
      %s1544 = sphi %s109, %s109
    $region463: #{seq2seq_forward.8} parent=459 // loop_header_branch
      %1541 = sbr.rel (%p1539) target = $region467
    $region464: #{seq2seq_forward.8} parent=459 // loop_body
      %v1545 = vld [vmem:[%s1543] sm:%s1536]
      %1546 = vst [vmem:[%s1544] sm:%s1536] %v1545
    $region465: #{seq2seq_forward.8} parent=459 // loop_footer
      %s1542 = sadd.s32 1, %s1538
    $region466: #{seq2seq_forward.8} parent=459 // loop_footer_branch
      %1537 = sbr.rel target = $region462
    $region467: #{seq2seq_forward.8} parent=459 // loop_exit
      _
  $region460: #{seq2seq_forward.8} parent=0 // pred_fallthru
    _
  // Predicated region
  $region486: #{seq2seq_forward.8} parent=0 // pred_check
    _
  $region487: #{seq2seq_forward.8} parent=0 // pred_check_branch
    %1580 = sbr.rel (0) target = $region489
  $region488: #{seq2seq_forward.8} parent=0 // pred_region
    %1581 = vsyncadd %s110, 192
  $region489: #{seq2seq_forward.8} parent=0 // pred_fallthru
    _
  %v1582 = vld [vmem:[#allocation2] sm:$0xff]
  %v1583 = vld [vmem:[#allocation2 + $0x8] sm:$0xf]
  %v1584 = vunpack.c.l.bf16 %v1582
  %v1585 = vunpack.c.h.bf16 %v1582
  %v1586 = vunpack.c.l.bf16 %v1583
  %1587 = vmatprep.subr.bf16.mxu0 %v252
  %1588 = vmatpush1.bf16.msra.mxu0 %v251
  %1589 = vmatprep.subr.bf16.mxu0 %v255
  %1590 = vmatpush1.bf16.msra.mxu0 %v254
  %1591 = vmatprep.subr.bf16.mxu0 %v258
  %1592 = vmatpush1.bf16.msra.mxu0 %v257
  %1593 = vmatprep.subr.bf16.mxu0 %v261
  %1594 = vmatpush1.bf16.msra.mxu0 %v260
  %1595 = vmatprep.subr.bf16.mxu0 %v264
  %1596 = vmatpush1.bf16.msra.mxu0 %v263
  %1597 = vmatprep.subr.bf16.mxu0 %v267
  %1598 = vmatpush1.bf16.msra.mxu0 %v266
  %1599 = vmatprep.subr.bf16.mxu0 %v270
  %1600 = vmatpush1.bf16.msra.mxu0 %v269
  %1601 = vmatprep.subr.bf16.mxu0 %v273
  %1602 = vmatpush1.bf16.msra.mxu0 %v272
  %1603 = vmatprep.subr.bf16.mxu0 0
  %1604 = vmatpush1.bf16.msra.mxu0 0
  %1605 = vmatprep.subr.bf16.mxu0 0
  %1606 = vmatpush1.bf16.msra.mxu0 0
  %1607 = vmatprep.subr.bf16.mxu0 0
  %1608 = vmatpush1.bf16.msra.mxu0 0
  %1609 = vmatprep.subr.bf16.mxu0 0
  %1610 = vmatpush1.bf16.msra.mxu0 0
  %1611 = vmatprep.subr.bf16.mxu0 0
  %1612 = vmatpush1.bf16.msra.mxu0 0
  %1613 = vmatprep.subr.bf16.mxu0 0
  %1614 = vmatpush1.bf16.msra.mxu0 0
  %1615 = vmatprep.subr.bf16.mxu0 0
  %1616 = vmatpush1.bf16.msra.mxu0 0
  %1617 = vmatprep.subr.bf16.mxu0 0
  %1618 = vmatpush1.bf16.msra.mxu0 0
  %1619 = vmatprep.mubr.bf16.mxu0 0
  %1620 = vmatmul.mubr.bf16.gmra.mrb[0].mxu0 %v1479
  %v1621 = vpop.f32.mrb[0].mxu0
  %v1622 = vadd.f32 0.0, %v1621
  %v1623 = vpop.f32.mrb[0].mxu0
  %v1624 = vadd.f32 0.0, %v1623
  %v1625 = vpop.f32.mrb[0].mxu0
  %v1626 = vpop.f32.mrb[0].mxu0
  %1627 = vdwg.mxu0
  %1628 = vmatprep.subr.bf16.mxu0 0
  %1629 = vmatpush1.bf16.msra.mxu0 %v253
  %1630 = vmatprep.subr.bf16.mxu0 0
  %1631 = vmatpush1.bf16.msra.mxu0 %v256
  %1632 = vmatprep.subr.bf16.mxu0 0
  %1633 = vmatpush1.bf16.msra.mxu0 %v259
  %1634 = vmatprep.subr.bf16.mxu0 0
  %1635 = vmatpush1.bf16.msra.mxu0 %v262
  %1636 = vmatprep.subr.bf16.mxu0 0
  %1637 = vmatpush1.bf16.msra.mxu0 %v265
  %1638 = vmatprep.subr.bf16.mxu0 0
  %1639 = vmatpush1.bf16.msra.mxu0 %v268
  %1640 = vmatprep.subr.bf16.mxu0 0
  %1641 = vmatpush1.bf16.msra.mxu0 %v271
  %1642 = vmatprep.subr.bf16.mxu0 0
  %1643 = vmatpush1.bf16.msra.mxu0 %v274
  %1644 = vmatprep.subr.bf16.mxu0 0
  %1645 = vmatpush1.bf16.msra.mxu0 0
  %1646 = vmatprep.subr.bf16.mxu0 0
  %1647 = vmatpush1.bf16.msra.mxu0 0
  %1648 = vmatprep.subr.bf16.mxu0 0
  %1649 = vmatpush1.bf16.msra.mxu0 0
  %1650 = vmatprep.subr.bf16.mxu0 0
  %1651 = vmatpush1.bf16.msra.mxu0 0
  %1652 = vmatprep.subr.bf16.mxu0 0
  %1653 = vmatpush1.bf16.msra.mxu0 0
  %1654 = vmatprep.subr.bf16.mxu0 0
  %1655 = vmatpush1.bf16.msra.mxu0 0
  %1656 = vmatprep.subr.bf16.mxu0 0
  %1657 = vmatpush1.bf16.msra.mxu0 0
  %1658 = vmatprep.subr.bf16.mxu0 0
  %1659 = vmatpush1.bf16.msra.mxu0 0
  %1660 = vmatprep.mubr.bf16.mxu0 0
  %1661 = vmatmul.mubr.bf16.gmra.mrb[0].mxu0 %v1479
  %v1662 = vpop.f32.mrb[0].mxu0
  %v1663 = vadd.f32 0.0, %v1662
  %v1664 = vpop.f32.mrb[0].mxu0
  %v1665 = vpop.f32.mrb[0].mxu0
  %v1666 = vpop.f32.mrb[0].mxu0
  %1667 = vdwg.mxu0
  %v1668 = vadd.f32 %v1584, %v1622
  %v1669 = vxor.u32 %v1668, 2147483648
  %v1670 = vmul.f32 %v1669, 1.442695
  %v1671 = vpow.pop %v1670
  %v1672 = vadd.f32 %v1671, 1.0
  %v1673 = vrcp.pop %v1672
  %v1674 = vmul.f32 1.0, %v1673
  %v1675 = vadd.f32 %v1585, %v1624
  %v1676 = vxor.u32 %v1675, 2147483648
  %v1677 = vmul.f32 %v1676, 1.442695
  %v1678 = vpow.pop %v1677
  %v1679 = vadd.f32 %v1678, 1.0
  %v1680 = vrcp.pop %v1679
  %v1681 = vmul.f32 1.0, %v1680
  %v1682 = vadd.f32 %v1663, %v398
  %v1683 = vmul.f32 %v1674, %v1682
  %v1684 = vadd.f32 %v1586, %v1683
  %v1685 = vtanh.pop %v1684
  %v1686 = vsub.f32 1.0, %v1681
  %v1687 = vmul.f32 %v1686, %v1685
  %v1688 = vmul.f32 %v1681, %v1475
  %v1689 = vadd.f32 %v1687, %v1688
  %s1690 = scalar_lea.vmem %s4, 24
  %s1691 = sshll.u32 %s834, 4
  %1692 = dma.done [#allocation5], %s1691
  %v1693 = vpack.c.bf16 %v1689, %v1689
  %1694 = vst [vmem:[#allocation3] sm:$0xf] %v1693
  %p1696 = scmp.lt.u32.totalorder 4, 8
  %p1697 = pneg %p1696
  // Predicated region
  $region490: #{seq2seq_forward.8} parent=0 // pred_check
    _
  $region491: #{seq2seq_forward.8} parent=0 // pred_check_branch
    %1699 = sbr.rel (%p1696) target = $region493
  $region492: #{seq2seq_forward.8} parent=0 // pred_region
    %s1714 = sand.u32 4, 7
    %p1715 = scmp.eq.s32.totalorder %s1714, 0
    %p1716 = pneg %p1715
    // Predicated region
    $region505: #{seq2seq_forward.8} parent=492 // pred_check
      _
    $region506: #{seq2seq_forward.8} parent=492 // pred_check_branch
      %1718 = sbr.rel (%p1715) target = $region508
    $region507: #{seq2seq_forward.8} parent=492 // pred_region
      %s1719 = sand.u32 4, 7
      %s1720 = ssub.s32 4, %s1719
      %s1721 = scalar_lea.vmem [#allocation3], %s1720
      %s1722 = ssub.s32 4, %s1719
      %s1723 = scalar_lea.vmem %s1690, %s1722
      %s1724 = sshllo.u32 0, %s1719
      loop: start=0, step=1, limit=1
      $region509: #{seq2seq_forward.8} parent=507 // loop_pre_header
        _
      $region510: #{seq2seq_forward.8} parent=507 // loop_header
        %s1726 = sphi 0, %s1730
        %p1727 = scmp.ge.s32.totalorder %s1726, 1
        %s1731 = sphi %s1721, %s1721
        %s1732 = sphi %s1723, %s1723
      $region511: #{seq2seq_forward.8} parent=507 // loop_header_branch
        %1729 = sbr.rel (%p1727) target = $region515
      $region512: #{seq2seq_forward.8} parent=507 // loop_body
        %v1733 = vld [vmem:[%s1731] sm:%s1724]
        %1734 = vst [vmem:[%s1732] sm:%s1724] %v1733
      $region513: #{seq2seq_forward.8} parent=507 // loop_footer
        %s1730 = sadd.s32 1, %s1726
      $region514: #{seq2seq_forward.8} parent=507 // loop_footer_branch
        %1725 = sbr.rel target = $region510
      $region515: #{seq2seq_forward.8} parent=507 // loop_exit
        _
    $region508: #{seq2seq_forward.8} parent=492 // pred_fallthru
      _
  $region493: #{seq2seq_forward.8} parent=0 // pred_fallthru
    _
  // Predicated region
  $region494: #{seq2seq_forward.8} parent=0 // pred_check
    %p1700 = pneg %p1696
  $region495: #{seq2seq_forward.8} parent=0 // pred_check_branch
    %1702 = sbr.rel (%p1700) target = $region497
  $region496: #{seq2seq_forward.8} parent=0 // pred_region
    %s1703 = sshllo.u32 0, 4
    loop: start=0, step=1, limit=1
    $region498: #{seq2seq_forward.8} parent=496 // loop_pre_header
      _
    $region499: #{seq2seq_forward.8} parent=496 // loop_header
      %s1705 = sphi 0, %s1709
      %p1706 = scmp.ge.s32.totalorder %s1705, 1
      %s1710 = sphi [#allocation3], [#allocation3]
      %s1711 = sphi %s1690, %s1690
    $region500: #{seq2seq_forward.8} parent=496 // loop_header_branch
      %1708 = sbr.rel (%p1706) target = $region504
    $region501: #{seq2seq_forward.8} parent=496 // loop_body
      %v1712 = vld [vmem:[%s1710] sm:%s1703]
      %1713 = vst [vmem:[%s1711] sm:%s1703] %v1712
    $region502: #{seq2seq_forward.8} parent=496 // loop_footer
      %s1709 = sadd.s32 1, %s1705
    $region503: #{seq2seq_forward.8} parent=496 // loop_footer_branch
      %1704 = sbr.rel target = $region499
    $region504: #{seq2seq_forward.8} parent=496 // loop_exit
      _
  $region497: #{seq2seq_forward.8} parent=0 // pred_fallthru
    _
  // Predicated region
  $region516: #{seq2seq_forward.8} parent=0 // pred_check
    _
  $region517: #{seq2seq_forward.8} parent=0 // pred_check_branch
    %1737 = sbr.rel (0) target = $region519
  $region518: #{seq2seq_forward.8} parent=0 // pred_region
    %1738 = vsyncadd [#allocation5], 64
  $region519: #{seq2seq_forward.8} parent=0 // pred_fallthru
    _
  %s1739 = sshll.u32 %s105, 4
  %1740 = dma.done %s110, %s1739
  %v1741 = vld [vmem:[%s109] sm:$0xff]
  %v1742 = vld [vmem:[%s109 + $0x8] sm:$0xf]
  %v1743 = vunpack.c.l.bf16 %v1741
  %v1744 = vunpack.c.h.bf16 %v1741
  %v1745 = vunpack.c.l.bf16 %v1742
  %1746 = vmatprep.subr.bf16.mxu0 %v252
  %1747 = vmatpush1.bf16.msra.mxu0 %v251
  %1748 = vmatprep.subr.bf16.mxu0 %v255
  %1749 = vmatpush1.bf16.msra.mxu0 %v254
  %1750 = vmatprep.subr.bf16.mxu0 %v258
  %1751 = vmatpush1.bf16.msra.mxu0 %v257
  %1752 = vmatprep.subr.bf16.mxu0 %v261
  %1753 = vmatpush1.bf16.msra.mxu0 %v260
  %1754 = vmatprep.subr.bf16.mxu0 %v264
  %1755 = vmatpush1.bf16.msra.mxu0 %v263
  %1756 = vmatprep.subr.bf16.mxu0 %v267
  %1757 = vmatpush1.bf16.msra.mxu0 %v266
  %1758 = vmatprep.subr.bf16.mxu0 %v270
  %1759 = vmatpush1.bf16.msra.mxu0 %v269
  %1760 = vmatprep.subr.bf16.mxu0 %v273
  %1761 = vmatpush1.bf16.msra.mxu0 %v272
  %1762 = vmatprep.subr.bf16.mxu0 0
  %1763 = vmatpush1.bf16.msra.mxu0 0
  %1764 = vmatprep.subr.bf16.mxu0 0
  %1765 = vmatpush1.bf16.msra.mxu0 0
  %1766 = vmatprep.subr.bf16.mxu0 0
  %1767 = vmatpush1.bf16.msra.mxu0 0
  %1768 = vmatprep.subr.bf16.mxu0 0
  %1769 = vmatpush1.bf16.msra.mxu0 0
  %1770 = vmatprep.subr.bf16.mxu0 0
  %1771 = vmatpush1.bf16.msra.mxu0 0
  %1772 = vmatprep.subr.bf16.mxu0 0
  %1773 = vmatpush1.bf16.msra.mxu0 0
  %1774 = vmatprep.subr.bf16.mxu0 0
  %1775 = vmatpush1.bf16.msra.mxu0 0
  %1776 = vmatprep.subr.bf16.mxu0 0
  %1777 = vmatpush1.bf16.msra.mxu0 0
  %1778 = vmatprep.mubr.bf16.mxu0 0
  %1779 = vmatmul.mubr.bf16.gmra.mrb[0].mxu0 %v1693
  %v1780 = vpop.f32.mrb[0].mxu0
  %v1781 = vadd.f32 0.0, %v1780
  %v1782 = vpop.f32.mrb[0].mxu0
  %v1783 = vadd.f32 0.0, %v1782
  %v1784 = vpop.f32.mrb[0].mxu0
  %v1785 = vpop.f32.mrb[0].mxu0
  %1786 = vdwg.mxu0
  %1787 = vmatprep.subr.bf16.mxu0 0
  %1788 = vmatpush1.bf16.msra.mxu0 %v253
  %1789 = vmatprep.subr.bf16.mxu0 0
  %1790 = vmatpush1.bf16.msra.mxu0 %v256
  %1791 = vmatprep.subr.bf16.mxu0 0
  %1792 = vmatpush1.bf16.msra.mxu0 %v259
  %1793 = vmatprep.subr.bf16.mxu0 0
  %1794 = vmatpush1.bf16.msra.mxu0 %v262
  %1795 = vmatprep.subr.bf16.mxu0 0
  %1796 = vmatpush1.bf16.msra.mxu0 %v265
  %1797 = vmatprep.subr.bf16.mxu0 0
  %1798 = vmatpush1.bf16.msra.mxu0 %v268
  %1799 = vmatprep.subr.bf16.mxu0 0
  %1800 = vmatpush1.bf16.msra.mxu0 %v271
  %1801 = vmatprep.subr.bf16.mxu0 0
  %1802 = vmatpush1.bf16.msra.mxu0 %v274
  %1803 = vmatprep.subr.bf16.mxu0 0
  %1804 = vmatpush1.bf16.msra.mxu0 0
  %1805 = vmatprep.subr.bf16.mxu0 0
  %1806 = vmatpush1.bf16.msra.mxu0 0
  %1807 = vmatprep.subr.bf16.mxu0 0
  %1808 = vmatpush1.bf16.msra.mxu0 0
  %1809 = vmatprep.subr.bf16.mxu0 0
  %1810 = vmatpush1.bf16.msra.mxu0 0
  %1811 = vmatprep.subr.bf16.mxu0 0
  %1812 = vmatpush1.bf16.msra.mxu0 0
  %1813 = vmatprep.subr.bf16.mxu0 0
  %1814 = vmatpush1.bf16.msra.mxu0 0
  %1815 = vmatprep.subr.bf16.mxu0 0
  %1816 = vmatpush1.bf16.msra.mxu0 0
  %1817 = vmatprep.subr.bf16.mxu0 0
  %1818 = vmatpush1.bf16.msra.mxu0 0
  %1819 = vmatprep.mubr.bf16.mxu0 0
  %1820 = vmatmul.mubr.bf16.gmra.mrb[0].mxu0 %v1693
  %v1821 = vpop.f32.mrb[0].mxu0
  %v1822 = vadd.f32 0.0, %v1821
  %v1823 = vpop.f32.mrb[0].mxu0
  %v1824 = vpop.f32.mrb[0].mxu0
  %v1825 = vpop.f32.mrb[0].mxu0
  %1826 = vdwg.mxu0
  %v1827 = vadd.f32 %v1743, %v1781
  %v1828 = vxor.u32 %v1827, 2147483648
  %v1829 = vmul.f32 %v1828, 1.442695
  %v1830 = vpow.pop %v1829
  %v1831 = vadd.f32 %v1830, 1.0
  %v1832 = vrcp.pop %v1831
  %v1833 = vmul.f32 1.0, %v1832
  %v1834 = vadd.f32 %v1744, %v1783
  %v1835 = vxor.u32 %v1834, 2147483648
  %v1836 = vmul.f32 %v1835, 1.442695
  %v1837 = vpow.pop %v1836
  %v1838 = vadd.f32 %v1837, 1.0
  %v1839 = vrcp.pop %v1838
  %v1840 = vmul.f32 1.0, %v1839
  %v1841 = vadd.f32 %v1822, %v398
  %v1842 = vmul.f32 %v1833, %v1841
  %v1843 = vadd.f32 %v1745, %v1842
  %v1844 = vtanh.pop %v1843
  %v1845 = vsub.f32 1.0, %v1840
  %v1846 = vmul.f32 %v1845, %v1844
  %v1847 = vmul.f32 %v1840, %v1689
  %v1848 = vadd.f32 %v1846, %v1847
  %s1849 = scalar_lea.vmem %s4, 28
  %s1850 = sshll.u32 %s834, 4
  %1851 = dma.done %s623, %s1850
  %v1852 = vpack.c.bf16 %v1848, %v1848
  %1853 = vst [vmem:[%s620] sm:$0xf] %v1852
  %p1855 = scmp.lt.u32.totalorder 4, 8
  %p1856 = pneg %p1855
  // Predicated region
  $region520: #{seq2seq_forward.8} parent=0 // pred_check
    _
  $region521: #{seq2seq_forward.8} parent=0 // pred_check_branch
    %1858 = sbr.rel (%p1855) target = $region523
  $region522: #{seq2seq_forward.8} parent=0 // pred_region
    %s1873 = sand.u32 4, 7
    %p1874 = scmp.eq.s32.totalorder %s1873, 0
    %p1875 = pneg %p1874
    // Predicated region
    $region535: #{seq2seq_forward.8} parent=522 // pred_check
      _
    $region536: #{seq2seq_forward.8} parent=522 // pred_check_branch
      %1877 = sbr.rel (%p1874) target = $region538
    $region537: #{seq2seq_forward.8} parent=522 // pred_region
      %s1878 = sand.u32 4, 7
      %s1879 = ssub.s32 4, %s1878
      %s1880 = scalar_lea.vmem %s620, %s1879 [#allocation3]
      %s1881 = ssub.s32 4, %s1878
      %s1882 = scalar_lea.vmem %s1849, %s1881
      %s1883 = sshllo.u32 0, %s1878
      loop: start=0, step=1, limit=1
      $region539: #{seq2seq_forward.8} parent=537 // loop_pre_header
        _
      $region540: #{seq2seq_forward.8} parent=537 // loop_header
        %s1885 = sphi 0, %s1889
        %p1886 = scmp.ge.s32.totalorder %s1885, 1
        %s1890 = sphi %s1880, %s1880
        %s1891 = sphi %s1882, %s1882
      $region541: #{seq2seq_forward.8} parent=537 // loop_header_branch
        %1888 = sbr.rel (%p1886) target = $region545
      $region542: #{seq2seq_forward.8} parent=537 // loop_body
        %v1892 = vld [vmem:[%s1890] sm:%s1883]
        %1893 = vst [vmem:[%s1891] sm:%s1883] %v1892
      $region543: #{seq2seq_forward.8} parent=537 // loop_footer
        %s1889 = sadd.s32 1, %s1885
      $region544: #{seq2seq_forward.8} parent=537 // loop_footer_branch
        %1884 = sbr.rel target = $region540
      $region545: #{seq2seq_forward.8} parent=537 // loop_exit
        _
    $region538: #{seq2seq_forward.8} parent=522 // pred_fallthru
      _
  $region523: #{seq2seq_forward.8} parent=0 // pred_fallthru
    _
  // Predicated region
  $region524: #{seq2seq_forward.8} parent=0 // pred_check
    %p1859 = pneg %p1855
  $region525: #{seq2seq_forward.8} parent=0 // pred_check_branch
    %1861 = sbr.rel (%p1859) target = $region527
  $region526: #{seq2seq_forward.8} parent=0 // pred_region
    %s1862 = sshllo.u32 0, 4
    loop: start=0, step=1, limit=1
    $region528: #{seq2seq_forward.8} parent=526 // loop_pre_header
      _
    $region529: #{seq2seq_forward.8} parent=526 // loop_header
      %s1864 = sphi 0, %s1868
      %p1865 = scmp.ge.s32.totalorder %s1864, 1
      %s1869 = sphi %s620, %s620
      %s1870 = sphi %s1849, %s1849
    $region530: #{seq2seq_forward.8} parent=526 // loop_header_branch
      %1867 = sbr.rel (%p1865) target = $region534
    $region531: #{seq2seq_forward.8} parent=526 // loop_body
      %v1871 = vld [vmem:[%s1869] sm:%s1862]
      %1872 = vst [vmem:[%s1870] sm:%s1862] %v1871
    $region532: #{seq2seq_forward.8} parent=526 // loop_footer
      %s1868 = sadd.s32 1, %s1864
    $region533: #{seq2seq_forward.8} parent=526 // loop_footer_branch
      %1863 = sbr.rel target = $region529
    $region534: #{seq2seq_forward.8} parent=526 // loop_exit
      _
  $region527: #{seq2seq_forward.8} parent=0 // pred_fallthru
    _
  // Predicated region
  $region546: #{seq2seq_forward.8} parent=0 // pred_check
    _
  $region547: #{seq2seq_forward.8} parent=0 // pred_check_branch
    %1896 = sbr.rel (0) target = $region549
  $region548: #{seq2seq_forward.8} parent=0 // pred_region
    %1897 = vsyncadd %s623, 64
  $region549: #{seq2seq_forward.8} parent=0 // pred_fallthru
    _
  %s1898 = sshll.u32 %s834, 4
  %1899 = dma.done [#allocation5], %s1898
  %s1900 = sshll.u32 %s834, 4
  %1901 = dma.done %s623, %s1900
  %1902 = vsyncmov [#allocation4]
  %s1903 = vpop.sfrf %1902
  %p1904 = scmp.eq.s32.totalorder %s1903, 0
  %p1905 = pneg %p1904
  %1907 = shalt.err (%p1905)
  %s1908 = scalar_lea.sflag [#allocation4], 1
  %1909 = vsyncmov %s1908
  %s1910 = vpop.sfrf %1909
  %p1911 = scmp.eq.s32.totalorder %s1910, 0
  %p1912 = pneg %p1911
  %1914 = shalt.err (%p1912)
  %1915 = vsyncmov [#allocation5]
  %s1916 = vpop.sfrf %1915
  %p1917 = scmp.eq.s32.totalorder %s1916, 0
  %p1918 = pneg %p1917
  %1920 = shalt.err (%p1918)
  %s1921 = scalar_lea.sflag [#allocation5], 1
  %1922 = vsyncmov %s1921
  %s1923 = vpop.sfrf %1922
  %p1924 = scmp.eq.s32.totalorder %s1923, 0
  %p1925 = pneg %p1924
  %1927 = shalt.err (%p1925)

</llo_original>
